<compile_context>
chip_gen: v7x
topology: tpu7x:2x2x1
jax: 0.10.0
libtpu: 0.0.40
codegen_flags: <defaults>
</compile_context>

<pallas_src>
import jax
import jax.numpy as jnp
from jax.experimental import pallas as pl
from jax.experimental.pallas import tpu as pltpu


# ---------------------------------------------------------------------------
# Static model hyper-parameters (mirror EMGModel2.__init__)
# ---------------------------------------------------------------------------
ENC_IN = [8, 32, 32, 64, 128]
ENC_OUT = [32, 32, 64, 128, 256]
ENC_K = [5, 3, 3, 3, 3]
DEC_IN = [256, 128, 64, 32, 32]
DEC_OUT = [128, 64, 32, 32, 10]
DEC_K = [3, 3, 3, 3, 5]
DEC_OP = [0, 0, 1, 1, 1]
STRIDE = 2
VAR_IN = 128
VAR_DIM = 256
BN_EPS = 1e-5


# ---------------------------------------------------------------------------
# Pallas kernels
# ---------------------------------------------------------------------------
def _make_tap_conv_kernel(tap_lists, act):
    """Kernel computing, for every output ref p:
         out_p = act( sum_{(off, wi) in tap_lists[p]} x[off:off+Lp, :] @ w[wi]
                      + shift )
    tap_lists / act are static Python structure baked into the trace.
    x_ref: (Lpad, Kin), w_ref: (T, Kin, Cout), sh_ref: (1, Cout),
    o_refs[p]: (Lp, Cout).  All f32, MXU matmuls with f32 accumulation.
    """
    def kernel(x_ref, w_ref, sh_ref, *o_refs):
        sh = sh_ref[...]                                 # (1, Cout)
        for taps, o_ref in zip(tap_lists, o_refs):
            lp = o_ref.shape[0]
            acc = None
            for off, wi in taps:                         # static offsets / indices
                part = jnp.dot(x_ref[off:off + lp, :], w_ref[wi],
                               preferred_element_type=jnp.float32)
                acc = part if acc is None else acc + part
            y = acc + sh
            if act == "relu":
                y = jnp.maximum(y, 0.0)
            elif act == "brelu":                         # bounded ReLU clamp(x,0,1)
                y = jnp.minimum(jnp.maximum(y, 0.0), 1.0)
            o_ref[...] = y
    return kernel


def _tap_conv(x, w, shift, out_lens, tap_lists, act):
    """Batched tap-accumulation conv.  x: (B, Lpad, Kin), w: (T, Kin, Cout),
    shift: (1, Cout).  Returns a tuple of (B, Lp, Cout) arrays."""
    b, lpad, kin = x.shape
    t, _, cout = w.shape
    out_shape = tuple(jax.ShapeDtypeStruct((b, lp, cout), jnp.float32)
                      for lp in out_lens)
    out_specs = tuple(pl.BlockSpec((None, lp, cout), lambda i: (i, 0, 0))
                      for lp in out_lens)
    outs = pl.pallas_call(
        _make_tap_conv_kernel(tap_lists, act),
        out_shape=out_shape,
        grid=(b,),                                       # batch -> parallel grid axis
        in_specs=[
            pl.BlockSpec((None, lpad, kin), lambda i: (i, 0, 0)),
            pl.BlockSpec((t, kin, cout), lambda i: (0, 0, 0)),
            pl.BlockSpec((1, cout), lambda i: (0, 0)),
        ],
        out_specs=out_specs,
        compiler_params=pltpu.CompilerParams(
            dimension_semantics=("parallel",)),
    )(x, w, shift)
    if not isinstance(outs, (tuple, list)):
        outs = (outs,)
    return tuple(outs)


def _bottleneck_kernel(h_ref, wm_ref, bm_ref, wv_ref, bv_ref, eps_ref, z_ref):
    # Fused: mean linear + var linear + reparameterization.
    h = h_ref[...]                                       # (M, 2*VAR_IN)
    vi = wm_ref.shape[0]                                 # static = VAR_IN
    mean = jnp.dot(h[:, :vi], wm_ref[...],
                   preferred_element_type=jnp.float32) + bm_ref[...]
    log_var = jnp.dot(h[:, vi:], wv_ref[...],
                      preferred_element_type=jnp.float32) + bv_ref[...]
    z_ref[...] = mean + jnp.exp(0.5 * log_var) * eps_ref[...]


def variational_bottleneck(h, wm_t, bm, wv_t, bv, eps):
    m, c = h.shape
    k, n = wm_t.shape
    return pl.pallas_call(
        _bottleneck_kernel,
        out_shape=jax.ShapeDtypeStruct((m, n), jnp.float32),
        grid=(1,),
        in_specs=[
            pl.BlockSpec((m, c), lambda i: (0, 0)),
            pl.BlockSpec((k, n), lambda i: (0, 0)),
            pl.BlockSpec((1, n), lambda i: (0, 0)),
            pl.BlockSpec((k, n), lambda i: (0, 0)),
            pl.BlockSpec((1, n), lambda i: (0, 0)),
            pl.BlockSpec((m, n), lambda i: (0, 0)),
        ],
        out_specs=pl.BlockSpec((m, n), lambda i: (0, 0)),
    )(h, wm_t, bm, wv_t, bv, eps)


# ---------------------------------------------------------------------------
# Layer glue (channels-last, folded BN)
# ---------------------------------------------------------------------------
def encoder_block(x, w2, shift, k):
    """Conv1d(k, stride=2) + folded BN + ReLU.  x: (B, L, Cin) channels-last.
    w2: (ceil(k/2), 2*Cin, Cout) pair-merged taps."""
    b, l, cin = x.shape
    k2 = w2.shape[0]
    lout = (l - k) // STRIDE + 1
    if l % 2:                                            # make pair-reshape legal
        x = jnp.pad(x, ((0, 0), (0, 1), (0, 0)))
    l2 = x.shape[1] // 2
    x2 = x.reshape(b, l2, 2 * cin)                       # free reshape, no gather
    need = lout + k2 - 1
    if need > l2:                                        # safety (zeros never used
        x2 = jnp.pad(x2, ((0, 0), (0, need - l2), (0, 0)))   # with nonzero weights)
        l2 = need
    taps = tuple((j, j) for j in range(k2))
    (y,) = _tap_conv(x2, w2, shift, (lout,), (taps,), act="relu")
    return y


def decoder_block(x, wt, shift, out_pad, act):
    """ConvTranspose1d(k, stride=2, output_padding=out_pad) + folded BN + act,
    channels-last, polyphase (no zero-stuffed input).  wt: (k, Cin, Cout)."""
    b, l, cin = x.shape
    k, _, cout = wt.shape
    lout = (l - 1) * STRIDE + k + out_pad
    le = (lout + 1) // 2                                 # even output positions
    lo = lout // 2                                       # odd output positions
    n_even = (k + 1) // 2                                # taps 0,2,4,...
    n_odd = k // 2                                       # taps 1,3,...
    pad_l = max(n_even, n_odd) - 1
    pad_r = max(0, max(le, lo) - l)
    xp = jnp.pad(x, ((0, 0), (pad_l, pad_r), (0, 0)))
    taps_even = tuple((pad_l - j, 2 * j) for j in range(n_even))
    taps_odd = tuple((pad_l - j, 1 + 2 * j) for j in range(n_odd))
    even, odd = _tap_conv(xp, wt, shift, (le, lo),
                          (taps_even, taps_odd), act=act)
    if lo < le:
        odd = jnp.pad(odd, ((0, 0), (0, le - lo), (0, 0)))
    y = jnp.stack([even, odd], axis=2).reshape(b, 2 * le, cout)
    return y[:, :lout, :]


# ---------------------------------------------------------------------------
# Parameter init (PyTorch-like uniform) and one-time BN/bias folding
# ---------------------------------------------------------------------------
def _uniform(key, shape, fan_in):
    bound = 1.0 / float(fan_in) ** 0.5
    return jax.random.uniform(key, shape, jnp.float32, -bound, bound)


def init_params(key):
    params = {"encoder": [], "decoder": []}
    for cin, cout, k in zip(ENC_IN, ENC_OUT, ENC_K):
        key, kw, kb = jax.random.split(key, 3)
        fan_in = cin * k
        params["encoder"].append(dict(
            w=_uniform(kw, (cout, cin, k), fan_in),           # PyTorch (Cout,Cin,k)
            b=_uniform(kb, (cout,), fan_in),
            gamma=jnp.ones((cout,), jnp.float32),
            beta=jnp.zeros((cout,), jnp.float32),
            rm=jnp.zeros((cout,), jnp.float32),
            rv=jnp.ones((cout,), jnp.float32)))
    key, k1, k2, k3, k4 = jax.random.split(key, 5)
    params["mean_w"] = _uniform(k1, (VAR_DIM, VAR_IN), VAR_IN)  # PyTorch (out,in)
    params["mean_b"] = _uniform(k2, (VAR_DIM,), VAR_IN)
    params["var_w"] = _uniform(k3, (VAR_DIM, VAR_IN), VAR_IN)
    params["var_b"] = _uniform(k4, (VAR_DIM,), VAR_IN)
    for cin, cout, k in zip(DEC_IN, DEC_OUT, DEC_K):
        key, kw, kb = jax.random.split(key, 3)
        fan_in = cout * k
        params["decoder"].append(dict(
            w=_uniform(kw, (cin, cout, k), fan_in),            # PyTorch (Cin,Cout,k)
            b=_uniform(kb, (cout,), fan_in),
            gamma=jnp.ones((cout,), jnp.float32),
            beta=jnp.zeros((cout,), jnp.float32),
            rm=jnp.zeros((cout,), jnp.float32),
            rv=jnp.ones((cout,), jnp.float32)))
    return params


def fold_params(params):
    """Fold eval-mode BatchNorm + conv bias into weights / a per-channel shift,
    and pre-lay-out weights for the tap-accumulation kernels.  Done once."""
    fp = {"encoder": [], "decoder": []}
    for p, k in zip(params["encoder"], ENC_K):
        scale = p["gamma"] / jnp.sqrt(p["rv"] + BN_EPS)
        shift = p["b"] * scale + p["beta"] - p["rm"] * scale
        w = p["w"] * scale[:, None, None]                      # (Cout, Cin, k)
        cout, cin, _ = w.shape
        k2 = (k + 1) // 2
        w2 = jnp.zeros((k2, 2 * cin, cout), jnp.float32)       # pair-merged taps
        for j in range(k2):
            w2 = w2.at[j, :cin, :].set(w[:, :, 2 * j].T)
            if 2 * j + 1 < k:
                w2 = w2.at[j, cin:, :].set(w[:, :, 2 * j + 1].T)
        fp["encoder"].append({"w2": w2, "shift": shift.reshape(1, cout)})
    for p in params["decoder"]:
        scale = p["gamma"] / jnp.sqrt(p["rv"] + BN_EPS)
        shift = p["b"] * scale + p["beta"] - p["rm"] * scale
        w = p["w"] * scale[None, :, None]                      # (Cin, Cout, k)
        cin, cout, _ = w.shape
        fp["decoder"].append({"wt": jnp.transpose(w, (2, 0, 1)),   # (k, Cin, Cout)
                              "shift": shift.reshape(1, cout)})
    fp["mean_w_t"] = params["mean_w"].T                        # (VAR_IN, VAR_DIM)
    fp["mean_b"] = params["mean_b"].reshape(1, VAR_DIM)
    fp["var_w_t"] = params["var_w"].T
    fp["var_b"] = params["var_b"].reshape(1, VAR_DIM)
    return fp


# ---------------------------------------------------------------------------
# Forward pass (mirrors EMGModel2.forward, eval mode)
# ---------------------------------------------------------------------------
def emg_model2_forward(x_ncl, fparams, eps_key):
    x = jnp.transpose(x_ncl, (0, 2, 1))                  # NCL -> NLC, once
    for layer, k in zip(fparams["encoder"], ENC_K):      # Dropout = identity (eval)
        x = encoder_block(x, layer["w2"], layer["shift"], k)

    b, lh, c = x.shape                                   # (B, Lh, 256), channels-last
    h = x.reshape(b * lh, c)                             # same row order as PyTorch
    eps = jax.random.normal(eps_key, (b * lh, VAR_DIM), jnp.float32)
    # TODO(synk): eps could be drawn in-kernel (pltpu.prng_seed + stateful draws)
    # to skip this tiny HBM round-trip; kept external for exact N(0,1) semantics.
    z = variational_bottleneck(h, fparams["mean_w_t"], fparams["mean_b"],
                               fparams["var_w_t"], fparams["var_b"], eps)
    # TODO(synk): kld_loss (stored attribute in the PyTorch module) not returned.
    x = z.reshape(b, lh, VAR_DIM)                        # already channels-last

    n_dec = len(fparams["decoder"])
    for i, (layer, op) in enumerate(zip(fparams["decoder"], DEC_OP)):
        act = "relu" if i == n_dec - 1 else "brelu"
        x = decoder_block(x, layer["wt"], layer["shift"], op, act)
    return jnp.transpose(x, (0, 2, 1))                   # NLC -> NCL


if __name__ == "__main__":
    key = jax.random.PRNGKey(0)
    key, pkey, xkey, ekey = jax.random.split(key, 4)

    params = init_params(pkey)
    fparams = fold_params(params)                        # one-time BN/bias fold

    # Input: (batch=2, channels=8, length=127) -> bottleneck length 2
    x = jax.random.normal(xkey, (2, 8, 127), jnp.float32)

    fwd = jax.jit(emg_model2_forward)
    out = jax.block_until_ready(fwd(x, fparams, ekey))

    assert out.shape == (2, 10, 104), out.shape
    assert bool(jnp.all(jnp.isfinite(out)))
    print("KERNEL_OK")
</pallas_src>

<mosaic_0001>
module attributes {stable_mosaic.version = 11 : i64} {
  func.func @kernel(%arg0: i32, %arg1: memref<1x64x16xf32, #tpu.memory_space<vmem>>, %arg2: memref<3x16x32xf32, #tpu.memory_space<vmem>>, %arg3: memref<1x32xf32, #tpu.memory_space<vmem>>, %arg4: memref<1x62x32xf32, #tpu.memory_space<vmem>>) attributes {dimension_semantics = [#tpu.dimension_semantics<parallel>], iteration_bounds = array<i64: 2>, scalar_prefetch = 0 : i64, scratch_operands = 0 : i64, tpu.core_type = #tpu.core_type<tc>, window_params = [{transform_indices = @transform_0, window_bounds = array<i64: 1, 64, 16>}, {pipeline_mode = #tpu.pipeline_mode<synchronous>, transform_indices = @transform_1, window_bounds = array<i64: 3, 16, 32>}, {pipeline_mode = #tpu.pipeline_mode<synchronous>, transform_indices = @transform_2, window_bounds = array<i64: 1, 32>}, {transform_indices = @transform_3, window_bounds = array<i64: 1, 62, 32>}]} {
    %c0 = arith.constant 0 : index
    %c0_0 = arith.constant 0 : index
    %0 = vector.load %arg3[%c0, %c0_0] : memref<1x32xf32, #tpu.memory_space<vmem>>, vector<1x32xf32>
    %c0_1 = arith.constant 0 : index
    %c0_2 = arith.constant 0 : index
    %c0_3 = arith.constant 0 : index
    %1 = vector.load %arg1[%c0_1, %c0_2, %c0_3] : memref<1x64x16xf32, #tpu.memory_space<vmem>>, vector<1x62x16xf32>
    %2 = vector.shape_cast %1 : vector<1x62x16xf32> to vector<62x16xf32>
    %c0_4 = arith.constant 0 : index
    %c0_5 = arith.constant 0 : index
    %c0_6 = arith.constant 0 : index
    %3 = vector.load %arg2[%c0_4, %c0_5, %c0_6] : memref<3x16x32xf32, #tpu.memory_space<vmem>>, vector<1x16x32xf32>
    %4 = vector.shape_cast %3 : vector<1x16x32xf32> to vector<16x32xf32>
    %cst = arith.constant dense<0.000000e+00> : vector<62x32xf32>
    %5 = tpu.matmul %2, %4, %cst {dimension_numbers = #tpu.dot_dimension_numbers<[1], [0], [0], [1], [0, 0, 1, 1], [], []>} : vector<62x16xf32>, vector<16x32xf32>, vector<62x32xf32> -> vector<62x32xf32>
    %c0_7 = arith.constant 0 : index
    %c1 = arith.constant 1 : index
    %c0_8 = arith.constant 0 : index
    %6 = vector.load %arg1[%c0_7, %c1, %c0_8] : memref<1x64x16xf32, #tpu.memory_space<vmem>>, vector<1x62x16xf32>
    %7 = vector.shape_cast %6 : vector<1x62x16xf32> to vector<62x16xf32>
    %c1_9 = arith.constant 1 : index
    %c0_10 = arith.constant 0 : index
    %c0_11 = arith.constant 0 : index
    %8 = vector.load %arg2[%c1_9, %c0_10, %c0_11] : memref<3x16x32xf32, #tpu.memory_space<vmem>>, vector<1x16x32xf32>
    %9 = vector.shape_cast %8 : vector<1x16x32xf32> to vector<16x32xf32>
    %cst_12 = arith.constant dense<0.000000e+00> : vector<62x32xf32>
    %10 = tpu.matmul %7, %9, %cst_12 {dimension_numbers = #tpu.dot_dimension_numbers<[1], [0], [0], [1], [0, 0, 1, 1], [], []>} : vector<62x16xf32>, vector<16x32xf32>, vector<62x32xf32> -> vector<62x32xf32>
    %11 = arith.addf %5, %10 : vector<62x32xf32>
    %c0_13 = arith.constant 0 : index
    %c2 = arith.constant 2 : index
    %c0_14 = arith.constant 0 : index
    %12 = vector.load %arg1[%c0_13, %c2, %c0_14] : memref<1x64x16xf32, #tpu.memory_space<vmem>>, vector<1x62x16xf32>
    %13 = vector.shape_cast %12 : vector<1x62x16xf32> to vector<62x16xf32>
    %c2_15 = arith.constant 2 : index
    %c0_16 = arith.constant 0 : index
    %c0_17 = arith.constant 0 : index
    %14 = vector.load %arg2[%c2_15, %c0_16, %c0_17] : memref<3x16x32xf32, #tpu.memory_space<vmem>>, vector<1x16x32xf32>
    %15 = vector.shape_cast %14 : vector<1x16x32xf32> to vector<16x32xf32>
    %cst_18 = arith.constant dense<0.000000e+00> : vector<62x32xf32>
    %16 = tpu.matmul %13, %15, %cst_18 {dimension_numbers = #tpu.dot_dimension_numbers<[1], [0], [0], [1], [0, 0, 1, 1], [], []>} : vector<62x16xf32>, vector<16x32xf32>, vector<62x32xf32> -> vector<62x32xf32>
    %17 = arith.addf %11, %16 : vector<62x32xf32>
    %18 = vector.broadcast %0 : vector<1x32xf32> to vector<62x32xf32>
    %19 = arith.addf %17, %18 : vector<62x32xf32>
    %cst_19 = arith.constant 0.000000e+00 : f32
    %20 = vector.broadcast %cst_19 : f32 to vector<62x32xf32>
    %21 = arith.maximumf %19, %20 : vector<62x32xf32>
    %c0_20 = arith.constant 0 : index
    %c0_21 = arith.constant 0 : index
    %c0_22 = arith.constant 0 : index
    %22 = vector.load %arg4[%c0_20, %c0_21, %c0_22] : memref<1x62x32xf32, #tpu.memory_space<vmem>>, vector<1x62x32xf32>
    %23 = vector.shape_cast %22 : vector<1x62x32xf32> to vector<62x32xf32>
    %24 = vector.shape_cast %21 : vector<62x32xf32> to vector<1x62x32xf32>
    tpu.vector_store %arg4[%c0_20, %c0_21, %c0_22], %24 {strides = array<i32>} : memref<1x62x32xf32, #tpu.memory_space<vmem>>, vector<1x62x32xf32>,
    return
  }
  func.func @transform_0(%arg0: i32) -> (i32, i32, i32) {
    %c0_i32 = arith.constant 0 : i32
    %c0_i32_0 = arith.constant 0 : i32
    %c0_i32_1 = arith.constant 0 : i32
    return %arg0, %c0_i32, %c0_i32_0 : i32, i32, i32
  }
  func.func @transform_1(%arg0: i32) -> (i32, i32, i32) {
    %c0_i32 = arith.constant 0 : i32
    %c0_i32_0 = arith.constant 0 : i32
    %c0_i32_1 = arith.constant 0 : i32
    %c0_i32_2 = arith.constant 0 : i32
    return %c0_i32, %c0_i32_0, %c0_i32_1 : i32, i32, i32
  }
  func.func @transform_2(%arg0: i32) -> (i32, i32) {
    %c0_i32 = arith.constant 0 : i32
    %c0_i32_0 = arith.constant 0 : i32
    %c0_i32_1 = arith.constant 0 : i32
    return %c0_i32, %c0_i32_0 : i32, i32
  }
  func.func @transform_3(%arg0: i32) -> (i32, i32, i32) {
    %c0_i32 = arith.constant 0 : i32
    %c0_i32_0 = arith.constant 0 : i32
    %c0_i32_1 = arith.constant 0 : i32
    return %arg0, %c0_i32, %c0_i32_0 : i32, i32, i32
  }
}

module attributes {stable_mosaic.version = 11 : i64} {
  func.func @kernel(%arg0: i32, %arg1: memref<1x7x128xf32, #tpu.memory_space<vmem>>, %arg2: memref<2x128x128xf32, #tpu.memory_space<vmem>>, %arg3: memref<1x128xf32, #tpu.memory_space<vmem>>, %arg4: memref<1x6x128xf32, #tpu.memory_space<vmem>>) attributes {dimension_semantics = [#tpu.dimension_semantics<parallel>], iteration_bounds = array<i64: 2>, scalar_prefetch = 0 : i64, scratch_operands = 0 : i64, tpu.core_type = #tpu.core_type<tc>, window_params = [{transform_indices = @transform_0, window_bounds = array<i64: 1, 7, 128>}, {pipeline_mode = #tpu.pipeline_mode<synchronous>, transform_indices = @transform_1, window_bounds = array<i64: 2, 128, 128>}, {pipeline_mode = #tpu.pipeline_mode<synchronous>, transform_indices = @transform_2, window_bounds = array<i64: 1, 128>}, {transform_indices = @transform_3, window_bounds = array<i64: 1, 6, 128>}]} {
    %c0 = arith.constant 0 : index
    %c0_0 = arith.constant 0 : index
    %0 = vector.load %arg3[%c0, %c0_0] : memref<1x128xf32, #tpu.memory_space<vmem>>, vector<1x128xf32>
    %c0_1 = arith.constant 0 : index
    %c0_2 = arith.constant 0 : index
    %c0_3 = arith.constant 0 : index
    %1 = vector.load %arg1[%c0_1, %c0_2, %c0_3] : memref<1x7x128xf32, #tpu.memory_space<vmem>>, vector<1x6x128xf32>
    %2 = vector.shape_cast %1 : vector<1x6x128xf32> to vector<6x128xf32>
    %c0_4 = arith.constant 0 : index
    %c0_5 = arith.constant 0 : index
    %c0_6 = arith.constant 0 : index
    %3 = vector.load %arg2[%c0_4, %c0_5, %c0_6] : memref<2x128x128xf32, #tpu.memory_space<vmem>>, vector<1x128x128xf32>
    %4 = vector.shape_cast %3 : vector<1x128x128xf32> to vector<128x128xf32>
    %cst = arith.constant dense<0.000000e+00> : vector<6x128xf32>
    %5 = tpu.matmul %2, %4, %cst {dimension_numbers = #tpu.dot_dimension_numbers<[1], [0], [0], [1], [0, 0, 1, 1], [], []>} : vector<6x128xf32>, vector<128x128xf32>, vector<6x128xf32> -> vector<6x128xf32>
    %c0_7 = arith.constant 0 : index
    %c1 = arith.constant 1 : index
    %c0_8 = arith.constant 0 : index
    %6 = vector.load %arg1[%c0_7, %c1, %c0_8] : memref<1x7x128xf32, #tpu.memory_space<vmem>>, vector<1x6x128xf32>
    %7 = vector.shape_cast %6 : vector<1x6x128xf32> to vector<6x128xf32>
    %c1_9 = arith.constant 1 : index
    %c0_10 = arith.constant 0 : index
    %c0_11 = arith.constant 0 : index
    %8 = vector.load %arg2[%c1_9, %c0_10, %c0_11] : memref<2x128x128xf32, #tpu.memory_space<vmem>>, vector<1x128x128xf32>
    %9 = vector.shape_cast %8 : vector<1x128x128xf32> to vector<128x128xf32>
    %cst_12 = arith.constant dense<0.000000e+00> : vector<6x128xf32>
    %10 = tpu.matmul %7, %9, %cst_12 {dimension_numbers = #tpu.dot_dimension_numbers<[1], [0], [0], [1], [0, 0, 1, 1], [], []>} : vector<6x128xf32>, vector<128x128xf32>, vector<6x128xf32> -> vector<6x128xf32>
    %11 = arith.addf %5, %10 : vector<6x128xf32>
    %12 = vector.broadcast %0 : vector<1x128xf32> to vector<6x128xf32>
    %13 = arith.addf %11, %12 : vector<6x128xf32>
    %cst_13 = arith.constant 0.000000e+00 : f32
    %14 = vector.broadcast %cst_13 : f32 to vector<6x128xf32>
    %15 = arith.maximumf %13, %14 : vector<6x128xf32>
    %c0_14 = arith.constant 0 : index
    %c0_15 = arith.constant 0 : index
    %c0_16 = arith.constant 0 : index
    %16 = vector.load %arg4[%c0_14, %c0_15, %c0_16] : memref<1x6x128xf32, #tpu.memory_space<vmem>>, vector<1x6x128xf32>
    %17 = vector.shape_cast %16 : vector<1x6x128xf32> to vector<6x128xf32>
    %18 = vector.shape_cast %15 : vector<6x128xf32> to vector<1x6x128xf32>
    tpu.vector_store %arg4[%c0_14, %c0_15, %c0_16], %18 {strides = array<i32>} : memref<1x6x128xf32, #tpu.memory_space<vmem>>, vector<1x6x128xf32>,
    return
  }
  func.func @transform_0(%arg0: i32) -> (i32, i32, i32) {
    %c0_i32 = arith.constant 0 : i32
    %c0_i32_0 = arith.constant 0 : i32
    %c0_i32_1 = arith.constant 0 : i32
    return %arg0, %c0_i32, %c0_i32_0 : i32, i32, i32
  }
  func.func @transform_1(%arg0: i32) -> (i32, i32, i32) {
    %c0_i32 = arith.constant 0 : i32
    %c0_i32_0 = arith.constant 0 : i32
    %c0_i32_1 = arith.constant 0 : i32
    %c0_i32_2 = arith.constant 0 : i32
    return %c0_i32, %c0_i32_0, %c0_i32_1 : i32, i32, i32
  }
  func.func @transform_2(%arg0: i32) -> (i32, i32) {
    %c0_i32 = arith.constant 0 : i32
    %c0_i32_0 = arith.constant 0 : i32
    %c0_i32_1 = arith.constant 0 : i32
    return %c0_i32, %c0_i32_0 : i32, i32
  }
  func.func @transform_3(%arg0: i32) -> (i32, i32, i32) {
    %c0_i32 = arith.constant 0 : i32
    %c0_i32_0 = arith.constant 0 : i32
    %c0_i32_1 = arith.constant 0 : i32
    return %arg0, %c0_i32, %c0_i32_0 : i32, i32, i32
  }
}

module attributes {stable_mosaic.version = 11 : i64} {
  func.func @kernel(%arg0: i32, %arg1: memref<1x31x64xf32, #tpu.memory_space<vmem>>, %arg2: memref<2x64x32xf32, #tpu.memory_space<vmem>>, %arg3: memref<1x32xf32, #tpu.memory_space<vmem>>, %arg4: memref<1x30x32xf32, #tpu.memory_space<vmem>>) attributes {dimension_semantics = [#tpu.dimension_semantics<parallel>], iteration_bounds = array<i64: 2>, scalar_prefetch = 0 : i64, scratch_operands = 0 : i64, tpu.core_type = #tpu.core_type<tc>, window_params = [{transform_indices = @transform_0, window_bounds = array<i64: 1, 31, 64>}, {pipeline_mode = #tpu.pipeline_mode<synchronous>, transform_indices = @transform_1, window_bounds = array<i64: 2, 64, 32>}, {pipeline_mode = #tpu.pipeline_mode<synchronous>, transform_indices = @transform_2, window_bounds = array<i64: 1, 32>}, {transform_indices = @transform_3, window_bounds = array<i64: 1, 30, 32>}]} {
    %c0 = arith.constant 0 : index
    %c0_0 = arith.constant 0 : index
    %0 = vector.load %arg3[%c0, %c0_0] : memref<1x32xf32, #tpu.memory_space<vmem>>, vector<1x32xf32>
    %c0_1 = arith.constant 0 : index
    %c0_2 = arith.constant 0 : index
    %c0_3 = arith.constant 0 : index
    %1 = vector.load %arg1[%c0_1, %c0_2, %c0_3] : memref<1x31x64xf32, #tpu.memory_space<vmem>>, vector<1x30x64xf32>
    %2 = vector.shape_cast %1 : vector<1x30x64xf32> to vector<30x64xf32>
    %c0_4 = arith.constant 0 : index
    %c0_5 = arith.constant 0 : index
    %c0_6 = arith.constant 0 : index
    %3 = vector.load %arg2[%c0_4, %c0_5, %c0_6] : memref<2x64x32xf32, #tpu.memory_space<vmem>>, vector<1x64x32xf32>
    %4 = vector.shape_cast %3 : vector<1x64x32xf32> to vector<64x32xf32>
    %cst = arith.constant dense<0.000000e+00> : vector<30x32xf32>
    %5 = tpu.matmul %2, %4, %cst {dimension_numbers = #tpu.dot_dimension_numbers<[1], [0], [0], [1], [0, 0, 1, 1], [], []>} : vector<30x64xf32>, vector<64x32xf32>, vector<30x32xf32> -> vector<30x32xf32>
    %c0_7 = arith.constant 0 : index
    %c1 = arith.constant 1 : index
    %c0_8 = arith.constant 0 : index
    %6 = vector.load %arg1[%c0_7, %c1, %c0_8] : memref<1x31x64xf32, #tpu.memory_space<vmem>>, vector<1x30x64xf32>
    %7 = vector.shape_cast %6 : vector<1x30x64xf32> to vector<30x64xf32>
    %c1_9 = arith.constant 1 : index
    %c0_10 = arith.constant 0 : index
    %c0_11 = arith.constant 0 : index
    %8 = vector.load %arg2[%c1_9, %c0_10, %c0_11] : memref<2x64x32xf32, #tpu.memory_space<vmem>>, vector<1x64x32xf32>
    %9 = vector.shape_cast %8 : vector<1x64x32xf32> to vector<64x32xf32>
    %cst_12 = arith.constant dense<0.000000e+00> : vector<30x32xf32>
    %10 = tpu.matmul %7, %9, %cst_12 {dimension_numbers = #tpu.dot_dimension_numbers<[1], [0], [0], [1], [0, 0, 1, 1], [], []>} : vector<30x64xf32>, vector<64x32xf32>, vector<30x32xf32> -> vector<30x32xf32>
    %11 = arith.addf %5, %10 : vector<30x32xf32>
    %12 = vector.broadcast %0 : vector<1x32xf32> to vector<30x32xf32>
    %13 = arith.addf %11, %12 : vector<30x32xf32>
    %cst_13 = arith.constant 0.000000e+00 : f32
    %14 = vector.broadcast %cst_13 : f32 to vector<30x32xf32>
    %15 = arith.maximumf %13, %14 : vector<30x32xf32>
    %c0_14 = arith.constant 0 : index
    %c0_15 = arith.constant 0 : index
    %c0_16 = arith.constant 0 : index
    %16 = vector.load %arg4[%c0_14, %c0_15, %c0_16] : memref<1x30x32xf32, #tpu.memory_space<vmem>>, vector<1x30x32xf32>
    %17 = vector.shape_cast %16 : vector<1x30x32xf32> to vector<30x32xf32>
    %18 = vector.shape_cast %15 : vector<30x32xf32> to vector<1x30x32xf32>
    tpu.vector_store %arg4[%c0_14, %c0_15, %c0_16], %18 {strides = array<i32>} : memref<1x30x32xf32, #tpu.memory_space<vmem>>, vector<1x30x32xf32>,
    return
  }
  func.func @transform_0(%arg0: i32) -> (i32, i32, i32) {
    %c0_i32 = arith.constant 0 : i32
    %c0_i32_0 = arith.constant 0 : i32
    %c0_i32_1 = arith.constant 0 : i32
    return %arg0, %c0_i32, %c0_i32_0 : i32, i32, i32
  }
  func.func @transform_1(%arg0: i32) -> (i32, i32, i32) {
    %c0_i32 = arith.constant 0 : i32
    %c0_i32_0 = arith.constant 0 : i32
    %c0_i32_1 = arith.constant 0 : i32
    %c0_i32_2 = arith.constant 0 : i32
    return %c0_i32, %c0_i32_0, %c0_i32_1 : i32, i32, i32
  }
  func.func @transform_2(%arg0: i32) -> (i32, i32) {
    %c0_i32 = arith.constant 0 : i32
    %c0_i32_0 = arith.constant 0 : i32
    %c0_i32_1 = arith.constant 0 : i32
    return %c0_i32, %c0_i32_0 : i32, i32
  }
  func.func @transform_3(%arg0: i32) -> (i32, i32, i32) {
    %c0_i32 = arith.constant 0 : i32
    %c0_i32_0 = arith.constant 0 : i32
    %c0_i32_1 = arith.constant 0 : i32
    return %arg0, %c0_i32, %c0_i32_0 : i32, i32, i32
  }
}

module attributes {stable_mosaic.version = 11 : i64} {
  func.func @kernel(%arg0: i32, %arg1: memref<1x15x64xf32, #tpu.memory_space<vmem>>, %arg2: memref<2x64x64xf32, #tpu.memory_space<vmem>>, %arg3: memref<1x64xf32, #tpu.memory_space<vmem>>, %arg4: memref<1x14x64xf32, #tpu.memory_space<vmem>>) attributes {dimension_semantics = [#tpu.dimension_semantics<parallel>], iteration_bounds = array<i64: 2>, scalar_prefetch = 0 : i64, scratch_operands = 0 : i64, tpu.core_type = #tpu.core_type<tc>, window_params = [{transform_indices = @transform_0, window_bounds = array<i64: 1, 15, 64>}, {pipeline_mode = #tpu.pipeline_mode<synchronous>, transform_indices = @transform_1, window_bounds = array<i64: 2, 64, 64>}, {pipeline_mode = #tpu.pipeline_mode<synchronous>, transform_indices = @transform_2, window_bounds = array<i64: 1, 64>}, {transform_indices = @transform_3, window_bounds = array<i64: 1, 14, 64>}]} {
    %c0 = arith.constant 0 : index
    %c0_0 = arith.constant 0 : index
    %0 = vector.load %arg3[%c0, %c0_0] : memref<1x64xf32, #tpu.memory_space<vmem>>, vector<1x64xf32>
    %c0_1 = arith.constant 0 : index
    %c0_2 = arith.constant 0 : index
    %c0_3 = arith.constant 0 : index
    %1 = vector.load %arg1[%c0_1, %c0_2, %c0_3] : memref<1x15x64xf32, #tpu.memory_space<vmem>>, vector<1x14x64xf32>
    %2 = vector.shape_cast %1 : vector<1x14x64xf32> to vector<14x64xf32>
    %c0_4 = arith.constant 0 : index
    %c0_5 = arith.constant 0 : index
    %c0_6 = arith.constant 0 : index
    %3 = vector.load %arg2[%c0_4, %c0_5, %c0_6] : memref<2x64x64xf32, #tpu.memory_space<vmem>>, vector<1x64x64xf32>
    %4 = vector.shape_cast %3 : vector<1x64x64xf32> to vector<64x64xf32>
    %cst = arith.constant dense<0.000000e+00> : vector<14x64xf32>
    %5 = tpu.matmul %2, %4, %cst {dimension_numbers = #tpu.dot_dimension_numbers<[1], [0], [0], [1], [0, 0, 1, 1], [], []>} : vector<14x64xf32>, vector<64x64xf32>, vector<14x64xf32> -> vector<14x64xf32>
    %c0_7 = arith.constant 0 : index
    %c1 = arith.constant 1 : index
    %c0_8 = arith.constant 0 : index
    %6 = vector.load %arg1[%c0_7, %c1, %c0_8] : memref<1x15x64xf32, #tpu.memory_space<vmem>>, vector<1x14x64xf32>
    %7 = vector.shape_cast %6 : vector<1x14x64xf32> to vector<14x64xf32>
    %c1_9 = arith.constant 1 : index
    %c0_10 = arith.constant 0 : index
    %c0_11 = arith.constant 0 : index
    %8 = vector.load %arg2[%c1_9, %c0_10, %c0_11] : memref<2x64x64xf32, #tpu.memory_space<vmem>>, vector<1x64x64xf32>
    %9 = vector.shape_cast %8 : vector<1x64x64xf32> to vector<64x64xf32>
    %cst_12 = arith.constant dense<0.000000e+00> : vector<14x64xf32>
    %10 = tpu.matmul %7, %9, %cst_12 {dimension_numbers = #tpu.dot_dimension_numbers<[1], [0], [0], [1], [0, 0, 1, 1], [], []>} : vector<14x64xf32>, vector<64x64xf32>, vector<14x64xf32> -> vector<14x64xf32>
    %11 = arith.addf %5, %10 : vector<14x64xf32>
    %12 = vector.broadcast %0 : vector<1x64xf32> to vector<14x64xf32>
    %13 = arith.addf %11, %12 : vector<14x64xf32>
    %cst_13 = arith.constant 0.000000e+00 : f32
    %14 = vector.broadcast %cst_13 : f32 to vector<14x64xf32>
    %15 = arith.maximumf %13, %14 : vector<14x64xf32>
    %c0_14 = arith.constant 0 : index
    %c0_15 = arith.constant 0 : index
    %c0_16 = arith.constant 0 : index
    %16 = vector.load %arg4[%c0_14, %c0_15, %c0_16] : memref<1x14x64xf32, #tpu.memory_space<vmem>>, vector<1x14x64xf32>
    %17 = vector.shape_cast %16 : vector<1x14x64xf32> to vector<14x64xf32>
    %18 = vector.shape_cast %15 : vector<14x64xf32> to vector<1x14x64xf32>
    tpu.vector_store %arg4[%c0_14, %c0_15, %c0_16], %18 {strides = array<i32>} : memref<1x14x64xf32, #tpu.memory_space<vmem>>, vector<1x14x64xf32>,
    return
  }
  func.func @transform_0(%arg0: i32) -> (i32, i32, i32) {
    %c0_i32 = arith.constant 0 : i32
    %c0_i32_0 = arith.constant 0 : i32
    %c0_i32_1 = arith.constant 0 : i32
    return %arg0, %c0_i32, %c0_i32_0 : i32, i32, i32
  }
  func.func @transform_1(%arg0: i32) -> (i32, i32, i32) {
    %c0_i32 = arith.constant 0 : i32
    %c0_i32_0 = arith.constant 0 : i32
    %c0_i32_1 = arith.constant 0 : i32
    %c0_i32_2 = arith.constant 0 : i32
    return %c0_i32, %c0_i32_0, %c0_i32_1 : i32, i32, i32
  }
  func.func @transform_2(%arg0: i32) -> (i32, i32) {
    %c0_i32 = arith.constant 0 : i32
    %c0_i32_0 = arith.constant 0 : i32
    %c0_i32_1 = arith.constant 0 : i32
    return %c0_i32, %c0_i32_0 : i32, i32
  }
  func.func @transform_3(%arg0: i32) -> (i32, i32, i32) {
    %c0_i32 = arith.constant 0 : i32
    %c0_i32_0 = arith.constant 0 : i32
    %c0_i32_1 = arith.constant 0 : i32
    return %arg0, %c0_i32, %c0_i32_0 : i32, i32, i32
  }
}

module attributes {stable_mosaic.version = 11 : i64} {
  func.func @kernel(%arg0: i32, %arg1: memref<1x3x256xf32, #tpu.memory_space<vmem>>, %arg2: memref<2x256x256xf32, #tpu.memory_space<vmem>>, %arg3: memref<1x256xf32, #tpu.memory_space<vmem>>, %arg4: memref<1x2x256xf32, #tpu.memory_space<vmem>>) attributes {dimension_semantics = [#tpu.dimension_semantics<parallel>], iteration_bounds = array<i64: 2>, scalar_prefetch = 0 : i64, scratch_operands = 0 : i64, tpu.core_type = #tpu.core_type<tc>, window_params = [{transform_indices = @transform_0, window_bounds = array<i64: 1, 3, 256>}, {pipeline_mode = #tpu.pipeline_mode<synchronous>, transform_indices = @transform_1, window_bounds = array<i64: 2, 256, 256>}, {pipeline_mode = #tpu.pipeline_mode<synchronous>, transform_indices = @transform_2, window_bounds = array<i64: 1, 256>}, {transform_indices = @transform_3, window_bounds = array<i64: 1, 2, 256>}]} {
    %c0 = arith.constant 0 : index
    %c0_0 = arith.constant 0 : index
    %0 = vector.load %arg3[%c0, %c0_0] : memref<1x256xf32, #tpu.memory_space<vmem>>, vector<1x256xf32>
    %c0_1 = arith.constant 0 : index
    %c0_2 = arith.constant 0 : index
    %c0_3 = arith.constant 0 : index
    %1 = vector.load %arg1[%c0_1, %c0_2, %c0_3] : memref<1x3x256xf32, #tpu.memory_space<vmem>>, vector<1x2x256xf32>
    %2 = vector.shape_cast %1 : vector<1x2x256xf32> to vector<2x256xf32>
    %c0_4 = arith.constant 0 : index
    %c0_5 = arith.constant 0 : index
    %c0_6 = arith.constant 0 : index
    %3 = vector.load %arg2[%c0_4, %c0_5, %c0_6] : memref<2x256x256xf32, #tpu.memory_space<vmem>>, vector<1x256x256xf32>
    %4 = vector.shape_cast %3 : vector<1x256x256xf32> to vector<256x256xf32>
    %cst = arith.constant dense<0.000000e+00> : vector<2x256xf32>
    %5 = tpu.matmul %2, %4, %cst {dimension_numbers = #tpu.dot_dimension_numbers<[1], [0], [0], [1], [0, 0, 1, 1], [], []>} : vector<2x256xf32>, vector<256x256xf32>, vector<2x256xf32> -> vector<2x256xf32>
    %c0_7 = arith.constant 0 : index
    %c1 = arith.constant 1 : index
    %c0_8 = arith.constant 0 : index
    %6 = vector.load %arg1[%c0_7, %c1, %c0_8] : memref<1x3x256xf32, #tpu.memory_space<vmem>>, vector<1x2x256xf32>
    %7 = vector.shape_cast %6 : vector<1x2x256xf32> to vector<2x256xf32>
    %c1_9 = arith.constant 1 : index
    %c0_10 = arith.constant 0 : index
    %c0_11 = arith.constant 0 : index
    %8 = vector.load %arg2[%c1_9, %c0_10, %c0_11] : memref<2x256x256xf32, #tpu.memory_space<vmem>>, vector<1x256x256xf32>
    %9 = vector.shape_cast %8 : vector<1x256x256xf32> to vector<256x256xf32>
    %cst_12 = arith.constant dense<0.000000e+00> : vector<2x256xf32>
    %10 = tpu.matmul %7, %9, %cst_12 {dimension_numbers = #tpu.dot_dimension_numbers<[1], [0], [0], [1], [0, 0, 1, 1], [], []>} : vector<2x256xf32>, vector<256x256xf32>, vector<2x256xf32> -> vector<2x256xf32>
    %11 = arith.addf %5, %10 : vector<2x256xf32>
    %12 = vector.broadcast %0 : vector<1x256xf32> to vector<2x256xf32>
    %13 = arith.addf %11, %12 : vector<2x256xf32>
    %cst_13 = arith.constant 0.000000e+00 : f32
    %14 = vector.broadcast %cst_13 : f32 to vector<2x256xf32>
    %15 = arith.maximumf %13, %14 : vector<2x256xf32>
    %c0_14 = arith.constant 0 : index
    %c0_15 = arith.constant 0 : index
    %c0_16 = arith.constant 0 : index
    %16 = vector.load %arg4[%c0_14, %c0_15, %c0_16] : memref<1x2x256xf32, #tpu.memory_space<vmem>>, vector<1x2x256xf32>
    %17 = vector.shape_cast %16 : vector<1x2x256xf32> to vector<2x256xf32>
    %18 = vector.shape_cast %15 : vector<2x256xf32> to vector<1x2x256xf32>
    tpu.vector_store %arg4[%c0_14, %c0_15, %c0_16], %18 {strides = array<i32>} : memref<1x2x256xf32, #tpu.memory_space<vmem>>, vector<1x2x256xf32>,
    return
  }
  func.func @transform_0(%arg0: i32) -> (i32, i32, i32) {
    %c0_i32 = arith.constant 0 : i32
    %c0_i32_0 = arith.constant 0 : i32
    %c0_i32_1 = arith.constant 0 : i32
    return %arg0, %c0_i32, %c0_i32_0 : i32, i32, i32
  }
  func.func @transform_1(%arg0: i32) -> (i32, i32, i32) {
    %c0_i32 = arith.constant 0 : i32
    %c0_i32_0 = arith.constant 0 : i32
    %c0_i32_1 = arith.constant 0 : i32
    %c0_i32_2 = arith.constant 0 : i32
    return %c0_i32, %c0_i32_0, %c0_i32_1 : i32, i32, i32
  }
  func.func @transform_2(%arg0: i32) -> (i32, i32) {
    %c0_i32 = arith.constant 0 : i32
    %c0_i32_0 = arith.constant 0 : i32
    %c0_i32_1 = arith.constant 0 : i32
    return %c0_i32, %c0_i32_0 : i32, i32
  }
  func.func @transform_3(%arg0: i32) -> (i32, i32, i32) {
    %c0_i32 = arith.constant 0 : i32
    %c0_i32_0 = arith.constant 0 : i32
    %c0_i32_1 = arith.constant 0 : i32
    return %arg0, %c0_i32, %c0_i32_0 : i32, i32, i32
  }
}

module attributes {stable_mosaic.version = 11 : i64} {
  func.func @kernel(%arg0: i32, %arg1: memref<1x4x256xf32, #tpu.memory_space<vmem>>, %arg2: memref<3x256x128xf32, #tpu.memory_space<vmem>>, %arg3: memref<1x128xf32, #tpu.memory_space<vmem>>, %arg4: memref<1x3x128xf32, #tpu.memory_space<vmem>>, %arg5: memref<1x2x128xf32, #tpu.memory_space<vmem>>) attributes {dimension_semantics = [#tpu.dimension_semantics<parallel>], iteration_bounds = array<i64: 2>, scalar_prefetch = 0 : i64, scratch_operands = 0 : i64, tpu.core_type = #tpu.core_type<tc>, window_params = [{transform_indices = @transform_0, window_bounds = array<i64: 1, 4, 256>}, {pipeline_mode = #tpu.pipeline_mode<synchronous>, transform_indices = @transform_1, window_bounds = array<i64: 3, 256, 128>}, {pipeline_mode = #tpu.pipeline_mode<synchronous>, transform_indices = @transform_2, window_bounds = array<i64: 1, 128>}, {transform_indices = @transform_3, window_bounds = array<i64: 1, 3, 128>}, {transform_indices = @transform_4, window_bounds = array<i64: 1, 2, 128>}]} {
    %c0 = arith.constant 0 : index
    %c0_0 = arith.constant 0 : index
    %0 = vector.load %arg3[%c0, %c0_0] : memref<1x128xf32, #tpu.memory_space<vmem>>, vector<1x128xf32>
    %c0_1 = arith.constant 0 : index
    %c1 = arith.constant 1 : index
    %c0_2 = arith.constant 0 : index
    %1 = vector.load %arg1[%c0_1, %c1, %c0_2] : memref<1x4x256xf32, #tpu.memory_space<vmem>>, vector<1x3x256xf32>
    %2 = vector.shape_cast %1 : vector<1x3x256xf32> to vector<3x256xf32>
    %c0_3 = arith.constant 0 : index
    %c0_4 = arith.constant 0 : index
    %c0_5 = arith.constant 0 : index
    %3 = vector.load %arg2[%c0_3, %c0_4, %c0_5] : memref<3x256x128xf32, #tpu.memory_space<vmem>>, vector<1x256x128xf32>
    %4 = vector.shape_cast %3 : vector<1x256x128xf32> to vector<256x128xf32>
    %cst = arith.constant dense<0.000000e+00> : vector<3x128xf32>
    %5 = tpu.matmul %2, %4, %cst {dimension_numbers = #tpu.dot_dimension_numbers<[1], [0], [0], [1], [0, 0, 1, 1], [], []>} : vector<3x256xf32>, vector<256x128xf32>, vector<3x128xf32> -> vector<3x128xf32>
    %c0_6 = arith.constant 0 : index
    %c0_7 = arith.constant 0 : index
    %c0_8 = arith.constant 0 : index
    %6 = vector.load %arg1[%c0_6, %c0_7, %c0_8] : memref<1x4x256xf32, #tpu.memory_space<vmem>>, vector<1x3x256xf32>
    %7 = vector.shape_cast %6 : vector<1x3x256xf32> to vector<3x256xf32>
    %c2 = arith.constant 2 : index
    %c0_9 = arith.constant 0 : index
    %c0_10 = arith.constant 0 : index
    %8 = vector.load %arg2[%c2, %c0_9, %c0_10] : memref<3x256x128xf32, #tpu.memory_space<vmem>>, vector<1x256x128xf32>
    %9 = vector.shape_cast %8 : vector<1x256x128xf32> to vector<256x128xf32>
    %cst_11 = arith.constant dense<0.000000e+00> : vector<3x128xf32>
    %10 = tpu.matmul %7, %9, %cst_11 {dimension_numbers = #tpu.dot_dimension_numbers<[1], [0], [0], [1], [0, 0, 1, 1], [], []>} : vector<3x256xf32>, vector<256x128xf32>, vector<3x128xf32> -> vector<3x128xf32>
    %11 = arith.addf %5, %10 : vector<3x128xf32>
    %12 = vector.broadcast %0 : vector<1x128xf32> to vector<3x128xf32>
    %13 = arith.addf %11, %12 : vector<3x128xf32>
    %cst_12 = arith.constant 0.000000e+00 : f32
    %14 = vector.broadcast %cst_12 : f32 to vector<3x128xf32>
    %15 = arith.maximumf %13, %14 : vector<3x128xf32>
    %cst_13 = arith.constant 1.000000e+00 : f32
    %16 = vector.broadcast %cst_13 : f32 to vector<3x128xf32>
    %17 = arith.minimumf %15, %16 : vector<3x128xf32>
    %c0_14 = arith.constant 0 : index
    %c0_15 = arith.constant 0 : index
    %c0_16 = arith.constant 0 : index
    %18 = vector.load %arg4[%c0_14, %c0_15, %c0_16] : memref<1x3x128xf32, #tpu.memory_space<vmem>>, vector<1x3x128xf32>
    %19 = vector.shape_cast %18 : vector<1x3x128xf32> to vector<3x128xf32>
    %20 = vector.shape_cast %17 : vector<3x128xf32> to vector<1x3x128xf32>
    tpu.vector_store %arg4[%c0_14, %c0_15, %c0_16], %20 {strides = array<i32>} : memref<1x3x128xf32, #tpu.memory_space<vmem>>, vector<1x3x128xf32>,
    %c0_17 = arith.constant 0 : index
    %c1_18 = arith.constant 1 : index
    %c0_19 = arith.constant 0 : index
    %21 = vector.load %arg1[%c0_17, %c1_18, %c0_19] : memref<1x4x256xf32, #tpu.memory_space<vmem>>, vector<1x2x256xf32>
    %22 = vector.shape_cast %21 : vector<1x2x256xf32> to vector<2x256xf32>
    %c1_20 = arith.constant 1 : index
    %c0_21 = arith.constant 0 : index
    %c0_22 = arith.constant 0 : index
    %23 = vector.load %arg2[%c1_20, %c0_21, %c0_22] : memref<3x256x128xf32, #tpu.memory_space<vmem>>, vector<1x256x128xf32>
    %24 = vector.shape_cast %23 : vector<1x256x128xf32> to vector<256x128xf32>
    %cst_23 = arith.constant dense<0.000000e+00> : vector<2x128xf32>
    %25 = tpu.matmul %22, %24, %cst_23 {dimension_numbers = #tpu.dot_dimension_numbers<[1], [0], [0], [1], [0, 0, 1, 1], [], []>} : vector<2x256xf32>, vector<256x128xf32>, vector<2x128xf32> -> vector<2x128xf32>
    %26 = vector.broadcast %0 : vector<1x128xf32> to vector<2x128xf32>
    %27 = arith.addf %25, %26 : vector<2x128xf32>
    %cst_24 = arith.constant 0.000000e+00 : f32
    %28 = vector.broadcast %cst_24 : f32 to vector<2x128xf32>
    %29 = arith.maximumf %27, %28 : vector<2x128xf32>
    %cst_25 = arith.constant 1.000000e+00 : f32
    %30 = vector.broadcast %cst_25 : f32 to vector<2x128xf32>
    %31 = arith.minimumf %29, %30 : vector<2x128xf32>
    %c0_26 = arith.constant 0 : index
    %c0_27 = arith.constant 0 : index
    %c0_28 = arith.constant 0 : index
    %32 = vector.load %arg5[%c0_26, %c0_27, %c0_28] : memref<1x2x128xf32, #tpu.memory_space<vmem>>, vector<1x2x128xf32>
    %33 = vector.shape_cast %32 : vector<1x2x128xf32> to vector<2x128xf32>
    %34 = vector.shape_cast %31 : vector<2x128xf32> to vector<1x2x128xf32>
    tpu.vector_store %arg5[%c0_26, %c0_27, %c0_28], %34 {strides = array<i32>} : memref<1x2x128xf32, #tpu.memory_space<vmem>>, vector<1x2x128xf32>,
    return
  }
  func.func @transform_0(%arg0: i32) -> (i32, i32, i32) {
    %c0_i32 = arith.constant 0 : i32
    %c0_i32_0 = arith.constant 0 : i32
    %c0_i32_1 = arith.constant 0 : i32
    return %arg0, %c0_i32, %c0_i32_0 : i32, i32, i32
  }
  func.func @transform_1(%arg0: i32) -> (i32, i32, i32) {
    %c0_i32 = arith.constant 0 : i32
    %c0_i32_0 = arith.constant 0 : i32
    %c0_i32_1 = arith.constant 0 : i32
    %c0_i32_2 = arith.constant 0 : i32
    return %c0_i32, %c0_i32_0, %c0_i32_1 : i32, i32, i32
  }
  func.func @transform_2(%arg0: i32) -> (i32, i32) {
    %c0_i32 = arith.constant 0 : i32
    %c0_i32_0 = arith.constant 0 : i32
    %c0_i32_1 = arith.constant 0 : i32
    return %c0_i32, %c0_i32_0 : i32, i32
  }
  func.func @transform_3(%arg0: i32) -> (i32, i32, i32) {
    %c0_i32 = arith.constant 0 : i32
    %c0_i32_0 = arith.constant 0 : i32
    %c0_i32_1 = arith.constant 0 : i32
    return %arg0, %c0_i32, %c0_i32_0 : i32, i32, i32
  }
  func.func @transform_4(%arg0: i32) -> (i32, i32, i32) {
    %c0_i32 = arith.constant 0 : i32
    %c0_i32_0 = arith.constant 0 : i32
    %c0_i32_1 = arith.constant 0 : i32
    return %arg0, %c0_i32, %c0_i32_0 : i32, i32, i32
  }
}

module attributes {stable_mosaic.version = 11 : i64} {
  func.func @_bottleneck_kernel(%arg0: i32, %arg1: memref<4x256xf32, #tpu.memory_space<vmem>>, %arg2: memref<128x256xf32, #tpu.memory_space<vmem>>, %arg3: memref<1x256xf32, #tpu.memory_space<vmem>>, %arg4: memref<128x256xf32, #tpu.memory_space<vmem>>, %arg5: memref<1x256xf32, #tpu.memory_space<vmem>>, %arg6: memref<4x256xf32, #tpu.memory_space<vmem>>, %arg7: memref<4x256xf32, #tpu.memory_space<vmem>>) attributes {dimension_semantics = [#tpu.dimension_semantics<arbitrary>], iteration_bounds = array<i64: 1>, scalar_prefetch = 0 : i64, scratch_operands = 0 : i64, tpu.core_type = #tpu.core_type<tc>, window_params = [{pipeline_mode = #tpu.pipeline_mode<synchronous>, transform_indices = @transform_0, window_bounds = array<i64: 4, 256>}, {pipeline_mode = #tpu.pipeline_mode<synchronous>, transform_indices = @transform_1, window_bounds = array<i64: 128, 256>}, {pipeline_mode = #tpu.pipeline_mode<synchronous>, transform_indices = @transform_2, window_bounds = array<i64: 1, 256>}, {pipeline_mode = #tpu.pipeline_mode<synchronous>, transform_indices = @transform_3, window_bounds = array<i64: 128, 256>}, {pipeline_mode = #tpu.pipeline_mode<synchronous>, transform_indices = @transform_4, window_bounds = array<i64: 1, 256>}, {pipeline_mode = #tpu.pipeline_mode<synchronous>, transform_indices = @transform_5, window_bounds = array<i64: 4, 256>}, {pipeline_mode = #tpu.pipeline_mode<synchronous>, transform_indices = @transform_6, window_bounds = array<i64: 4, 256>}]} {
    %c0 = arith.constant 0 : index
    %c0_0 = arith.constant 0 : index
    %0 = vector.load %arg1[%c0, %c0_0] : memref<4x256xf32, #tpu.memory_space<vmem>>, vector<4x256xf32>
    %1 = vector.extract_strided_slice %0 {offsets = [0, 0], sizes = [4, 128], strides = [1, 1]} : vector<4x256xf32> to vector<4x128xf32>
    %c0_1 = arith.constant 0 : index
    %c0_2 = arith.constant 0 : index
    %2 = vector.load %arg2[%c0_1, %c0_2] : memref<128x256xf32, #tpu.memory_space<vmem>>, vector<128x256xf32>
    %cst = arith.constant dense<0.000000e+00> : vector<4x256xf32>
    %3 = tpu.matmul %1, %2, %cst {dimension_numbers = #tpu.dot_dimension_numbers<[1], [0], [0], [1], [0, 0, 1, 1], [], []>} : vector<4x128xf32>, vector<128x256xf32>, vector<4x256xf32> -> vector<4x256xf32>
    %c0_3 = arith.constant 0 : index
    %c0_4 = arith.constant 0 : index
    %4 = vector.load %arg3[%c0_3, %c0_4] : memref<1x256xf32, #tpu.memory_space<vmem>>, vector<1x256xf32>
    %5 = vector.broadcast %4 : vector<1x256xf32> to vector<4x256xf32>
    %6 = arith.addf %3, %5 : vector<4x256xf32>
    %7 = vector.extract_strided_slice %0 {offsets = [0, 128], sizes = [4, 128], strides = [1, 1]} : vector<4x256xf32> to vector<4x128xf32>
    %c0_5 = arith.constant 0 : index
    %c0_6 = arith.constant 0 : index
    %8 = vector.load %arg4[%c0_5, %c0_6] : memref<128x256xf32, #tpu.memory_space<vmem>>, vector<128x256xf32>
    %cst_7 = arith.constant dense<0.000000e+00> : vector<4x256xf32>
    %9 = tpu.matmul %7, %8, %cst_7 {dimension_numbers = #tpu.dot_dimension_numbers<[1], [0], [0], [1], [0, 0, 1, 1], [], []>} : vector<4x128xf32>, vector<128x256xf32>, vector<4x256xf32> -> vector<4x256xf32>
    %c0_8 = arith.constant 0 : index
    %c0_9 = arith.constant 0 : index
    %10 = vector.load %arg5[%c0_8, %c0_9] : memref<1x256xf32, #tpu.memory_space<vmem>>, vector<1x256xf32>
    %11 = vector.broadcast %10 : vector<1x256xf32> to vector<4x256xf32>
    %12 = arith.addf %9, %11 : vector<4x256xf32>
    %cst_10 = arith.constant 5.000000e-01 : f32
    %13 = vector.broadcast %cst_10 : f32 to vector<4x256xf32>
    %14 = arith.mulf %13, %12 : vector<4x256xf32>
    %15 = math.exp %14 : vector<4x256xf32>
    %c0_11 = arith.constant 0 : index
    %c0_12 = arith.constant 0 : index
    %16 = vector.load %arg6[%c0_11, %c0_12] : memref<4x256xf32, #tpu.memory_space<vmem>>, vector<4x256xf32>
    %17 = arith.mulf %15, %16 : vector<4x256xf32>
    %18 = arith.addf %6, %17 : vector<4x256xf32>
    %c0_13 = arith.constant 0 : index
    %c0_14 = arith.constant 0 : index
    %19 = vector.load %arg7[%c0_13, %c0_14] : memref<4x256xf32, #tpu.memory_space<vmem>>, vector<4x256xf32>
    tpu.vector_store %arg7[%c0_13, %c0_14], %18 {strides = array<i32>} : memref<4x256xf32, #tpu.memory_space<vmem>>, vector<4x256xf32>,
    return
  }
  func.func @transform_0(%arg0: i32) -> (i32, i32) {
    %c0_i32 = arith.constant 0 : i32
    %c0_i32_0 = arith.constant 0 : i32
    %c0_i32_1 = arith.constant 0 : i32
    return %c0_i32, %c0_i32_0 : i32, i32
  }
  func.func @transform_1(%arg0: i32) -> (i32, i32) {
    %c0_i32 = arith.constant 0 : i32
    %c0_i32_0 = arith.constant 0 : i32
    %c0_i32_1 = arith.constant 0 : i32
    return %c0_i32, %c0_i32_0 : i32, i32
  }
  func.func @transform_2(%arg0: i32) -> (i32, i32) {
    %c0_i32 = arith.constant 0 : i32
    %c0_i32_0 = arith.constant 0 : i32
    %c0_i32_1 = arith.constant 0 : i32
    return %c0_i32, %c0_i32_0 : i32, i32
  }
  func.func @transform_3(%arg0: i32) -> (i32, i32) {
    %c0_i32 = arith.constant 0 : i32
    %c0_i32_0 = arith.constant 0 : i32
    %c0_i32_1 = arith.constant 0 : i32
    return %c0_i32, %c0_i32_0 : i32, i32
  }
  func.func @transform_4(%arg0: i32) -> (i32, i32) {
    %c0_i32 = arith.constant 0 : i32
    %c0_i32_0 = arith.constant 0 : i32
    %c0_i32_1 = arith.constant 0 : i32
    return %c0_i32, %c0_i32_0 : i32, i32
  }
  func.func @transform_5(%arg0: i32) -> (i32, i32) {
    %c0_i32 = arith.constant 0 : i32
    %c0_i32_0 = arith.constant 0 : i32
    %c0_i32_1 = arith.constant 0 : i32
    return %c0_i32, %c0_i32_0 : i32, i32
  }
  func.func @transform_6(%arg0: i32) -> (i32, i32) {
    %c0_i32 = arith.constant 0 : i32
    %c0_i32_0 = arith.constant 0 : i32
    %c0_i32_1 = arith.constant 0 : i32
    return %c0_i32, %c0_i32_0 : i32, i32
  }
}

module attributes {stable_mosaic.version = 11 : i64} {
  func.func @kernel(%arg0: i32, %arg1: memref<1x7x128xf32, #tpu.memory_space<vmem>>, %arg2: memref<3x128x64xf32, #tpu.memory_space<vmem>>, %arg3: memref<1x64xf32, #tpu.memory_space<vmem>>, %arg4: memref<1x6x64xf32, #tpu.memory_space<vmem>>, %arg5: memref<1x5x64xf32, #tpu.memory_space<vmem>>) attributes {dimension_semantics = [#tpu.dimension_semantics<parallel>], iteration_bounds = array<i64: 2>, scalar_prefetch = 0 : i64, scratch_operands = 0 : i64, tpu.core_type = #tpu.core_type<tc>, window_params = [{transform_indices = @transform_0, window_bounds = array<i64: 1, 7, 128>}, {pipeline_mode = #tpu.pipeline_mode<synchronous>, transform_indices = @transform_1, window_bounds = array<i64: 3, 128, 64>}, {pipeline_mode = #tpu.pipeline_mode<synchronous>, transform_indices = @transform_2, window_bounds = array<i64: 1, 64>}, {transform_indices = @transform_3, window_bounds = array<i64: 1, 6, 64>}, {transform_indices = @transform_4, window_bounds = array<i64: 1, 5, 64>}]} {
    %c0 = arith.constant 0 : index
    %c0_0 = arith.constant 0 : index
    %0 = vector.load %arg3[%c0, %c0_0] : memref<1x64xf32, #tpu.memory_space<vmem>>, vector<1x64xf32>
    %c0_1 = arith.constant 0 : index
    %c1 = arith.constant 1 : index
    %c0_2 = arith.constant 0 : index
    %1 = vector.load %arg1[%c0_1, %c1, %c0_2] : memref<1x7x128xf32, #tpu.memory_space<vmem>>, vector<1x6x128xf32>
    %2 = vector.shape_cast %1 : vector<1x6x128xf32> to vector<6x128xf32>
    %c0_3 = arith.constant 0 : index
    %c0_4 = arith.constant 0 : index
    %c0_5 = arith.constant 0 : index
    %3 = vector.load %arg2[%c0_3, %c0_4, %c0_5] : memref<3x128x64xf32, #tpu.memory_space<vmem>>, vector<1x128x64xf32>
    %4 = vector.shape_cast %3 : vector<1x128x64xf32> to vector<128x64xf32>
    %cst = arith.constant dense<0.000000e+00> : vector<6x64xf32>
    %5 = tpu.matmul %2, %4, %cst {dimension_numbers = #tpu.dot_dimension_numbers<[1], [0], [0], [1], [0, 0, 1, 1], [], []>} : vector<6x128xf32>, vector<128x64xf32>, vector<6x64xf32> -> vector<6x64xf32>
    %c0_6 = arith.constant 0 : index
    %c0_7 = arith.constant 0 : index
    %c0_8 = arith.constant 0 : index
    %6 = vector.load %arg1[%c0_6, %c0_7, %c0_8] : memref<1x7x128xf32, #tpu.memory_space<vmem>>, vector<1x6x128xf32>
    %7 = vector.shape_cast %6 : vector<1x6x128xf32> to vector<6x128xf32>
    %c2 = arith.constant 2 : index
    %c0_9 = arith.constant 0 : index
    %c0_10 = arith.constant 0 : index
    %8 = vector.load %arg2[%c2, %c0_9, %c0_10] : memref<3x128x64xf32, #tpu.memory_space<vmem>>, vector<1x128x64xf32>
    %9 = vector.shape_cast %8 : vector<1x128x64xf32> to vector<128x64xf32>
    %cst_11 = arith.constant dense<0.000000e+00> : vector<6x64xf32>
    %10 = tpu.matmul %7, %9, %cst_11 {dimension_numbers = #tpu.dot_dimension_numbers<[1], [0], [0], [1], [0, 0, 1, 1], [], []>} : vector<6x128xf32>, vector<128x64xf32>, vector<6x64xf32> -> vector<6x64xf32>
    %11 = arith.addf %5, %10 : vector<6x64xf32>
    %12 = vector.broadcast %0 : vector<1x64xf32> to vector<6x64xf32>
    %13 = arith.addf %11, %12 : vector<6x64xf32>
    %cst_12 = arith.constant 0.000000e+00 : f32
    %14 = vector.broadcast %cst_12 : f32 to vector<6x64xf32>
    %15 = arith.maximumf %13, %14 : vector<6x64xf32>
    %cst_13 = arith.constant 1.000000e+00 : f32
    %16 = vector.broadcast %cst_13 : f32 to vector<6x64xf32>
    %17 = arith.minimumf %15, %16 : vector<6x64xf32>
    %c0_14 = arith.constant 0 : index
    %c0_15 = arith.constant 0 : index
    %c0_16 = arith.constant 0 : index
    %18 = vector.load %arg4[%c0_14, %c0_15, %c0_16] : memref<1x6x64xf32, #tpu.memory_space<vmem>>, vector<1x6x64xf32>
    %19 = vector.shape_cast %18 : vector<1x6x64xf32> to vector<6x64xf32>
    %20 = vector.shape_cast %17 : vector<6x64xf32> to vector<1x6x64xf32>
    tpu.vector_store %arg4[%c0_14, %c0_15, %c0_16], %20 {strides = array<i32>} : memref<1x6x64xf32, #tpu.memory_space<vmem>>, vector<1x6x64xf32>,
    %c0_17 = arith.constant 0 : index
    %c1_18 = arith.constant 1 : index
    %c0_19 = arith.constant 0 : index
    %21 = vector.load %arg1[%c0_17, %c1_18, %c0_19] : memref<1x7x128xf32, #tpu.memory_space<vmem>>, vector<1x5x128xf32>
    %22 = vector.shape_cast %21 : vector<1x5x128xf32> to vector<5x128xf32>
    %c1_20 = arith.constant 1 : index
    %c0_21 = arith.constant 0 : index
    %c0_22 = arith.constant 0 : index
    %23 = vector.load %arg2[%c1_20, %c0_21, %c0_22] : memref<3x128x64xf32, #tpu.memory_space<vmem>>, vector<1x128x64xf32>
    %24 = vector.shape_cast %23 : vector<1x128x64xf32> to vector<128x64xf32>
    %cst_23 = arith.constant dense<0.000000e+00> : vector<5x64xf32>
    %25 = tpu.matmul %22, %24, %cst_23 {dimension_numbers = #tpu.dot_dimension_numbers<[1], [0], [0], [1], [0, 0, 1, 1], [], []>} : vector<5x128xf32>, vector<128x64xf32>, vector<5x64xf32> -> vector<5x64xf32>
    %26 = vector.broadcast %0 : vector<1x64xf32> to vector<5x64xf32>
    %27 = arith.addf %25, %26 : vector<5x64xf32>
    %cst_24 = arith.constant 0.000000e+00 : f32
    %28 = vector.broadcast %cst_24 : f32 to vector<5x64xf32>
    %29 = arith.maximumf %27, %28 : vector<5x64xf32>
    %cst_25 = arith.constant 1.000000e+00 : f32
    %30 = vector.broadcast %cst_25 : f32 to vector<5x64xf32>
    %31 = arith.minimumf %29, %30 : vector<5x64xf32>
    %c0_26 = arith.constant 0 : index
    %c0_27 = arith.constant 0 : index
    %c0_28 = arith.constant 0 : index
    %32 = vector.load %arg5[%c0_26, %c0_27, %c0_28] : memref<1x5x64xf32, #tpu.memory_space<vmem>>, vector<1x5x64xf32>
    %33 = vector.shape_cast %32 : vector<1x5x64xf32> to vector<5x64xf32>
    %34 = vector.shape_cast %31 : vector<5x64xf32> to vector<1x5x64xf32>
    tpu.vector_store %arg5[%c0_26, %c0_27, %c0_28], %34 {strides = array<i32>} : memref<1x5x64xf32, #tpu.memory_space<vmem>>, vector<1x5x64xf32>,
    return
  }
  func.func @transform_0(%arg0: i32) -> (i32, i32, i32) {
    %c0_i32 = arith.constant 0 : i32
    %c0_i32_0 = arith.constant 0 : i32
    %c0_i32_1 = arith.constant 0 : i32
    return %arg0, %c0_i32, %c0_i32_0 : i32, i32, i32
  }
  func.func @transform_1(%arg0: i32) -> (i32, i32, i32) {
    %c0_i32 = arith.constant 0 : i32
    %c0_i32_0 = arith.constant 0 : i32
    %c0_i32_1 = arith.constant 0 : i32
    %c0_i32_2 = arith.constant 0 : i32
    return %c0_i32, %c0_i32_0, %c0_i32_1 : i32, i32, i32
  }
  func.func @transform_2(%arg0: i32) -> (i32, i32) {
    %c0_i32 = arith.constant 0 : i32
    %c0_i32_0 = arith.constant 0 : i32
    %c0_i32_1 = arith.constant 0 : i32
    return %c0_i32, %c0_i32_0 : i32, i32
  }
  func.func @transform_3(%arg0: i32) -> (i32, i32, i32) {
    %c0_i32 = arith.constant 0 : i32
    %c0_i32_0 = arith.constant 0 : i32
    %c0_i32_1 = arith.constant 0 : i32
    return %arg0, %c0_i32, %c0_i32_0 : i32, i32, i32
  }
  func.func @transform_4(%arg0: i32) -> (i32, i32, i32) {
    %c0_i32 = arith.constant 0 : i32
    %c0_i32_0 = arith.constant 0 : i32
    %c0_i32_1 = arith.constant 0 : i32
    return %arg0, %c0_i32, %c0_i32_0 : i32, i32, i32
  }
}

module attributes {stable_mosaic.version = 11 : i64} {
  func.func @kernel(%arg0: i32, %arg1: memref<1x13x64xf32, #tpu.memory_space<vmem>>, %arg2: memref<3x64x32xf32, #tpu.memory_space<vmem>>, %arg3: memref<1x32xf32, #tpu.memory_space<vmem>>, %arg4: memref<1x12x32xf32, #tpu.memory_space<vmem>>, %arg5: memref<1x12x32xf32, #tpu.memory_space<vmem>>) attributes {dimension_semantics = [#tpu.dimension_semantics<parallel>], iteration_bounds = array<i64: 2>, scalar_prefetch = 0 : i64, scratch_operands = 0 : i64, tpu.core_type = #tpu.core_type<tc>, window_params = [{transform_indices = @transform_0, window_bounds = array<i64: 1, 13, 64>}, {pipeline_mode = #tpu.pipeline_mode<synchronous>, transform_indices = @transform_1, window_bounds = array<i64: 3, 64, 32>}, {pipeline_mode = #tpu.pipeline_mode<synchronous>, transform_indices = @transform_2, window_bounds = array<i64: 1, 32>}, {transform_indices = @transform_3, window_bounds = array<i64: 1, 12, 32>}, {transform_indices = @transform_4, window_bounds = array<i64: 1, 12, 32>}]} {
    %c0 = arith.constant 0 : index
    %c0_0 = arith.constant 0 : index
    %0 = vector.load %arg3[%c0, %c0_0] : memref<1x32xf32, #tpu.memory_space<vmem>>, vector<1x32xf32>
    %c0_1 = arith.constant 0 : index
    %c1 = arith.constant 1 : index
    %c0_2 = arith.constant 0 : index
    %1 = vector.load %arg1[%c0_1, %c1, %c0_2] : memref<1x13x64xf32, #tpu.memory_space<vmem>>, vector<1x12x64xf32>
    %2 = vector.shape_cast %1 : vector<1x12x64xf32> to vector<12x64xf32>
    %c0_3 = arith.constant 0 : index
    %c0_4 = arith.constant 0 : index
    %c0_5 = arith.constant 0 : index
    %3 = vector.load %arg2[%c0_3, %c0_4, %c0_5] : memref<3x64x32xf32, #tpu.memory_space<vmem>>, vector<1x64x32xf32>
    %4 = vector.shape_cast %3 : vector<1x64x32xf32> to vector<64x32xf32>
    %cst = arith.constant dense<0.000000e+00> : vector<12x32xf32>
    %5 = tpu.matmul %2, %4, %cst {dimension_numbers = #tpu.dot_dimension_numbers<[1], [0], [0], [1], [0, 0, 1, 1], [], []>} : vector<12x64xf32>, vector<64x32xf32>, vector<12x32xf32> -> vector<12x32xf32>
    %c0_6 = arith.constant 0 : index
    %c0_7 = arith.constant 0 : index
    %c0_8 = arith.constant 0 : index
    %6 = vector.load %arg1[%c0_6, %c0_7, %c0_8] : memref<1x13x64xf32, #tpu.memory_space<vmem>>, vector<1x12x64xf32>
    %7 = vector.shape_cast %6 : vector<1x12x64xf32> to vector<12x64xf32>
    %c2 = arith.constant 2 : index
    %c0_9 = arith.constant 0 : index
    %c0_10 = arith.constant 0 : index
    %8 = vector.load %arg2[%c2, %c0_9, %c0_10] : memref<3x64x32xf32, #tpu.memory_space<vmem>>, vector<1x64x32xf32>
    %9 = vector.shape_cast %8 : vector<1x64x32xf32> to vector<64x32xf32>
    %cst_11 = arith.constant dense<0.000000e+00> : vector<12x32xf32>
    %10 = tpu.matmul %7, %9, %cst_11 {dimension_numbers = #tpu.dot_dimension_numbers<[1], [0], [0], [1], [0, 0, 1, 1], [], []>} : vector<12x64xf32>, vector<64x32xf32>, vector<12x32xf32> -> vector<12x32xf32>
    %11 = arith.addf %5, %10 : vector<12x32xf32>
    %12 = vector.broadcast %0 : vector<1x32xf32> to vector<12x32xf32>
    %13 = arith.addf %11, %12 : vector<12x32xf32>
    %cst_12 = arith.constant 0.000000e+00 : f32
    %14 = vector.broadcast %cst_12 : f32 to vector<12x32xf32>
    %15 = arith.maximumf %13, %14 : vector<12x32xf32>
    %cst_13 = arith.constant 1.000000e+00 : f32
    %16 = vector.broadcast %cst_13 : f32 to vector<12x32xf32>
    %17 = arith.minimumf %15, %16 : vector<12x32xf32>
    %c0_14 = arith.constant 0 : index
    %c0_15 = arith.constant 0 : index
    %c0_16 = arith.constant 0 : index
    %18 = vector.load %arg4[%c0_14, %c0_15, %c0_16] : memref<1x12x32xf32, #tpu.memory_space<vmem>>, vector<1x12x32xf32>
    %19 = vector.shape_cast %18 : vector<1x12x32xf32> to vector<12x32xf32>
    %20 = vector.shape_cast %17 : vector<12x32xf32> to vector<1x12x32xf32>
    tpu.vector_store %arg4[%c0_14, %c0_15, %c0_16], %20 {strides = array<i32>} : memref<1x12x32xf32, #tpu.memory_space<vmem>>, vector<1x12x32xf32>,
    %c0_17 = arith.constant 0 : index
    %c1_18 = arith.constant 1 : index
    %c0_19 = arith.constant 0 : index
    %21 = vector.load %arg1[%c0_17, %c1_18, %c0_19] : memref<1x13x64xf32, #tpu.memory_space<vmem>>, vector<1x12x64xf32>
    %22 = vector.shape_cast %21 : vector<1x12x64xf32> to vector<12x64xf32>
    %c1_20 = arith.constant 1 : index
    %c0_21 = arith.constant 0 : index
    %c0_22 = arith.constant 0 : index
    %23 = vector.load %arg2[%c1_20, %c0_21, %c0_22] : memref<3x64x32xf32, #tpu.memory_space<vmem>>, vector<1x64x32xf32>
    %24 = vector.shape_cast %23 : vector<1x64x32xf32> to vector<64x32xf32>
    %cst_23 = arith.constant dense<0.000000e+00> : vector<12x32xf32>
    %25 = tpu.matmul %22, %24, %cst_23 {dimension_numbers = #tpu.dot_dimension_numbers<[1], [0], [0], [1], [0, 0, 1, 1], [], []>} : vector<12x64xf32>, vector<64x32xf32>, vector<12x32xf32> -> vector<12x32xf32>
    %26 = vector.broadcast %0 : vector<1x32xf32> to vector<12x32xf32>
    %27 = arith.addf %25, %26 : vector<12x32xf32>
    %cst_24 = arith.constant 0.000000e+00 : f32
    %28 = vector.broadcast %cst_24 : f32 to vector<12x32xf32>
    %29 = arith.maximumf %27, %28 : vector<12x32xf32>
    %cst_25 = arith.constant 1.000000e+00 : f32
    %30 = vector.broadcast %cst_25 : f32 to vector<12x32xf32>
    %31 = arith.minimumf %29, %30 : vector<12x32xf32>
    %c0_26 = arith.constant 0 : index
    %c0_27 = arith.constant 0 : index
    %c0_28 = arith.constant 0 : index
    %32 = vector.load %arg5[%c0_26, %c0_27, %c0_28] : memref<1x12x32xf32, #tpu.memory_space<vmem>>, vector<1x12x32xf32>
    %33 = vector.shape_cast %32 : vector<1x12x32xf32> to vector<12x32xf32>
    %34 = vector.shape_cast %31 : vector<12x32xf32> to vector<1x12x32xf32>
    tpu.vector_store %arg5[%c0_26, %c0_27, %c0_28], %34 {strides = array<i32>} : memref<1x12x32xf32, #tpu.memory_space<vmem>>, vector<1x12x32xf32>,
    return
  }
  func.func @transform_0(%arg0: i32) -> (i32, i32, i32) {
    %c0_i32 = arith.constant 0 : i32
    %c0_i32_0 = arith.constant 0 : i32
    %c0_i32_1 = arith.constant 0 : i32
    return %arg0, %c0_i32, %c0_i32_0 : i32, i32, i32
  }
  func.func @transform_1(%arg0: i32) -> (i32, i32, i32) {
    %c0_i32 = arith.constant 0 : i32
    %c0_i32_0 = arith.constant 0 : i32
    %c0_i32_1 = arith.constant 0 : i32
    %c0_i32_2 = arith.constant 0 : i32
    return %c0_i32, %c0_i32_0, %c0_i32_1 : i32, i32, i32
  }
  func.func @transform_2(%arg0: i32) -> (i32, i32) {
    %c0_i32 = arith.constant 0 : i32
    %c0_i32_0 = arith.constant 0 : i32
    %c0_i32_1 = arith.constant 0 : i32
    return %c0_i32, %c0_i32_0 : i32, i32
  }
  func.func @transform_3(%arg0: i32) -> (i32, i32, i32) {
    %c0_i32 = arith.constant 0 : i32
    %c0_i32_0 = arith.constant 0 : i32
    %c0_i32_1 = arith.constant 0 : i32
    return %arg0, %c0_i32, %c0_i32_0 : i32, i32, i32
  }
  func.func @transform_4(%arg0: i32) -> (i32, i32, i32) {
    %c0_i32 = arith.constant 0 : i32
    %c0_i32_0 = arith.constant 0 : i32
    %c0_i32_1 = arith.constant 0 : i32
    return %arg0, %c0_i32, %c0_i32_0 : i32, i32, i32
  }
}

module attributes {stable_mosaic.version = 11 : i64} {
  func.func @kernel(%arg0: i32, %arg1: memref<1x26x32xf32, #tpu.memory_space<vmem>>, %arg2: memref<3x32x32xf32, #tpu.memory_space<vmem>>, %arg3: memref<1x32xf32, #tpu.memory_space<vmem>>, %arg4: memref<1x25x32xf32, #tpu.memory_space<vmem>>, %arg5: memref<1x25x32xf32, #tpu.memory_space<vmem>>) attributes {dimension_semantics = [#tpu.dimension_semantics<parallel>], iteration_bounds = array<i64: 2>, scalar_prefetch = 0 : i64, scratch_operands = 0 : i64, tpu.core_type = #tpu.core_type<tc>, window_params = [{transform_indices = @transform_0, window_bounds = array<i64: 1, 26, 32>}, {pipeline_mode = #tpu.pipeline_mode<synchronous>, transform_indices = @transform_1, window_bounds = array<i64: 3, 32, 32>}, {pipeline_mode = #tpu.pipeline_mode<synchronous>, transform_indices = @transform_2, window_bounds = array<i64: 1, 32>}, {transform_indices = @transform_3, window_bounds = array<i64: 1, 25, 32>}, {transform_indices = @transform_4, window_bounds = array<i64: 1, 25, 32>}]} {
    %c0 = arith.constant 0 : index
    %c0_0 = arith.constant 0 : index
    %0 = vector.load %arg3[%c0, %c0_0] : memref<1x32xf32, #tpu.memory_space<vmem>>, vector<1x32xf32>
    %c0_1 = arith.constant 0 : index
    %c1 = arith.constant 1 : index
    %c0_2 = arith.constant 0 : index
    %1 = vector.load %arg1[%c0_1, %c1, %c0_2] : memref<1x26x32xf32, #tpu.memory_space<vmem>>, vector<1x25x32xf32>
    %2 = vector.shape_cast %1 : vector<1x25x32xf32> to vector<25x32xf32>
    %c0_3 = arith.constant 0 : index
    %c0_4 = arith.constant 0 : index
    %c0_5 = arith.constant 0 : index
    %3 = vector.load %arg2[%c0_3, %c0_4, %c0_5] : memref<3x32x32xf32, #tpu.memory_space<vmem>>, vector<1x32x32xf32>
    %4 = vector.shape_cast %3 : vector<1x32x32xf32> to vector<32x32xf32>
    %cst = arith.constant dense<0.000000e+00> : vector<25x32xf32>
    %5 = tpu.matmul %2, %4, %cst {dimension_numbers = #tpu.dot_dimension_numbers<[1], [0], [0], [1], [0, 0, 1, 1], [], []>} : vector<25x32xf32>, vector<32x32xf32>, vector<25x32xf32> -> vector<25x32xf32>
    %c0_6 = arith.constant 0 : index
    %c0_7 = arith.constant 0 : index
    %c0_8 = arith.constant 0 : index
    %6 = vector.load %arg1[%c0_6, %c0_7, %c0_8] : memref<1x26x32xf32, #tpu.memory_space<vmem>>, vector<1x25x32xf32>
    %7 = vector.shape_cast %6 : vector<1x25x32xf32> to vector<25x32xf32>
    %c2 = arith.constant 2 : index
    %c0_9 = arith.constant 0 : index
    %c0_10 = arith.constant 0 : index
    %8 = vector.load %arg2[%c2, %c0_9, %c0_10] : memref<3x32x32xf32, #tpu.memory_space<vmem>>, vector<1x32x32xf32>
    %9 = vector.shape_cast %8 : vector<1x32x32xf32> to vector<32x32xf32>
    %cst_11 = arith.constant dense<0.000000e+00> : vector<25x32xf32>
    %10 = tpu.matmul %7, %9, %cst_11 {dimension_numbers = #tpu.dot_dimension_numbers<[1], [0], [0], [1], [0, 0, 1, 1], [], []>} : vector<25x32xf32>, vector<32x32xf32>, vector<25x32xf32> -> vector<25x32xf32>
    %11 = arith.addf %5, %10 : vector<25x32xf32>
    %12 = vector.broadcast %0 : vector<1x32xf32> to vector<25x32xf32>
    %13 = arith.addf %11, %12 : vector<25x32xf32>
    %cst_12 = arith.constant 0.000000e+00 : f32
    %14 = vector.broadcast %cst_12 : f32 to vector<25x32xf32>
    %15 = arith.maximumf %13, %14 : vector<25x32xf32>
    %cst_13 = arith.constant 1.000000e+00 : f32
    %16 = vector.broadcast %cst_13 : f32 to vector<25x32xf32>
    %17 = arith.minimumf %15, %16 : vector<25x32xf32>
    %c0_14 = arith.constant 0 : index
    %c0_15 = arith.constant 0 : index
    %c0_16 = arith.constant 0 : index
    %18 = vector.load %arg4[%c0_14, %c0_15, %c0_16] : memref<1x25x32xf32, #tpu.memory_space<vmem>>, vector<1x25x32xf32>
    %19 = vector.shape_cast %18 : vector<1x25x32xf32> to vector<25x32xf32>
    %20 = vector.shape_cast %17 : vector<25x32xf32> to vector<1x25x32xf32>
    tpu.vector_store %arg4[%c0_14, %c0_15, %c0_16], %20 {strides = array<i32>} : memref<1x25x32xf32, #tpu.memory_space<vmem>>, vector<1x25x32xf32>,
    %c0_17 = arith.constant 0 : index
    %c1_18 = arith.constant 1 : index
    %c0_19 = arith.constant 0 : index
    %21 = vector.load %arg1[%c0_17, %c1_18, %c0_19] : memref<1x26x32xf32, #tpu.memory_space<vmem>>, vector<1x25x32xf32>
    %22 = vector.shape_cast %21 : vector<1x25x32xf32> to vector<25x32xf32>
    %c1_20 = arith.constant 1 : index
    %c0_21 = arith.constant 0 : index
    %c0_22 = arith.constant 0 : index
    %23 = vector.load %arg2[%c1_20, %c0_21, %c0_22] : memref<3x32x32xf32, #tpu.memory_space<vmem>>, vector<1x32x32xf32>
    %24 = vector.shape_cast %23 : vector<1x32x32xf32> to vector<32x32xf32>
    %cst_23 = arith.constant dense<0.000000e+00> : vector<25x32xf32>
    %25 = tpu.matmul %22, %24, %cst_23 {dimension_numbers = #tpu.dot_dimension_numbers<[1], [0], [0], [1], [0, 0, 1, 1], [], []>} : vector<25x32xf32>, vector<32x32xf32>, vector<25x32xf32> -> vector<25x32xf32>
    %26 = vector.broadcast %0 : vector<1x32xf32> to vector<25x32xf32>
    %27 = arith.addf %25, %26 : vector<25x32xf32>
    %cst_24 = arith.constant 0.000000e+00 : f32
    %28 = vector.broadcast %cst_24 : f32 to vector<25x32xf32>
    %29 = arith.maximumf %27, %28 : vector<25x32xf32>
    %cst_25 = arith.constant 1.000000e+00 : f32
    %30 = vector.broadcast %cst_25 : f32 to vector<25x32xf32>
    %31 = arith.minimumf %29, %30 : vector<25x32xf32>
    %c0_26 = arith.constant 0 : index
    %c0_27 = arith.constant 0 : index
    %c0_28 = arith.constant 0 : index
    %32 = vector.load %arg5[%c0_26, %c0_27, %c0_28] : memref<1x25x32xf32, #tpu.memory_space<vmem>>, vector<1x25x32xf32>
    %33 = vector.shape_cast %32 : vector<1x25x32xf32> to vector<25x32xf32>
    %34 = vector.shape_cast %31 : vector<25x32xf32> to vector<1x25x32xf32>
    tpu.vector_store %arg5[%c0_26, %c0_27, %c0_28], %34 {strides = array<i32>} : memref<1x25x32xf32, #tpu.memory_space<vmem>>, vector<1x25x32xf32>,
    return
  }
  func.func @transform_0(%arg0: i32) -> (i32, i32, i32) {
    %c0_i32 = arith.constant 0 : i32
    %c0_i32_0 = arith.constant 0 : i32
    %c0_i32_1 = arith.constant 0 : i32
    return %arg0, %c0_i32, %c0_i32_0 : i32, i32, i32
  }
  func.func @transform_1(%arg0: i32) -> (i32, i32, i32) {
    %c0_i32 = arith.constant 0 : i32
    %c0_i32_0 = arith.constant 0 : i32
    %c0_i32_1 = arith.constant 0 : i32
    %c0_i32_2 = arith.constant 0 : i32
    return %c0_i32, %c0_i32_0, %c0_i32_1 : i32, i32, i32
  }
  func.func @transform_2(%arg0: i32) -> (i32, i32) {
    %c0_i32 = arith.constant 0 : i32
    %c0_i32_0 = arith.constant 0 : i32
    %c0_i32_1 = arith.constant 0 : i32
    return %c0_i32, %c0_i32_0 : i32, i32
  }
  func.func @transform_3(%arg0: i32) -> (i32, i32, i32) {
    %c0_i32 = arith.constant 0 : i32
    %c0_i32_0 = arith.constant 0 : i32
    %c0_i32_1 = arith.constant 0 : i32
    return %arg0, %c0_i32, %c0_i32_0 : i32, i32, i32
  }
  func.func @transform_4(%arg0: i32) -> (i32, i32, i32) {
    %c0_i32 = arith.constant 0 : i32
    %c0_i32_0 = arith.constant 0 : i32
    %c0_i32_1 = arith.constant 0 : i32
    return %arg0, %c0_i32, %c0_i32_0 : i32, i32, i32
  }
}

module attributes {stable_mosaic.version = 11 : i64} {
  func.func @kernel(%arg0: i32, %arg1: memref<1x54x32xf32, #tpu.memory_space<vmem>>, %arg2: memref<5x32x10xf32, #tpu.memory_space<vmem>>, %arg3: memref<1x10xf32, #tpu.memory_space<vmem>>, %arg4: memref<1x52x10xf32, #tpu.memory_space<vmem>>, %arg5: memref<1x52x10xf32, #tpu.memory_space<vmem>>) attributes {dimension_semantics = [#tpu.dimension_semantics<parallel>], iteration_bounds = array<i64: 2>, scalar_prefetch = 0 : i64, scratch_operands = 0 : i64, tpu.core_type = #tpu.core_type<tc>, window_params = [{transform_indices = @transform_0, window_bounds = array<i64: 1, 54, 32>}, {pipeline_mode = #tpu.pipeline_mode<synchronous>, transform_indices = @transform_1, window_bounds = array<i64: 5, 32, 10>}, {pipeline_mode = #tpu.pipeline_mode<synchronous>, transform_indices = @transform_2, window_bounds = array<i64: 1, 10>}, {transform_indices = @transform_3, window_bounds = array<i64: 1, 52, 10>}, {transform_indices = @transform_4, window_bounds = array<i64: 1, 52, 10>}]} {
    %c0 = arith.constant 0 : index
    %c0_0 = arith.constant 0 : index
    %0 = vector.load %arg3[%c0, %c0_0] : memref<1x10xf32, #tpu.memory_space<vmem>>, vector<1x10xf32>
    %c0_1 = arith.constant 0 : index
    %c2 = arith.constant 2 : index
    %c0_2 = arith.constant 0 : index
    %1 = vector.load %arg1[%c0_1, %c2, %c0_2] : memref<1x54x32xf32, #tpu.memory_space<vmem>>, vector<1x52x32xf32>
    %2 = vector.shape_cast %1 : vector<1x52x32xf32> to vector<52x32xf32>
    %c0_3 = arith.constant 0 : index
    %c0_4 = arith.constant 0 : index
    %c0_5 = arith.constant 0 : index
    %3 = vector.load %arg2[%c0_3, %c0_4, %c0_5] : memref<5x32x10xf32, #tpu.memory_space<vmem>>, vector<1x32x10xf32>
    %4 = vector.shape_cast %3 : vector<1x32x10xf32> to vector<32x10xf32>
    %cst = arith.constant dense<0.000000e+00> : vector<52x10xf32>
    %5 = tpu.matmul %2, %4, %cst {dimension_numbers = #tpu.dot_dimension_numbers<[1], [0], [0], [1], [0, 0, 1, 1], [], []>} : vector<52x32xf32>, vector<32x10xf32>, vector<52x10xf32> -> vector<52x10xf32>
    %c0_6 = arith.constant 0 : index
    %c1 = arith.constant 1 : index
    %c0_7 = arith.constant 0 : index
    %6 = vector.load %arg1[%c0_6, %c1, %c0_7] : memref<1x54x32xf32, #tpu.memory_space<vmem>>, vector<1x52x32xf32>
    %7 = vector.shape_cast %6 : vector<1x52x32xf32> to vector<52x32xf32>
    %c2_8 = arith.constant 2 : index
    %c0_9 = arith.constant 0 : index
    %c0_10 = arith.constant 0 : index
    %8 = vector.load %arg2[%c2_8, %c0_9, %c0_10] : memref<5x32x10xf32, #tpu.memory_space<vmem>>, vector<1x32x10xf32>
    %9 = vector.shape_cast %8 : vector<1x32x10xf32> to vector<32x10xf32>
    %cst_11 = arith.constant dense<0.000000e+00> : vector<52x10xf32>
    %10 = tpu.matmul %7, %9, %cst_11 {dimension_numbers = #tpu.dot_dimension_numbers<[1], [0], [0], [1], [0, 0, 1, 1], [], []>} : vector<52x32xf32>, vector<32x10xf32>, vector<52x10xf32> -> vector<52x10xf32>
    %11 = arith.addf %5, %10 : vector<52x10xf32>
    %c0_12 = arith.constant 0 : index
    %c0_13 = arith.constant 0 : index
    %c0_14 = arith.constant 0 : index
    %12 = vector.load %arg1[%c0_12, %c0_13, %c0_14] : memref<1x54x32xf32, #tpu.memory_space<vmem>>, vector<1x52x32xf32>
    %13 = vector.shape_cast %12 : vector<1x52x32xf32> to vector<52x32xf32>
    %c4 = arith.constant 4 : index
    %c0_15 = arith.constant 0 : index
    %c0_16 = arith.constant 0 : index
    %14 = vector.load %arg2[%c4, %c0_15, %c0_16] : memref<5x32x10xf32, #tpu.memory_space<vmem>>, vector<1x32x10xf32>
    %15 = vector.shape_cast %14 : vector<1x32x10xf32> to vector<32x10xf32>
    %cst_17 = arith.constant dense<0.000000e+00> : vector<52x10xf32>
    %16 = tpu.matmul %13, %15, %cst_17 {dimension_numbers = #tpu.dot_dimension_numbers<[1], [0], [0], [1], [0, 0, 1, 1], [], []>} : vector<52x32xf32>, vector<32x10xf32>, vector<52x10xf32> -> vector<52x10xf32>
    %17 = arith.addf %11, %16 : vector<52x10xf32>
    %18 = vector.broadcast %0 : vector<1x10xf32> to vector<52x10xf32>
    %19 = arith.addf %17, %18 : vector<52x10xf32>
    %cst_18 = arith.constant 0.000000e+00 : f32
    %20 = vector.broadcast %cst_18 : f32 to vector<52x10xf32>
    %21 = arith.maximumf %19, %20 : vector<52x10xf32>
    %c0_19 = arith.constant 0 : index
    %c0_20 = arith.constant 0 : index
    %c0_21 = arith.constant 0 : index
    %22 = vector.load %arg4[%c0_19, %c0_20, %c0_21] : memref<1x52x10xf32, #tpu.memory_space<vmem>>, vector<1x52x10xf32>
    %23 = vector.shape_cast %22 : vector<1x52x10xf32> to vector<52x10xf32>
    %24 = vector.shape_cast %21 : vector<52x10xf32> to vector<1x52x10xf32>
    tpu.vector_store %arg4[%c0_19, %c0_20, %c0_21], %24 {strides = array<i32>} : memref<1x52x10xf32, #tpu.memory_space<vmem>>, vector<1x52x10xf32>,
    %c0_22 = arith.constant 0 : index
    %c2_23 = arith.constant 2 : index
    %c0_24 = arith.constant 0 : index
    %25 = vector.load %arg1[%c0_22, %c2_23, %c0_24] : memref<1x54x32xf32, #tpu.memory_space<vmem>>, vector<1x52x32xf32>
    %26 = vector.shape_cast %25 : vector<1x52x32xf32> to vector<52x32xf32>
    %c1_25 = arith.constant 1 : index
    %c0_26 = arith.constant 0 : index
    %c0_27 = arith.constant 0 : index
    %27 = vector.load %arg2[%c1_25, %c0_26, %c0_27] : memref<5x32x10xf32, #tpu.memory_space<vmem>>, vector<1x32x10xf32>
    %28 = vector.shape_cast %27 : vector<1x32x10xf32> to vector<32x10xf32>
    %cst_28 = arith.constant dense<0.000000e+00> : vector<52x10xf32>
    %29 = tpu.matmul %26, %28, %cst_28 {dimension_numbers = #tpu.dot_dimension_numbers<[1], [0], [0], [1], [0, 0, 1, 1], [], []>} : vector<52x32xf32>, vector<32x10xf32>, vector<52x10xf32> -> vector<52x10xf32>
    %c0_29 = arith.constant 0 : index
    %c1_30 = arith.constant 1 : index
    %c0_31 = arith.constant 0 : index
    %30 = vector.load %arg1[%c0_29, %c1_30, %c0_31] : memref<1x54x32xf32, #tpu.memory_space<vmem>>, vector<1x52x32xf32>
    %31 = vector.shape_cast %30 : vector<1x52x32xf32> to vector<52x32xf32>
    %c3 = arith.constant 3 : index
    %c0_32 = arith.constant 0 : index
    %c0_33 = arith.constant 0 : index
    %32 = vector.load %arg2[%c3, %c0_32, %c0_33] : memref<5x32x10xf32, #tpu.memory_space<vmem>>, vector<1x32x10xf32>
    %33 = vector.shape_cast %32 : vector<1x32x10xf32> to vector<32x10xf32>
    %cst_34 = arith.constant dense<0.000000e+00> : vector<52x10xf32>
    %34 = tpu.matmul %31, %33, %cst_34 {dimension_numbers = #tpu.dot_dimension_numbers<[1], [0], [0], [1], [0, 0, 1, 1], [], []>} : vector<52x32xf32>, vector<32x10xf32>, vector<52x10xf32> -> vector<52x10xf32>
    %35 = arith.addf %29, %34 : vector<52x10xf32>
    %36 = vector.broadcast %0 : vector<1x10xf32> to vector<52x10xf32>
    %37 = arith.addf %35, %36 : vector<52x10xf32>
    %cst_35 = arith.constant 0.000000e+00 : f32
    %38 = vector.broadcast %cst_35 : f32 to vector<52x10xf32>
    %39 = arith.maximumf %37, %38 : vector<52x10xf32>
    %c0_36 = arith.constant 0 : index
    %c0_37 = arith.constant 0 : index
    %c0_38 = arith.constant 0 : index
    %40 = vector.load %arg5[%c0_36, %c0_37, %c0_38] : memref<1x52x10xf32, #tpu.memory_space<vmem>>, vector<1x52x10xf32>
    %41 = vector.shape_cast %40 : vector<1x52x10xf32> to vector<52x10xf32>
    %42 = vector.shape_cast %39 : vector<52x10xf32> to vector<1x52x10xf32>
    tpu.vector_store %arg5[%c0_36, %c0_37, %c0_38], %42 {strides = array<i32>} : memref<1x52x10xf32, #tpu.memory_space<vmem>>, vector<1x52x10xf32>,
    return
  }
  func.func @transform_0(%arg0: i32) -> (i32, i32, i32) {
    %c0_i32 = arith.constant 0 : i32
    %c0_i32_0 = arith.constant 0 : i32
    %c0_i32_1 = arith.constant 0 : i32
    return %arg0, %c0_i32, %c0_i32_0 : i32, i32, i32
  }
  func.func @transform_1(%arg0: i32) -> (i32, i32, i32) {
    %c0_i32 = arith.constant 0 : i32
    %c0_i32_0 = arith.constant 0 : i32
    %c0_i32_1 = arith.constant 0 : i32
    %c0_i32_2 = arith.constant 0 : i32
    return %c0_i32, %c0_i32_0, %c0_i32_1 : i32, i32, i32
  }
  func.func @transform_2(%arg0: i32) -> (i32, i32) {
    %c0_i32 = arith.constant 0 : i32
    %c0_i32_0 = arith.constant 0 : i32
    %c0_i32_1 = arith.constant 0 : i32
    return %c0_i32, %c0_i32_0 : i32, i32
  }
  func.func @transform_3(%arg0: i32) -> (i32, i32, i32) {
    %c0_i32 = arith.constant 0 : i32
    %c0_i32_0 = arith.constant 0 : i32
    %c0_i32_1 = arith.constant 0 : i32
    return %arg0, %c0_i32, %c0_i32_0 : i32, i32, i32
  }
  func.func @transform_4(%arg0: i32) -> (i32, i32, i32) {
    %c0_i32 = arith.constant 0 : i32
    %c0_i32_0 = arith.constant 0 : i32
    %c0_i32_1 = arith.constant 0 : i32
    return %arg0, %c0_i32, %c0_i32_0 : i32, i32, i32
  }
}

</mosaic_0001>

<llo_original>
// kernel: emg_model2_forward.14
$region0: #{emg_model2_forward.14}
  #allocation0 [shape = 'u32[]', space=smem, size = 0x4, offset = 0x4, fixed_abs, tag = 'smem constant byte address 0x4 - core index']
  #allocation1 [shape = 'u32[144,128]{1,0:T(1,128)}', space=vmem, size = 0x12000, scoped, tag = 'internal scratch']
  %s0 = inlined_call_operand.vmem [shape: f32[2,7,128], index: 0, kind: input, shape index: {}]
  %s1 = inlined_call_operand.vmem [shape: f32[2,128,128], index: 1, kind: input, shape index: {}]
  %s2 = inlined_call_operand.vmem [shape: f32[1,128], index: 2, kind: input, shape index: {}]
  %s3 = inlined_call_operand.vmem [shape: f32[2,6,128], index: 3, kind: output, shape index: {}]
  %s4 = sld [smem:[#allocation0]]
  $region45: #{emg_model2_forward.14} parent=0
    _
  %s6 = ssub.s32 1, %s4
  %s7 = scalar_select 0, %s6, %s4
  loop: start=0, step=1, limit=4
  $region2: #{emg_model2_forward.14} parent=0 // loop_pre_header
    _
  $region3: #{emg_model2_forward.14} parent=0 // loop_header
    %s9 = sphi 0, %s13
    %p10 = scmp.ge.s32.totalorder %s9, 4
    %s19 = sphi 0, %s21
    %s22 = sphi 0, %s19
    %s23 = sphi 0, %s22
    %s39 = sphi 0, %s23
    %s43 = sphi 0, %s43
    %s45 = sphi 0, %s43
    %s46 = sphi 0, %s45
    %s60 = sphi 0, %s46
    %s64 = sphi 0, %s64
    %s66 = sphi 0, %s64
    %s67 = sphi 0, %s66
    %s81 = sphi 0, %s67
    %s87 = sphi 0, %s89
    %s90 = sphi 0, %s87
    %s91 = sphi 0, %s90
    %s107 = sphi 0, %s91
  $region4: #{emg_model2_forward.14} parent=0 // loop_header_branch
    %12 = sbr.rel (%p10) target = $region8
  $region5: #{emg_model2_forward.14} parent=0 // loop_body
    %s14 = ssub.s32 %s9, 1
    %s15 = ssub.s32 %s9, 2
    %s16 = sadd.s32 %s9, 1
    %s17 = ssub.s32 %s9, %s16
    %p18 = scmp.eq.s32.totalorder %s17, 0
    %s20 = sadd.s32 %s19, 1
    %s21 = scalar_select %p18, %s19, %s20
    %p24 = pneg %p18
    %p25 = scmp.eq.s32.totalorder %s9, 1
    %p26 = por %p24, %p25
    %p27 = scmp.ne.s32.totalorder %s19, %s22
    %p28 = scmp.eq.s32.totalorder %s9, 0
    %p29 = por %p27, %p28
    %p30 = scmp.ne.s32.totalorder %s19, %s22
    %p31 = scmp.eq.s32.totalorder %s14, 1
    %p32 = por %p30, %p31
    %p33 = scmp.ne.s32.totalorder %s22, %s23
    %p34 = scmp.eq.s32.totalorder %s14, 0
    %p35 = por %p33, %p34
    %p36 = scmp.ne.s32.totalorder %s22, %s23
    %p37 = scmp.eq.s32.totalorder %s15, 1
    %p38 = por %p36, %p37
    %p40 = scmp.ne.s32.totalorder %s23, %s39
    %p41 = scmp.eq.s32.totalorder %s15, 0
    %p42 = por %p40, %p41
    %s44 = sadd.s32 %s43, 1
    %p47 = scmp.eq.s32.totalorder %s9, 1
    %p48 = scmp.ne.s32.totalorder %s43, %s45
    %p49 = scmp.eq.s32.totalorder %s9, 0
    %p50 = por %p48, %p49
    %p51 = scmp.ne.s32.totalorder %s43, %s45
    %p52 = scmp.eq.s32.totalorder %s14, 1
    %p53 = por %p51, %p52
    %p54 = scmp.ne.s32.totalorder %s45, %s46
    %p55 = scmp.eq.s32.totalorder %s14, 0
    %p56 = por %p54, %p55
    %p57 = scmp.ne.s32.totalorder %s45, %s46
    %p58 = scmp.eq.s32.totalorder %s15, 1
    %p59 = por %p57, %p58
    %p61 = scmp.ne.s32.totalorder %s46, %s60
    %p62 = scmp.eq.s32.totalorder %s15, 0
    %p63 = por %p61, %p62
    %s65 = sadd.s32 %s64, 1
    %p68 = scmp.eq.s32.totalorder %s9, 1
    %p69 = scmp.ne.s32.totalorder %s64, %s66
    %p70 = scmp.eq.s32.totalorder %s9, 0
    %p71 = por %p69, %p70
    %p72 = scmp.ne.s32.totalorder %s64, %s66
    %p73 = scmp.eq.s32.totalorder %s14, 1
    %p74 = por %p72, %p73
    %p75 = scmp.ne.s32.totalorder %s66, %s67
    %p76 = scmp.eq.s32.totalorder %s14, 0
    %p77 = por %p75, %p76
    %p78 = scmp.ne.s32.totalorder %s66, %s67
    %p79 = scmp.eq.s32.totalorder %s15, 1
    %p80 = por %p78, %p79
    %p82 = scmp.ne.s32.totalorder %s67, %s81
    %p83 = scmp.eq.s32.totalorder %s15, 0
    %p84 = por %p82, %p83
    %s85 = ssub.s32 %s9, %s16
    %p86 = scmp.eq.s32.totalorder %s85, 0
    %s88 = sadd.s32 %s87, 1
    %s89 = scalar_select %p86, %s87, %s88
    %p92 = pneg %p86
    %p93 = scmp.eq.s32.totalorder %s9, 1
    %p94 = por %p92, %p93
    %p95 = scmp.ne.s32.totalorder %s87, %s90
    %p96 = scmp.eq.s32.totalorder %s9, 0
    %p97 = por %p95, %p96
    %p98 = scmp.ne.s32.totalorder %s87, %s90
    %p99 = scmp.eq.s32.totalorder %s14, 1
    %p100 = por %p98, %p99
    %p101 = scmp.ne.s32.totalorder %s90, %s91
    %p102 = scmp.eq.s32.totalorder %s14, 0
    %p103 = por %p101, %p102
    %p104 = scmp.ne.s32.totalorder %s90, %s91
    %p105 = scmp.eq.s32.totalorder %s15, 1
    %p106 = por %p104, %p105
    %p108 = scmp.ne.s32.totalorder %s91, %s107
    %p109 = scmp.eq.s32.totalorder %s15, 0
    %p110 = por %p108, %p109
    %p111 = scmp.le.s32.totalorder 1, %s9
    %p112 = scmp.lt.s32.totalorder %s9, 3
    %p113 = pnand %p111, %p112
    %p114 = pneg %p113
    // Predicated region
    $region9: #{emg_model2_forward.14} parent=5 // pred_check
      _
    $region10: #{emg_model2_forward.14} parent=5 // pred_check_branch
      %116 = sbr.rel (%p113) target = $region12
    $region11: #{emg_model2_forward.14} parent=5 // pred_region
      %s117 = ssub.s32 %s9, 1
      // Predicated region
      $region13: #{emg_model2_forward.14} parent=11 // pred_check
        %p118 = pneg %p56
      $region14: #{emg_model2_forward.14} parent=11 // pred_check_branch
        %120 = sbr.rel (%p118) target = $region16
      $region15: #{emg_model2_forward.14} parent=11 // pred_region
        _
      $region16: #{emg_model2_forward.14} parent=11 // pred_fallthru
        _
      // Predicated region
      $region17: #{emg_model2_forward.14} parent=11 // pred_check
        %p121 = pneg %p77
      $region18: #{emg_model2_forward.14} parent=11 // pred_check_branch
        %123 = sbr.rel (%p121) target = $region20
      $region19: #{emg_model2_forward.14} parent=11 // pred_region
        _
      $region20: #{emg_model2_forward.14} parent=11 // pred_fallthru
        _
    $region12: #{emg_model2_forward.14} parent=5 // pred_fallthru
      _
    %p124 = scmp.lt.s32.totalorder %s9, 2
    // Predicated region
    $region21: #{emg_model2_forward.14} parent=5 // pred_check
      %p125 = pneg %p124
    $region22: #{emg_model2_forward.14} parent=5 // pred_check_branch
      %127 = sbr.rel (%p125) target = $region24
    $region23: #{emg_model2_forward.14} parent=5 // pred_region
      // Predicated region
      $region25: #{emg_model2_forward.14} parent=23 // pred_check
        %p128 = pneg %p29
      $region26: #{emg_model2_forward.14} parent=23 // pred_check_branch
        %130 = sbr.rel (%p128) target = $region28
      $region27: #{emg_model2_forward.14} parent=23 // pred_region
        %p131 = scmp.lt.s32.totalorder %s9, 1
        %s132 = scalar_select %p131, %s9, 1
        %s133 = smul.addr %s132, 8
        %s134 = scalar_lea.vmem %s0, %s133
      $region28: #{emg_model2_forward.14} parent=23 // pred_fallthru
        _
    $region24: #{emg_model2_forward.14} parent=5 // pred_fallthru
      _
    %p135 = scmp.le.s32.totalorder 1, %s9
    %p136 = scmp.lt.s32.totalorder %s9, 3
    %p137 = pnand %p135, %p136
    %p138 = pneg %p137
    // Predicated region
    $region29: #{emg_model2_forward.14} parent=5 // pred_check
      _
    $region30: #{emg_model2_forward.14} parent=5 // pred_check_branch
      %140 = sbr.rel (%p137) target = $region32
    $region31: #{emg_model2_forward.14} parent=5 // pred_region
      %s141 = ssub.s32 %s9, 1
      %p142 = scmp.lt.s32.totalorder %s14, 1
      %s143 = scalar_select %p142, %s14, 1
      %s144 = smul.addr %s143, 8
      %s145 = scalar_lea.vmem %s0, %s144
      %p146 = pneg %p35
      %p147 = pneg %p32
      %p148 = pneg %p56
      %p149 = pneg %p53
      %p150 = pneg %p77
      %p151 = pneg %p74
      %p152 = pneg %p103
      %p153 = pneg %p100
      %p154 = scmp.lt.s32.totalorder %s14, 1
      %s155 = scalar_select %p154, %s14, 1
      %s156 = smul.addr %s155, 8
      %s157 = scalar_lea.vmem %s3, %s156
      %p158 = scmp.lt.s32.totalorder %s14, 1
      %s159 = scalar_select %p158, %s14, 1
      %s160 = smul.addr %s159, 8
      %s161 = scalar_lea.vmem %s0, %s160
      %p162 = scmp.lt.s32.totalorder %s14, 1
      %s163 = scalar_select %p162, %s14, 1
      %s164 = smul.addr %s163, 8
      %s165 = scalar_lea.vmem %s3, %s164
      %v166 = vld [vmem:[%s2] sm:$0x1]
      %v167 = vld [vmem:[%s161] sm:$0x3f]
      %v168 = vld [vmem:[%s1] sm:$0xff]
      %v169 = vld [vmem:[%s1 + $0x8] sm:$0xff]
      %v170 = vld [vmem:[%s1 + $0x10] sm:$0xff]
      %v171 = vld [vmem:[%s1 + $0x18] sm:$0xff]
      %v172 = vld [vmem:[%s1 + $0x20] sm:$0xff]
      %v173 = vld [vmem:[%s1 + $0x28] sm:$0xff]
      %v174 = vld [vmem:[%s1 + $0x30] sm:$0xff]
      %v175 = vld [vmem:[%s1 + $0x38] sm:$0xff]
      %v176 = vld [vmem:[%s1 + $0x40] sm:$0xff]
      %v177 = vld [vmem:[%s1 + $0x48] sm:$0xff]
      %v178 = vld [vmem:[%s1 + $0x50] sm:$0xff]
      %v179 = vld [vmem:[%s1 + $0x58] sm:$0xff]
      %v180 = vld [vmem:[%s1 + $0x60] sm:$0xff]
      %v181 = vld [vmem:[%s1 + $0x68] sm:$0xff]
      %v182 = vld [vmem:[%s1 + $0x70] sm:$0xff]
      %v183 = vld [vmem:[%s1 + $0x78] sm:$0xff]
      %v184 = vld [vmem:[%s161 + $0x1] sm:$0x3f]
      %s185 = scalar_lea.vmem %s1, 128
      %v186 = vld [vmem:[%s185] sm:$0xff]
      %v187 = vld [vmem:[%s185 + $0x8] sm:$0xff]
      %v188 = vld [vmem:[%s185 + $0x10] sm:$0xff]
      %v189 = vld [vmem:[%s185 + $0x18] sm:$0xff]
      %v190 = vld [vmem:[%s185 + $0x20] sm:$0xff]
      %v191 = vld [vmem:[%s185 + $0x28] sm:$0xff]
      %v192 = vld [vmem:[%s185 + $0x30] sm:$0xff]
      %v193 = vld [vmem:[%s185 + $0x38] sm:$0xff]
      %v194 = vld [vmem:[%s185 + $0x40] sm:$0xff]
      %v195 = vld [vmem:[%s185 + $0x48] sm:$0xff]
      %v196 = vld [vmem:[%s185 + $0x50] sm:$0xff]
      %v197 = vld [vmem:[%s185 + $0x58] sm:$0xff]
      %v198 = vld [vmem:[%s185 + $0x60] sm:$0xff]
      %v199 = vld [vmem:[%s185 + $0x68] sm:$0xff]
      %v200 = vld [vmem:[%s185 + $0x70] sm:$0xff]
      %v201 = vld [vmem:[%s185 + $0x78] sm:$0xff]
      %202 = vmatprep.subr.mxu0 0.0
      %203 = vmatpush1.msra.mxu0 %v186
      %204 = vmatprep.subr.mxu0 0.0
      %205 = vmatpush1.msra.mxu0 %v187
      %206 = vmatprep.subr.mxu0 0.0
      %207 = vmatpush1.msra.mxu0 %v188
      %208 = vmatprep.subr.mxu0 0.0
      %209 = vmatpush1.msra.mxu0 %v189
      %210 = vmatprep.subr.mxu0 0.0
      %211 = vmatpush1.msra.mxu0 %v190
      %212 = vmatprep.subr.mxu0 0.0
      %213 = vmatpush1.msra.mxu0 %v191
      %214 = vmatprep.subr.mxu0 0.0
      %215 = vmatpush1.msra.mxu0 %v192
      %216 = vmatprep.subr.mxu0 0.0
      %217 = vmatpush1.msra.mxu0 %v193
      %218 = vmatprep.subr.mxu0 0.0
      %219 = vmatpush1.msra.mxu0 %v194
      %220 = vmatprep.subr.mxu0 0.0
      %221 = vmatpush1.msra.mxu0 %v195
      %222 = vmatprep.subr.mxu0 0.0
      %223 = vmatpush1.msra.mxu0 %v196
      %224 = vmatprep.subr.mxu0 0.0
      %225 = vmatpush1.msra.mxu0 %v197
      %226 = vmatprep.subr.mxu0 0.0
      %227 = vmatpush1.msra.mxu0 %v198
      %228 = vmatprep.subr.mxu0 0.0
      %229 = vmatpush1.msra.mxu0 %v199
      %230 = vmatprep.subr.mxu0 0.0
      %231 = vmatpush1.msra.mxu0 %v200
      %232 = vmatprep.subr.mxu0 0.0
      %233 = vmatpush1.msra.mxu0 %v201
      %234 = vmatprep.subr.mxu0 0.0
      %235 = vmatpush1.msra.mxu0 0.0
      %236 = vmatprep.subr.mxu0 0.0
      %237 = vmatpush1.msra.mxu0 0.0
      %238 = vmatprep.subr.mxu0 0.0
      %239 = vmatpush1.msra.mxu0 0.0
      %240 = vmatprep.subr.mxu0 0.0
      %241 = vmatpush1.msra.mxu0 0.0
      %242 = vmatprep.subr.mxu0 0.0
      %243 = vmatpush1.msra.mxu0 0.0
      %244 = vmatprep.subr.mxu0 0.0
      %245 = vmatpush1.msra.mxu0 0.0
      %246 = vmatprep.subr.mxu0 0.0
      %247 = vmatpush1.msra.mxu0 0.0
      %248 = vmatprep.subr.mxu0 0.0
      %249 = vmatpush1.msra.mxu0 0.0
      %250 = vmatprep.subr.mxu0 0.0
      %251 = vmatpush1.msra.mxu0 0.0
      %252 = vmatprep.subr.mxu0 0.0
      %253 = vmatpush1.msra.mxu0 0.0
      %254 = vmatprep.subr.mxu0 0.0
      %255 = vmatpush1.msra.mxu0 0.0
      %256 = vmatprep.subr.mxu0 0.0
      %257 = vmatpush1.msra.mxu0 0.0
      %258 = vmatprep.subr.mxu0 0.0
      %259 = vmatpush1.msra.mxu0 0.0
      %260 = vmatprep.subr.mxu0 0.0
      %261 = vmatpush1.msra.mxu0 0.0
      %262 = vmatprep.subr.mxu0 0.0
      %263 = vmatpush1.msra.mxu0 0.0
      %264 = vmatprep.subr.mxu0 0.0
      %265 = vmatpush1.msra.mxu0 0.0
      %266 = vmatprep.mubr.f32.mxu0 0.0
      %267 = vmatmul.mubr.f32.gmra.mrb[0].mxu0 %v184
      %v268 = vpop.f32.mrb[0].mxu0
      %v269 = vadd.f32 0.0, %v268
      %v270 = vpop.f32.mrb[0].mxu0
      %271 = vdwg.mxu0
      %272 = vmatprep.subr.mxu0 0.0
      %273 = vmatpush1.msra.mxu0 %v168
      %274 = vmatprep.subr.mxu0 0.0
      %275 = vmatpush1.msra.mxu0 %v169
      %276 = vmatprep.subr.mxu0 0.0
      %277 = vmatpush1.msra.mxu0 %v170
      %278 = vmatprep.subr.mxu0 0.0
      %279 = vmatpush1.msra.mxu0 %v171
      %280 = vmatprep.subr.mxu0 0.0
      %281 = vmatpush1.msra.mxu0 %v172
      %282 = vmatprep.subr.mxu0 0.0
      %283 = vmatpush1.msra.mxu0 %v173
      %284 = vmatprep.subr.mxu0 0.0
      %285 = vmatpush1.msra.mxu0 %v174
      %286 = vmatprep.subr.mxu0 0.0
      %287 = vmatpush1.msra.mxu0 %v175
      %288 = vmatprep.subr.mxu0 0.0
      %289 = vmatpush1.msra.mxu0 %v176
      %290 = vmatprep.subr.mxu0 0.0
      %291 = vmatpush1.msra.mxu0 %v177
      %292 = vmatprep.subr.mxu0 0.0
      %293 = vmatpush1.msra.mxu0 %v178
      %294 = vmatprep.subr.mxu0 0.0
      %295 = vmatpush1.msra.mxu0 %v179
      %296 = vmatprep.subr.mxu0 0.0
      %297 = vmatpush1.msra.mxu0 %v180
      %298 = vmatprep.subr.mxu0 0.0
      %299 = vmatpush1.msra.mxu0 %v181
      %300 = vmatprep.subr.mxu0 0.0
      %301 = vmatpush1.msra.mxu0 %v182
      %302 = vmatprep.subr.mxu0 0.0
      %303 = vmatpush1.msra.mxu0 %v183
      %304 = vmatprep.subr.mxu0 0.0
      %305 = vmatpush1.msra.mxu0 0.0
      %306 = vmatprep.subr.mxu0 0.0
      %307 = vmatpush1.msra.mxu0 0.0
      %308 = vmatprep.subr.mxu0 0.0
      %309 = vmatpush1.msra.mxu0 0.0
      %310 = vmatprep.subr.mxu0 0.0
      %311 = vmatpush1.msra.mxu0 0.0
      %312 = vmatprep.subr.mxu0 0.0
      %313 = vmatpush1.msra.mxu0 0.0
      %314 = vmatprep.subr.mxu0 0.0
      %315 = vmatpush1.msra.mxu0 0.0
      %316 = vmatprep.subr.mxu0 0.0
      %317 = vmatpush1.msra.mxu0 0.0
      %318 = vmatprep.subr.mxu0 0.0
      %319 = vmatpush1.msra.mxu0 0.0
      %320 = vmatprep.subr.mxu0 0.0
      %321 = vmatpush1.msra.mxu0 0.0
      %322 = vmatprep.subr.mxu0 0.0
      %323 = vmatpush1.msra.mxu0 0.0
      %324 = vmatprep.subr.mxu0 0.0
      %325 = vmatpush1.msra.mxu0 0.0
      %326 = vmatprep.subr.mxu0 0.0
      %327 = vmatpush1.msra.mxu0 0.0
      %328 = vmatprep.subr.mxu0 0.0
      %329 = vmatpush1.msra.mxu0 0.0
      %330 = vmatprep.subr.mxu0 0.0
      %331 = vmatpush1.msra.mxu0 0.0
      %332 = vmatprep.subr.mxu0 0.0
      %333 = vmatpush1.msra.mxu0 0.0
      %334 = vmatprep.subr.mxu0 0.0
      %335 = vmatpush1.msra.mxu0 0.0
      %336 = vmatprep.mubr.f32.mxu0 0.0
      %337 = vmatmul.mubr.f32.gmra.mrb[0].mxu0 %v167
      %v338 = vpop.f32.mrb[0].mxu0
      %v339 = vadd.f32 %v269, %v338
      %v340 = vpop.f32.mrb[0].mxu0
      %341 = vdwg.mxu0
      %v343 = vlaneseq
      %v344 = vshrl.u32 %v343, 7
      %v345 = vsub.s32 0, %v344
      %v346 = vrot.slane %v166, %v345
      %v348 = vadd.f32 %v339, %v346
      %v349 = vmax.f32 %v348, 0.0
      %350 = vst [vmem:[%s165] sm:$0x3f] %v349
      %p351 = scmp.lt.s32.totalorder %s14, 1
      %s352 = scalar_select %p351, %s14, 1
      %s353 = smul.addr %s352, 8
      %s354 = scalar_lea.vmem %s3, %s353
      // Predicated region
      $region33: #{emg_model2_forward.14} parent=31 // pred_check
        %p355 = pneg %p100
      $region34: #{emg_model2_forward.14} parent=31 // pred_check_branch
        %357 = sbr.rel (%p355) target = $region36
      $region35: #{emg_model2_forward.14} parent=31 // pred_region
        _
      $region36: #{emg_model2_forward.14} parent=31 // pred_fallthru
        _
    $region32: #{emg_model2_forward.14} parent=5 // pred_fallthru
      _
    %p358 = scmp.le.s32.totalorder 2, %s9
    // Predicated region
    $region37: #{emg_model2_forward.14} parent=5 // pred_check
      %p359 = pneg %p358
    $region38: #{emg_model2_forward.14} parent=5 // pred_check_branch
      %361 = sbr.rel (%p359) target = $region40
    $region39: #{emg_model2_forward.14} parent=5 // pred_region
      %s362 = ssub.s32 %s9, 2
      // Predicated region
      $region41: #{emg_model2_forward.14} parent=39 // pred_check
        %p363 = pneg %p106
      $region42: #{emg_model2_forward.14} parent=39 // pred_check_branch
        %365 = sbr.rel (%p363) target = $region44
      $region43: #{emg_model2_forward.14} parent=39 // pred_region
        %p366 = scmp.lt.s32.totalorder %s15, 1
        %s367 = scalar_select %p366, %s15, 1
        %s368 = smul.addr %s367, 8
        %s369 = scalar_lea.vmem %s3, %s368
      $region44: #{emg_model2_forward.14} parent=39 // pred_fallthru
        _
    $region40: #{emg_model2_forward.14} parent=5 // pred_fallthru
      _
  $region6: #{emg_model2_forward.14} parent=0 // loop_footer
    %s13 = sadd.s32 1, %s9
  $region7: #{emg_model2_forward.14} parent=0 // loop_footer_branch
    %8 = sbr.rel target = $region3
  $region8: #{emg_model2_forward.14} parent=0 // loop_exit
    _

// kernel: emg_model2_forward.11
$region0: #{emg_model2_forward.11}
  #allocation0 [shape = 'u32[]', space=smem, size = 0x4, offset = 0x4, fixed_abs, tag = 'smem constant byte address 0x4 - core index']
  #allocation1 [shape = 'u32[144,128]{1,0:T(1,128)}', space=vmem, size = 0x12000, scoped, tag = 'internal scratch']
  %s0 = inlined_call_operand.vmem [shape: f32[2,64,16], index: 0, kind: input, shape index: {}]
  %s1 = inlined_call_operand.vmem [shape: f32[3,16,32], index: 1, kind: input, shape index: {}]
  %s2 = inlined_call_operand.vmem [shape: f32[1,32], index: 2, kind: input, shape index: {}]
  %s3 = inlined_call_operand.vmem [shape: f32[2,62,32], index: 3, kind: output, shape index: {}]
  %s4 = sld [smem:[#allocation0]]
  $region45: #{emg_model2_forward.11} parent=0
    _
  %s6 = ssub.s32 1, %s4
  %s7 = scalar_select 0, %s6, %s4
  loop: start=0, step=1, limit=4
  $region2: #{emg_model2_forward.11} parent=0 // loop_pre_header
    _
  $region3: #{emg_model2_forward.11} parent=0 // loop_header
    %s9 = sphi 0, %s13
    %p10 = scmp.ge.s32.totalorder %s9, 4
    %s19 = sphi 0, %s21
    %s22 = sphi 0, %s19
    %s23 = sphi 0, %s22
    %s39 = sphi 0, %s23
    %s43 = sphi 0, %s43
    %s45 = sphi 0, %s43
    %s46 = sphi 0, %s45
    %s60 = sphi 0, %s46
    %s64 = sphi 0, %s64
    %s66 = sphi 0, %s64
    %s67 = sphi 0, %s66
    %s81 = sphi 0, %s67
    %s87 = sphi 0, %s89
    %s90 = sphi 0, %s87
    %s91 = sphi 0, %s90
    %s107 = sphi 0, %s91
  $region4: #{emg_model2_forward.11} parent=0 // loop_header_branch
    %12 = sbr.rel (%p10) target = $region8
  $region5: #{emg_model2_forward.11} parent=0 // loop_body
    %s14 = ssub.s32 %s9, 1
    %s15 = ssub.s32 %s9, 2
    %s16 = sadd.s32 %s9, 1
    %s17 = ssub.s32 %s9, %s16
    %p18 = scmp.eq.s32.totalorder %s17, 0
    %s20 = sadd.s32 %s19, 1
    %s21 = scalar_select %p18, %s19, %s20
    %p24 = pneg %p18
    %p25 = scmp.eq.s32.totalorder %s9, 1
    %p26 = por %p24, %p25
    %p27 = scmp.ne.s32.totalorder %s19, %s22
    %p28 = scmp.eq.s32.totalorder %s9, 0
    %p29 = por %p27, %p28
    %p30 = scmp.ne.s32.totalorder %s19, %s22
    %p31 = scmp.eq.s32.totalorder %s14, 1
    %p32 = por %p30, %p31
    %p33 = scmp.ne.s32.totalorder %s22, %s23
    %p34 = scmp.eq.s32.totalorder %s14, 0
    %p35 = por %p33, %p34
    %p36 = scmp.ne.s32.totalorder %s22, %s23
    %p37 = scmp.eq.s32.totalorder %s15, 1
    %p38 = por %p36, %p37
    %p40 = scmp.ne.s32.totalorder %s23, %s39
    %p41 = scmp.eq.s32.totalorder %s15, 0
    %p42 = por %p40, %p41
    %s44 = sadd.s32 %s43, 1
    %p47 = scmp.eq.s32.totalorder %s9, 1
    %p48 = scmp.ne.s32.totalorder %s43, %s45
    %p49 = scmp.eq.s32.totalorder %s9, 0
    %p50 = por %p48, %p49
    %p51 = scmp.ne.s32.totalorder %s43, %s45
    %p52 = scmp.eq.s32.totalorder %s14, 1
    %p53 = por %p51, %p52
    %p54 = scmp.ne.s32.totalorder %s45, %s46
    %p55 = scmp.eq.s32.totalorder %s14, 0
    %p56 = por %p54, %p55
    %p57 = scmp.ne.s32.totalorder %s45, %s46
    %p58 = scmp.eq.s32.totalorder %s15, 1
    %p59 = por %p57, %p58
    %p61 = scmp.ne.s32.totalorder %s46, %s60
    %p62 = scmp.eq.s32.totalorder %s15, 0
    %p63 = por %p61, %p62
    %s65 = sadd.s32 %s64, 1
    %p68 = scmp.eq.s32.totalorder %s9, 1
    %p69 = scmp.ne.s32.totalorder %s64, %s66
    %p70 = scmp.eq.s32.totalorder %s9, 0
    %p71 = por %p69, %p70
    %p72 = scmp.ne.s32.totalorder %s64, %s66
    %p73 = scmp.eq.s32.totalorder %s14, 1
    %p74 = por %p72, %p73
    %p75 = scmp.ne.s32.totalorder %s66, %s67
    %p76 = scmp.eq.s32.totalorder %s14, 0
    %p77 = por %p75, %p76
    %p78 = scmp.ne.s32.totalorder %s66, %s67
    %p79 = scmp.eq.s32.totalorder %s15, 1
    %p80 = por %p78, %p79
    %p82 = scmp.ne.s32.totalorder %s67, %s81
    %p83 = scmp.eq.s32.totalorder %s15, 0
    %p84 = por %p82, %p83
    %s85 = ssub.s32 %s9, %s16
    %p86 = scmp.eq.s32.totalorder %s85, 0
    %s88 = sadd.s32 %s87, 1
    %s89 = scalar_select %p86, %s87, %s88
    %p92 = pneg %p86
    %p93 = scmp.eq.s32.totalorder %s9, 1
    %p94 = por %p92, %p93
    %p95 = scmp.ne.s32.totalorder %s87, %s90
    %p96 = scmp.eq.s32.totalorder %s9, 0
    %p97 = por %p95, %p96
    %p98 = scmp.ne.s32.totalorder %s87, %s90
    %p99 = scmp.eq.s32.totalorder %s14, 1
    %p100 = por %p98, %p99
    %p101 = scmp.ne.s32.totalorder %s90, %s91
    %p102 = scmp.eq.s32.totalorder %s14, 0
    %p103 = por %p101, %p102
    %p104 = scmp.ne.s32.totalorder %s90, %s91
    %p105 = scmp.eq.s32.totalorder %s15, 1
    %p106 = por %p104, %p105
    %p108 = scmp.ne.s32.totalorder %s91, %s107
    %p109 = scmp.eq.s32.totalorder %s15, 0
    %p110 = por %p108, %p109
    %p111 = scmp.le.s32.totalorder 1, %s9
    %p112 = scmp.lt.s32.totalorder %s9, 3
    %p113 = pnand %p111, %p112
    %p114 = pneg %p113
    // Predicated region
    $region9: #{emg_model2_forward.11} parent=5 // pred_check
      _
    $region10: #{emg_model2_forward.11} parent=5 // pred_check_branch
      %116 = sbr.rel (%p113) target = $region12
    $region11: #{emg_model2_forward.11} parent=5 // pred_region
      %s117 = ssub.s32 %s9, 1
      // Predicated region
      $region13: #{emg_model2_forward.11} parent=11 // pred_check
        %p118 = pneg %p56
      $region14: #{emg_model2_forward.11} parent=11 // pred_check_branch
        %120 = sbr.rel (%p118) target = $region16
      $region15: #{emg_model2_forward.11} parent=11 // pred_region
        _
      $region16: #{emg_model2_forward.11} parent=11 // pred_fallthru
        _
      // Predicated region
      $region17: #{emg_model2_forward.11} parent=11 // pred_check
        %p121 = pneg %p77
      $region18: #{emg_model2_forward.11} parent=11 // pred_check_branch
        %123 = sbr.rel (%p121) target = $region20
      $region19: #{emg_model2_forward.11} parent=11 // pred_region
        _
      $region20: #{emg_model2_forward.11} parent=11 // pred_fallthru
        _
    $region12: #{emg_model2_forward.11} parent=5 // pred_fallthru
      _
    %p124 = scmp.lt.s32.totalorder %s9, 2
    // Predicated region
    $region21: #{emg_model2_forward.11} parent=5 // pred_check
      %p125 = pneg %p124
    $region22: #{emg_model2_forward.11} parent=5 // pred_check_branch
      %127 = sbr.rel (%p125) target = $region24
    $region23: #{emg_model2_forward.11} parent=5 // pred_region
      // Predicated region
      $region25: #{emg_model2_forward.11} parent=23 // pred_check
        %p128 = pneg %p29
      $region26: #{emg_model2_forward.11} parent=23 // pred_check_branch
        %130 = sbr.rel (%p128) target = $region28
      $region27: #{emg_model2_forward.11} parent=23 // pred_region
        %p131 = scmp.lt.s32.totalorder %s9, 1
        %s132 = scalar_select %p131, %s9, 1
        %s133 = smul.addr %s132, 8
        %s134 = smul.addr %s133, 8
        %s135 = scalar_lea.vmem %s0, %s134
      $region28: #{emg_model2_forward.11} parent=23 // pred_fallthru
        _
    $region24: #{emg_model2_forward.11} parent=5 // pred_fallthru
      _
    %p136 = scmp.le.s32.totalorder 1, %s9
    %p137 = scmp.lt.s32.totalorder %s9, 3
    %p138 = pnand %p136, %p137
    %p139 = pneg %p138
    // Predicated region
    $region29: #{emg_model2_forward.11} parent=5 // pred_check
      _
    $region30: #{emg_model2_forward.11} parent=5 // pred_check_branch
      %141 = sbr.rel (%p138) target = $region32
    $region31: #{emg_model2_forward.11} parent=5 // pred_region
      %s142 = ssub.s32 %s9, 1
      %p143 = scmp.lt.s32.totalorder %s14, 1
      %s144 = scalar_select %p143, %s14, 1
      %s145 = smul.addr %s144, 8
      %s146 = smul.addr %s145, 8
      %s147 = scalar_lea.vmem %s0, %s146
      %p148 = pneg %p35
      %p149 = pneg %p32
      %p150 = pneg %p56
      %p151 = pneg %p53
      %p152 = pneg %p77
      %p153 = pneg %p74
      %p154 = pneg %p103
      %p155 = pneg %p100
      %p156 = scmp.lt.s32.totalorder %s14, 1
      %s157 = scalar_select %p156, %s14, 1
      %s158 = smul.addr %s157, 8
      %s159 = smul.addr %s158, 8
      %s160 = scalar_lea.vmem %s3, %s159
      %p161 = scmp.lt.s32.totalorder %s14, 1
      %s162 = scalar_select %p161, %s14, 1
      %s163 = smul.addr %s162, 8
      %s164 = smul.addr %s163, 8
      %s165 = scalar_lea.vmem %s0, %s164
      %p166 = scmp.lt.s32.totalorder %s14, 1
      %s167 = scalar_select %p166, %s14, 1
      %s168 = smul.addr %s167, 8
      %s169 = smul.addr %s168, 8
      %s170 = scalar_lea.vmem %s3, %s169
      %v171 = vld [vmem:[%s2] sm:$0x1]
      %v172 = vld [vmem:[%s165] sm:$0xff]
      %v173 = vld [vmem:[%s165 + $0x8] sm:$0xff]
      %v174 = vld [vmem:[%s165 + $0x10] sm:$0xff]
      %v175 = vld [vmem:[%s165 + $0x18] sm:$0xff]
      %v176 = vld [vmem:[%s165 + $0x20] sm:$0xff]
      %v177 = vld [vmem:[%s165 + $0x28] sm:$0xff]
      %v178 = vld [vmem:[%s165 + $0x30] sm:$0xff]
      %v179 = vld [vmem:[%s165 + $0x38] sm:$0x3f]
      %v180 = vld [vmem:[%s1] sm:$0xff]
      %v181 = vld [vmem:[%s1 + $0x8] sm:$0xff]
      %v182 = vld [vmem:[%s165 + $0x1] sm:$0xff]
      %v183 = vld [vmem:[%s165 + $0x9] sm:$0xff]
      %v184 = vld [vmem:[%s165 + $0x11] sm:$0xff]
      %v185 = vld [vmem:[%s165 + $0x19] sm:$0xff]
      %v186 = vld [vmem:[%s165 + $0x21] sm:$0xff]
      %v187 = vld [vmem:[%s165 + $0x29] sm:$0xff]
      %v188 = vld [vmem:[%s165 + $0x31] sm:$0xff]
      %v189 = vld [vmem:[%s165 + $0x39] sm:$0x3f]
      %s190 = scalar_lea.vmem %s1, 16
      %v191 = vld [vmem:[%s190] sm:$0xff]
      %v192 = vld [vmem:[%s190 + $0x8] sm:$0xff]
      %vm193 = vcmask 130048
      %v195 = vsel %vm193, %v182, 0
      %v198 = vsel %vm193, %v183, 0
      %v201 = vsel %vm193, %v184, 0
      %v204 = vsel %vm193, %v185, 0
      %v207 = vsel %vm193, %v186, 0
      %v210 = vsel %vm193, %v187, 0
      %v213 = vsel %vm193, %v188, 0
      %v216 = vsel %vm193, %v189, 0
      %218 = vmatprep.subr.mxu0 0.0
      %219 = vmatpush1.msra.mxu0 %v191
      %220 = vmatprep.subr.mxu0 0.0
      %221 = vmatpush1.msra.mxu0 %v192
      %222 = vmatprep.subr.mxu0 0.0
      %223 = vmatpush1.msra.mxu0 0.0
      %224 = vmatprep.subr.mxu0 0.0
      %225 = vmatpush1.msra.mxu0 0.0
      %226 = vmatprep.subr.mxu0 0.0
      %227 = vmatpush1.msra.mxu0 0.0
      %228 = vmatprep.subr.mxu0 0.0
      %229 = vmatpush1.msra.mxu0 0.0
      %230 = vmatprep.subr.mxu0 0.0
      %231 = vmatpush1.msra.mxu0 0.0
      %232 = vmatprep.subr.mxu0 0.0
      %233 = vmatpush1.msra.mxu0 0.0
      %234 = vmatprep.subr.mxu0 0.0
      %235 = vmatpush1.msra.mxu0 0.0
      %236 = vmatprep.subr.mxu0 0.0
      %237 = vmatpush1.msra.mxu0 0.0
      %238 = vmatprep.subr.mxu0 0.0
      %239 = vmatpush1.msra.mxu0 0.0
      %240 = vmatprep.subr.mxu0 0.0
      %241 = vmatpush1.msra.mxu0 0.0
      %242 = vmatprep.subr.mxu0 0.0
      %243 = vmatpush1.msra.mxu0 0.0
      %244 = vmatprep.subr.mxu0 0.0
      %245 = vmatpush1.msra.mxu0 0.0
      %246 = vmatprep.subr.mxu0 0.0
      %247 = vmatpush1.msra.mxu0 0.0
      %248 = vmatprep.subr.mxu0 0.0
      %249 = vmatpush1.msra.mxu0 0.0
      %250 = vmatprep.subr.mxu0 0.0
      %251 = vmatpush1.msra.mxu0 0.0
      %252 = vmatprep.subr.mxu0 0.0
      %253 = vmatpush1.msra.mxu0 0.0
      %254 = vmatprep.subr.mxu0 0.0
      %255 = vmatpush1.msra.mxu0 0.0
      %256 = vmatprep.subr.mxu0 0.0
      %257 = vmatpush1.msra.mxu0 0.0
      %258 = vmatprep.subr.mxu0 0.0
      %259 = vmatpush1.msra.mxu0 0.0
      %260 = vmatprep.subr.mxu0 0.0
      %261 = vmatpush1.msra.mxu0 0.0
      %262 = vmatprep.subr.mxu0 0.0
      %263 = vmatpush1.msra.mxu0 0.0
      %264 = vmatprep.subr.mxu0 0.0
      %265 = vmatpush1.msra.mxu0 0.0
      %266 = vmatprep.subr.mxu0 0.0
      %267 = vmatpush1.msra.mxu0 0.0
      %268 = vmatprep.subr.mxu0 0.0
      %269 = vmatpush1.msra.mxu0 0.0
      %270 = vmatprep.subr.mxu0 0.0
      %271 = vmatpush1.msra.mxu0 0.0
      %272 = vmatprep.subr.mxu0 0.0
      %273 = vmatpush1.msra.mxu0 0.0
      %274 = vmatprep.subr.mxu0 0.0
      %275 = vmatpush1.msra.mxu0 0.0
      %276 = vmatprep.subr.mxu0 0.0
      %277 = vmatpush1.msra.mxu0 0.0
      %278 = vmatprep.subr.mxu0 0.0
      %279 = vmatpush1.msra.mxu0 0.0
      %280 = vmatprep.subr.mxu0 0.0
      %281 = vmatpush1.msra.mxu0 0.0
      %282 = vmatprep.mubr.f32.mxu0 0.0
      %283 = vmatmul.mubr.f32.gmra.mrb[0].mxu0 %v195
      %v284 = vpop.f32.mrb[0].mxu0
      %v285 = vadd.f32 0.0, %v284
      %v286 = vpop.f32.mrb[0].mxu0
      %287 = vmatprep.mubr.f32.mxu0 0.0
      %288 = vmatmul.mubr.f32.gmra.mrb[0].mxu0 %v198
      %v289 = vpop.f32.mrb[0].mxu0
      %v290 = vadd.f32 0.0, %v289
      %v291 = vpop.f32.mrb[0].mxu0
      %292 = vmatprep.mubr.f32.mxu0 0.0
      %293 = vmatmul.mubr.f32.gmra.mrb[0].mxu0 %v201
      %v294 = vpop.f32.mrb[0].mxu0
      %v295 = vadd.f32 0.0, %v294
      %v296 = vpop.f32.mrb[0].mxu0
      %297 = vmatprep.mubr.f32.mxu0 0.0
      %298 = vmatmul.mubr.f32.gmra.mrb[0].mxu0 %v204
      %v299 = vpop.f32.mrb[0].mxu0
      %v300 = vadd.f32 0.0, %v299
      %v301 = vpop.f32.mrb[0].mxu0
      %302 = vmatprep.mubr.f32.mxu0 0.0
      %303 = vmatmul.mubr.f32.gmra.mrb[0].mxu0 %v207
      %v304 = vpop.f32.mrb[0].mxu0
      %v305 = vadd.f32 0.0, %v304
      %v306 = vpop.f32.mrb[0].mxu0
      %307 = vmatprep.mubr.f32.mxu0 0.0
      %308 = vmatmul.mubr.f32.gmra.mrb[0].mxu0 %v210
      %v309 = vpop.f32.mrb[0].mxu0
      %v310 = vadd.f32 0.0, %v309
      %v311 = vpop.f32.mrb[0].mxu0
      %312 = vmatprep.mubr.f32.mxu0 0.0
      %313 = vmatmul.mubr.f32.gmra.mrb[0].mxu0 %v213
      %v314 = vpop.f32.mrb[0].mxu0
      %v315 = vadd.f32 0.0, %v314
      %v316 = vpop.f32.mrb[0].mxu0
      %317 = vmatprep.mubr.f32.mxu0 0.0
      %318 = vmatmul.mubr.f32.gmra.mrb[0].mxu0 %v216
      %v319 = vpop.f32.mrb[0].mxu0
      %v320 = vadd.f32 0.0, %v319
      %v321 = vpop.f32.mrb[0].mxu0
      %322 = vdwg.mxu0
      %v324 = vsel %vm193, %v172, 0
      %v327 = vsel %vm193, %v173, 0
      %v330 = vsel %vm193, %v174, 0
      %v333 = vsel %vm193, %v175, 0
      %v336 = vsel %vm193, %v176, 0
      %v339 = vsel %vm193, %v177, 0
      %v342 = vsel %vm193, %v178, 0
      %v345 = vsel %vm193, %v179, 0
      %347 = vmatprep.subr.mxu0 0.0
      %348 = vmatpush1.msra.mxu0 %v180
      %349 = vmatprep.subr.mxu0 0.0
      %350 = vmatpush1.msra.mxu0 %v181
      %351 = vmatprep.subr.mxu0 0.0
      %352 = vmatpush1.msra.mxu0 0.0
      %353 = vmatprep.subr.mxu0 0.0
      %354 = vmatpush1.msra.mxu0 0.0
      %355 = vmatprep.subr.mxu0 0.0
      %356 = vmatpush1.msra.mxu0 0.0
      %357 = vmatprep.subr.mxu0 0.0
      %358 = vmatpush1.msra.mxu0 0.0
      %359 = vmatprep.subr.mxu0 0.0
      %360 = vmatpush1.msra.mxu0 0.0
      %361 = vmatprep.subr.mxu0 0.0
      %362 = vmatpush1.msra.mxu0 0.0
      %363 = vmatprep.subr.mxu0 0.0
      %364 = vmatpush1.msra.mxu0 0.0
      %365 = vmatprep.subr.mxu0 0.0
      %366 = vmatpush1.msra.mxu0 0.0
      %367 = vmatprep.subr.mxu0 0.0
      %368 = vmatpush1.msra.mxu0 0.0
      %369 = vmatprep.subr.mxu0 0.0
      %370 = vmatpush1.msra.mxu0 0.0
      %371 = vmatprep.subr.mxu0 0.0
      %372 = vmatpush1.msra.mxu0 0.0
      %373 = vmatprep.subr.mxu0 0.0
      %374 = vmatpush1.msra.mxu0 0.0
      %375 = vmatprep.subr.mxu0 0.0
      %376 = vmatpush1.msra.mxu0 0.0
      %377 = vmatprep.subr.mxu0 0.0
      %378 = vmatpush1.msra.mxu0 0.0
      %379 = vmatprep.subr.mxu0 0.0
      %380 = vmatpush1.msra.mxu0 0.0
      %381 = vmatprep.subr.mxu0 0.0
      %382 = vmatpush1.msra.mxu0 0.0
      %383 = vmatprep.subr.mxu0 0.0
      %384 = vmatpush1.msra.mxu0 0.0
      %385 = vmatprep.subr.mxu0 0.0
      %386 = vmatpush1.msra.mxu0 0.0
      %387 = vmatprep.subr.mxu0 0.0
      %388 = vmatpush1.msra.mxu0 0.0
      %389 = vmatprep.subr.mxu0 0.0
      %390 = vmatpush1.msra.mxu0 0.0
      %391 = vmatprep.subr.mxu0 0.0
      %392 = vmatpush1.msra.mxu0 0.0
      %393 = vmatprep.subr.mxu0 0.0
      %394 = vmatpush1.msra.mxu0 0.0
      %395 = vmatprep.subr.mxu0 0.0
      %396 = vmatpush1.msra.mxu0 0.0
      %397 = vmatprep.subr.mxu0 0.0
      %398 = vmatpush1.msra.mxu0 0.0
      %399 = vmatprep.subr.mxu0 0.0
      %400 = vmatpush1.msra.mxu0 0.0
      %401 = vmatprep.subr.mxu0 0.0
      %402 = vmatpush1.msra.mxu0 0.0
      %403 = vmatprep.subr.mxu0 0.0
      %404 = vmatpush1.msra.mxu0 0.0
      %405 = vmatprep.subr.mxu0 0.0
      %406 = vmatpush1.msra.mxu0 0.0
      %407 = vmatprep.subr.mxu0 0.0
      %408 = vmatpush1.msra.mxu0 0.0
      %409 = vmatprep.subr.mxu0 0.0
      %410 = vmatpush1.msra.mxu0 0.0
      %411 = vmatprep.mubr.f32.mxu0 0.0
      %412 = vmatmul.mubr.f32.gmra.mrb[0].mxu0 %v324
      %v413 = vpop.f32.mrb[0].mxu0
      %v414 = vadd.f32 %v285, %v413
      %v415 = vpop.f32.mrb[0].mxu0
      %416 = vmatprep.mubr.f32.mxu0 0.0
      %417 = vmatmul.mubr.f32.gmra.mrb[0].mxu0 %v327
      %v418 = vpop.f32.mrb[0].mxu0
      %v419 = vadd.f32 %v290, %v418
      %v420 = vpop.f32.mrb[0].mxu0
      %421 = vmatprep.mubr.f32.mxu0 0.0
      %422 = vmatmul.mubr.f32.gmra.mrb[0].mxu0 %v330
      %v423 = vpop.f32.mrb[0].mxu0
      %v424 = vadd.f32 %v295, %v423
      %v425 = vpop.f32.mrb[0].mxu0
      %426 = vmatprep.mubr.f32.mxu0 0.0
      %427 = vmatmul.mubr.f32.gmra.mrb[0].mxu0 %v333
      %v428 = vpop.f32.mrb[0].mxu0
      %v429 = vadd.f32 %v300, %v428
      %v430 = vpop.f32.mrb[0].mxu0
      %431 = vmatprep.mubr.f32.mxu0 0.0
      %432 = vmatmul.mubr.f32.gmra.mrb[0].mxu0 %v336
      %v433 = vpop.f32.mrb[0].mxu0
      %v434 = vadd.f32 %v305, %v433
      %v435 = vpop.f32.mrb[0].mxu0
      %436 = vmatprep.mubr.f32.mxu0 0.0
      %437 = vmatmul.mubr.f32.gmra.mrb[0].mxu0 %v339
      %v438 = vpop.f32.mrb[0].mxu0
      %v439 = vadd.f32 %v310, %v438
      %v440 = vpop.f32.mrb[0].mxu0
      %441 = vmatprep.mubr.f32.mxu0 0.0
      %442 = vmatmul.mubr.f32.gmra.mrb[0].mxu0 %v342
      %v443 = vpop.f32.mrb[0].mxu0
      %v444 = vadd.f32 %v315, %v443
      %v445 = vpop.f32.mrb[0].mxu0
      %446 = vmatprep.mubr.f32.mxu0 0.0
      %447 = vmatmul.mubr.f32.gmra.mrb[0].mxu0 %v345
      %v448 = vpop.f32.mrb[0].mxu0
      %v449 = vadd.f32 %v320, %v448
      %v450 = vpop.f32.mrb[0].mxu0
      %451 = vdwg.mxu0
      %v452 = vld [vmem:[%s165 + $0x2] sm:$0xff]
      %v453 = vld [vmem:[%s165 + $0xa] sm:$0xff]
      %v454 = vld [vmem:[%s165 + $0x12] sm:$0xff]
      %v455 = vld [vmem:[%s165 + $0x1a] sm:$0xff]
      %v456 = vld [vmem:[%s165 + $0x22] sm:$0xff]
      %v457 = vld [vmem:[%s165 + $0x2a] sm:$0xff]
      %v458 = vld [vmem:[%s165 + $0x32] sm:$0xff]
      %v459 = vld [vmem:[%s165 + $0x3a] sm:$0x3f]
      %s460 = scalar_lea.vmem %s1, 32
      %v461 = vld [vmem:[%s460] sm:$0xff]
      %v462 = vld [vmem:[%s460 + $0x8] sm:$0xff]
      %v464 = vsel %vm193, %v452, 0
      %v467 = vsel %vm193, %v453, 0
      %v470 = vsel %vm193, %v454, 0
      %v473 = vsel %vm193, %v455, 0
      %v476 = vsel %vm193, %v456, 0
      %v479 = vsel %vm193, %v457, 0
      %v482 = vsel %vm193, %v458, 0
      %v485 = vsel %vm193, %v459, 0
      %487 = vmatprep.subr.mxu0 0.0
      %488 = vmatpush1.msra.mxu0 %v461
      %489 = vmatprep.subr.mxu0 0.0
      %490 = vmatpush1.msra.mxu0 %v462
      %491 = vmatprep.subr.mxu0 0.0
      %492 = vmatpush1.msra.mxu0 0.0
      %493 = vmatprep.subr.mxu0 0.0
      %494 = vmatpush1.msra.mxu0 0.0
      %495 = vmatprep.subr.mxu0 0.0
      %496 = vmatpush1.msra.mxu0 0.0
      %497 = vmatprep.subr.mxu0 0.0
      %498 = vmatpush1.msra.mxu0 0.0
      %499 = vmatprep.subr.mxu0 0.0
      %500 = vmatpush1.msra.mxu0 0.0
      %501 = vmatprep.subr.mxu0 0.0
      %502 = vmatpush1.msra.mxu0 0.0
      %503 = vmatprep.subr.mxu0 0.0
      %504 = vmatpush1.msra.mxu0 0.0
      %505 = vmatprep.subr.mxu0 0.0
      %506 = vmatpush1.msra.mxu0 0.0
      %507 = vmatprep.subr.mxu0 0.0
      %508 = vmatpush1.msra.mxu0 0.0
      %509 = vmatprep.subr.mxu0 0.0
      %510 = vmatpush1.msra.mxu0 0.0
      %511 = vmatprep.subr.mxu0 0.0
      %512 = vmatpush1.msra.mxu0 0.0
      %513 = vmatprep.subr.mxu0 0.0
      %514 = vmatpush1.msra.mxu0 0.0
      %515 = vmatprep.subr.mxu0 0.0
      %516 = vmatpush1.msra.mxu0 0.0
      %517 = vmatprep.subr.mxu0 0.0
      %518 = vmatpush1.msra.mxu0 0.0
      %519 = vmatprep.subr.mxu0 0.0
      %520 = vmatpush1.msra.mxu0 0.0
      %521 = vmatprep.subr.mxu0 0.0
      %522 = vmatpush1.msra.mxu0 0.0
      %523 = vmatprep.subr.mxu0 0.0
      %524 = vmatpush1.msra.mxu0 0.0
      %525 = vmatprep.subr.mxu0 0.0
      %526 = vmatpush1.msra.mxu0 0.0
      %527 = vmatprep.subr.mxu0 0.0
      %528 = vmatpush1.msra.mxu0 0.0
      %529 = vmatprep.subr.mxu0 0.0
      %530 = vmatpush1.msra.mxu0 0.0
      %531 = vmatprep.subr.mxu0 0.0
      %532 = vmatpush1.msra.mxu0 0.0
      %533 = vmatprep.subr.mxu0 0.0
      %534 = vmatpush1.msra.mxu0 0.0
      %535 = vmatprep.subr.mxu0 0.0
      %536 = vmatpush1.msra.mxu0 0.0
      %537 = vmatprep.subr.mxu0 0.0
      %538 = vmatpush1.msra.mxu0 0.0
      %539 = vmatprep.subr.mxu0 0.0
      %540 = vmatpush1.msra.mxu0 0.0
      %541 = vmatprep.subr.mxu0 0.0
      %542 = vmatpush1.msra.mxu0 0.0
      %543 = vmatprep.subr.mxu0 0.0
      %544 = vmatpush1.msra.mxu0 0.0
      %545 = vmatprep.subr.mxu0 0.0
      %546 = vmatpush1.msra.mxu0 0.0
      %547 = vmatprep.subr.mxu0 0.0
      %548 = vmatpush1.msra.mxu0 0.0
      %549 = vmatprep.subr.mxu0 0.0
      %550 = vmatpush1.msra.mxu0 0.0
      %551 = vmatprep.mubr.f32.mxu0 0.0
      %552 = vmatmul.mubr.f32.gmra.mrb[0].mxu0 %v464
      %v553 = vpop.f32.mrb[0].mxu0
      %v554 = vadd.f32 0.0, %v553
      %v555 = vpop.f32.mrb[0].mxu0
      %556 = vmatprep.mubr.f32.mxu0 0.0
      %557 = vmatmul.mubr.f32.gmra.mrb[0].mxu0 %v467
      %v558 = vpop.f32.mrb[0].mxu0
      %v559 = vadd.f32 0.0, %v558
      %v560 = vpop.f32.mrb[0].mxu0
      %561 = vmatprep.mubr.f32.mxu0 0.0
      %562 = vmatmul.mubr.f32.gmra.mrb[0].mxu0 %v470
      %v563 = vpop.f32.mrb[0].mxu0
      %v564 = vadd.f32 0.0, %v563
      %v565 = vpop.f32.mrb[0].mxu0
      %566 = vmatprep.mubr.f32.mxu0 0.0
      %567 = vmatmul.mubr.f32.gmra.mrb[0].mxu0 %v473
      %v568 = vpop.f32.mrb[0].mxu0
      %v569 = vadd.f32 0.0, %v568
      %v570 = vpop.f32.mrb[0].mxu0
      %571 = vmatprep.mubr.f32.mxu0 0.0
      %572 = vmatmul.mubr.f32.gmra.mrb[0].mxu0 %v476
      %v573 = vpop.f32.mrb[0].mxu0
      %v574 = vadd.f32 0.0, %v573
      %v575 = vpop.f32.mrb[0].mxu0
      %576 = vmatprep.mubr.f32.mxu0 0.0
      %577 = vmatmul.mubr.f32.gmra.mrb[0].mxu0 %v479
      %v578 = vpop.f32.mrb[0].mxu0
      %v579 = vadd.f32 0.0, %v578
      %v580 = vpop.f32.mrb[0].mxu0
      %581 = vmatprep.mubr.f32.mxu0 0.0
      %582 = vmatmul.mubr.f32.gmra.mrb[0].mxu0 %v482
      %v583 = vpop.f32.mrb[0].mxu0
      %v584 = vadd.f32 0.0, %v583
      %v585 = vpop.f32.mrb[0].mxu0
      %586 = vmatprep.mubr.f32.mxu0 0.0
      %587 = vmatmul.mubr.f32.gmra.mrb[0].mxu0 %v485
      %v588 = vpop.f32.mrb[0].mxu0
      %v589 = vadd.f32 0.0, %v588
      %v590 = vpop.f32.mrb[0].mxu0
      %591 = vdwg.mxu0
      %v592 = vadd.f32 %v414, %v554
      %v593 = vadd.f32 %v419, %v559
      %v594 = vadd.f32 %v424, %v564
      %v595 = vadd.f32 %v429, %v569
      %v596 = vadd.f32 %v434, %v574
      %v597 = vadd.f32 %v439, %v579
      %v598 = vadd.f32 %v444, %v584
      %v599 = vadd.f32 %v449, %v589
      %v601 = vlaneseq
      %v602 = vshrl.u32 %v601, 7
      %v603 = vsub.s32 0, %v602
      %v604 = vrot.slane %v171, %v603
      %v606 = vadd.f32 %v592, %v604
      %v607 = vadd.f32 %v593, %v604
      %v608 = vadd.f32 %v594, %v604
      %v609 = vadd.f32 %v595, %v604
      %v610 = vadd.f32 %v596, %v604
      %v611 = vadd.f32 %v597, %v604
      %v612 = vadd.f32 %v598, %v604
      %v613 = vadd.f32 %v599, %v604
      %v614 = vmax.f32 %v606, 0.0
      %v615 = vmax.f32 %v607, 0.0
      %v616 = vmax.f32 %v608, 0.0
      %v617 = vmax.f32 %v609, 0.0
      %v618 = vmax.f32 %v610, 0.0
      %v619 = vmax.f32 %v611, 0.0
      %v620 = vmax.f32 %v612, 0.0
      %v621 = vmax.f32 %v613, 0.0
      %vm622 = vcmask 261120
      %623 = vst.msk [vmem:[%s170] sm:$0xff] %vm622, %v614
      %624 = vst.msk [vmem:[%s170 + $0x8] sm:$0xff] %vm622, %v615
      %625 = vst.msk [vmem:[%s170 + $0x10] sm:$0xff] %vm622, %v616
      %626 = vst.msk [vmem:[%s170 + $0x18] sm:$0xff] %vm622, %v617
      %627 = vst.msk [vmem:[%s170 + $0x20] sm:$0xff] %vm622, %v618
      %628 = vst.msk [vmem:[%s170 + $0x28] sm:$0xff] %vm622, %v619
      %629 = vst.msk [vmem:[%s170 + $0x30] sm:$0xff] %vm622, %v620
      %vm630 = vcmask 259072
      %631 = vst.msk [vmem:[%s170 + $0x38] sm:$0x3f] %vm630, %v621
      %p632 = scmp.lt.s32.totalorder %s14, 1
      %s633 = scalar_select %p632, %s14, 1
      %s634 = smul.addr %s633, 8
      %s635 = smul.addr %s634, 8
      %s636 = scalar_lea.vmem %s3, %s635
      // Predicated region
      $region33: #{emg_model2_forward.11} parent=31 // pred_check
        %p637 = pneg %p100
      $region34: #{emg_model2_forward.11} parent=31 // pred_check_branch
        %639 = sbr.rel (%p637) target = $region36
      $region35: #{emg_model2_forward.11} parent=31 // pred_region
        _
      $region36: #{emg_model2_forward.11} parent=31 // pred_fallthru
        _
    $region32: #{emg_model2_forward.11} parent=5 // pred_fallthru
      _
    %p640 = scmp.le.s32.totalorder 2, %s9
    // Predicated region
    $region37: #{emg_model2_forward.11} parent=5 // pred_check
      %p641 = pneg %p640
    $region38: #{emg_model2_forward.11} parent=5 // pred_check_branch
      %643 = sbr.rel (%p641) target = $region40
    $region39: #{emg_model2_forward.11} parent=5 // pred_region
      %s644 = ssub.s32 %s9, 2
      // Predicated region
      $region41: #{emg_model2_forward.11} parent=39 // pred_check
        %p645 = pneg %p106
      $region42: #{emg_model2_forward.11} parent=39 // pred_check_branch
        %647 = sbr.rel (%p645) target = $region44
      $region43: #{emg_model2_forward.11} parent=39 // pred_region
        %p648 = scmp.lt.s32.totalorder %s15, 1
        %s649 = scalar_select %p648, %s15, 1
        %s650 = smul.addr %s649, 8
        %s651 = smul.addr %s650, 8
        %s652 = scalar_lea.vmem %s3, %s651
      $region44: #{emg_model2_forward.11} parent=39 // pred_fallthru
        _
    $region40: #{emg_model2_forward.11} parent=5 // pred_fallthru
      _
  $region6: #{emg_model2_forward.11} parent=0 // loop_footer
    %s13 = sadd.s32 1, %s9
  $region7: #{emg_model2_forward.11} parent=0 // loop_footer_branch
    %8 = sbr.rel target = $region3
  $region8: #{emg_model2_forward.11} parent=0 // loop_exit
    _

// kernel: emg_model2_forward.12
$region0: #{emg_model2_forward.12}
  #allocation0 [shape = 'u32[]', space=smem, size = 0x4, offset = 0x4, fixed_abs, tag = 'smem constant byte address 0x4 - core index']
  #allocation1 [shape = 'u32[144,128]{1,0:T(1,128)}', space=vmem, size = 0x12000, scoped, tag = 'internal scratch']
  %s0 = inlined_call_operand.vmem [shape: f32[2,31,64], index: 0, kind: input, shape index: {}]
  %s1 = inlined_call_operand.vmem [shape: f32[2,64,32], index: 1, kind: input, shape index: {}]
  %s2 = inlined_call_operand.vmem [shape: f32[1,32], index: 2, kind: input, shape index: {}]
  %s3 = inlined_call_operand.vmem [shape: f32[2,30,32], index: 3, kind: output, shape index: {}]
  %s4 = sld [smem:[#allocation0]]
  $region45: #{emg_model2_forward.12} parent=0
    _
  %s6 = ssub.s32 1, %s4
  %s7 = scalar_select 0, %s6, %s4
  loop: start=0, step=1, limit=4
  $region2: #{emg_model2_forward.12} parent=0 // loop_pre_header
    _
  $region3: #{emg_model2_forward.12} parent=0 // loop_header
    %s9 = sphi 0, %s13
    %p10 = scmp.ge.s32.totalorder %s9, 4
    %s19 = sphi 0, %s21
    %s22 = sphi 0, %s19
    %s23 = sphi 0, %s22
    %s39 = sphi 0, %s23
    %s43 = sphi 0, %s43
    %s45 = sphi 0, %s43
    %s46 = sphi 0, %s45
    %s60 = sphi 0, %s46
    %s64 = sphi 0, %s64
    %s66 = sphi 0, %s64
    %s67 = sphi 0, %s66
    %s81 = sphi 0, %s67
    %s87 = sphi 0, %s89
    %s90 = sphi 0, %s87
    %s91 = sphi 0, %s90
    %s107 = sphi 0, %s91
  $region4: #{emg_model2_forward.12} parent=0 // loop_header_branch
    %12 = sbr.rel (%p10) target = $region8
  $region5: #{emg_model2_forward.12} parent=0 // loop_body
    %s14 = ssub.s32 %s9, 1
    %s15 = ssub.s32 %s9, 2
    %s16 = sadd.s32 %s9, 1
    %s17 = ssub.s32 %s9, %s16
    %p18 = scmp.eq.s32.totalorder %s17, 0
    %s20 = sadd.s32 %s19, 1
    %s21 = scalar_select %p18, %s19, %s20
    %p24 = pneg %p18
    %p25 = scmp.eq.s32.totalorder %s9, 1
    %p26 = por %p24, %p25
    %p27 = scmp.ne.s32.totalorder %s19, %s22
    %p28 = scmp.eq.s32.totalorder %s9, 0
    %p29 = por %p27, %p28
    %p30 = scmp.ne.s32.totalorder %s19, %s22
    %p31 = scmp.eq.s32.totalorder %s14, 1
    %p32 = por %p30, %p31
    %p33 = scmp.ne.s32.totalorder %s22, %s23
    %p34 = scmp.eq.s32.totalorder %s14, 0
    %p35 = por %p33, %p34
    %p36 = scmp.ne.s32.totalorder %s22, %s23
    %p37 = scmp.eq.s32.totalorder %s15, 1
    %p38 = por %p36, %p37
    %p40 = scmp.ne.s32.totalorder %s23, %s39
    %p41 = scmp.eq.s32.totalorder %s15, 0
    %p42 = por %p40, %p41
    %s44 = sadd.s32 %s43, 1
    %p47 = scmp.eq.s32.totalorder %s9, 1
    %p48 = scmp.ne.s32.totalorder %s43, %s45
    %p49 = scmp.eq.s32.totalorder %s9, 0
    %p50 = por %p48, %p49
    %p51 = scmp.ne.s32.totalorder %s43, %s45
    %p52 = scmp.eq.s32.totalorder %s14, 1
    %p53 = por %p51, %p52
    %p54 = scmp.ne.s32.totalorder %s45, %s46
    %p55 = scmp.eq.s32.totalorder %s14, 0
    %p56 = por %p54, %p55
    %p57 = scmp.ne.s32.totalorder %s45, %s46
    %p58 = scmp.eq.s32.totalorder %s15, 1
    %p59 = por %p57, %p58
    %p61 = scmp.ne.s32.totalorder %s46, %s60
    %p62 = scmp.eq.s32.totalorder %s15, 0
    %p63 = por %p61, %p62
    %s65 = sadd.s32 %s64, 1
    %p68 = scmp.eq.s32.totalorder %s9, 1
    %p69 = scmp.ne.s32.totalorder %s64, %s66
    %p70 = scmp.eq.s32.totalorder %s9, 0
    %p71 = por %p69, %p70
    %p72 = scmp.ne.s32.totalorder %s64, %s66
    %p73 = scmp.eq.s32.totalorder %s14, 1
    %p74 = por %p72, %p73
    %p75 = scmp.ne.s32.totalorder %s66, %s67
    %p76 = scmp.eq.s32.totalorder %s14, 0
    %p77 = por %p75, %p76
    %p78 = scmp.ne.s32.totalorder %s66, %s67
    %p79 = scmp.eq.s32.totalorder %s15, 1
    %p80 = por %p78, %p79
    %p82 = scmp.ne.s32.totalorder %s67, %s81
    %p83 = scmp.eq.s32.totalorder %s15, 0
    %p84 = por %p82, %p83
    %s85 = ssub.s32 %s9, %s16
    %p86 = scmp.eq.s32.totalorder %s85, 0
    %s88 = sadd.s32 %s87, 1
    %s89 = scalar_select %p86, %s87, %s88
    %p92 = pneg %p86
    %p93 = scmp.eq.s32.totalorder %s9, 1
    %p94 = por %p92, %p93
    %p95 = scmp.ne.s32.totalorder %s87, %s90
    %p96 = scmp.eq.s32.totalorder %s9, 0
    %p97 = por %p95, %p96
    %p98 = scmp.ne.s32.totalorder %s87, %s90
    %p99 = scmp.eq.s32.totalorder %s14, 1
    %p100 = por %p98, %p99
    %p101 = scmp.ne.s32.totalorder %s90, %s91
    %p102 = scmp.eq.s32.totalorder %s14, 0
    %p103 = por %p101, %p102
    %p104 = scmp.ne.s32.totalorder %s90, %s91
    %p105 = scmp.eq.s32.totalorder %s15, 1
    %p106 = por %p104, %p105
    %p108 = scmp.ne.s32.totalorder %s91, %s107
    %p109 = scmp.eq.s32.totalorder %s15, 0
    %p110 = por %p108, %p109
    %p111 = scmp.le.s32.totalorder 1, %s9
    %p112 = scmp.lt.s32.totalorder %s9, 3
    %p113 = pnand %p111, %p112
    %p114 = pneg %p113
    // Predicated region
    $region9: #{emg_model2_forward.12} parent=5 // pred_check
      _
    $region10: #{emg_model2_forward.12} parent=5 // pred_check_branch
      %116 = sbr.rel (%p113) target = $region12
    $region11: #{emg_model2_forward.12} parent=5 // pred_region
      %s117 = ssub.s32 %s9, 1
      // Predicated region
      $region13: #{emg_model2_forward.12} parent=11 // pred_check
        %p118 = pneg %p56
      $region14: #{emg_model2_forward.12} parent=11 // pred_check_branch
        %120 = sbr.rel (%p118) target = $region16
      $region15: #{emg_model2_forward.12} parent=11 // pred_region
        _
      $region16: #{emg_model2_forward.12} parent=11 // pred_fallthru
        _
      // Predicated region
      $region17: #{emg_model2_forward.12} parent=11 // pred_check
        %p121 = pneg %p77
      $region18: #{emg_model2_forward.12} parent=11 // pred_check_branch
        %123 = sbr.rel (%p121) target = $region20
      $region19: #{emg_model2_forward.12} parent=11 // pred_region
        _
      $region20: #{emg_model2_forward.12} parent=11 // pred_fallthru
        _
    $region12: #{emg_model2_forward.12} parent=5 // pred_fallthru
      _
    %p124 = scmp.lt.s32.totalorder %s9, 2
    // Predicated region
    $region21: #{emg_model2_forward.12} parent=5 // pred_check
      %p125 = pneg %p124
    $region22: #{emg_model2_forward.12} parent=5 // pred_check_branch
      %127 = sbr.rel (%p125) target = $region24
    $region23: #{emg_model2_forward.12} parent=5 // pred_region
      // Predicated region
      $region25: #{emg_model2_forward.12} parent=23 // pred_check
        %p128 = pneg %p29
      $region26: #{emg_model2_forward.12} parent=23 // pred_check_branch
        %130 = sbr.rel (%p128) target = $region28
      $region27: #{emg_model2_forward.12} parent=23 // pred_region
        %p131 = scmp.lt.s32.totalorder %s9, 1
        %s132 = scalar_select %p131, %s9, 1
        %s133 = smul.addr %s132, 4
        %s134 = smul.addr %s133, 8
        %s135 = scalar_lea.vmem %s0, %s134
      $region28: #{emg_model2_forward.12} parent=23 // pred_fallthru
        _
    $region24: #{emg_model2_forward.12} parent=5 // pred_fallthru
      _
    %p136 = scmp.le.s32.totalorder 1, %s9
    %p137 = scmp.lt.s32.totalorder %s9, 3
    %p138 = pnand %p136, %p137
    %p139 = pneg %p138
    // Predicated region
    $region29: #{emg_model2_forward.12} parent=5 // pred_check
      _
    $region30: #{emg_model2_forward.12} parent=5 // pred_check_branch
      %141 = sbr.rel (%p138) target = $region32
    $region31: #{emg_model2_forward.12} parent=5 // pred_region
      %s142 = ssub.s32 %s9, 1
      %p143 = scmp.lt.s32.totalorder %s14, 1
      %s144 = scalar_select %p143, %s14, 1
      %s145 = smul.addr %s144, 4
      %s146 = smul.addr %s145, 8
      %s147 = scalar_lea.vmem %s0, %s146
      %p148 = pneg %p35
      %p149 = pneg %p32
      %p150 = pneg %p56
      %p151 = pneg %p53
      %p152 = pneg %p77
      %p153 = pneg %p74
      %p154 = pneg %p103
      %p155 = pneg %p100
      %p156 = scmp.lt.s32.totalorder %s14, 1
      %s157 = scalar_select %p156, %s14, 1
      %s158 = smul.addr %s157, 4
      %s159 = smul.addr %s158, 8
      %s160 = scalar_lea.vmem %s3, %s159
      %p161 = scmp.lt.s32.totalorder %s14, 1
      %s162 = scalar_select %p161, %s14, 1
      %s163 = smul.addr %s162, 4
      %s164 = smul.addr %s163, 8
      %s165 = scalar_lea.vmem %s0, %s164
      %p166 = scmp.lt.s32.totalorder %s14, 1
      %s167 = scalar_select %p166, %s14, 1
      %s168 = smul.addr %s167, 4
      %s169 = smul.addr %s168, 8
      %s170 = scalar_lea.vmem %s3, %s169
      %v171 = vld [vmem:[%s2] sm:$0x1]
      %v172 = vld [vmem:[%s165] sm:$0xff]
      %v173 = vld [vmem:[%s165 + $0x8] sm:$0xff]
      %v174 = vld [vmem:[%s165 + $0x10] sm:$0xff]
      %v175 = vld [vmem:[%s165 + $0x18] sm:$0x3f]
      %v176 = vld [vmem:[%s1] sm:$0xff]
      %v177 = vld [vmem:[%s1 + $0x8] sm:$0xff]
      %v178 = vld [vmem:[%s1 + $0x10] sm:$0xff]
      %v179 = vld [vmem:[%s1 + $0x18] sm:$0xff]
      %v180 = vld [vmem:[%s1 + $0x20] sm:$0xff]
      %v181 = vld [vmem:[%s1 + $0x28] sm:$0xff]
      %v182 = vld [vmem:[%s1 + $0x30] sm:$0xff]
      %v183 = vld [vmem:[%s1 + $0x38] sm:$0xff]
      %v184 = vld [vmem:[%s165 + $0x1] sm:$0xff]
      %v185 = vld [vmem:[%s165 + $0x9] sm:$0xff]
      %v186 = vld [vmem:[%s165 + $0x11] sm:$0xff]
      %v187 = vld [vmem:[%s165 + $0x19] sm:$0x3f]
      %s188 = scalar_lea.vmem %s1, 64
      %v189 = vld [vmem:[%s188] sm:$0xff]
      %v190 = vld [vmem:[%s188 + $0x8] sm:$0xff]
      %v191 = vld [vmem:[%s188 + $0x10] sm:$0xff]
      %v192 = vld [vmem:[%s188 + $0x18] sm:$0xff]
      %v193 = vld [vmem:[%s188 + $0x20] sm:$0xff]
      %v194 = vld [vmem:[%s188 + $0x28] sm:$0xff]
      %v195 = vld [vmem:[%s188 + $0x30] sm:$0xff]
      %v196 = vld [vmem:[%s188 + $0x38] sm:$0xff]
      %vm197 = vcmask 523264
      %v199 = vsel %vm197, %v184, 0
      %v202 = vsel %vm197, %v185, 0
      %v205 = vsel %vm197, %v186, 0
      %v208 = vsel %vm197, %v187, 0
      %210 = vmatprep.subr.mxu0 0.0
      %211 = vmatpush1.msra.mxu0 %v189
      %212 = vmatprep.subr.mxu0 0.0
      %213 = vmatpush1.msra.mxu0 %v190
      %214 = vmatprep.subr.mxu0 0.0
      %215 = vmatpush1.msra.mxu0 %v191
      %216 = vmatprep.subr.mxu0 0.0
      %217 = vmatpush1.msra.mxu0 %v192
      %218 = vmatprep.subr.mxu0 0.0
      %219 = vmatpush1.msra.mxu0 %v193
      %220 = vmatprep.subr.mxu0 0.0
      %221 = vmatpush1.msra.mxu0 %v194
      %222 = vmatprep.subr.mxu0 0.0
      %223 = vmatpush1.msra.mxu0 %v195
      %224 = vmatprep.subr.mxu0 0.0
      %225 = vmatpush1.msra.mxu0 %v196
      %226 = vmatprep.subr.mxu0 0.0
      %227 = vmatpush1.msra.mxu0 0.0
      %228 = vmatprep.subr.mxu0 0.0
      %229 = vmatpush1.msra.mxu0 0.0
      %230 = vmatprep.subr.mxu0 0.0
      %231 = vmatpush1.msra.mxu0 0.0
      %232 = vmatprep.subr.mxu0 0.0
      %233 = vmatpush1.msra.mxu0 0.0
      %234 = vmatprep.subr.mxu0 0.0
      %235 = vmatpush1.msra.mxu0 0.0
      %236 = vmatprep.subr.mxu0 0.0
      %237 = vmatpush1.msra.mxu0 0.0
      %238 = vmatprep.subr.mxu0 0.0
      %239 = vmatpush1.msra.mxu0 0.0
      %240 = vmatprep.subr.mxu0 0.0
      %241 = vmatpush1.msra.mxu0 0.0
      %242 = vmatprep.subr.mxu0 0.0
      %243 = vmatpush1.msra.mxu0 0.0
      %244 = vmatprep.subr.mxu0 0.0
      %245 = vmatpush1.msra.mxu0 0.0
      %246 = vmatprep.subr.mxu0 0.0
      %247 = vmatpush1.msra.mxu0 0.0
      %248 = vmatprep.subr.mxu0 0.0
      %249 = vmatpush1.msra.mxu0 0.0
      %250 = vmatprep.subr.mxu0 0.0
      %251 = vmatpush1.msra.mxu0 0.0
      %252 = vmatprep.subr.mxu0 0.0
      %253 = vmatpush1.msra.mxu0 0.0
      %254 = vmatprep.subr.mxu0 0.0
      %255 = vmatpush1.msra.mxu0 0.0
      %256 = vmatprep.subr.mxu0 0.0
      %257 = vmatpush1.msra.mxu0 0.0
      %258 = vmatprep.subr.mxu0 0.0
      %259 = vmatpush1.msra.mxu0 0.0
      %260 = vmatprep.subr.mxu0 0.0
      %261 = vmatpush1.msra.mxu0 0.0
      %262 = vmatprep.subr.mxu0 0.0
      %263 = vmatpush1.msra.mxu0 0.0
      %264 = vmatprep.subr.mxu0 0.0
      %265 = vmatpush1.msra.mxu0 0.0
      %266 = vmatprep.subr.mxu0 0.0
      %267 = vmatpush1.msra.mxu0 0.0
      %268 = vmatprep.subr.mxu0 0.0
      %269 = vmatpush1.msra.mxu0 0.0
      %270 = vmatprep.subr.mxu0 0.0
      %271 = vmatpush1.msra.mxu0 0.0
      %272 = vmatprep.subr.mxu0 0.0
      %273 = vmatpush1.msra.mxu0 0.0
      %274 = vmatprep.mubr.f32.mxu0 0.0
      %275 = vmatmul.mubr.f32.gmra.mrb[0].mxu0 %v199
      %v276 = vpop.f32.mrb[0].mxu0
      %v277 = vadd.f32 0.0, %v276
      %v278 = vpop.f32.mrb[0].mxu0
      %279 = vmatprep.mubr.f32.mxu0 0.0
      %280 = vmatmul.mubr.f32.gmra.mrb[0].mxu0 %v202
      %v281 = vpop.f32.mrb[0].mxu0
      %v282 = vadd.f32 0.0, %v281
      %v283 = vpop.f32.mrb[0].mxu0
      %284 = vmatprep.mubr.f32.mxu0 0.0
      %285 = vmatmul.mubr.f32.gmra.mrb[0].mxu0 %v205
      %v286 = vpop.f32.mrb[0].mxu0
      %v287 = vadd.f32 0.0, %v286
      %v288 = vpop.f32.mrb[0].mxu0
      %289 = vmatprep.mubr.f32.mxu0 0.0
      %290 = vmatmul.mubr.f32.gmra.mrb[0].mxu0 %v208
      %v291 = vpop.f32.mrb[0].mxu0
      %v292 = vadd.f32 0.0, %v291
      %v293 = vpop.f32.mrb[0].mxu0
      %294 = vdwg.mxu0
      %v296 = vsel %vm197, %v172, 0
      %v299 = vsel %vm197, %v173, 0
      %v302 = vsel %vm197, %v174, 0
      %v305 = vsel %vm197, %v175, 0
      %307 = vmatprep.subr.mxu0 0.0
      %308 = vmatpush1.msra.mxu0 %v176
      %309 = vmatprep.subr.mxu0 0.0
      %310 = vmatpush1.msra.mxu0 %v177
      %311 = vmatprep.subr.mxu0 0.0
      %312 = vmatpush1.msra.mxu0 %v178
      %313 = vmatprep.subr.mxu0 0.0
      %314 = vmatpush1.msra.mxu0 %v179
      %315 = vmatprep.subr.mxu0 0.0
      %316 = vmatpush1.msra.mxu0 %v180
      %317 = vmatprep.subr.mxu0 0.0
      %318 = vmatpush1.msra.mxu0 %v181
      %319 = vmatprep.subr.mxu0 0.0
      %320 = vmatpush1.msra.mxu0 %v182
      %321 = vmatprep.subr.mxu0 0.0
      %322 = vmatpush1.msra.mxu0 %v183
      %323 = vmatprep.subr.mxu0 0.0
      %324 = vmatpush1.msra.mxu0 0.0
      %325 = vmatprep.subr.mxu0 0.0
      %326 = vmatpush1.msra.mxu0 0.0
      %327 = vmatprep.subr.mxu0 0.0
      %328 = vmatpush1.msra.mxu0 0.0
      %329 = vmatprep.subr.mxu0 0.0
      %330 = vmatpush1.msra.mxu0 0.0
      %331 = vmatprep.subr.mxu0 0.0
      %332 = vmatpush1.msra.mxu0 0.0
      %333 = vmatprep.subr.mxu0 0.0
      %334 = vmatpush1.msra.mxu0 0.0
      %335 = vmatprep.subr.mxu0 0.0
      %336 = vmatpush1.msra.mxu0 0.0
      %337 = vmatprep.subr.mxu0 0.0
      %338 = vmatpush1.msra.mxu0 0.0
      %339 = vmatprep.subr.mxu0 0.0
      %340 = vmatpush1.msra.mxu0 0.0
      %341 = vmatprep.subr.mxu0 0.0
      %342 = vmatpush1.msra.mxu0 0.0
      %343 = vmatprep.subr.mxu0 0.0
      %344 = vmatpush1.msra.mxu0 0.0
      %345 = vmatprep.subr.mxu0 0.0
      %346 = vmatpush1.msra.mxu0 0.0
      %347 = vmatprep.subr.mxu0 0.0
      %348 = vmatpush1.msra.mxu0 0.0
      %349 = vmatprep.subr.mxu0 0.0
      %350 = vmatpush1.msra.mxu0 0.0
      %351 = vmatprep.subr.mxu0 0.0
      %352 = vmatpush1.msra.mxu0 0.0
      %353 = vmatprep.subr.mxu0 0.0
      %354 = vmatpush1.msra.mxu0 0.0
      %355 = vmatprep.subr.mxu0 0.0
      %356 = vmatpush1.msra.mxu0 0.0
      %357 = vmatprep.subr.mxu0 0.0
      %358 = vmatpush1.msra.mxu0 0.0
      %359 = vmatprep.subr.mxu0 0.0
      %360 = vmatpush1.msra.mxu0 0.0
      %361 = vmatprep.subr.mxu0 0.0
      %362 = vmatpush1.msra.mxu0 0.0
      %363 = vmatprep.subr.mxu0 0.0
      %364 = vmatpush1.msra.mxu0 0.0
      %365 = vmatprep.subr.mxu0 0.0
      %366 = vmatpush1.msra.mxu0 0.0
      %367 = vmatprep.subr.mxu0 0.0
      %368 = vmatpush1.msra.mxu0 0.0
      %369 = vmatprep.subr.mxu0 0.0
      %370 = vmatpush1.msra.mxu0 0.0
      %371 = vmatprep.mubr.f32.mxu0 0.0
      %372 = vmatmul.mubr.f32.gmra.mrb[0].mxu0 %v296
      %v373 = vpop.f32.mrb[0].mxu0
      %v374 = vadd.f32 %v277, %v373
      %v375 = vpop.f32.mrb[0].mxu0
      %376 = vmatprep.mubr.f32.mxu0 0.0
      %377 = vmatmul.mubr.f32.gmra.mrb[0].mxu0 %v299
      %v378 = vpop.f32.mrb[0].mxu0
      %v379 = vadd.f32 %v282, %v378
      %v380 = vpop.f32.mrb[0].mxu0
      %381 = vmatprep.mubr.f32.mxu0 0.0
      %382 = vmatmul.mubr.f32.gmra.mrb[0].mxu0 %v302
      %v383 = vpop.f32.mrb[0].mxu0
      %v384 = vadd.f32 %v287, %v383
      %v385 = vpop.f32.mrb[0].mxu0
      %386 = vmatprep.mubr.f32.mxu0 0.0
      %387 = vmatmul.mubr.f32.gmra.mrb[0].mxu0 %v305
      %v388 = vpop.f32.mrb[0].mxu0
      %v389 = vadd.f32 %v292, %v388
      %v390 = vpop.f32.mrb[0].mxu0
      %391 = vdwg.mxu0
      %v393 = vlaneseq
      %v394 = vshrl.u32 %v393, 7
      %v395 = vsub.s32 0, %v394
      %v396 = vrot.slane %v171, %v395
      %v398 = vadd.f32 %v374, %v396
      %v399 = vadd.f32 %v379, %v396
      %v400 = vadd.f32 %v384, %v396
      %v401 = vadd.f32 %v389, %v396
      %v402 = vmax.f32 %v398, 0.0
      %v403 = vmax.f32 %v399, 0.0
      %v404 = vmax.f32 %v400, 0.0
      %v405 = vmax.f32 %v401, 0.0
      %vm406 = vcmask 261120
      %407 = vst.msk [vmem:[%s170] sm:$0xff] %vm406, %v402
      %408 = vst.msk [vmem:[%s170 + $0x8] sm:$0xff] %vm406, %v403
      %409 = vst.msk [vmem:[%s170 + $0x10] sm:$0xff] %vm406, %v404
      %vm410 = vcmask 259072
      %411 = vst.msk [vmem:[%s170 + $0x18] sm:$0x3f] %vm410, %v405
      %p412 = scmp.lt.s32.totalorder %s14, 1
      %s413 = scalar_select %p412, %s14, 1
      %s414 = smul.addr %s413, 4
      %s415 = smul.addr %s414, 8
      %s416 = scalar_lea.vmem %s3, %s415
      // Predicated region
      $region33: #{emg_model2_forward.12} parent=31 // pred_check
        %p417 = pneg %p100
      $region34: #{emg_model2_forward.12} parent=31 // pred_check_branch
        %419 = sbr.rel (%p417) target = $region36
      $region35: #{emg_model2_forward.12} parent=31 // pred_region
        _
      $region36: #{emg_model2_forward.12} parent=31 // pred_fallthru
        _
    $region32: #{emg_model2_forward.12} parent=5 // pred_fallthru
      _
    %p420 = scmp.le.s32.totalorder 2, %s9
    // Predicated region
    $region37: #{emg_model2_forward.12} parent=5 // pred_check
      %p421 = pneg %p420
    $region38: #{emg_model2_forward.12} parent=5 // pred_check_branch
      %423 = sbr.rel (%p421) target = $region40
    $region39: #{emg_model2_forward.12} parent=5 // pred_region
      %s424 = ssub.s32 %s9, 2
      // Predicated region
      $region41: #{emg_model2_forward.12} parent=39 // pred_check
        %p425 = pneg %p106
      $region42: #{emg_model2_forward.12} parent=39 // pred_check_branch
        %427 = sbr.rel (%p425) target = $region44
      $region43: #{emg_model2_forward.12} parent=39 // pred_region
        %p428 = scmp.lt.s32.totalorder %s15, 1
        %s429 = scalar_select %p428, %s15, 1
        %s430 = smul.addr %s429, 4
        %s431 = smul.addr %s430, 8
        %s432 = scalar_lea.vmem %s3, %s431
      $region44: #{emg_model2_forward.12} parent=39 // pred_fallthru
        _
    $region40: #{emg_model2_forward.12} parent=5 // pred_fallthru
      _
  $region6: #{emg_model2_forward.12} parent=0 // loop_footer
    %s13 = sadd.s32 1, %s9
  $region7: #{emg_model2_forward.12} parent=0 // loop_footer_branch
    %8 = sbr.rel target = $region3
  $region8: #{emg_model2_forward.12} parent=0 // loop_exit
    _

// kernel: emg_model2_forward.13
$region0: #{emg_model2_forward.13}
  #allocation0 [shape = 'u32[]', space=smem, size = 0x4, offset = 0x4, fixed_abs, tag = 'smem constant byte address 0x4 - core index']
  #allocation1 [shape = 'u32[144,128]{1,0:T(1,128)}', space=vmem, size = 0x12000, scoped, tag = 'internal scratch']
  %s0 = inlined_call_operand.vmem [shape: f32[2,15,64], index: 0, kind: input, shape index: {}]
  %s1 = inlined_call_operand.vmem [shape: f32[2,64,64], index: 1, kind: input, shape index: {}]
  %s2 = inlined_call_operand.vmem [shape: f32[1,64], index: 2, kind: input, shape index: {}]
  %s3 = inlined_call_operand.vmem [shape: f32[2,14,64], index: 3, kind: output, shape index: {}]
  %s4 = sld [smem:[#allocation0]]
  $region45: #{emg_model2_forward.13} parent=0
    _
  %s6 = ssub.s32 1, %s4
  %s7 = scalar_select 0, %s6, %s4
  loop: start=0, step=1, limit=4
  $region2: #{emg_model2_forward.13} parent=0 // loop_pre_header
    _
  $region3: #{emg_model2_forward.13} parent=0 // loop_header
    %s9 = sphi 0, %s13
    %p10 = scmp.ge.s32.totalorder %s9, 4
    %s19 = sphi 0, %s21
    %s22 = sphi 0, %s19
    %s23 = sphi 0, %s22
    %s39 = sphi 0, %s23
    %s43 = sphi 0, %s43
    %s45 = sphi 0, %s43
    %s46 = sphi 0, %s45
    %s60 = sphi 0, %s46
    %s64 = sphi 0, %s64
    %s66 = sphi 0, %s64
    %s67 = sphi 0, %s66
    %s81 = sphi 0, %s67
    %s87 = sphi 0, %s89
    %s90 = sphi 0, %s87
    %s91 = sphi 0, %s90
    %s107 = sphi 0, %s91
  $region4: #{emg_model2_forward.13} parent=0 // loop_header_branch
    %12 = sbr.rel (%p10) target = $region8
  $region5: #{emg_model2_forward.13} parent=0 // loop_body
    %s14 = ssub.s32 %s9, 1
    %s15 = ssub.s32 %s9, 2
    %s16 = sadd.s32 %s9, 1
    %s17 = ssub.s32 %s9, %s16
    %p18 = scmp.eq.s32.totalorder %s17, 0
    %s20 = sadd.s32 %s19, 1
    %s21 = scalar_select %p18, %s19, %s20
    %p24 = pneg %p18
    %p25 = scmp.eq.s32.totalorder %s9, 1
    %p26 = por %p24, %p25
    %p27 = scmp.ne.s32.totalorder %s19, %s22
    %p28 = scmp.eq.s32.totalorder %s9, 0
    %p29 = por %p27, %p28
    %p30 = scmp.ne.s32.totalorder %s19, %s22
    %p31 = scmp.eq.s32.totalorder %s14, 1
    %p32 = por %p30, %p31
    %p33 = scmp.ne.s32.totalorder %s22, %s23
    %p34 = scmp.eq.s32.totalorder %s14, 0
    %p35 = por %p33, %p34
    %p36 = scmp.ne.s32.totalorder %s22, %s23
    %p37 = scmp.eq.s32.totalorder %s15, 1
    %p38 = por %p36, %p37
    %p40 = scmp.ne.s32.totalorder %s23, %s39
    %p41 = scmp.eq.s32.totalorder %s15, 0
    %p42 = por %p40, %p41
    %s44 = sadd.s32 %s43, 1
    %p47 = scmp.eq.s32.totalorder %s9, 1
    %p48 = scmp.ne.s32.totalorder %s43, %s45
    %p49 = scmp.eq.s32.totalorder %s9, 0
    %p50 = por %p48, %p49
    %p51 = scmp.ne.s32.totalorder %s43, %s45
    %p52 = scmp.eq.s32.totalorder %s14, 1
    %p53 = por %p51, %p52
    %p54 = scmp.ne.s32.totalorder %s45, %s46
    %p55 = scmp.eq.s32.totalorder %s14, 0
    %p56 = por %p54, %p55
    %p57 = scmp.ne.s32.totalorder %s45, %s46
    %p58 = scmp.eq.s32.totalorder %s15, 1
    %p59 = por %p57, %p58
    %p61 = scmp.ne.s32.totalorder %s46, %s60
    %p62 = scmp.eq.s32.totalorder %s15, 0
    %p63 = por %p61, %p62
    %s65 = sadd.s32 %s64, 1
    %p68 = scmp.eq.s32.totalorder %s9, 1
    %p69 = scmp.ne.s32.totalorder %s64, %s66
    %p70 = scmp.eq.s32.totalorder %s9, 0
    %p71 = por %p69, %p70
    %p72 = scmp.ne.s32.totalorder %s64, %s66
    %p73 = scmp.eq.s32.totalorder %s14, 1
    %p74 = por %p72, %p73
    %p75 = scmp.ne.s32.totalorder %s66, %s67
    %p76 = scmp.eq.s32.totalorder %s14, 0
    %p77 = por %p75, %p76
    %p78 = scmp.ne.s32.totalorder %s66, %s67
    %p79 = scmp.eq.s32.totalorder %s15, 1
    %p80 = por %p78, %p79
    %p82 = scmp.ne.s32.totalorder %s67, %s81
    %p83 = scmp.eq.s32.totalorder %s15, 0
    %p84 = por %p82, %p83
    %s85 = ssub.s32 %s9, %s16
    %p86 = scmp.eq.s32.totalorder %s85, 0
    %s88 = sadd.s32 %s87, 1
    %s89 = scalar_select %p86, %s87, %s88
    %p92 = pneg %p86
    %p93 = scmp.eq.s32.totalorder %s9, 1
    %p94 = por %p92, %p93
    %p95 = scmp.ne.s32.totalorder %s87, %s90
    %p96 = scmp.eq.s32.totalorder %s9, 0
    %p97 = por %p95, %p96
    %p98 = scmp.ne.s32.totalorder %s87, %s90
    %p99 = scmp.eq.s32.totalorder %s14, 1
    %p100 = por %p98, %p99
    %p101 = scmp.ne.s32.totalorder %s90, %s91
    %p102 = scmp.eq.s32.totalorder %s14, 0
    %p103 = por %p101, %p102
    %p104 = scmp.ne.s32.totalorder %s90, %s91
    %p105 = scmp.eq.s32.totalorder %s15, 1
    %p106 = por %p104, %p105
    %p108 = scmp.ne.s32.totalorder %s91, %s107
    %p109 = scmp.eq.s32.totalorder %s15, 0
    %p110 = por %p108, %p109
    %p111 = scmp.le.s32.totalorder 1, %s9
    %p112 = scmp.lt.s32.totalorder %s9, 3
    %p113 = pnand %p111, %p112
    %p114 = pneg %p113
    // Predicated region
    $region9: #{emg_model2_forward.13} parent=5 // pred_check
      _
    $region10: #{emg_model2_forward.13} parent=5 // pred_check_branch
      %116 = sbr.rel (%p113) target = $region12
    $region11: #{emg_model2_forward.13} parent=5 // pred_region
      %s117 = ssub.s32 %s9, 1
      // Predicated region
      $region13: #{emg_model2_forward.13} parent=11 // pred_check
        %p118 = pneg %p56
      $region14: #{emg_model2_forward.13} parent=11 // pred_check_branch
        %120 = sbr.rel (%p118) target = $region16
      $region15: #{emg_model2_forward.13} parent=11 // pred_region
        _
      $region16: #{emg_model2_forward.13} parent=11 // pred_fallthru
        _
      // Predicated region
      $region17: #{emg_model2_forward.13} parent=11 // pred_check
        %p121 = pneg %p77
      $region18: #{emg_model2_forward.13} parent=11 // pred_check_branch
        %123 = sbr.rel (%p121) target = $region20
      $region19: #{emg_model2_forward.13} parent=11 // pred_region
        _
      $region20: #{emg_model2_forward.13} parent=11 // pred_fallthru
        _
    $region12: #{emg_model2_forward.13} parent=5 // pred_fallthru
      _
    %p124 = scmp.lt.s32.totalorder %s9, 2
    // Predicated region
    $region21: #{emg_model2_forward.13} parent=5 // pred_check
      %p125 = pneg %p124
    $region22: #{emg_model2_forward.13} parent=5 // pred_check_branch
      %127 = sbr.rel (%p125) target = $region24
    $region23: #{emg_model2_forward.13} parent=5 // pred_region
      // Predicated region
      $region25: #{emg_model2_forward.13} parent=23 // pred_check
        %p128 = pneg %p29
      $region26: #{emg_model2_forward.13} parent=23 // pred_check_branch
        %130 = sbr.rel (%p128) target = $region28
      $region27: #{emg_model2_forward.13} parent=23 // pred_region
        %p131 = scmp.lt.s32.totalorder %s9, 1
        %s132 = scalar_select %p131, %s9, 1
        %s133 = smul.addr %s132, 2
        %s134 = smul.addr %s133, 8
        %s135 = scalar_lea.vmem %s0, %s134
      $region28: #{emg_model2_forward.13} parent=23 // pred_fallthru
        _
    $region24: #{emg_model2_forward.13} parent=5 // pred_fallthru
      _
    %p136 = scmp.le.s32.totalorder 1, %s9
    %p137 = scmp.lt.s32.totalorder %s9, 3
    %p138 = pnand %p136, %p137
    %p139 = pneg %p138
    // Predicated region
    $region29: #{emg_model2_forward.13} parent=5 // pred_check
      _
    $region30: #{emg_model2_forward.13} parent=5 // pred_check_branch
      %141 = sbr.rel (%p138) target = $region32
    $region31: #{emg_model2_forward.13} parent=5 // pred_region
      %s142 = ssub.s32 %s9, 1
      %p143 = scmp.lt.s32.totalorder %s14, 1
      %s144 = scalar_select %p143, %s14, 1
      %s145 = smul.addr %s144, 2
      %s146 = smul.addr %s145, 8
      %s147 = scalar_lea.vmem %s0, %s146
      %p148 = pneg %p35
      %p149 = pneg %p32
      %p150 = pneg %p56
      %p151 = pneg %p53
      %p152 = pneg %p77
      %p153 = pneg %p74
      %p154 = pneg %p103
      %p155 = pneg %p100
      %p156 = scmp.lt.s32.totalorder %s14, 1
      %s157 = scalar_select %p156, %s14, 1
      %s158 = smul.addr %s157, 2
      %s159 = smul.addr %s158, 8
      %s160 = scalar_lea.vmem %s3, %s159
      %p161 = scmp.lt.s32.totalorder %s14, 1
      %s162 = scalar_select %p161, %s14, 1
      %s163 = smul.addr %s162, 2
      %s164 = smul.addr %s163, 8
      %s165 = scalar_lea.vmem %s0, %s164
      %p166 = scmp.lt.s32.totalorder %s14, 1
      %s167 = scalar_select %p166, %s14, 1
      %s168 = smul.addr %s167, 2
      %s169 = smul.addr %s168, 8
      %s170 = scalar_lea.vmem %s3, %s169
      %v171 = vld [vmem:[%s2] sm:$0x1]
      %v172 = vld [vmem:[%s165] sm:$0xff]
      %v173 = vld [vmem:[%s165 + $0x8] sm:$0x3f]
      %v174 = vld [vmem:[%s1] sm:$0xff]
      %v175 = vld [vmem:[%s1 + $0x8] sm:$0xff]
      %v176 = vld [vmem:[%s1 + $0x10] sm:$0xff]
      %v177 = vld [vmem:[%s1 + $0x18] sm:$0xff]
      %v178 = vld [vmem:[%s1 + $0x20] sm:$0xff]
      %v179 = vld [vmem:[%s1 + $0x28] sm:$0xff]
      %v180 = vld [vmem:[%s1 + $0x30] sm:$0xff]
      %v181 = vld [vmem:[%s1 + $0x38] sm:$0xff]
      %v182 = vld [vmem:[%s165 + $0x1] sm:$0xff]
      %v183 = vld [vmem:[%s165 + $0x9] sm:$0x3f]
      %s184 = scalar_lea.vmem %s1, 64
      %v185 = vld [vmem:[%s184] sm:$0xff]
      %v186 = vld [vmem:[%s184 + $0x8] sm:$0xff]
      %v187 = vld [vmem:[%s184 + $0x10] sm:$0xff]
      %v188 = vld [vmem:[%s184 + $0x18] sm:$0xff]
      %v189 = vld [vmem:[%s184 + $0x20] sm:$0xff]
      %v190 = vld [vmem:[%s184 + $0x28] sm:$0xff]
      %v191 = vld [vmem:[%s184 + $0x30] sm:$0xff]
      %v192 = vld [vmem:[%s184 + $0x38] sm:$0xff]
      %vm193 = vcmask 523264
      %v195 = vsel %vm193, %v182, 0
      %v198 = vsel %vm193, %v183, 0
      %200 = vmatprep.subr.mxu0 0.0
      %201 = vmatpush1.msra.mxu0 %v185
      %202 = vmatprep.subr.mxu0 0.0
      %203 = vmatpush1.msra.mxu0 %v186
      %204 = vmatprep.subr.mxu0 0.0
      %205 = vmatpush1.msra.mxu0 %v187
      %206 = vmatprep.subr.mxu0 0.0
      %207 = vmatpush1.msra.mxu0 %v188
      %208 = vmatprep.subr.mxu0 0.0
      %209 = vmatpush1.msra.mxu0 %v189
      %210 = vmatprep.subr.mxu0 0.0
      %211 = vmatpush1.msra.mxu0 %v190
      %212 = vmatprep.subr.mxu0 0.0
      %213 = vmatpush1.msra.mxu0 %v191
      %214 = vmatprep.subr.mxu0 0.0
      %215 = vmatpush1.msra.mxu0 %v192
      %216 = vmatprep.subr.mxu0 0.0
      %217 = vmatpush1.msra.mxu0 0.0
      %218 = vmatprep.subr.mxu0 0.0
      %219 = vmatpush1.msra.mxu0 0.0
      %220 = vmatprep.subr.mxu0 0.0
      %221 = vmatpush1.msra.mxu0 0.0
      %222 = vmatprep.subr.mxu0 0.0
      %223 = vmatpush1.msra.mxu0 0.0
      %224 = vmatprep.subr.mxu0 0.0
      %225 = vmatpush1.msra.mxu0 0.0
      %226 = vmatprep.subr.mxu0 0.0
      %227 = vmatpush1.msra.mxu0 0.0
      %228 = vmatprep.subr.mxu0 0.0
      %229 = vmatpush1.msra.mxu0 0.0
      %230 = vmatprep.subr.mxu0 0.0
      %231 = vmatpush1.msra.mxu0 0.0
      %232 = vmatprep.subr.mxu0 0.0
      %233 = vmatpush1.msra.mxu0 0.0
      %234 = vmatprep.subr.mxu0 0.0
      %235 = vmatpush1.msra.mxu0 0.0
      %236 = vmatprep.subr.mxu0 0.0
      %237 = vmatpush1.msra.mxu0 0.0
      %238 = vmatprep.subr.mxu0 0.0
      %239 = vmatpush1.msra.mxu0 0.0
      %240 = vmatprep.subr.mxu0 0.0
      %241 = vmatpush1.msra.mxu0 0.0
      %242 = vmatprep.subr.mxu0 0.0
      %243 = vmatpush1.msra.mxu0 0.0
      %244 = vmatprep.subr.mxu0 0.0
      %245 = vmatpush1.msra.mxu0 0.0
      %246 = vmatprep.subr.mxu0 0.0
      %247 = vmatpush1.msra.mxu0 0.0
      %248 = vmatprep.subr.mxu0 0.0
      %249 = vmatpush1.msra.mxu0 0.0
      %250 = vmatprep.subr.mxu0 0.0
      %251 = vmatpush1.msra.mxu0 0.0
      %252 = vmatprep.subr.mxu0 0.0
      %253 = vmatpush1.msra.mxu0 0.0
      %254 = vmatprep.subr.mxu0 0.0
      %255 = vmatpush1.msra.mxu0 0.0
      %256 = vmatprep.subr.mxu0 0.0
      %257 = vmatpush1.msra.mxu0 0.0
      %258 = vmatprep.subr.mxu0 0.0
      %259 = vmatpush1.msra.mxu0 0.0
      %260 = vmatprep.subr.mxu0 0.0
      %261 = vmatpush1.msra.mxu0 0.0
      %262 = vmatprep.subr.mxu0 0.0
      %263 = vmatpush1.msra.mxu0 0.0
      %264 = vmatprep.mubr.f32.mxu0 0.0
      %265 = vmatmul.mubr.f32.gmra.mrb[0].mxu0 %v195
      %v266 = vpop.f32.mrb[0].mxu0
      %v267 = vadd.f32 0.0, %v266
      %v268 = vpop.f32.mrb[0].mxu0
      %269 = vmatprep.mubr.f32.mxu0 0.0
      %270 = vmatmul.mubr.f32.gmra.mrb[0].mxu0 %v198
      %v271 = vpop.f32.mrb[0].mxu0
      %v272 = vadd.f32 0.0, %v271
      %v273 = vpop.f32.mrb[0].mxu0
      %274 = vdwg.mxu0
      %v276 = vsel %vm193, %v172, 0
      %v279 = vsel %vm193, %v173, 0
      %281 = vmatprep.subr.mxu0 0.0
      %282 = vmatpush1.msra.mxu0 %v174
      %283 = vmatprep.subr.mxu0 0.0
      %284 = vmatpush1.msra.mxu0 %v175
      %285 = vmatprep.subr.mxu0 0.0
      %286 = vmatpush1.msra.mxu0 %v176
      %287 = vmatprep.subr.mxu0 0.0
      %288 = vmatpush1.msra.mxu0 %v177
      %289 = vmatprep.subr.mxu0 0.0
      %290 = vmatpush1.msra.mxu0 %v178
      %291 = vmatprep.subr.mxu0 0.0
      %292 = vmatpush1.msra.mxu0 %v179
      %293 = vmatprep.subr.mxu0 0.0
      %294 = vmatpush1.msra.mxu0 %v180
      %295 = vmatprep.subr.mxu0 0.0
      %296 = vmatpush1.msra.mxu0 %v181
      %297 = vmatprep.subr.mxu0 0.0
      %298 = vmatpush1.msra.mxu0 0.0
      %299 = vmatprep.subr.mxu0 0.0
      %300 = vmatpush1.msra.mxu0 0.0
      %301 = vmatprep.subr.mxu0 0.0
      %302 = vmatpush1.msra.mxu0 0.0
      %303 = vmatprep.subr.mxu0 0.0
      %304 = vmatpush1.msra.mxu0 0.0
      %305 = vmatprep.subr.mxu0 0.0
      %306 = vmatpush1.msra.mxu0 0.0
      %307 = vmatprep.subr.mxu0 0.0
      %308 = vmatpush1.msra.mxu0 0.0
      %309 = vmatprep.subr.mxu0 0.0
      %310 = vmatpush1.msra.mxu0 0.0
      %311 = vmatprep.subr.mxu0 0.0
      %312 = vmatpush1.msra.mxu0 0.0
      %313 = vmatprep.subr.mxu0 0.0
      %314 = vmatpush1.msra.mxu0 0.0
      %315 = vmatprep.subr.mxu0 0.0
      %316 = vmatpush1.msra.mxu0 0.0
      %317 = vmatprep.subr.mxu0 0.0
      %318 = vmatpush1.msra.mxu0 0.0
      %319 = vmatprep.subr.mxu0 0.0
      %320 = vmatpush1.msra.mxu0 0.0
      %321 = vmatprep.subr.mxu0 0.0
      %322 = vmatpush1.msra.mxu0 0.0
      %323 = vmatprep.subr.mxu0 0.0
      %324 = vmatpush1.msra.mxu0 0.0
      %325 = vmatprep.subr.mxu0 0.0
      %326 = vmatpush1.msra.mxu0 0.0
      %327 = vmatprep.subr.mxu0 0.0
      %328 = vmatpush1.msra.mxu0 0.0
      %329 = vmatprep.subr.mxu0 0.0
      %330 = vmatpush1.msra.mxu0 0.0
      %331 = vmatprep.subr.mxu0 0.0
      %332 = vmatpush1.msra.mxu0 0.0
      %333 = vmatprep.subr.mxu0 0.0
      %334 = vmatpush1.msra.mxu0 0.0
      %335 = vmatprep.subr.mxu0 0.0
      %336 = vmatpush1.msra.mxu0 0.0
      %337 = vmatprep.subr.mxu0 0.0
      %338 = vmatpush1.msra.mxu0 0.0
      %339 = vmatprep.subr.mxu0 0.0
      %340 = vmatpush1.msra.mxu0 0.0
      %341 = vmatprep.subr.mxu0 0.0
      %342 = vmatpush1.msra.mxu0 0.0
      %343 = vmatprep.subr.mxu0 0.0
      %344 = vmatpush1.msra.mxu0 0.0
      %345 = vmatprep.mubr.f32.mxu0 0.0
      %346 = vmatmul.mubr.f32.gmra.mrb[0].mxu0 %v276
      %v347 = vpop.f32.mrb[0].mxu0
      %v348 = vadd.f32 %v267, %v347
      %v349 = vpop.f32.mrb[0].mxu0
      %350 = vmatprep.mubr.f32.mxu0 0.0
      %351 = vmatmul.mubr.f32.gmra.mrb[0].mxu0 %v279
      %v352 = vpop.f32.mrb[0].mxu0
      %v353 = vadd.f32 %v272, %v352
      %v354 = vpop.f32.mrb[0].mxu0
      %355 = vdwg.mxu0
      %v357 = vlaneseq
      %v358 = vshrl.u32 %v357, 7
      %v359 = vsub.s32 0, %v358
      %v360 = vrot.slane %v171, %v359
      %v362 = vadd.f32 %v348, %v360
      %v363 = vadd.f32 %v353, %v360
      %v364 = vmax.f32 %v362, 0.0
      %v365 = vmax.f32 %v363, 0.0
      %366 = vst.msk [vmem:[%s170] sm:$0xff] %vm193, %v364
      %vm367 = vcmask 521216
      %368 = vst.msk [vmem:[%s170 + $0x8] sm:$0x3f] %vm367, %v365
      %p369 = scmp.lt.s32.totalorder %s14, 1
      %s370 = scalar_select %p369, %s14, 1
      %s371 = smul.addr %s370, 2
      %s372 = smul.addr %s371, 8
      %s373 = scalar_lea.vmem %s3, %s372
      // Predicated region
      $region33: #{emg_model2_forward.13} parent=31 // pred_check
        %p374 = pneg %p100
      $region34: #{emg_model2_forward.13} parent=31 // pred_check_branch
        %376 = sbr.rel (%p374) target = $region36
      $region35: #{emg_model2_forward.13} parent=31 // pred_region
        _
      $region36: #{emg_model2_forward.13} parent=31 // pred_fallthru
        _
    $region32: #{emg_model2_forward.13} parent=5 // pred_fallthru
      _
    %p377 = scmp.le.s32.totalorder 2, %s9
    // Predicated region
    $region37: #{emg_model2_forward.13} parent=5 // pred_check
      %p378 = pneg %p377
    $region38: #{emg_model2_forward.13} parent=5 // pred_check_branch
      %380 = sbr.rel (%p378) target = $region40
    $region39: #{emg_model2_forward.13} parent=5 // pred_region
      %s381 = ssub.s32 %s9, 2
      // Predicated region
      $region41: #{emg_model2_forward.13} parent=39 // pred_check
        %p382 = pneg %p106
      $region42: #{emg_model2_forward.13} parent=39 // pred_check_branch
        %384 = sbr.rel (%p382) target = $region44
      $region43: #{emg_model2_forward.13} parent=39 // pred_region
        %p385 = scmp.lt.s32.totalorder %s15, 1
        %s386 = scalar_select %p385, %s15, 1
        %s387 = smul.addr %s386, 2
        %s388 = smul.addr %s387, 8
        %s389 = scalar_lea.vmem %s3, %s388
      $region44: #{emg_model2_forward.13} parent=39 // pred_fallthru
        _
    $region40: #{emg_model2_forward.13} parent=5 // pred_fallthru
      _
  $region6: #{emg_model2_forward.13} parent=0 // loop_footer
    %s13 = sadd.s32 1, %s9
  $region7: #{emg_model2_forward.13} parent=0 // loop_footer_branch
    %8 = sbr.rel target = $region3
  $region8: #{emg_model2_forward.13} parent=0 // loop_exit
    _

// kernel: emg_model2_forward.15
$region0: #{emg_model2_forward.15}
  #allocation0 [shape = 'u32[]', space=smem, size = 0x4, offset = 0x4, fixed_abs, tag = 'smem constant byte address 0x4 - core index']
  #allocation1 [shape = 'u32[144,128]{1,0:T(1,128)}', space=vmem, size = 0x12000, scoped, tag = 'internal scratch']
  %s0 = inlined_call_operand.vmem [shape: f32[2,3,256], index: 0, kind: input, shape index: {}]
  %s1 = inlined_call_operand.vmem [shape: f32[2,256,256], index: 1, kind: input, shape index: {}]
  %s2 = inlined_call_operand.vmem [shape: f32[1,256], index: 2, kind: input, shape index: {}]
  %s3 = inlined_call_operand.vmem [shape: f32[2,2,256], index: 3, kind: output, shape index: {}]
  %s4 = sld [smem:[#allocation0]]
  $region45: #{emg_model2_forward.15} parent=0
    _
  %s6 = ssub.s32 1, %s4
  %s7 = scalar_select 0, %s6, %s4
  loop: start=0, step=1, limit=4
  $region2: #{emg_model2_forward.15} parent=0 // loop_pre_header
    _
  $region3: #{emg_model2_forward.15} parent=0 // loop_header
    %s9 = sphi 0, %s13
    %p10 = scmp.ge.s32.totalorder %s9, 4
    %s19 = sphi 0, %s21
    %s22 = sphi 0, %s19
    %s23 = sphi 0, %s22
    %s39 = sphi 0, %s23
    %s43 = sphi 0, %s43
    %s45 = sphi 0, %s43
    %s46 = sphi 0, %s45
    %s60 = sphi 0, %s46
    %s64 = sphi 0, %s64
    %s66 = sphi 0, %s64
    %s67 = sphi 0, %s66
    %s81 = sphi 0, %s67
    %s87 = sphi 0, %s89
    %s90 = sphi 0, %s87
    %s91 = sphi 0, %s90
    %s107 = sphi 0, %s91
  $region4: #{emg_model2_forward.15} parent=0 // loop_header_branch
    %12 = sbr.rel (%p10) target = $region8
  $region5: #{emg_model2_forward.15} parent=0 // loop_body
    %s14 = ssub.s32 %s9, 1
    %s15 = ssub.s32 %s9, 2
    %s16 = sadd.s32 %s9, 1
    %s17 = ssub.s32 %s9, %s16
    %p18 = scmp.eq.s32.totalorder %s17, 0
    %s20 = sadd.s32 %s19, 1
    %s21 = scalar_select %p18, %s19, %s20
    %p24 = pneg %p18
    %p25 = scmp.eq.s32.totalorder %s9, 1
    %p26 = por %p24, %p25
    %p27 = scmp.ne.s32.totalorder %s19, %s22
    %p28 = scmp.eq.s32.totalorder %s9, 0
    %p29 = por %p27, %p28
    %p30 = scmp.ne.s32.totalorder %s19, %s22
    %p31 = scmp.eq.s32.totalorder %s14, 1
    %p32 = por %p30, %p31
    %p33 = scmp.ne.s32.totalorder %s22, %s23
    %p34 = scmp.eq.s32.totalorder %s14, 0
    %p35 = por %p33, %p34
    %p36 = scmp.ne.s32.totalorder %s22, %s23
    %p37 = scmp.eq.s32.totalorder %s15, 1
    %p38 = por %p36, %p37
    %p40 = scmp.ne.s32.totalorder %s23, %s39
    %p41 = scmp.eq.s32.totalorder %s15, 0
    %p42 = por %p40, %p41
    %s44 = sadd.s32 %s43, 1
    %p47 = scmp.eq.s32.totalorder %s9, 1
    %p48 = scmp.ne.s32.totalorder %s43, %s45
    %p49 = scmp.eq.s32.totalorder %s9, 0
    %p50 = por %p48, %p49
    %p51 = scmp.ne.s32.totalorder %s43, %s45
    %p52 = scmp.eq.s32.totalorder %s14, 1
    %p53 = por %p51, %p52
    %p54 = scmp.ne.s32.totalorder %s45, %s46
    %p55 = scmp.eq.s32.totalorder %s14, 0
    %p56 = por %p54, %p55
    %p57 = scmp.ne.s32.totalorder %s45, %s46
    %p58 = scmp.eq.s32.totalorder %s15, 1
    %p59 = por %p57, %p58
    %p61 = scmp.ne.s32.totalorder %s46, %s60
    %p62 = scmp.eq.s32.totalorder %s15, 0
    %p63 = por %p61, %p62
    %s65 = sadd.s32 %s64, 1
    %p68 = scmp.eq.s32.totalorder %s9, 1
    %p69 = scmp.ne.s32.totalorder %s64, %s66
    %p70 = scmp.eq.s32.totalorder %s9, 0
    %p71 = por %p69, %p70
    %p72 = scmp.ne.s32.totalorder %s64, %s66
    %p73 = scmp.eq.s32.totalorder %s14, 1
    %p74 = por %p72, %p73
    %p75 = scmp.ne.s32.totalorder %s66, %s67
    %p76 = scmp.eq.s32.totalorder %s14, 0
    %p77 = por %p75, %p76
    %p78 = scmp.ne.s32.totalorder %s66, %s67
    %p79 = scmp.eq.s32.totalorder %s15, 1
    %p80 = por %p78, %p79
    %p82 = scmp.ne.s32.totalorder %s67, %s81
    %p83 = scmp.eq.s32.totalorder %s15, 0
    %p84 = por %p82, %p83
    %s85 = ssub.s32 %s9, %s16
    %p86 = scmp.eq.s32.totalorder %s85, 0
    %s88 = sadd.s32 %s87, 1
    %s89 = scalar_select %p86, %s87, %s88
    %p92 = pneg %p86
    %p93 = scmp.eq.s32.totalorder %s9, 1
    %p94 = por %p92, %p93
    %p95 = scmp.ne.s32.totalorder %s87, %s90
    %p96 = scmp.eq.s32.totalorder %s9, 0
    %p97 = por %p95, %p96
    %p98 = scmp.ne.s32.totalorder %s87, %s90
    %p99 = scmp.eq.s32.totalorder %s14, 1
    %p100 = por %p98, %p99
    %p101 = scmp.ne.s32.totalorder %s90, %s91
    %p102 = scmp.eq.s32.totalorder %s14, 0
    %p103 = por %p101, %p102
    %p104 = scmp.ne.s32.totalorder %s90, %s91
    %p105 = scmp.eq.s32.totalorder %s15, 1
    %p106 = por %p104, %p105
    %p108 = scmp.ne.s32.totalorder %s91, %s107
    %p109 = scmp.eq.s32.totalorder %s15, 0
    %p110 = por %p108, %p109
    %p111 = scmp.le.s32.totalorder 1, %s9
    %p112 = scmp.lt.s32.totalorder %s9, 3
    %p113 = pnand %p111, %p112
    %p114 = pneg %p113
    // Predicated region
    $region9: #{emg_model2_forward.15} parent=5 // pred_check
      _
    $region10: #{emg_model2_forward.15} parent=5 // pred_check_branch
      %116 = sbr.rel (%p113) target = $region12
    $region11: #{emg_model2_forward.15} parent=5 // pred_region
      %s117 = ssub.s32 %s9, 1
      // Predicated region
      $region13: #{emg_model2_forward.15} parent=11 // pred_check
        %p118 = pneg %p56
      $region14: #{emg_model2_forward.15} parent=11 // pred_check_branch
        %120 = sbr.rel (%p118) target = $region16
      $region15: #{emg_model2_forward.15} parent=11 // pred_region
        _
      $region16: #{emg_model2_forward.15} parent=11 // pred_fallthru
        _
      // Predicated region
      $region17: #{emg_model2_forward.15} parent=11 // pred_check
        %p121 = pneg %p77
      $region18: #{emg_model2_forward.15} parent=11 // pred_check_branch
        %123 = sbr.rel (%p121) target = $region20
      $region19: #{emg_model2_forward.15} parent=11 // pred_region
        _
      $region20: #{emg_model2_forward.15} parent=11 // pred_fallthru
        _
    $region12: #{emg_model2_forward.15} parent=5 // pred_fallthru
      _
    %p124 = scmp.lt.s32.totalorder %s9, 2
    // Predicated region
    $region21: #{emg_model2_forward.15} parent=5 // pred_check
      %p125 = pneg %p124
    $region22: #{emg_model2_forward.15} parent=5 // pred_check_branch
      %127 = sbr.rel (%p125) target = $region24
    $region23: #{emg_model2_forward.15} parent=5 // pred_region
      // Predicated region
      $region25: #{emg_model2_forward.15} parent=23 // pred_check
        %p128 = pneg %p29
      $region26: #{emg_model2_forward.15} parent=23 // pred_check_branch
        %130 = sbr.rel (%p128) target = $region28
      $region27: #{emg_model2_forward.15} parent=23 // pred_region
        %p131 = scmp.lt.s32.totalorder %s9, 1
        %s132 = scalar_select %p131, %s9, 1
        %s133 = smul.addr %s132, 2
        %s134 = smul.addr %s133, 4
        %s135 = scalar_lea.vmem %s0, %s134
      $region28: #{emg_model2_forward.15} parent=23 // pred_fallthru
        _
    $region24: #{emg_model2_forward.15} parent=5 // pred_fallthru
      _
    %p136 = scmp.le.s32.totalorder 1, %s9
    %p137 = scmp.lt.s32.totalorder %s9, 3
    %p138 = pnand %p136, %p137
    %p139 = pneg %p138
    // Predicated region
    $region29: #{emg_model2_forward.15} parent=5 // pred_check
      _
    $region30: #{emg_model2_forward.15} parent=5 // pred_check_branch
      %141 = sbr.rel (%p138) target = $region32
    $region31: #{emg_model2_forward.15} parent=5 // pred_region
      %s142 = ssub.s32 %s9, 1
      %p143 = scmp.lt.s32.totalorder %s14, 1
      %s144 = scalar_select %p143, %s14, 1
      %s145 = smul.addr %s144, 2
      %s146 = smul.addr %s145, 4
      %s147 = scalar_lea.vmem %s0, %s146
      %p148 = pneg %p35
      %p149 = pneg %p32
      %p150 = pneg %p56
      %p151 = pneg %p53
      %p152 = pneg %p77
      %p153 = pneg %p74
      %p154 = pneg %p103
      %p155 = pneg %p100
      %p156 = scmp.lt.s32.totalorder %s14, 1
      %s157 = scalar_select %p156, %s14, 1
      %s158 = smul.addr %s157, 2
      %s159 = smul.addr %s158, 2
      %s160 = scalar_lea.vmem %s3, %s159
      %p161 = scmp.lt.s32.totalorder %s14, 1
      %s162 = scalar_select %p161, %s14, 1
      %s163 = smul.addr %s162, 2
      %s164 = smul.addr %s163, 4
      %s165 = scalar_lea.vmem %s0, %s164
      %p166 = scmp.lt.s32.totalorder %s14, 1
      %s167 = scalar_select %p166, %s14, 1
      %s168 = smul.addr %s167, 2
      %s169 = smul.addr %s168, 2
      %s170 = scalar_lea.vmem %s3, %s169
      %v171 = vld [vmem:[%s2] sm:$0x3]
      %v172 = vld [vmem:[%s165] sm:$0x33]
      %v173 = vld [vmem:[%s1] sm:$0xff]
      %v174 = vld [vmem:[%s1 + $0x8] sm:$0xff]
      %v175 = vld [vmem:[%s1 + $0x10] sm:$0xff]
      %v176 = vld [vmem:[%s1 + $0x18] sm:$0xff]
      %v177 = vld [vmem:[%s1 + $0x20] sm:$0xff]
      %v178 = vld [vmem:[%s1 + $0x28] sm:$0xff]
      %v179 = vld [vmem:[%s1 + $0x30] sm:$0xff]
      %v180 = vld [vmem:[%s1 + $0x38] sm:$0xff]
      %v181 = vld [vmem:[%s1 + $0x40] sm:$0xff]
      %v182 = vld [vmem:[%s1 + $0x48] sm:$0xff]
      %v183 = vld [vmem:[%s1 + $0x50] sm:$0xff]
      %v184 = vld [vmem:[%s1 + $0x58] sm:$0xff]
      %v185 = vld [vmem:[%s1 + $0x60] sm:$0xff]
      %v186 = vld [vmem:[%s1 + $0x68] sm:$0xff]
      %v187 = vld [vmem:[%s1 + $0x70] sm:$0xff]
      %v188 = vld [vmem:[%s1 + $0x78] sm:$0xff]
      %v189 = vld [vmem:[%s1 + $0x80] sm:$0xff]
      %v190 = vld [vmem:[%s1 + $0x88] sm:$0xff]
      %v191 = vld [vmem:[%s1 + $0x90] sm:$0xff]
      %v192 = vld [vmem:[%s1 + $0x98] sm:$0xff]
      %v193 = vld [vmem:[%s1 + $0xa0] sm:$0xff]
      %v194 = vld [vmem:[%s1 + $0xa8] sm:$0xff]
      %v195 = vld [vmem:[%s1 + $0xb0] sm:$0xff]
      %v196 = vld [vmem:[%s1 + $0xb8] sm:$0xff]
      %v197 = vld [vmem:[%s1 + $0xc0] sm:$0xff]
      %v198 = vld [vmem:[%s1 + $0xc8] sm:$0xff]
      %v199 = vld [vmem:[%s1 + $0xd0] sm:$0xff]
      %v200 = vld [vmem:[%s1 + $0xd8] sm:$0xff]
      %v201 = vld [vmem:[%s1 + $0xe0] sm:$0xff]
      %v202 = vld [vmem:[%s1 + $0xe8] sm:$0xff]
      %v203 = vld [vmem:[%s1 + $0xf0] sm:$0xff]
      %v204 = vld [vmem:[%s1 + $0xf8] sm:$0xff]
      %v205 = vld [vmem:[%s1 + $0x100] sm:$0xff]
      %v206 = vld [vmem:[%s1 + $0x108] sm:$0xff]
      %v207 = vld [vmem:[%s1 + $0x110] sm:$0xff]
      %v208 = vld [vmem:[%s1 + $0x118] sm:$0xff]
      %v209 = vld [vmem:[%s1 + $0x120] sm:$0xff]
      %v210 = vld [vmem:[%s1 + $0x128] sm:$0xff]
      %v211 = vld [vmem:[%s1 + $0x130] sm:$0xff]
      %v212 = vld [vmem:[%s1 + $0x138] sm:$0xff]
      %v213 = vld [vmem:[%s1 + $0x140] sm:$0xff]
      %v214 = vld [vmem:[%s1 + $0x148] sm:$0xff]
      %v215 = vld [vmem:[%s1 + $0x150] sm:$0xff]
      %v216 = vld [vmem:[%s1 + $0x158] sm:$0xff]
      %v217 = vld [vmem:[%s1 + $0x160] sm:$0xff]
      %v218 = vld [vmem:[%s1 + $0x168] sm:$0xff]
      %v219 = vld [vmem:[%s1 + $0x170] sm:$0xff]
      %v220 = vld [vmem:[%s1 + $0x178] sm:$0xff]
      %v221 = vld [vmem:[%s1 + $0x180] sm:$0xff]
      %v222 = vld [vmem:[%s1 + $0x188] sm:$0xff]
      %v223 = vld [vmem:[%s1 + $0x190] sm:$0xff]
      %v224 = vld [vmem:[%s1 + $0x198] sm:$0xff]
      %v225 = vld [vmem:[%s1 + $0x1a0] sm:$0xff]
      %v226 = vld [vmem:[%s1 + $0x1a8] sm:$0xff]
      %v227 = vld [vmem:[%s1 + $0x1b0] sm:$0xff]
      %v228 = vld [vmem:[%s1 + $0x1b8] sm:$0xff]
      %v229 = vld [vmem:[%s1 + $0x1c0] sm:$0xff]
      %v230 = vld [vmem:[%s1 + $0x1c8] sm:$0xff]
      %v231 = vld [vmem:[%s1 + $0x1d0] sm:$0xff]
      %v232 = vld [vmem:[%s1 + $0x1d8] sm:$0xff]
      %v233 = vld [vmem:[%s1 + $0x1e0] sm:$0xff]
      %v234 = vld [vmem:[%s1 + $0x1e8] sm:$0xff]
      %v235 = vld [vmem:[%s1 + $0x1f0] sm:$0xff]
      %v236 = vld [vmem:[%s1 + $0x1f8] sm:$0xff]
      %v237 = vld [vmem:[%s165] sm:$0x66]
      %s238 = scalar_lea.vmem %s1, 512
      %v239 = vld [vmem:[%s238] sm:$0xff]
      %v240 = vld [vmem:[%s238 + $0x8] sm:$0xff]
      %v241 = vld [vmem:[%s238 + $0x10] sm:$0xff]
      %v242 = vld [vmem:[%s238 + $0x18] sm:$0xff]
      %v243 = vld [vmem:[%s238 + $0x20] sm:$0xff]
      %v244 = vld [vmem:[%s238 + $0x28] sm:$0xff]
      %v245 = vld [vmem:[%s238 + $0x30] sm:$0xff]
      %v246 = vld [vmem:[%s238 + $0x38] sm:$0xff]
      %v247 = vld [vmem:[%s238 + $0x40] sm:$0xff]
      %v248 = vld [vmem:[%s238 + $0x48] sm:$0xff]
      %v249 = vld [vmem:[%s238 + $0x50] sm:$0xff]
      %v250 = vld [vmem:[%s238 + $0x58] sm:$0xff]
      %v251 = vld [vmem:[%s238 + $0x60] sm:$0xff]
      %v252 = vld [vmem:[%s238 + $0x68] sm:$0xff]
      %v253 = vld [vmem:[%s238 + $0x70] sm:$0xff]
      %v254 = vld [vmem:[%s238 + $0x78] sm:$0xff]
      %v255 = vld [vmem:[%s238 + $0x80] sm:$0xff]
      %v256 = vld [vmem:[%s238 + $0x88] sm:$0xff]
      %v257 = vld [vmem:[%s238 + $0x90] sm:$0xff]
      %v258 = vld [vmem:[%s238 + $0x98] sm:$0xff]
      %v259 = vld [vmem:[%s238 + $0xa0] sm:$0xff]
      %v260 = vld [vmem:[%s238 + $0xa8] sm:$0xff]
      %v261 = vld [vmem:[%s238 + $0xb0] sm:$0xff]
      %v262 = vld [vmem:[%s238 + $0xb8] sm:$0xff]
      %v263 = vld [vmem:[%s238 + $0xc0] sm:$0xff]
      %v264 = vld [vmem:[%s238 + $0xc8] sm:$0xff]
      %v265 = vld [vmem:[%s238 + $0xd0] sm:$0xff]
      %v266 = vld [vmem:[%s238 + $0xd8] sm:$0xff]
      %v267 = vld [vmem:[%s238 + $0xe0] sm:$0xff]
      %v268 = vld [vmem:[%s238 + $0xe8] sm:$0xff]
      %v269 = vld [vmem:[%s238 + $0xf0] sm:$0xff]
      %v270 = vld [vmem:[%s238 + $0xf8] sm:$0xff]
      %v271 = vld [vmem:[%s238 + $0x100] sm:$0xff]
      %v272 = vld [vmem:[%s238 + $0x108] sm:$0xff]
      %v273 = vld [vmem:[%s238 + $0x110] sm:$0xff]
      %v274 = vld [vmem:[%s238 + $0x118] sm:$0xff]
      %v275 = vld [vmem:[%s238 + $0x120] sm:$0xff]
      %v276 = vld [vmem:[%s238 + $0x128] sm:$0xff]
      %v277 = vld [vmem:[%s238 + $0x130] sm:$0xff]
      %v278 = vld [vmem:[%s238 + $0x138] sm:$0xff]
      %v279 = vld [vmem:[%s238 + $0x140] sm:$0xff]
      %v280 = vld [vmem:[%s238 + $0x148] sm:$0xff]
      %v281 = vld [vmem:[%s238 + $0x150] sm:$0xff]
      %v282 = vld [vmem:[%s238 + $0x158] sm:$0xff]
      %v283 = vld [vmem:[%s238 + $0x160] sm:$0xff]
      %v284 = vld [vmem:[%s238 + $0x168] sm:$0xff]
      %v285 = vld [vmem:[%s238 + $0x170] sm:$0xff]
      %v286 = vld [vmem:[%s238 + $0x178] sm:$0xff]
      %v287 = vld [vmem:[%s238 + $0x180] sm:$0xff]
      %v288 = vld [vmem:[%s238 + $0x188] sm:$0xff]
      %v289 = vld [vmem:[%s238 + $0x190] sm:$0xff]
      %v290 = vld [vmem:[%s238 + $0x198] sm:$0xff]
      %v291 = vld [vmem:[%s238 + $0x1a0] sm:$0xff]
      %v292 = vld [vmem:[%s238 + $0x1a8] sm:$0xff]
      %v293 = vld [vmem:[%s238 + $0x1b0] sm:$0xff]
      %v294 = vld [vmem:[%s238 + $0x1b8] sm:$0xff]
      %v295 = vld [vmem:[%s238 + $0x1c0] sm:$0xff]
      %v296 = vld [vmem:[%s238 + $0x1c8] sm:$0xff]
      %v297 = vld [vmem:[%s238 + $0x1d0] sm:$0xff]
      %v298 = vld [vmem:[%s238 + $0x1d8] sm:$0xff]
      %v299 = vld [vmem:[%s238 + $0x1e0] sm:$0xff]
      %v300 = vld [vmem:[%s238 + $0x1e8] sm:$0xff]
      %v301 = vld [vmem:[%s238 + $0x1f0] sm:$0xff]
      %v302 = vld [vmem:[%s238 + $0x1f8] sm:$0xff]
      %v304 = vcombine.high %v237, %v237
      %v305 = vrot.slane %v237, 1
      %v306 = vrot.slane %v304, 1
      %309 = vmatprep.subr.mxu0 %v240
      %310 = vmatpush1.msra.mxu0 %v239
      %311 = vmatprep.subr.mxu0 %v242
      %312 = vmatpush1.msra.mxu0 %v241
      %313 = vmatprep.subr.mxu0 %v244
      %314 = vmatpush1.msra.mxu0 %v243
      %315 = vmatprep.subr.mxu0 %v246
      %316 = vmatpush1.msra.mxu0 %v245
      %317 = vmatprep.subr.mxu0 %v248
      %318 = vmatpush1.msra.mxu0 %v247
      %319 = vmatprep.subr.mxu0 %v250
      %320 = vmatpush1.msra.mxu0 %v249
      %321 = vmatprep.subr.mxu0 %v252
      %322 = vmatpush1.msra.mxu0 %v251
      %323 = vmatprep.subr.mxu0 %v254
      %324 = vmatpush1.msra.mxu0 %v253
      %325 = vmatprep.subr.mxu0 %v256
      %326 = vmatpush1.msra.mxu0 %v255
      %327 = vmatprep.subr.mxu0 %v258
      %328 = vmatpush1.msra.mxu0 %v257
      %329 = vmatprep.subr.mxu0 %v260
      %330 = vmatpush1.msra.mxu0 %v259
      %331 = vmatprep.subr.mxu0 %v262
      %332 = vmatpush1.msra.mxu0 %v261
      %333 = vmatprep.subr.mxu0 %v264
      %334 = vmatpush1.msra.mxu0 %v263
      %335 = vmatprep.subr.mxu0 %v266
      %336 = vmatpush1.msra.mxu0 %v265
      %337 = vmatprep.subr.mxu0 %v268
      %338 = vmatpush1.msra.mxu0 %v267
      %339 = vmatprep.subr.mxu0 %v270
      %340 = vmatpush1.msra.mxu0 %v269
      %341 = vmatprep.subr.mxu0 %v272
      %342 = vmatpush1.msra.mxu0 %v271
      %343 = vmatprep.subr.mxu0 %v274
      %344 = vmatpush1.msra.mxu0 %v273
      %345 = vmatprep.subr.mxu0 %v276
      %346 = vmatpush1.msra.mxu0 %v275
      %347 = vmatprep.subr.mxu0 %v278
      %348 = vmatpush1.msra.mxu0 %v277
      %349 = vmatprep.subr.mxu0 %v280
      %350 = vmatpush1.msra.mxu0 %v279
      %351 = vmatprep.subr.mxu0 %v282
      %352 = vmatpush1.msra.mxu0 %v281
      %353 = vmatprep.subr.mxu0 %v284
      %354 = vmatpush1.msra.mxu0 %v283
      %355 = vmatprep.subr.mxu0 %v286
      %356 = vmatpush1.msra.mxu0 %v285
      %357 = vmatprep.subr.mxu0 %v288
      %358 = vmatpush1.msra.mxu0 %v287
      %359 = vmatprep.subr.mxu0 %v290
      %360 = vmatpush1.msra.mxu0 %v289
      %361 = vmatprep.subr.mxu0 %v292
      %362 = vmatpush1.msra.mxu0 %v291
      %363 = vmatprep.subr.mxu0 %v294
      %364 = vmatpush1.msra.mxu0 %v293
      %365 = vmatprep.subr.mxu0 %v296
      %366 = vmatpush1.msra.mxu0 %v295
      %367 = vmatprep.subr.mxu0 %v298
      %368 = vmatpush1.msra.mxu0 %v297
      %369 = vmatprep.subr.mxu0 %v300
      %370 = vmatpush1.msra.mxu0 %v299
      %371 = vmatprep.subr.mxu0 %v302
      %372 = vmatpush1.msra.mxu0 %v301
      %373 = vmatprep.mubr.f32.mxu0 %v306
      %374 = vmatmul.mubr.f32.gmra.mrb[0].mxu0 %v305
      %v375 = vpop.f32.mrb[0].mxu0
      %v376 = vadd.f32 0.0, %v375
      %v377 = vpop.f32.mrb[0].mxu0
      %v378 = vadd.f32 0.0, %v377
      %379 = vdwg.mxu0
      %v381 = vcombine.high %v172, %v172
      %383 = vmatprep.subr.mxu0 %v174
      %384 = vmatpush1.msra.mxu0 %v173
      %385 = vmatprep.subr.mxu0 %v176
      %386 = vmatpush1.msra.mxu0 %v175
      %387 = vmatprep.subr.mxu0 %v178
      %388 = vmatpush1.msra.mxu0 %v177
      %389 = vmatprep.subr.mxu0 %v180
      %390 = vmatpush1.msra.mxu0 %v179
      %391 = vmatprep.subr.mxu0 %v182
      %392 = vmatpush1.msra.mxu0 %v181
      %393 = vmatprep.subr.mxu0 %v184
      %394 = vmatpush1.msra.mxu0 %v183
      %395 = vmatprep.subr.mxu0 %v186
      %396 = vmatpush1.msra.mxu0 %v185
      %397 = vmatprep.subr.mxu0 %v188
      %398 = vmatpush1.msra.mxu0 %v187
      %399 = vmatprep.subr.mxu0 %v190
      %400 = vmatpush1.msra.mxu0 %v189
      %401 = vmatprep.subr.mxu0 %v192
      %402 = vmatpush1.msra.mxu0 %v191
      %403 = vmatprep.subr.mxu0 %v194
      %404 = vmatpush1.msra.mxu0 %v193
      %405 = vmatprep.subr.mxu0 %v196
      %406 = vmatpush1.msra.mxu0 %v195
      %407 = vmatprep.subr.mxu0 %v198
      %408 = vmatpush1.msra.mxu0 %v197
      %409 = vmatprep.subr.mxu0 %v200
      %410 = vmatpush1.msra.mxu0 %v199
      %411 = vmatprep.subr.mxu0 %v202
      %412 = vmatpush1.msra.mxu0 %v201
      %413 = vmatprep.subr.mxu0 %v204
      %414 = vmatpush1.msra.mxu0 %v203
      %415 = vmatprep.subr.mxu0 %v206
      %416 = vmatpush1.msra.mxu0 %v205
      %417 = vmatprep.subr.mxu0 %v208
      %418 = vmatpush1.msra.mxu0 %v207
      %419 = vmatprep.subr.mxu0 %v210
      %420 = vmatpush1.msra.mxu0 %v209
      %421 = vmatprep.subr.mxu0 %v212
      %422 = vmatpush1.msra.mxu0 %v211
      %423 = vmatprep.subr.mxu0 %v214
      %424 = vmatpush1.msra.mxu0 %v213
      %425 = vmatprep.subr.mxu0 %v216
      %426 = vmatpush1.msra.mxu0 %v215
      %427 = vmatprep.subr.mxu0 %v218
      %428 = vmatpush1.msra.mxu0 %v217
      %429 = vmatprep.subr.mxu0 %v220
      %430 = vmatpush1.msra.mxu0 %v219
      %431 = vmatprep.subr.mxu0 %v222
      %432 = vmatpush1.msra.mxu0 %v221
      %433 = vmatprep.subr.mxu0 %v224
      %434 = vmatpush1.msra.mxu0 %v223
      %435 = vmatprep.subr.mxu0 %v226
      %436 = vmatpush1.msra.mxu0 %v225
      %437 = vmatprep.subr.mxu0 %v228
      %438 = vmatpush1.msra.mxu0 %v227
      %439 = vmatprep.subr.mxu0 %v230
      %440 = vmatpush1.msra.mxu0 %v229
      %441 = vmatprep.subr.mxu0 %v232
      %442 = vmatpush1.msra.mxu0 %v231
      %443 = vmatprep.subr.mxu0 %v234
      %444 = vmatpush1.msra.mxu0 %v233
      %445 = vmatprep.subr.mxu0 %v236
      %446 = vmatpush1.msra.mxu0 %v235
      %447 = vmatprep.mubr.f32.mxu0 %v381
      %448 = vmatmul.mubr.f32.gmra.mrb[0].mxu0 %v172
      %v449 = vpop.f32.mrb[0].mxu0
      %v450 = vadd.f32 %v376, %v449
      %v451 = vpop.f32.mrb[0].mxu0
      %v452 = vadd.f32 %v378, %v451
      %453 = vdwg.mxu0
      %v455 = vlaneseq
      %v456 = vshrl.u32 %v455, 7
      %v457 = vsub.s32 0, %v456
      %v458 = vrot.slane %v171, %v457
      %v459 = vlaneseq
      %v460 = vshrl.u32 %v459, 7
      %v461 = vsub.s32 1, %v460
      %v462 = vrot.slane %v171, %v461
      %v465 = vadd.f32 %v450, %v458
      %v466 = vadd.f32 %v452, %v462
      %v467 = vmax.f32 %v465, 0.0
      %v468 = vmax.f32 %v466, 0.0
      %v471 = vcombine.low %v467, %v468
      %v473 = vunpack.c.l.s4 1983009808
      %v474 = vunpack.c.0.s8 %v473
      %v475 = vlaneseq
      %v476 = vshrl.u32 %v475, 7
      %v477 = vsub.s32 %v474, %v476
      %v478 = vrot.slane %v471, %v477
      %480 = vst [vmem:[%s170] sm:$0xf] %v478
      %p481 = scmp.lt.s32.totalorder %s14, 1
      %s482 = scalar_select %p481, %s14, 1
      %s483 = smul.addr %s482, 2
      %s484 = smul.addr %s483, 2
      %s485 = scalar_lea.vmem %s3, %s484
      // Predicated region
      $region33: #{emg_model2_forward.15} parent=31 // pred_check
        %p486 = pneg %p100
      $region34: #{emg_model2_forward.15} parent=31 // pred_check_branch
        %488 = sbr.rel (%p486) target = $region36
      $region35: #{emg_model2_forward.15} parent=31 // pred_region
        _
      $region36: #{emg_model2_forward.15} parent=31 // pred_fallthru
        _
    $region32: #{emg_model2_forward.15} parent=5 // pred_fallthru
      _
    %p489 = scmp.le.s32.totalorder 2, %s9
    // Predicated region
    $region37: #{emg_model2_forward.15} parent=5 // pred_check
      %p490 = pneg %p489
    $region38: #{emg_model2_forward.15} parent=5 // pred_check_branch
      %492 = sbr.rel (%p490) target = $region40
    $region39: #{emg_model2_forward.15} parent=5 // pred_region
      %s493 = ssub.s32 %s9, 2
      // Predicated region
      $region41: #{emg_model2_forward.15} parent=39 // pred_check
        %p494 = pneg %p106
      $region42: #{emg_model2_forward.15} parent=39 // pred_check_branch
        %496 = sbr.rel (%p494) target = $region44
      $region43: #{emg_model2_forward.15} parent=39 // pred_region
        %p497 = scmp.lt.s32.totalorder %s15, 1
        %s498 = scalar_select %p497, %s15, 1
        %s499 = smul.addr %s498, 2
        %s500 = smul.addr %s499, 2
        %s501 = scalar_lea.vmem %s3, %s500
      $region44: #{emg_model2_forward.15} parent=39 // pred_fallthru
        _
    $region40: #{emg_model2_forward.15} parent=5 // pred_fallthru
      _
  $region6: #{emg_model2_forward.15} parent=0 // loop_footer
    %s13 = sadd.s32 1, %s9
  $region7: #{emg_model2_forward.15} parent=0 // loop_footer_branch
    %8 = sbr.rel target = $region3
  $region8: #{emg_model2_forward.15} parent=0 // loop_exit
    _

// kernel: emg_model2_forward.17
$region0: #{emg_model2_forward.17}
  #allocation0 [shape = 'u32[]', space=smem, size = 0x4, offset = 0x4, fixed_abs, tag = 'smem constant byte address 0x4 - core index']
  #allocation1 [shape = 'u32[144,128]{1,0:T(1,128)}', space=vmem, size = 0x12000, scoped, tag = 'internal scratch']
  %s0 = inlined_call_operand.vmem [shape: f32[2,4,256], index: 0, kind: input, shape index: {}]
  %s1 = inlined_call_operand.vmem [shape: f32[3,256,128], index: 1, kind: input, shape index: {}]
  %s2 = inlined_call_operand.vmem [shape: f32[1,128], index: 2, kind: input, shape index: {}]
  %s3 = inlined_call_operand.vmem [shape: f32[2,3,128], index: 3, kind: output, shape index: {0}]
  %s4 = inlined_call_operand.vmem [shape: f32[2,2,128], index: 4, kind: output, shape index: {1}]
  %5 = xla_tuple %s3, %s4
  %s6 = sld [smem:[#allocation0]]
  $region53: #{emg_model2_forward.17} parent=0
    _
  %s8 = ssub.s32 1, %s6
  %s9 = scalar_select 0, %s8, %s6
  loop: start=0, step=1, limit=4
  $region2: #{emg_model2_forward.17} parent=0 // loop_pre_header
    _
  $region3: #{emg_model2_forward.17} parent=0 // loop_header
    %s11 = sphi 0, %s15
    %p12 = scmp.ge.s32.totalorder %s11, 4
    %s21 = sphi 0, %s23
    %s24 = sphi 0, %s21
    %s25 = sphi 0, %s24
    %s41 = sphi 0, %s25
    %s45 = sphi 0, %s45
    %s47 = sphi 0, %s45
    %s48 = sphi 0, %s47
    %s62 = sphi 0, %s48
    %s66 = sphi 0, %s66
    %s68 = sphi 0, %s66
    %s69 = sphi 0, %s68
    %s83 = sphi 0, %s69
    %s89 = sphi 0, %s91
    %s92 = sphi 0, %s89
    %s93 = sphi 0, %s92
    %s109 = sphi 0, %s93
    %s115 = sphi 0, %s117
    %s118 = sphi 0, %s115
    %s119 = sphi 0, %s118
    %s135 = sphi 0, %s119
  $region4: #{emg_model2_forward.17} parent=0 // loop_header_branch
    %14 = sbr.rel (%p12) target = $region8
  $region5: #{emg_model2_forward.17} parent=0 // loop_body
    %s16 = ssub.s32 %s11, 1
    %s17 = ssub.s32 %s11, 2
    %s18 = sadd.s32 %s11, 1
    %s19 = ssub.s32 %s11, %s18
    %p20 = scmp.eq.s32.totalorder %s19, 0
    %s22 = sadd.s32 %s21, 1
    %s23 = scalar_select %p20, %s21, %s22
    %p26 = pneg %p20
    %p27 = scmp.eq.s32.totalorder %s11, 1
    %p28 = por %p26, %p27
    %p29 = scmp.ne.s32.totalorder %s21, %s24
    %p30 = scmp.eq.s32.totalorder %s11, 0
    %p31 = por %p29, %p30
    %p32 = scmp.ne.s32.totalorder %s21, %s24
    %p33 = scmp.eq.s32.totalorder %s16, 1
    %p34 = por %p32, %p33
    %p35 = scmp.ne.s32.totalorder %s24, %s25
    %p36 = scmp.eq.s32.totalorder %s16, 0
    %p37 = por %p35, %p36
    %p38 = scmp.ne.s32.totalorder %s24, %s25
    %p39 = scmp.eq.s32.totalorder %s17, 1
    %p40 = por %p38, %p39
    %p42 = scmp.ne.s32.totalorder %s25, %s41
    %p43 = scmp.eq.s32.totalorder %s17, 0
    %p44 = por %p42, %p43
    %s46 = sadd.s32 %s45, 1
    %p49 = scmp.eq.s32.totalorder %s11, 1
    %p50 = scmp.ne.s32.totalorder %s45, %s47
    %p51 = scmp.eq.s32.totalorder %s11, 0
    %p52 = por %p50, %p51
    %p53 = scmp.ne.s32.totalorder %s45, %s47
    %p54 = scmp.eq.s32.totalorder %s16, 1
    %p55 = por %p53, %p54
    %p56 = scmp.ne.s32.totalorder %s47, %s48
    %p57 = scmp.eq.s32.totalorder %s16, 0
    %p58 = por %p56, %p57
    %p59 = scmp.ne.s32.totalorder %s47, %s48
    %p60 = scmp.eq.s32.totalorder %s17, 1
    %p61 = por %p59, %p60
    %p63 = scmp.ne.s32.totalorder %s48, %s62
    %p64 = scmp.eq.s32.totalorder %s17, 0
    %p65 = por %p63, %p64
    %s67 = sadd.s32 %s66, 1
    %p70 = scmp.eq.s32.totalorder %s11, 1
    %p71 = scmp.ne.s32.totalorder %s66, %s68
    %p72 = scmp.eq.s32.totalorder %s11, 0
    %p73 = por %p71, %p72
    %p74 = scmp.ne.s32.totalorder %s66, %s68
    %p75 = scmp.eq.s32.totalorder %s16, 1
    %p76 = por %p74, %p75
    %p77 = scmp.ne.s32.totalorder %s68, %s69
    %p78 = scmp.eq.s32.totalorder %s16, 0
    %p79 = por %p77, %p78
    %p80 = scmp.ne.s32.totalorder %s68, %s69
    %p81 = scmp.eq.s32.totalorder %s17, 1
    %p82 = por %p80, %p81
    %p84 = scmp.ne.s32.totalorder %s69, %s83
    %p85 = scmp.eq.s32.totalorder %s17, 0
    %p86 = por %p84, %p85
    %s87 = ssub.s32 %s11, %s18
    %p88 = scmp.eq.s32.totalorder %s87, 0
    %s90 = sadd.s32 %s89, 1
    %s91 = scalar_select %p88, %s89, %s90
    %p94 = pneg %p88
    %p95 = scmp.eq.s32.totalorder %s11, 1
    %p96 = por %p94, %p95
    %p97 = scmp.ne.s32.totalorder %s89, %s92
    %p98 = scmp.eq.s32.totalorder %s11, 0
    %p99 = por %p97, %p98
    %p100 = scmp.ne.s32.totalorder %s89, %s92
    %p101 = scmp.eq.s32.totalorder %s16, 1
    %p102 = por %p100, %p101
    %p103 = scmp.ne.s32.totalorder %s92, %s93
    %p104 = scmp.eq.s32.totalorder %s16, 0
    %p105 = por %p103, %p104
    %p106 = scmp.ne.s32.totalorder %s92, %s93
    %p107 = scmp.eq.s32.totalorder %s17, 1
    %p108 = por %p106, %p107
    %p110 = scmp.ne.s32.totalorder %s93, %s109
    %p111 = scmp.eq.s32.totalorder %s17, 0
    %p112 = por %p110, %p111
    %s113 = ssub.s32 %s11, %s18
    %p114 = scmp.eq.s32.totalorder %s113, 0
    %s116 = sadd.s32 %s115, 1
    %s117 = scalar_select %p114, %s115, %s116
    %p120 = pneg %p114
    %p121 = scmp.eq.s32.totalorder %s11, 1
    %p122 = por %p120, %p121
    %p123 = scmp.ne.s32.totalorder %s115, %s118
    %p124 = scmp.eq.s32.totalorder %s11, 0
    %p125 = por %p123, %p124
    %p126 = scmp.ne.s32.totalorder %s115, %s118
    %p127 = scmp.eq.s32.totalorder %s16, 1
    %p128 = por %p126, %p127
    %p129 = scmp.ne.s32.totalorder %s118, %s119
    %p130 = scmp.eq.s32.totalorder %s16, 0
    %p131 = por %p129, %p130
    %p132 = scmp.ne.s32.totalorder %s118, %s119
    %p133 = scmp.eq.s32.totalorder %s17, 1
    %p134 = por %p132, %p133
    %p136 = scmp.ne.s32.totalorder %s119, %s135
    %p137 = scmp.eq.s32.totalorder %s17, 0
    %p138 = por %p136, %p137
    %p139 = scmp.le.s32.totalorder 1, %s11
    %p140 = scmp.lt.s32.totalorder %s11, 3
    %p141 = pnand %p139, %p140
    %p142 = pneg %p141
    // Predicated region
    $region9: #{emg_model2_forward.17} parent=5 // pred_check
      _
    $region10: #{emg_model2_forward.17} parent=5 // pred_check_branch
      %144 = sbr.rel (%p141) target = $region12
    $region11: #{emg_model2_forward.17} parent=5 // pred_region
      %s145 = ssub.s32 %s11, 1
      // Predicated region
      $region13: #{emg_model2_forward.17} parent=11 // pred_check
        %p146 = pneg %p58
      $region14: #{emg_model2_forward.17} parent=11 // pred_check_branch
        %148 = sbr.rel (%p146) target = $region16
      $region15: #{emg_model2_forward.17} parent=11 // pred_region
        _
      $region16: #{emg_model2_forward.17} parent=11 // pred_fallthru
        _
      // Predicated region
      $region17: #{emg_model2_forward.17} parent=11 // pred_check
        %p149 = pneg %p79
      $region18: #{emg_model2_forward.17} parent=11 // pred_check_branch
        %151 = sbr.rel (%p149) target = $region20
      $region19: #{emg_model2_forward.17} parent=11 // pred_region
        _
      $region20: #{emg_model2_forward.17} parent=11 // pred_fallthru
        _
    $region12: #{emg_model2_forward.17} parent=5 // pred_fallthru
      _
    %p152 = scmp.lt.s32.totalorder %s11, 2
    // Predicated region
    $region21: #{emg_model2_forward.17} parent=5 // pred_check
      %p153 = pneg %p152
    $region22: #{emg_model2_forward.17} parent=5 // pred_check_branch
      %155 = sbr.rel (%p153) target = $region24
    $region23: #{emg_model2_forward.17} parent=5 // pred_region
      // Predicated region
      $region25: #{emg_model2_forward.17} parent=23 // pred_check
        %p156 = pneg %p31
      $region26: #{emg_model2_forward.17} parent=23 // pred_check_branch
        %158 = sbr.rel (%p156) target = $region28
      $region27: #{emg_model2_forward.17} parent=23 // pred_region
        %p159 = scmp.lt.s32.totalorder %s11, 1
        %s160 = scalar_select %p159, %s11, 1
        %s161 = smul.addr %s160, 2
        %s162 = smul.addr %s161, 4
        %s163 = scalar_lea.vmem %s0, %s162
      $region28: #{emg_model2_forward.17} parent=23 // pred_fallthru
        _
    $region24: #{emg_model2_forward.17} parent=5 // pred_fallthru
      _
    %p164 = scmp.le.s32.totalorder 1, %s11
    %p165 = scmp.lt.s32.totalorder %s11, 3
    %p166 = pnand %p164, %p165
    %p167 = pneg %p166
    // Predicated region
    $region29: #{emg_model2_forward.17} parent=5 // pred_check
      _
    $region30: #{emg_model2_forward.17} parent=5 // pred_check_branch
      %169 = sbr.rel (%p166) target = $region32
    $region31: #{emg_model2_forward.17} parent=5 // pred_region
      %s170 = ssub.s32 %s11, 1
      %p171 = scmp.lt.s32.totalorder %s16, 1
      %s172 = scalar_select %p171, %s16, 1
      %s173 = smul.addr %s172, 2
      %s174 = smul.addr %s173, 4
      %s175 = scalar_lea.vmem %s0, %s174
      %p176 = pneg %p37
      %p177 = pneg %p34
      %p178 = pneg %p58
      %p179 = pneg %p55
      %p180 = pneg %p79
      %p181 = pneg %p76
      %p182 = pneg %p105
      %p183 = pneg %p102
      %p184 = scmp.lt.s32.totalorder %s16, 1
      %s185 = scalar_select %p184, %s16, 1
      %s186 = smul.addr %s185, 4
      %s187 = scalar_lea.vmem %s3, %s186
      %p188 = pneg %p131
      %p189 = pneg %p128
      %p190 = scmp.lt.s32.totalorder %s16, 1
      %s191 = scalar_select %p190, %s16, 1
      %s192 = smul.addr %s191, 2
      %s193 = scalar_lea.vmem %s4, %s192
      %p194 = scmp.lt.s32.totalorder %s16, 1
      %s195 = scalar_select %p194, %s16, 1
      %s196 = smul.addr %s195, 2
      %s197 = smul.addr %s196, 4
      %s198 = scalar_lea.vmem %s0, %s197
      %p199 = scmp.lt.s32.totalorder %s16, 1
      %s200 = scalar_select %p199, %s16, 1
      %s201 = smul.addr %s200, 4
      %s202 = scalar_lea.vmem %s3, %s201
      %p203 = scmp.lt.s32.totalorder %s16, 1
      %s204 = scalar_select %p203, %s16, 1
      %s205 = smul.addr %s204, 2
      %s206 = scalar_lea.vmem %s4, %s205
      %v207 = vld [vmem:[%s2] sm:$0x1]
      %v208 = vld [vmem:[%s198] sm:$0xee]
      %v209 = vld [vmem:[%s1] sm:$0xff]
      %v210 = vld [vmem:[%s1 + $0x8] sm:$0xff]
      %v211 = vld [vmem:[%s1 + $0x10] sm:$0xff]
      %v212 = vld [vmem:[%s1 + $0x18] sm:$0xff]
      %v213 = vld [vmem:[%s1 + $0x20] sm:$0xff]
      %v214 = vld [vmem:[%s1 + $0x28] sm:$0xff]
      %v215 = vld [vmem:[%s1 + $0x30] sm:$0xff]
      %v216 = vld [vmem:[%s1 + $0x38] sm:$0xff]
      %v217 = vld [vmem:[%s1 + $0x40] sm:$0xff]
      %v218 = vld [vmem:[%s1 + $0x48] sm:$0xff]
      %v219 = vld [vmem:[%s1 + $0x50] sm:$0xff]
      %v220 = vld [vmem:[%s1 + $0x58] sm:$0xff]
      %v221 = vld [vmem:[%s1 + $0x60] sm:$0xff]
      %v222 = vld [vmem:[%s1 + $0x68] sm:$0xff]
      %v223 = vld [vmem:[%s1 + $0x70] sm:$0xff]
      %v224 = vld [vmem:[%s1 + $0x78] sm:$0xff]
      %v225 = vld [vmem:[%s1 + $0x80] sm:$0xff]
      %v226 = vld [vmem:[%s1 + $0x88] sm:$0xff]
      %v227 = vld [vmem:[%s1 + $0x90] sm:$0xff]
      %v228 = vld [vmem:[%s1 + $0x98] sm:$0xff]
      %v229 = vld [vmem:[%s1 + $0xa0] sm:$0xff]
      %v230 = vld [vmem:[%s1 + $0xa8] sm:$0xff]
      %v231 = vld [vmem:[%s1 + $0xb0] sm:$0xff]
      %v232 = vld [vmem:[%s1 + $0xb8] sm:$0xff]
      %v233 = vld [vmem:[%s1 + $0xc0] sm:$0xff]
      %v234 = vld [vmem:[%s1 + $0xc8] sm:$0xff]
      %v235 = vld [vmem:[%s1 + $0xd0] sm:$0xff]
      %v236 = vld [vmem:[%s1 + $0xd8] sm:$0xff]
      %v237 = vld [vmem:[%s1 + $0xe0] sm:$0xff]
      %v238 = vld [vmem:[%s1 + $0xe8] sm:$0xff]
      %v239 = vld [vmem:[%s1 + $0xf0] sm:$0xff]
      %v240 = vld [vmem:[%s1 + $0xf8] sm:$0xff]
      %v241 = vld [vmem:[%s198] sm:$0x77]
      %s242 = scalar_lea.vmem %s1, 512
      %v243 = vld [vmem:[%s242] sm:$0xff]
      %v244 = vld [vmem:[%s242 + $0x8] sm:$0xff]
      %v245 = vld [vmem:[%s242 + $0x10] sm:$0xff]
      %v246 = vld [vmem:[%s242 + $0x18] sm:$0xff]
      %v247 = vld [vmem:[%s242 + $0x20] sm:$0xff]
      %v248 = vld [vmem:[%s242 + $0x28] sm:$0xff]
      %v249 = vld [vmem:[%s242 + $0x30] sm:$0xff]
      %v250 = vld [vmem:[%s242 + $0x38] sm:$0xff]
      %v251 = vld [vmem:[%s242 + $0x40] sm:$0xff]
      %v252 = vld [vmem:[%s242 + $0x48] sm:$0xff]
      %v253 = vld [vmem:[%s242 + $0x50] sm:$0xff]
      %v254 = vld [vmem:[%s242 + $0x58] sm:$0xff]
      %v255 = vld [vmem:[%s242 + $0x60] sm:$0xff]
      %v256 = vld [vmem:[%s242 + $0x68] sm:$0xff]
      %v257 = vld [vmem:[%s242 + $0x70] sm:$0xff]
      %v258 = vld [vmem:[%s242 + $0x78] sm:$0xff]
      %v259 = vld [vmem:[%s242 + $0x80] sm:$0xff]
      %v260 = vld [vmem:[%s242 + $0x88] sm:$0xff]
      %v261 = vld [vmem:[%s242 + $0x90] sm:$0xff]
      %v262 = vld [vmem:[%s242 + $0x98] sm:$0xff]
      %v263 = vld [vmem:[%s242 + $0xa0] sm:$0xff]
      %v264 = vld [vmem:[%s242 + $0xa8] sm:$0xff]
      %v265 = vld [vmem:[%s242 + $0xb0] sm:$0xff]
      %v266 = vld [vmem:[%s242 + $0xb8] sm:$0xff]
      %v267 = vld [vmem:[%s242 + $0xc0] sm:$0xff]
      %v268 = vld [vmem:[%s242 + $0xc8] sm:$0xff]
      %v269 = vld [vmem:[%s242 + $0xd0] sm:$0xff]
      %v270 = vld [vmem:[%s242 + $0xd8] sm:$0xff]
      %v271 = vld [vmem:[%s242 + $0xe0] sm:$0xff]
      %v272 = vld [vmem:[%s242 + $0xe8] sm:$0xff]
      %v273 = vld [vmem:[%s242 + $0xf0] sm:$0xff]
      %v274 = vld [vmem:[%s242 + $0xf8] sm:$0xff]
      %v276 = vcombine.high %v241, %v241
      %278 = vmatprep.subr.mxu0 0.0
      %279 = vmatpush1.msra.mxu0 %v243
      %280 = vmatprep.subr.mxu0 0.0
      %281 = vmatpush1.msra.mxu0 %v244
      %282 = vmatprep.subr.mxu0 0.0
      %283 = vmatpush1.msra.mxu0 %v245
      %284 = vmatprep.subr.mxu0 0.0
      %285 = vmatpush1.msra.mxu0 %v246
      %286 = vmatprep.subr.mxu0 0.0
      %287 = vmatpush1.msra.mxu0 %v247
      %288 = vmatprep.subr.mxu0 0.0
      %289 = vmatpush1.msra.mxu0 %v248
      %290 = vmatprep.subr.mxu0 0.0
      %291 = vmatpush1.msra.mxu0 %v249
      %292 = vmatprep.subr.mxu0 0.0
      %293 = vmatpush1.msra.mxu0 %v250
      %294 = vmatprep.subr.mxu0 0.0
      %295 = vmatpush1.msra.mxu0 %v251
      %296 = vmatprep.subr.mxu0 0.0
      %297 = vmatpush1.msra.mxu0 %v252
      %298 = vmatprep.subr.mxu0 0.0
      %299 = vmatpush1.msra.mxu0 %v253
      %300 = vmatprep.subr.mxu0 0.0
      %301 = vmatpush1.msra.mxu0 %v254
      %302 = vmatprep.subr.mxu0 0.0
      %303 = vmatpush1.msra.mxu0 %v255
      %304 = vmatprep.subr.mxu0 0.0
      %305 = vmatpush1.msra.mxu0 %v256
      %306 = vmatprep.subr.mxu0 0.0
      %307 = vmatpush1.msra.mxu0 %v257
      %308 = vmatprep.subr.mxu0 0.0
      %309 = vmatpush1.msra.mxu0 %v258
      %310 = vmatprep.subr.mxu0 0.0
      %311 = vmatpush1.msra.mxu0 %v259
      %312 = vmatprep.subr.mxu0 0.0
      %313 = vmatpush1.msra.mxu0 %v260
      %314 = vmatprep.subr.mxu0 0.0
      %315 = vmatpush1.msra.mxu0 %v261
      %316 = vmatprep.subr.mxu0 0.0
      %317 = vmatpush1.msra.mxu0 %v262
      %318 = vmatprep.subr.mxu0 0.0
      %319 = vmatpush1.msra.mxu0 %v263
      %320 = vmatprep.subr.mxu0 0.0
      %321 = vmatpush1.msra.mxu0 %v264
      %322 = vmatprep.subr.mxu0 0.0
      %323 = vmatpush1.msra.mxu0 %v265
      %324 = vmatprep.subr.mxu0 0.0
      %325 = vmatpush1.msra.mxu0 %v266
      %326 = vmatprep.subr.mxu0 0.0
      %327 = vmatpush1.msra.mxu0 %v267
      %328 = vmatprep.subr.mxu0 0.0
      %329 = vmatpush1.msra.mxu0 %v268
      %330 = vmatprep.subr.mxu0 0.0
      %331 = vmatpush1.msra.mxu0 %v269
      %332 = vmatprep.subr.mxu0 0.0
      %333 = vmatpush1.msra.mxu0 %v270
      %334 = vmatprep.subr.mxu0 0.0
      %335 = vmatpush1.msra.mxu0 %v271
      %336 = vmatprep.subr.mxu0 0.0
      %337 = vmatpush1.msra.mxu0 %v272
      %338 = vmatprep.subr.mxu0 0.0
      %339 = vmatpush1.msra.mxu0 %v273
      %340 = vmatprep.subr.mxu0 0.0
      %341 = vmatpush1.msra.mxu0 %v274
      %342 = vmatprep.mubr.f32.mxu0 %v276
      %343 = vmatmul.mubr.f32.gmra.mrb[0].mxu0 %v241
      %v344 = vpop.f32.mrb[0].mxu0
      %v345 = vadd.f32 0.0, %v344
      %v346 = vpop.f32.mrb[0].mxu0
      %347 = vdwg.mxu0
      %v349 = vcombine.high %v208, %v208
      %v350 = vrot.slane %v208, 1
      %v351 = vrot.slane %v349, 1
      %354 = vmatprep.subr.mxu0 0.0
      %355 = vmatpush1.msra.mxu0 %v209
      %356 = vmatprep.subr.mxu0 0.0
      %357 = vmatpush1.msra.mxu0 %v210
      %358 = vmatprep.subr.mxu0 0.0
      %359 = vmatpush1.msra.mxu0 %v211
      %360 = vmatprep.subr.mxu0 0.0
      %361 = vmatpush1.msra.mxu0 %v212
      %362 = vmatprep.subr.mxu0 0.0
      %363 = vmatpush1.msra.mxu0 %v213
      %364 = vmatprep.subr.mxu0 0.0
      %365 = vmatpush1.msra.mxu0 %v214
      %366 = vmatprep.subr.mxu0 0.0
      %367 = vmatpush1.msra.mxu0 %v215
      %368 = vmatprep.subr.mxu0 0.0
      %369 = vmatpush1.msra.mxu0 %v216
      %370 = vmatprep.subr.mxu0 0.0
      %371 = vmatpush1.msra.mxu0 %v217
      %372 = vmatprep.subr.mxu0 0.0
      %373 = vmatpush1.msra.mxu0 %v218
      %374 = vmatprep.subr.mxu0 0.0
      %375 = vmatpush1.msra.mxu0 %v219
      %376 = vmatprep.subr.mxu0 0.0
      %377 = vmatpush1.msra.mxu0 %v220
      %378 = vmatprep.subr.mxu0 0.0
      %379 = vmatpush1.msra.mxu0 %v221
      %380 = vmatprep.subr.mxu0 0.0
      %381 = vmatpush1.msra.mxu0 %v222
      %382 = vmatprep.subr.mxu0 0.0
      %383 = vmatpush1.msra.mxu0 %v223
      %384 = vmatprep.subr.mxu0 0.0
      %385 = vmatpush1.msra.mxu0 %v224
      %386 = vmatprep.subr.mxu0 0.0
      %387 = vmatpush1.msra.mxu0 %v225
      %388 = vmatprep.subr.mxu0 0.0
      %389 = vmatpush1.msra.mxu0 %v226
      %390 = vmatprep.subr.mxu0 0.0
      %391 = vmatpush1.msra.mxu0 %v227
      %392 = vmatprep.subr.mxu0 0.0
      %393 = vmatpush1.msra.mxu0 %v228
      %394 = vmatprep.subr.mxu0 0.0
      %395 = vmatpush1.msra.mxu0 %v229
      %396 = vmatprep.subr.mxu0 0.0
      %397 = vmatpush1.msra.mxu0 %v230
      %398 = vmatprep.subr.mxu0 0.0
      %399 = vmatpush1.msra.mxu0 %v231
      %400 = vmatprep.subr.mxu0 0.0
      %401 = vmatpush1.msra.mxu0 %v232
      %402 = vmatprep.subr.mxu0 0.0
      %403 = vmatpush1.msra.mxu0 %v233
      %404 = vmatprep.subr.mxu0 0.0
      %405 = vmatpush1.msra.mxu0 %v234
      %406 = vmatprep.subr.mxu0 0.0
      %407 = vmatpush1.msra.mxu0 %v235
      %408 = vmatprep.subr.mxu0 0.0
      %409 = vmatpush1.msra.mxu0 %v236
      %410 = vmatprep.subr.mxu0 0.0
      %411 = vmatpush1.msra.mxu0 %v237
      %412 = vmatprep.subr.mxu0 0.0
      %413 = vmatpush1.msra.mxu0 %v238
      %414 = vmatprep.subr.mxu0 0.0
      %415 = vmatpush1.msra.mxu0 %v239
      %416 = vmatprep.subr.mxu0 0.0
      %417 = vmatpush1.msra.mxu0 %v240
      %418 = vmatprep.mubr.f32.mxu0 %v351
      %419 = vmatmul.mubr.f32.gmra.mrb[0].mxu0 %v350
      %v420 = vpop.f32.mrb[0].mxu0
      %v421 = vadd.f32 %v345, %v420
      %v422 = vpop.f32.mrb[0].mxu0
      %423 = vdwg.mxu0
      %v425 = vlaneseq
      %v426 = vshrl.u32 %v425, 7
      %v427 = vsub.s32 0, %v426
      %v428 = vrot.slane %v207, %v427
      %v430 = vadd.f32 %v421, %v428
      %v431 = vmax.f32 %v430, 0.0
      %v432 = vmin.f32 %v431, 1.0
      %433 = vst [vmem:[%s202] sm:$0x7] %v432
      %v434 = vld [vmem:[%s198] sm:$0x66]
      %s435 = scalar_lea.vmem %s1, 256
      %v436 = vld [vmem:[%s435] sm:$0xff]
      %v437 = vld [vmem:[%s435 + $0x8] sm:$0xff]
      %v438 = vld [vmem:[%s435 + $0x10] sm:$0xff]
      %v439 = vld [vmem:[%s435 + $0x18] sm:$0xff]
      %v440 = vld [vmem:[%s435 + $0x20] sm:$0xff]
      %v441 = vld [vmem:[%s435 + $0x28] sm:$0xff]
      %v442 = vld [vmem:[%s435 + $0x30] sm:$0xff]
      %v443 = vld [vmem:[%s435 + $0x38] sm:$0xff]
      %v444 = vld [vmem:[%s435 + $0x40] sm:$0xff]
      %v445 = vld [vmem:[%s435 + $0x48] sm:$0xff]
      %v446 = vld [vmem:[%s435 + $0x50] sm:$0xff]
      %v447 = vld [vmem:[%s435 + $0x58] sm:$0xff]
      %v448 = vld [vmem:[%s435 + $0x60] sm:$0xff]
      %v449 = vld [vmem:[%s435 + $0x68] sm:$0xff]
      %v450 = vld [vmem:[%s435 + $0x70] sm:$0xff]
      %v451 = vld [vmem:[%s435 + $0x78] sm:$0xff]
      %v452 = vld [vmem:[%s435 + $0x80] sm:$0xff]
      %v453 = vld [vmem:[%s435 + $0x88] sm:$0xff]
      %v454 = vld [vmem:[%s435 + $0x90] sm:$0xff]
      %v455 = vld [vmem:[%s435 + $0x98] sm:$0xff]
      %v456 = vld [vmem:[%s435 + $0xa0] sm:$0xff]
      %v457 = vld [vmem:[%s435 + $0xa8] sm:$0xff]
      %v458 = vld [vmem:[%s435 + $0xb0] sm:$0xff]
      %v459 = vld [vmem:[%s435 + $0xb8] sm:$0xff]
      %v460 = vld [vmem:[%s435 + $0xc0] sm:$0xff]
      %v461 = vld [vmem:[%s435 + $0xc8] sm:$0xff]
      %v462 = vld [vmem:[%s435 + $0xd0] sm:$0xff]
      %v463 = vld [vmem:[%s435 + $0xd8] sm:$0xff]
      %v464 = vld [vmem:[%s435 + $0xe0] sm:$0xff]
      %v465 = vld [vmem:[%s435 + $0xe8] sm:$0xff]
      %v466 = vld [vmem:[%s435 + $0xf0] sm:$0xff]
      %v467 = vld [vmem:[%s435 + $0xf8] sm:$0xff]
      %v469 = vcombine.high %v434, %v434
      %v470 = vrot.slane %v434, 1
      %v471 = vrot.slane %v469, 1
      %474 = vmatprep.subr.mxu0 0.0
      %475 = vmatpush1.msra.mxu0 %v436
      %476 = vmatprep.subr.mxu0 0.0
      %477 = vmatpush1.msra.mxu0 %v437
      %478 = vmatprep.subr.mxu0 0.0
      %479 = vmatpush1.msra.mxu0 %v438
      %480 = vmatprep.subr.mxu0 0.0
      %481 = vmatpush1.msra.mxu0 %v439
      %482 = vmatprep.subr.mxu0 0.0
      %483 = vmatpush1.msra.mxu0 %v440
      %484 = vmatprep.subr.mxu0 0.0
      %485 = vmatpush1.msra.mxu0 %v441
      %486 = vmatprep.subr.mxu0 0.0
      %487 = vmatpush1.msra.mxu0 %v442
      %488 = vmatprep.subr.mxu0 0.0
      %489 = vmatpush1.msra.mxu0 %v443
      %490 = vmatprep.subr.mxu0 0.0
      %491 = vmatpush1.msra.mxu0 %v444
      %492 = vmatprep.subr.mxu0 0.0
      %493 = vmatpush1.msra.mxu0 %v445
      %494 = vmatprep.subr.mxu0 0.0
      %495 = vmatpush1.msra.mxu0 %v446
      %496 = vmatprep.subr.mxu0 0.0
      %497 = vmatpush1.msra.mxu0 %v447
      %498 = vmatprep.subr.mxu0 0.0
      %499 = vmatpush1.msra.mxu0 %v448
      %500 = vmatprep.subr.mxu0 0.0
      %501 = vmatpush1.msra.mxu0 %v449
      %502 = vmatprep.subr.mxu0 0.0
      %503 = vmatpush1.msra.mxu0 %v450
      %504 = vmatprep.subr.mxu0 0.0
      %505 = vmatpush1.msra.mxu0 %v451
      %506 = vmatprep.subr.mxu0 0.0
      %507 = vmatpush1.msra.mxu0 %v452
      %508 = vmatprep.subr.mxu0 0.0
      %509 = vmatpush1.msra.mxu0 %v453
      %510 = vmatprep.subr.mxu0 0.0
      %511 = vmatpush1.msra.mxu0 %v454
      %512 = vmatprep.subr.mxu0 0.0
      %513 = vmatpush1.msra.mxu0 %v455
      %514 = vmatprep.subr.mxu0 0.0
      %515 = vmatpush1.msra.mxu0 %v456
      %516 = vmatprep.subr.mxu0 0.0
      %517 = vmatpush1.msra.mxu0 %v457
      %518 = vmatprep.subr.mxu0 0.0
      %519 = vmatpush1.msra.mxu0 %v458
      %520 = vmatprep.subr.mxu0 0.0
      %521 = vmatpush1.msra.mxu0 %v459
      %522 = vmatprep.subr.mxu0 0.0
      %523 = vmatpush1.msra.mxu0 %v460
      %524 = vmatprep.subr.mxu0 0.0
      %525 = vmatpush1.msra.mxu0 %v461
      %526 = vmatprep.subr.mxu0 0.0
      %527 = vmatpush1.msra.mxu0 %v462
      %528 = vmatprep.subr.mxu0 0.0
      %529 = vmatpush1.msra.mxu0 %v463
      %530 = vmatprep.subr.mxu0 0.0
      %531 = vmatpush1.msra.mxu0 %v464
      %532 = vmatprep.subr.mxu0 0.0
      %533 = vmatpush1.msra.mxu0 %v465
      %534 = vmatprep.subr.mxu0 0.0
      %535 = vmatpush1.msra.mxu0 %v466
      %536 = vmatprep.subr.mxu0 0.0
      %537 = vmatpush1.msra.mxu0 %v467
      %538 = vmatprep.mubr.f32.mxu0 %v471
      %539 = vmatmul.mubr.f32.gmra.mrb[0].mxu0 %v470
      %v540 = vpop.f32.mrb[0].mxu0
      %v541 = vadd.f32 %v428, %v540
      %v542 = vpop.f32.mrb[0].mxu0
      %543 = vdwg.mxu0
      %v544 = vmax.f32 %v541, 0.0
      %v545 = vmin.f32 %v544, 1.0
      %546 = vst [vmem:[%s206] sm:$0x3] %v545
      %p547 = scmp.lt.s32.totalorder %s16, 1
      %s548 = scalar_select %p547, %s16, 1
      %s549 = smul.addr %s548, 4
      %s550 = scalar_lea.vmem %s3, %s549
      %p551 = scmp.lt.s32.totalorder %s16, 1
      %s552 = scalar_select %p551, %s16, 1
      %s553 = smul.addr %s552, 2
      %s554 = scalar_lea.vmem %s4, %s553
      // Predicated region
      $region33: #{emg_model2_forward.17} parent=31 // pred_check
        %p555 = pneg %p102
      $region34: #{emg_model2_forward.17} parent=31 // pred_check_branch
        %557 = sbr.rel (%p555) target = $region36
      $region35: #{emg_model2_forward.17} parent=31 // pred_region
        _
      $region36: #{emg_model2_forward.17} parent=31 // pred_fallthru
        _
      // Predicated region
      $region37: #{emg_model2_forward.17} parent=31 // pred_check
        %p558 = pneg %p128
      $region38: #{emg_model2_forward.17} parent=31 // pred_check_branch
        %560 = sbr.rel (%p558) target = $region40
      $region39: #{emg_model2_forward.17} parent=31 // pred_region
        _
      $region40: #{emg_model2_forward.17} parent=31 // pred_fallthru
        _
    $region32: #{emg_model2_forward.17} parent=5 // pred_fallthru
      _
    %p561 = scmp.le.s32.totalorder 2, %s11
    // Predicated region
    $region41: #{emg_model2_forward.17} parent=5 // pred_check
      %p562 = pneg %p561
    $region42: #{emg_model2_forward.17} parent=5 // pred_check_branch
      %564 = sbr.rel (%p562) target = $region44
    $region43: #{emg_model2_forward.17} parent=5 // pred_region
      %s565 = ssub.s32 %s11, 2
      // Predicated region
      $region45: #{emg_model2_forward.17} parent=43 // pred_check
        %p566 = pneg %p108
      $region46: #{emg_model2_forward.17} parent=43 // pred_check_branch
        %568 = sbr.rel (%p566) target = $region48
      $region47: #{emg_model2_forward.17} parent=43 // pred_region
        %p569 = scmp.lt.s32.totalorder %s17, 1
        %s570 = scalar_select %p569, %s17, 1
        %s571 = smul.addr %s570, 4
        %s572 = scalar_lea.vmem %s3, %s571
      $region48: #{emg_model2_forward.17} parent=43 // pred_fallthru
        _
      // Predicated region
      $region49: #{emg_model2_forward.17} parent=43 // pred_check
        %p573 = pneg %p134
      $region50: #{emg_model2_forward.17} parent=43 // pred_check_branch
        %575 = sbr.rel (%p573) target = $region52
      $region51: #{emg_model2_forward.17} parent=43 // pred_region
        %p576 = scmp.lt.s32.totalorder %s17, 1
        %s577 = scalar_select %p576, %s17, 1
        %s578 = smul.addr %s577, 2
        %s579 = scalar_lea.vmem %s4, %s578
      $region52: #{emg_model2_forward.17} parent=43 // pred_fallthru
        _
    $region44: #{emg_model2_forward.17} parent=5 // pred_fallthru
      _
  $region6: #{emg_model2_forward.17} parent=0 // loop_footer
    %s15 = sadd.s32 1, %s11
  $region7: #{emg_model2_forward.17} parent=0 // loop_footer_branch
    %10 = sbr.rel target = $region3
  $region8: #{emg_model2_forward.17} parent=0 // loop_exit
    _

// kernel: emg_model2_forward.16
$region0: #{emg_model2_forward.16}
  #allocation0 [shape = 'u32[]', space=smem, size = 0x4, offset = 0x4, fixed_abs, tag = 'smem constant byte address 0x4 - core index']
  #allocation1 [shape = 'u32[144,128]{1,0:T(1,128)}', space=vmem, size = 0x12000, scoped, tag = 'internal scratch']
  %s0 = inlined_call_operand.vmem [shape: f32[4,256], index: 0, kind: input, shape index: {}]
  %s1 = inlined_call_operand.vmem [shape: f32[128,256], index: 1, kind: input, shape index: {}]
  %s2 = inlined_call_operand.vmem [shape: f32[1,256], index: 2, kind: input, shape index: {}]
  %s3 = inlined_call_operand.vmem [shape: f32[128,256], index: 3, kind: input, shape index: {}]
  %s4 = inlined_call_operand.vmem [shape: f32[1,256], index: 4, kind: input, shape index: {}]
  %s5 = inlined_call_operand.vmem [shape: f32[4,256], index: 5, kind: input, shape index: {}]
  %s6 = inlined_call_operand.vmem [shape: f32[4,256], index: 6, kind: output, shape index: {}]
  %s7 = sld [smem:[#allocation0]]
  $region34: #{emg_model2_forward.16} parent=0
    _
  %s9 = ssub.s32 1, %s7
  %s10 = scalar_select 0, %s9, %s7
  // Predicated region
  $region2: #{emg_model2_forward.16} parent=0 // pred_check
    _
  $region3: #{emg_model2_forward.16} parent=0 // pred_check_branch
    %12 = sbr.rel (0) target = $region5
  $region4: #{emg_model2_forward.16} parent=0 // pred_region
    _
  $region5: #{emg_model2_forward.16} parent=0 // pred_fallthru
    _
  // Predicated region
  $region6: #{emg_model2_forward.16} parent=0 // pred_check
    _
  $region7: #{emg_model2_forward.16} parent=0 // pred_check_branch
    %14 = sbr.rel (0) target = $region9
  $region8: #{emg_model2_forward.16} parent=0 // pred_region
    _
  $region9: #{emg_model2_forward.16} parent=0 // pred_fallthru
    _
  // Predicated region
  $region10: #{emg_model2_forward.16} parent=0 // pred_check
    _
  $region11: #{emg_model2_forward.16} parent=0 // pred_check_branch
    %16 = sbr.rel (0) target = $region13
  $region12: #{emg_model2_forward.16} parent=0 // pred_region
    _
  $region13: #{emg_model2_forward.16} parent=0 // pred_fallthru
    _
  // Predicated region
  $region14: #{emg_model2_forward.16} parent=0 // pred_check
    _
  $region15: #{emg_model2_forward.16} parent=0 // pred_check_branch
    %18 = sbr.rel (0) target = $region17
  $region16: #{emg_model2_forward.16} parent=0 // pred_region
    _
  $region17: #{emg_model2_forward.16} parent=0 // pred_fallthru
    _
  // Predicated region
  $region18: #{emg_model2_forward.16} parent=0 // pred_check
    _
  $region19: #{emg_model2_forward.16} parent=0 // pred_check_branch
    %20 = sbr.rel (0) target = $region21
  $region20: #{emg_model2_forward.16} parent=0 // pred_region
    _
  $region21: #{emg_model2_forward.16} parent=0 // pred_fallthru
    _
  // Predicated region
  $region22: #{emg_model2_forward.16} parent=0 // pred_check
    _
  $region23: #{emg_model2_forward.16} parent=0 // pred_check_branch
    %22 = sbr.rel (0) target = $region25
  $region24: #{emg_model2_forward.16} parent=0 // pred_region
    _
  $region25: #{emg_model2_forward.16} parent=0 // pred_fallthru
    _
  %v23 = vld [vmem:[%s0] sm:$0xff]
  %v24 = vld [vmem:[%s1] sm:$0xff]
  %v25 = vld [vmem:[%s1 + $0x8] sm:$0xff]
  %v26 = vld [vmem:[%s1 + $0x10] sm:$0xff]
  %v27 = vld [vmem:[%s1 + $0x18] sm:$0xff]
  %v28 = vld [vmem:[%s1 + $0x20] sm:$0xff]
  %v29 = vld [vmem:[%s1 + $0x28] sm:$0xff]
  %v30 = vld [vmem:[%s1 + $0x30] sm:$0xff]
  %v31 = vld [vmem:[%s1 + $0x38] sm:$0xff]
  %v32 = vld [vmem:[%s1 + $0x40] sm:$0xff]
  %v33 = vld [vmem:[%s1 + $0x48] sm:$0xff]
  %v34 = vld [vmem:[%s1 + $0x50] sm:$0xff]
  %v35 = vld [vmem:[%s1 + $0x58] sm:$0xff]
  %v36 = vld [vmem:[%s1 + $0x60] sm:$0xff]
  %v37 = vld [vmem:[%s1 + $0x68] sm:$0xff]
  %v38 = vld [vmem:[%s1 + $0x70] sm:$0xff]
  %v39 = vld [vmem:[%s1 + $0x78] sm:$0xff]
  %v40 = vld [vmem:[%s1 + $0x80] sm:$0xff]
  %v41 = vld [vmem:[%s1 + $0x88] sm:$0xff]
  %v42 = vld [vmem:[%s1 + $0x90] sm:$0xff]
  %v43 = vld [vmem:[%s1 + $0x98] sm:$0xff]
  %v44 = vld [vmem:[%s1 + $0xa0] sm:$0xff]
  %v45 = vld [vmem:[%s1 + $0xa8] sm:$0xff]
  %v46 = vld [vmem:[%s1 + $0xb0] sm:$0xff]
  %v47 = vld [vmem:[%s1 + $0xb8] sm:$0xff]
  %v48 = vld [vmem:[%s1 + $0xc0] sm:$0xff]
  %v49 = vld [vmem:[%s1 + $0xc8] sm:$0xff]
  %v50 = vld [vmem:[%s1 + $0xd0] sm:$0xff]
  %v51 = vld [vmem:[%s1 + $0xd8] sm:$0xff]
  %v52 = vld [vmem:[%s1 + $0xe0] sm:$0xff]
  %v53 = vld [vmem:[%s1 + $0xe8] sm:$0xff]
  %v54 = vld [vmem:[%s1 + $0xf0] sm:$0xff]
  %v55 = vld [vmem:[%s1 + $0xf8] sm:$0xff]
  %v56 = vld [vmem:[%s2] sm:$0x3]
  %v58 = vlaneseq
  %v59 = vshrl.u32 %v58, 7
  %v60 = vsub.s32 0, %v59
  %v61 = vrot.slane %v56, %v60
  %v62 = vlaneseq
  %v63 = vshrl.u32 %v62, 7
  %v64 = vsub.s32 1, %v63
  %v65 = vrot.slane %v56, %v64
  %68 = vmatprep.subr.mxu0 %v25
  %69 = vmatpush1.msra.mxu0 %v24
  %70 = vmatprep.subr.mxu0 %v27
  %71 = vmatpush1.msra.mxu0 %v26
  %72 = vmatprep.subr.mxu0 %v29
  %73 = vmatpush1.msra.mxu0 %v28
  %74 = vmatprep.subr.mxu0 %v31
  %75 = vmatpush1.msra.mxu0 %v30
  %76 = vmatprep.subr.mxu0 %v33
  %77 = vmatpush1.msra.mxu0 %v32
  %78 = vmatprep.subr.mxu0 %v35
  %79 = vmatpush1.msra.mxu0 %v34
  %80 = vmatprep.subr.mxu0 %v37
  %81 = vmatpush1.msra.mxu0 %v36
  %82 = vmatprep.subr.mxu0 %v39
  %83 = vmatpush1.msra.mxu0 %v38
  %84 = vmatprep.subr.mxu0 %v41
  %85 = vmatpush1.msra.mxu0 %v40
  %86 = vmatprep.subr.mxu0 %v43
  %87 = vmatpush1.msra.mxu0 %v42
  %88 = vmatprep.subr.mxu0 %v45
  %89 = vmatpush1.msra.mxu0 %v44
  %90 = vmatprep.subr.mxu0 %v47
  %91 = vmatpush1.msra.mxu0 %v46
  %92 = vmatprep.subr.mxu0 %v49
  %93 = vmatpush1.msra.mxu0 %v48
  %94 = vmatprep.subr.mxu0 %v51
  %95 = vmatpush1.msra.mxu0 %v50
  %96 = vmatprep.subr.mxu0 %v53
  %97 = vmatpush1.msra.mxu0 %v52
  %98 = vmatprep.subr.mxu0 %v55
  %99 = vmatpush1.msra.mxu0 %v54
  %100 = vmatprep.subr.mxu0 0.0
  %101 = vmatpush1.msra.mxu0 0.0
  %102 = vmatprep.subr.mxu0 0.0
  %103 = vmatpush1.msra.mxu0 0.0
  %104 = vmatprep.subr.mxu0 0.0
  %105 = vmatpush1.msra.mxu0 0.0
  %106 = vmatprep.subr.mxu0 0.0
  %107 = vmatpush1.msra.mxu0 0.0
  %108 = vmatprep.subr.mxu0 0.0
  %109 = vmatpush1.msra.mxu0 0.0
  %110 = vmatprep.subr.mxu0 0.0
  %111 = vmatpush1.msra.mxu0 0.0
  %112 = vmatprep.subr.mxu0 0.0
  %113 = vmatpush1.msra.mxu0 0.0
  %114 = vmatprep.subr.mxu0 0.0
  %115 = vmatpush1.msra.mxu0 0.0
  %116 = vmatprep.subr.mxu0 0.0
  %117 = vmatpush1.msra.mxu0 0.0
  %118 = vmatprep.subr.mxu0 0.0
  %119 = vmatpush1.msra.mxu0 0.0
  %120 = vmatprep.subr.mxu0 0.0
  %121 = vmatpush1.msra.mxu0 0.0
  %122 = vmatprep.subr.mxu0 0.0
  %123 = vmatpush1.msra.mxu0 0.0
  %124 = vmatprep.subr.mxu0 0.0
  %125 = vmatpush1.msra.mxu0 0.0
  %126 = vmatprep.subr.mxu0 0.0
  %127 = vmatpush1.msra.mxu0 0.0
  %128 = vmatprep.subr.mxu0 0.0
  %129 = vmatpush1.msra.mxu0 0.0
  %130 = vmatprep.subr.mxu0 0.0
  %131 = vmatpush1.msra.mxu0 0.0
  %132 = vmatprep.mubr.f32.mxu0 0.0
  %133 = vmatmul.mubr.f32.gmra.mrb[0].mxu0 %v23
  %v134 = vpop.f32.mrb[0].mxu0
  %v135 = vadd.f32 %v61, %v134
  %v136 = vpop.f32.mrb[0].mxu0
  %v137 = vadd.f32 %v65, %v136
  %138 = vdwg.mxu0
  %v139 = vld [vmem:[%s3] sm:$0xff]
  %v140 = vld [vmem:[%s3 + $0x8] sm:$0xff]
  %v141 = vld [vmem:[%s3 + $0x10] sm:$0xff]
  %v142 = vld [vmem:[%s3 + $0x18] sm:$0xff]
  %v143 = vld [vmem:[%s3 + $0x20] sm:$0xff]
  %v144 = vld [vmem:[%s3 + $0x28] sm:$0xff]
  %v145 = vld [vmem:[%s3 + $0x30] sm:$0xff]
  %v146 = vld [vmem:[%s3 + $0x38] sm:$0xff]
  %v147 = vld [vmem:[%s3 + $0x40] sm:$0xff]
  %v148 = vld [vmem:[%s3 + $0x48] sm:$0xff]
  %v149 = vld [vmem:[%s3 + $0x50] sm:$0xff]
  %v150 = vld [vmem:[%s3 + $0x58] sm:$0xff]
  %v151 = vld [vmem:[%s3 + $0x60] sm:$0xff]
  %v152 = vld [vmem:[%s3 + $0x68] sm:$0xff]
  %v153 = vld [vmem:[%s3 + $0x70] sm:$0xff]
  %v154 = vld [vmem:[%s3 + $0x78] sm:$0xff]
  %v155 = vld [vmem:[%s3 + $0x80] sm:$0xff]
  %v156 = vld [vmem:[%s3 + $0x88] sm:$0xff]
  %v157 = vld [vmem:[%s3 + $0x90] sm:$0xff]
  %v158 = vld [vmem:[%s3 + $0x98] sm:$0xff]
  %v159 = vld [vmem:[%s3 + $0xa0] sm:$0xff]
  %v160 = vld [vmem:[%s3 + $0xa8] sm:$0xff]
  %v161 = vld [vmem:[%s3 + $0xb0] sm:$0xff]
  %v162 = vld [vmem:[%s3 + $0xb8] sm:$0xff]
  %v163 = vld [vmem:[%s3 + $0xc0] sm:$0xff]
  %v164 = vld [vmem:[%s3 + $0xc8] sm:$0xff]
  %v165 = vld [vmem:[%s3 + $0xd0] sm:$0xff]
  %v166 = vld [vmem:[%s3 + $0xd8] sm:$0xff]
  %v167 = vld [vmem:[%s3 + $0xe0] sm:$0xff]
  %v168 = vld [vmem:[%s3 + $0xe8] sm:$0xff]
  %v169 = vld [vmem:[%s3 + $0xf0] sm:$0xff]
  %v170 = vld [vmem:[%s3 + $0xf8] sm:$0xff]
  %v171 = vld [vmem:[%s4] sm:$0x3]
  %v173 = vlaneseq
  %v174 = vshrl.u32 %v173, 7
  %v175 = vsub.s32 0, %v174
  %v176 = vrot.slane %v171, %v175
  %v177 = vlaneseq
  %v178 = vshrl.u32 %v177, 7
  %v179 = vsub.s32 1, %v178
  %v180 = vrot.slane %v171, %v179
  %v184 = vcombine.high %v23, %v23
  %186 = vmatprep.subr.mxu0 %v140
  %187 = vmatpush1.msra.mxu0 %v139
  %188 = vmatprep.subr.mxu0 %v142
  %189 = vmatpush1.msra.mxu0 %v141
  %190 = vmatprep.subr.mxu0 %v144
  %191 = vmatpush1.msra.mxu0 %v143
  %192 = vmatprep.subr.mxu0 %v146
  %193 = vmatpush1.msra.mxu0 %v145
  %194 = vmatprep.subr.mxu0 %v148
  %195 = vmatpush1.msra.mxu0 %v147
  %196 = vmatprep.subr.mxu0 %v150
  %197 = vmatpush1.msra.mxu0 %v149
  %198 = vmatprep.subr.mxu0 %v152
  %199 = vmatpush1.msra.mxu0 %v151
  %200 = vmatprep.subr.mxu0 %v154
  %201 = vmatpush1.msra.mxu0 %v153
  %202 = vmatprep.subr.mxu0 %v156
  %203 = vmatpush1.msra.mxu0 %v155
  %204 = vmatprep.subr.mxu0 %v158
  %205 = vmatpush1.msra.mxu0 %v157
  %206 = vmatprep.subr.mxu0 %v160
  %207 = vmatpush1.msra.mxu0 %v159
  %208 = vmatprep.subr.mxu0 %v162
  %209 = vmatpush1.msra.mxu0 %v161
  %210 = vmatprep.subr.mxu0 %v164
  %211 = vmatpush1.msra.mxu0 %v163
  %212 = vmatprep.subr.mxu0 %v166
  %213 = vmatpush1.msra.mxu0 %v165
  %214 = vmatprep.subr.mxu0 %v168
  %215 = vmatpush1.msra.mxu0 %v167
  %216 = vmatprep.subr.mxu0 %v170
  %217 = vmatpush1.msra.mxu0 %v169
  %218 = vmatprep.subr.mxu0 0.0
  %219 = vmatpush1.msra.mxu0 0.0
  %220 = vmatprep.subr.mxu0 0.0
  %221 = vmatpush1.msra.mxu0 0.0
  %222 = vmatprep.subr.mxu0 0.0
  %223 = vmatpush1.msra.mxu0 0.0
  %224 = vmatprep.subr.mxu0 0.0
  %225 = vmatpush1.msra.mxu0 0.0
  %226 = vmatprep.subr.mxu0 0.0
  %227 = vmatpush1.msra.mxu0 0.0
  %228 = vmatprep.subr.mxu0 0.0
  %229 = vmatpush1.msra.mxu0 0.0
  %230 = vmatprep.subr.mxu0 0.0
  %231 = vmatpush1.msra.mxu0 0.0
  %232 = vmatprep.subr.mxu0 0.0
  %233 = vmatpush1.msra.mxu0 0.0
  %234 = vmatprep.subr.mxu0 0.0
  %235 = vmatpush1.msra.mxu0 0.0
  %236 = vmatprep.subr.mxu0 0.0
  %237 = vmatpush1.msra.mxu0 0.0
  %238 = vmatprep.subr.mxu0 0.0
  %239 = vmatpush1.msra.mxu0 0.0
  %240 = vmatprep.subr.mxu0 0.0
  %241 = vmatpush1.msra.mxu0 0.0
  %242 = vmatprep.subr.mxu0 0.0
  %243 = vmatpush1.msra.mxu0 0.0
  %244 = vmatprep.subr.mxu0 0.0
  %245 = vmatpush1.msra.mxu0 0.0
  %246 = vmatprep.subr.mxu0 0.0
  %247 = vmatpush1.msra.mxu0 0.0
  %248 = vmatprep.subr.mxu0 0.0
  %249 = vmatpush1.msra.mxu0 0.0
  %250 = vmatprep.mubr.f32.mxu0 0.0
  %251 = vmatmul.mubr.f32.gmra.mrb[0].mxu0 %v184
  %v252 = vpop.f32.mrb[0].mxu0
  %v253 = vadd.f32 %v176, %v252
  %v254 = vpop.f32.mrb[0].mxu0
  %v255 = vadd.f32 %v180, %v254
  %256 = vdwg.mxu0
  %v257 = vmul.f32 %v253, 0.5
  %v258 = vmul.f32 %v255, 0.5
  %v259 = vmul.f32 %v257, 1.442695
  %v260 = vpow.pop %v259
  %v261 = vmul.f32 %v258, 1.442695
  %v262 = vpow.pop %v261
  %v263 = vld [vmem:[%s5] sm:$0xff]
  %v265 = vcombine.high %v263, %v263
  %v267 = vmul.f32 %v260, %v263
  %v268 = vmul.f32 %v262, %v265
  %v269 = vadd.f32 %v135, %v267
  %v270 = vadd.f32 %v137, %v268
  %v273 = vcombine.low %v269, %v270
  %275 = vst [vmem:[%s6] sm:$0xff] %v273
  // Predicated region
  $region26: #{emg_model2_forward.16} parent=0 // pred_check
    _
  $region27: #{emg_model2_forward.16} parent=0 // pred_check_branch
    %277 = sbr.rel (0) target = $region29
  $region28: #{emg_model2_forward.16} parent=0 // pred_region
    _
  $region29: #{emg_model2_forward.16} parent=0 // pred_fallthru
    _
  // Predicated region
  $region30: #{emg_model2_forward.16} parent=0 // pred_check
    _
  $region31: #{emg_model2_forward.16} parent=0 // pred_check_branch
    %279 = sbr.rel (0) target = $region33
  $region32: #{emg_model2_forward.16} parent=0 // pred_region
    _
  $region33: #{emg_model2_forward.16} parent=0 // pred_fallthru
    _

// kernel: emg_model2_forward.18
$region0: #{emg_model2_forward.18}
  #allocation0 [shape = 'u32[]', space=smem, size = 0x4, offset = 0x4, fixed_abs, tag = 'smem constant byte address 0x4 - core index']
  #allocation1 [shape = 'u32[144,128]{1,0:T(1,128)}', space=vmem, size = 0x12000, scoped, tag = 'internal scratch']
  %s0 = inlined_call_operand.vmem [shape: f32[2,7,128], index: 0, kind: input, shape index: {}]
  %s1 = inlined_call_operand.vmem [shape: f32[3,128,64], index: 1, kind: input, shape index: {}]
  %s2 = inlined_call_operand.vmem [shape: f32[1,64], index: 2, kind: input, shape index: {}]
  %s3 = inlined_call_operand.vmem [shape: f32[2,6,64], index: 3, kind: output, shape index: {0}]
  %s4 = inlined_call_operand.vmem [shape: f32[2,5,64], index: 4, kind: output, shape index: {1}]
  %5 = xla_tuple %s3, %s4
  %s6 = sld [smem:[#allocation0]]
  $region53: #{emg_model2_forward.18} parent=0
    _
  %s8 = ssub.s32 1, %s6
  %s9 = scalar_select 0, %s8, %s6
  loop: start=0, step=1, limit=4
  $region2: #{emg_model2_forward.18} parent=0 // loop_pre_header
    _
  $region3: #{emg_model2_forward.18} parent=0 // loop_header
    %s11 = sphi 0, %s15
    %p12 = scmp.ge.s32.totalorder %s11, 4
    %s21 = sphi 0, %s23
    %s24 = sphi 0, %s21
    %s25 = sphi 0, %s24
    %s41 = sphi 0, %s25
    %s45 = sphi 0, %s45
    %s47 = sphi 0, %s45
    %s48 = sphi 0, %s47
    %s62 = sphi 0, %s48
    %s66 = sphi 0, %s66
    %s68 = sphi 0, %s66
    %s69 = sphi 0, %s68
    %s83 = sphi 0, %s69
    %s89 = sphi 0, %s91
    %s92 = sphi 0, %s89
    %s93 = sphi 0, %s92
    %s109 = sphi 0, %s93
    %s115 = sphi 0, %s117
    %s118 = sphi 0, %s115
    %s119 = sphi 0, %s118
    %s135 = sphi 0, %s119
  $region4: #{emg_model2_forward.18} parent=0 // loop_header_branch
    %14 = sbr.rel (%p12) target = $region8
  $region5: #{emg_model2_forward.18} parent=0 // loop_body
    %s16 = ssub.s32 %s11, 1
    %s17 = ssub.s32 %s11, 2
    %s18 = sadd.s32 %s11, 1
    %s19 = ssub.s32 %s11, %s18
    %p20 = scmp.eq.s32.totalorder %s19, 0
    %s22 = sadd.s32 %s21, 1
    %s23 = scalar_select %p20, %s21, %s22
    %p26 = pneg %p20
    %p27 = scmp.eq.s32.totalorder %s11, 1
    %p28 = por %p26, %p27
    %p29 = scmp.ne.s32.totalorder %s21, %s24
    %p30 = scmp.eq.s32.totalorder %s11, 0
    %p31 = por %p29, %p30
    %p32 = scmp.ne.s32.totalorder %s21, %s24
    %p33 = scmp.eq.s32.totalorder %s16, 1
    %p34 = por %p32, %p33
    %p35 = scmp.ne.s32.totalorder %s24, %s25
    %p36 = scmp.eq.s32.totalorder %s16, 0
    %p37 = por %p35, %p36
    %p38 = scmp.ne.s32.totalorder %s24, %s25
    %p39 = scmp.eq.s32.totalorder %s17, 1
    %p40 = por %p38, %p39
    %p42 = scmp.ne.s32.totalorder %s25, %s41
    %p43 = scmp.eq.s32.totalorder %s17, 0
    %p44 = por %p42, %p43
    %s46 = sadd.s32 %s45, 1
    %p49 = scmp.eq.s32.totalorder %s11, 1
    %p50 = scmp.ne.s32.totalorder %s45, %s47
    %p51 = scmp.eq.s32.totalorder %s11, 0
    %p52 = por %p50, %p51
    %p53 = scmp.ne.s32.totalorder %s45, %s47
    %p54 = scmp.eq.s32.totalorder %s16, 1
    %p55 = por %p53, %p54
    %p56 = scmp.ne.s32.totalorder %s47, %s48
    %p57 = scmp.eq.s32.totalorder %s16, 0
    %p58 = por %p56, %p57
    %p59 = scmp.ne.s32.totalorder %s47, %s48
    %p60 = scmp.eq.s32.totalorder %s17, 1
    %p61 = por %p59, %p60
    %p63 = scmp.ne.s32.totalorder %s48, %s62
    %p64 = scmp.eq.s32.totalorder %s17, 0
    %p65 = por %p63, %p64
    %s67 = sadd.s32 %s66, 1
    %p70 = scmp.eq.s32.totalorder %s11, 1
    %p71 = scmp.ne.s32.totalorder %s66, %s68
    %p72 = scmp.eq.s32.totalorder %s11, 0
    %p73 = por %p71, %p72
    %p74 = scmp.ne.s32.totalorder %s66, %s68
    %p75 = scmp.eq.s32.totalorder %s16, 1
    %p76 = por %p74, %p75
    %p77 = scmp.ne.s32.totalorder %s68, %s69
    %p78 = scmp.eq.s32.totalorder %s16, 0
    %p79 = por %p77, %p78
    %p80 = scmp.ne.s32.totalorder %s68, %s69
    %p81 = scmp.eq.s32.totalorder %s17, 1
    %p82 = por %p80, %p81
    %p84 = scmp.ne.s32.totalorder %s69, %s83
    %p85 = scmp.eq.s32.totalorder %s17, 0
    %p86 = por %p84, %p85
    %s87 = ssub.s32 %s11, %s18
    %p88 = scmp.eq.s32.totalorder %s87, 0
    %s90 = sadd.s32 %s89, 1
    %s91 = scalar_select %p88, %s89, %s90
    %p94 = pneg %p88
    %p95 = scmp.eq.s32.totalorder %s11, 1
    %p96 = por %p94, %p95
    %p97 = scmp.ne.s32.totalorder %s89, %s92
    %p98 = scmp.eq.s32.totalorder %s11, 0
    %p99 = por %p97, %p98
    %p100 = scmp.ne.s32.totalorder %s89, %s92
    %p101 = scmp.eq.s32.totalorder %s16, 1
    %p102 = por %p100, %p101
    %p103 = scmp.ne.s32.totalorder %s92, %s93
    %p104 = scmp.eq.s32.totalorder %s16, 0
    %p105 = por %p103, %p104
    %p106 = scmp.ne.s32.totalorder %s92, %s93
    %p107 = scmp.eq.s32.totalorder %s17, 1
    %p108 = por %p106, %p107
    %p110 = scmp.ne.s32.totalorder %s93, %s109
    %p111 = scmp.eq.s32.totalorder %s17, 0
    %p112 = por %p110, %p111
    %s113 = ssub.s32 %s11, %s18
    %p114 = scmp.eq.s32.totalorder %s113, 0
    %s116 = sadd.s32 %s115, 1
    %s117 = scalar_select %p114, %s115, %s116
    %p120 = pneg %p114
    %p121 = scmp.eq.s32.totalorder %s11, 1
    %p122 = por %p120, %p121
    %p123 = scmp.ne.s32.totalorder %s115, %s118
    %p124 = scmp.eq.s32.totalorder %s11, 0
    %p125 = por %p123, %p124
    %p126 = scmp.ne.s32.totalorder %s115, %s118
    %p127 = scmp.eq.s32.totalorder %s16, 1
    %p128 = por %p126, %p127
    %p129 = scmp.ne.s32.totalorder %s118, %s119
    %p130 = scmp.eq.s32.totalorder %s16, 0
    %p131 = por %p129, %p130
    %p132 = scmp.ne.s32.totalorder %s118, %s119
    %p133 = scmp.eq.s32.totalorder %s17, 1
    %p134 = por %p132, %p133
    %p136 = scmp.ne.s32.totalorder %s119, %s135
    %p137 = scmp.eq.s32.totalorder %s17, 0
    %p138 = por %p136, %p137
    %p139 = scmp.le.s32.totalorder 1, %s11
    %p140 = scmp.lt.s32.totalorder %s11, 3
    %p141 = pnand %p139, %p140
    %p142 = pneg %p141
    // Predicated region
    $region9: #{emg_model2_forward.18} parent=5 // pred_check
      _
    $region10: #{emg_model2_forward.18} parent=5 // pred_check_branch
      %144 = sbr.rel (%p141) target = $region12
    $region11: #{emg_model2_forward.18} parent=5 // pred_region
      %s145 = ssub.s32 %s11, 1
      // Predicated region
      $region13: #{emg_model2_forward.18} parent=11 // pred_check
        %p146 = pneg %p58
      $region14: #{emg_model2_forward.18} parent=11 // pred_check_branch
        %148 = sbr.rel (%p146) target = $region16
      $region15: #{emg_model2_forward.18} parent=11 // pred_region
        _
      $region16: #{emg_model2_forward.18} parent=11 // pred_fallthru
        _
      // Predicated region
      $region17: #{emg_model2_forward.18} parent=11 // pred_check
        %p149 = pneg %p79
      $region18: #{emg_model2_forward.18} parent=11 // pred_check_branch
        %151 = sbr.rel (%p149) target = $region20
      $region19: #{emg_model2_forward.18} parent=11 // pred_region
        _
      $region20: #{emg_model2_forward.18} parent=11 // pred_fallthru
        _
    $region12: #{emg_model2_forward.18} parent=5 // pred_fallthru
      _
    %p152 = scmp.lt.s32.totalorder %s11, 2
    // Predicated region
    $region21: #{emg_model2_forward.18} parent=5 // pred_check
      %p153 = pneg %p152
    $region22: #{emg_model2_forward.18} parent=5 // pred_check_branch
      %155 = sbr.rel (%p153) target = $region24
    $region23: #{emg_model2_forward.18} parent=5 // pred_region
      // Predicated region
      $region25: #{emg_model2_forward.18} parent=23 // pred_check
        %p156 = pneg %p31
      $region26: #{emg_model2_forward.18} parent=23 // pred_check_branch
        %158 = sbr.rel (%p156) target = $region28
      $region27: #{emg_model2_forward.18} parent=23 // pred_region
        %p159 = scmp.lt.s32.totalorder %s11, 1
        %s160 = scalar_select %p159, %s11, 1
        %s161 = smul.addr %s160, 8
        %s162 = scalar_lea.vmem %s0, %s161
      $region28: #{emg_model2_forward.18} parent=23 // pred_fallthru
        _
    $region24: #{emg_model2_forward.18} parent=5 // pred_fallthru
      _
    %p163 = scmp.le.s32.totalorder 1, %s11
    %p164 = scmp.lt.s32.totalorder %s11, 3
    %p165 = pnand %p163, %p164
    %p166 = pneg %p165
    // Predicated region
    $region29: #{emg_model2_forward.18} parent=5 // pred_check
      _
    $region30: #{emg_model2_forward.18} parent=5 // pred_check_branch
      %168 = sbr.rel (%p165) target = $region32
    $region31: #{emg_model2_forward.18} parent=5 // pred_region
      %s169 = ssub.s32 %s11, 1
      %p170 = scmp.lt.s32.totalorder %s16, 1
      %s171 = scalar_select %p170, %s16, 1
      %s172 = smul.addr %s171, 8
      %s173 = scalar_lea.vmem %s0, %s172
      %p174 = pneg %p37
      %p175 = pneg %p34
      %p176 = pneg %p58
      %p177 = pneg %p55
      %p178 = pneg %p79
      %p179 = pneg %p76
      %p180 = pneg %p105
      %p181 = pneg %p102
      %p182 = scmp.lt.s32.totalorder %s16, 1
      %s183 = scalar_select %p182, %s16, 1
      %s184 = smul.addr %s183, 8
      %s185 = scalar_lea.vmem %s3, %s184
      %p186 = pneg %p131
      %p187 = pneg %p128
      %p188 = scmp.lt.s32.totalorder %s16, 1
      %s189 = scalar_select %p188, %s16, 1
      %s190 = smul.addr %s189, 8
      %s191 = scalar_lea.vmem %s4, %s190
      %p192 = scmp.lt.s32.totalorder %s16, 1
      %s193 = scalar_select %p192, %s16, 1
      %s194 = smul.addr %s193, 8
      %s195 = scalar_lea.vmem %s0, %s194
      %p196 = scmp.lt.s32.totalorder %s16, 1
      %s197 = scalar_select %p196, %s16, 1
      %s198 = smul.addr %s197, 8
      %s199 = scalar_lea.vmem %s3, %s198
      %p200 = scmp.lt.s32.totalorder %s16, 1
      %s201 = scalar_select %p200, %s16, 1
      %s202 = smul.addr %s201, 8
      %s203 = scalar_lea.vmem %s4, %s202
      %v204 = vld [vmem:[%s2] sm:$0x1]
      %v205 = vld [vmem:[%s195 + $0x1] sm:$0x3f]
      %v206 = vld [vmem:[%s1] sm:$0xff]
      %v207 = vld [vmem:[%s1 + $0x8] sm:$0xff]
      %v208 = vld [vmem:[%s1 + $0x10] sm:$0xff]
      %v209 = vld [vmem:[%s1 + $0x18] sm:$0xff]
      %v210 = vld [vmem:[%s1 + $0x20] sm:$0xff]
      %v211 = vld [vmem:[%s1 + $0x28] sm:$0xff]
      %v212 = vld [vmem:[%s1 + $0x30] sm:$0xff]
      %v213 = vld [vmem:[%s1 + $0x38] sm:$0xff]
      %v214 = vld [vmem:[%s1 + $0x40] sm:$0xff]
      %v215 = vld [vmem:[%s1 + $0x48] sm:$0xff]
      %v216 = vld [vmem:[%s1 + $0x50] sm:$0xff]
      %v217 = vld [vmem:[%s1 + $0x58] sm:$0xff]
      %v218 = vld [vmem:[%s1 + $0x60] sm:$0xff]
      %v219 = vld [vmem:[%s1 + $0x68] sm:$0xff]
      %v220 = vld [vmem:[%s1 + $0x70] sm:$0xff]
      %v221 = vld [vmem:[%s1 + $0x78] sm:$0xff]
      %v222 = vld [vmem:[%s195] sm:$0x3f]
      %s223 = scalar_lea.vmem %s1, 256
      %v224 = vld [vmem:[%s223] sm:$0xff]
      %v225 = vld [vmem:[%s223 + $0x8] sm:$0xff]
      %v226 = vld [vmem:[%s223 + $0x10] sm:$0xff]
      %v227 = vld [vmem:[%s223 + $0x18] sm:$0xff]
      %v228 = vld [vmem:[%s223 + $0x20] sm:$0xff]
      %v229 = vld [vmem:[%s223 + $0x28] sm:$0xff]
      %v230 = vld [vmem:[%s223 + $0x30] sm:$0xff]
      %v231 = vld [vmem:[%s223 + $0x38] sm:$0xff]
      %v232 = vld [vmem:[%s223 + $0x40] sm:$0xff]
      %v233 = vld [vmem:[%s223 + $0x48] sm:$0xff]
      %v234 = vld [vmem:[%s223 + $0x50] sm:$0xff]
      %v235 = vld [vmem:[%s223 + $0x58] sm:$0xff]
      %v236 = vld [vmem:[%s223 + $0x60] sm:$0xff]
      %v237 = vld [vmem:[%s223 + $0x68] sm:$0xff]
      %v238 = vld [vmem:[%s223 + $0x70] sm:$0xff]
      %v239 = vld [vmem:[%s223 + $0x78] sm:$0xff]
      %240 = vmatprep.subr.mxu0 0.0
      %241 = vmatpush1.msra.mxu0 %v224
      %242 = vmatprep.subr.mxu0 0.0
      %243 = vmatpush1.msra.mxu0 %v225
      %244 = vmatprep.subr.mxu0 0.0
      %245 = vmatpush1.msra.mxu0 %v226
      %246 = vmatprep.subr.mxu0 0.0
      %247 = vmatpush1.msra.mxu0 %v227
      %248 = vmatprep.subr.mxu0 0.0
      %249 = vmatpush1.msra.mxu0 %v228
      %250 = vmatprep.subr.mxu0 0.0
      %251 = vmatpush1.msra.mxu0 %v229
      %252 = vmatprep.subr.mxu0 0.0
      %253 = vmatpush1.msra.mxu0 %v230
      %254 = vmatprep.subr.mxu0 0.0
      %255 = vmatpush1.msra.mxu0 %v231
      %256 = vmatprep.subr.mxu0 0.0
      %257 = vmatpush1.msra.mxu0 %v232
      %258 = vmatprep.subr.mxu0 0.0
      %259 = vmatpush1.msra.mxu0 %v233
      %260 = vmatprep.subr.mxu0 0.0
      %261 = vmatpush1.msra.mxu0 %v234
      %262 = vmatprep.subr.mxu0 0.0
      %263 = vmatpush1.msra.mxu0 %v235
      %264 = vmatprep.subr.mxu0 0.0
      %265 = vmatpush1.msra.mxu0 %v236
      %266 = vmatprep.subr.mxu0 0.0
      %267 = vmatpush1.msra.mxu0 %v237
      %268 = vmatprep.subr.mxu0 0.0
      %269 = vmatpush1.msra.mxu0 %v238
      %270 = vmatprep.subr.mxu0 0.0
      %271 = vmatpush1.msra.mxu0 %v239
      %272 = vmatprep.subr.mxu0 0.0
      %273 = vmatpush1.msra.mxu0 0.0
      %274 = vmatprep.subr.mxu0 0.0
      %275 = vmatpush1.msra.mxu0 0.0
      %276 = vmatprep.subr.mxu0 0.0
      %277 = vmatpush1.msra.mxu0 0.0
      %278 = vmatprep.subr.mxu0 0.0
      %279 = vmatpush1.msra.mxu0 0.0
      %280 = vmatprep.subr.mxu0 0.0
      %281 = vmatpush1.msra.mxu0 0.0
      %282 = vmatprep.subr.mxu0 0.0
      %283 = vmatpush1.msra.mxu0 0.0
      %284 = vmatprep.subr.mxu0 0.0
      %285 = vmatpush1.msra.mxu0 0.0
      %286 = vmatprep.subr.mxu0 0.0
      %287 = vmatpush1.msra.mxu0 0.0
      %288 = vmatprep.subr.mxu0 0.0
      %289 = vmatpush1.msra.mxu0 0.0
      %290 = vmatprep.subr.mxu0 0.0
      %291 = vmatpush1.msra.mxu0 0.0
      %292 = vmatprep.subr.mxu0 0.0
      %293 = vmatpush1.msra.mxu0 0.0
      %294 = vmatprep.subr.mxu0 0.0
      %295 = vmatpush1.msra.mxu0 0.0
      %296 = vmatprep.subr.mxu0 0.0
      %297 = vmatpush1.msra.mxu0 0.0
      %298 = vmatprep.subr.mxu0 0.0
      %299 = vmatpush1.msra.mxu0 0.0
      %300 = vmatprep.subr.mxu0 0.0
      %301 = vmatpush1.msra.mxu0 0.0
      %302 = vmatprep.subr.mxu0 0.0
      %303 = vmatpush1.msra.mxu0 0.0
      %304 = vmatprep.mubr.f32.mxu0 0.0
      %305 = vmatmul.mubr.f32.gmra.mrb[0].mxu0 %v222
      %v306 = vpop.f32.mrb[0].mxu0
      %v307 = vadd.f32 0.0, %v306
      %v308 = vpop.f32.mrb[0].mxu0
      %309 = vdwg.mxu0
      %310 = vmatprep.subr.mxu0 0.0
      %311 = vmatpush1.msra.mxu0 %v206
      %312 = vmatprep.subr.mxu0 0.0
      %313 = vmatpush1.msra.mxu0 %v207
      %314 = vmatprep.subr.mxu0 0.0
      %315 = vmatpush1.msra.mxu0 %v208
      %316 = vmatprep.subr.mxu0 0.0
      %317 = vmatpush1.msra.mxu0 %v209
      %318 = vmatprep.subr.mxu0 0.0
      %319 = vmatpush1.msra.mxu0 %v210
      %320 = vmatprep.subr.mxu0 0.0
      %321 = vmatpush1.msra.mxu0 %v211
      %322 = vmatprep.subr.mxu0 0.0
      %323 = vmatpush1.msra.mxu0 %v212
      %324 = vmatprep.subr.mxu0 0.0
      %325 = vmatpush1.msra.mxu0 %v213
      %326 = vmatprep.subr.mxu0 0.0
      %327 = vmatpush1.msra.mxu0 %v214
      %328 = vmatprep.subr.mxu0 0.0
      %329 = vmatpush1.msra.mxu0 %v215
      %330 = vmatprep.subr.mxu0 0.0
      %331 = vmatpush1.msra.mxu0 %v216
      %332 = vmatprep.subr.mxu0 0.0
      %333 = vmatpush1.msra.mxu0 %v217
      %334 = vmatprep.subr.mxu0 0.0
      %335 = vmatpush1.msra.mxu0 %v218
      %336 = vmatprep.subr.mxu0 0.0
      %337 = vmatpush1.msra.mxu0 %v219
      %338 = vmatprep.subr.mxu0 0.0
      %339 = vmatpush1.msra.mxu0 %v220
      %340 = vmatprep.subr.mxu0 0.0
      %341 = vmatpush1.msra.mxu0 %v221
      %342 = vmatprep.subr.mxu0 0.0
      %343 = vmatpush1.msra.mxu0 0.0
      %344 = vmatprep.subr.mxu0 0.0
      %345 = vmatpush1.msra.mxu0 0.0
      %346 = vmatprep.subr.mxu0 0.0
      %347 = vmatpush1.msra.mxu0 0.0
      %348 = vmatprep.subr.mxu0 0.0
      %349 = vmatpush1.msra.mxu0 0.0
      %350 = vmatprep.subr.mxu0 0.0
      %351 = vmatpush1.msra.mxu0 0.0
      %352 = vmatprep.subr.mxu0 0.0
      %353 = vmatpush1.msra.mxu0 0.0
      %354 = vmatprep.subr.mxu0 0.0
      %355 = vmatpush1.msra.mxu0 0.0
      %356 = vmatprep.subr.mxu0 0.0
      %357 = vmatpush1.msra.mxu0 0.0
      %358 = vmatprep.subr.mxu0 0.0
      %359 = vmatpush1.msra.mxu0 0.0
      %360 = vmatprep.subr.mxu0 0.0
      %361 = vmatpush1.msra.mxu0 0.0
      %362 = vmatprep.subr.mxu0 0.0
      %363 = vmatpush1.msra.mxu0 0.0
      %364 = vmatprep.subr.mxu0 0.0
      %365 = vmatpush1.msra.mxu0 0.0
      %366 = vmatprep.subr.mxu0 0.0
      %367 = vmatpush1.msra.mxu0 0.0
      %368 = vmatprep.subr.mxu0 0.0
      %369 = vmatpush1.msra.mxu0 0.0
      %370 = vmatprep.subr.mxu0 0.0
      %371 = vmatpush1.msra.mxu0 0.0
      %372 = vmatprep.subr.mxu0 0.0
      %373 = vmatpush1.msra.mxu0 0.0
      %374 = vmatprep.mubr.f32.mxu0 0.0
      %375 = vmatmul.mubr.f32.gmra.mrb[0].mxu0 %v205
      %v376 = vpop.f32.mrb[0].mxu0
      %v377 = vadd.f32 %v307, %v376
      %v378 = vpop.f32.mrb[0].mxu0
      %379 = vdwg.mxu0
      %v381 = vlaneseq
      %v382 = vshrl.u32 %v381, 7
      %v383 = vsub.s32 0, %v382
      %v384 = vrot.slane %v204, %v383
      %v386 = vadd.f32 %v377, %v384
      %v387 = vmax.f32 %v386, 0.0
      %v388 = vmin.f32 %v387, 1.0
      %vm389 = vcmask 521216
      %390 = vst.msk [vmem:[%s199] sm:$0x3f] %vm389, %v388
      %v391 = vld [vmem:[%s195 + $0x1] sm:$0x1f]
      %s392 = scalar_lea.vmem %s1, 128
      %v393 = vld [vmem:[%s392] sm:$0xff]
      %v394 = vld [vmem:[%s392 + $0x8] sm:$0xff]
      %v395 = vld [vmem:[%s392 + $0x10] sm:$0xff]
      %v396 = vld [vmem:[%s392 + $0x18] sm:$0xff]
      %v397 = vld [vmem:[%s392 + $0x20] sm:$0xff]
      %v398 = vld [vmem:[%s392 + $0x28] sm:$0xff]
      %v399 = vld [vmem:[%s392 + $0x30] sm:$0xff]
      %v400 = vld [vmem:[%s392 + $0x38] sm:$0xff]
      %v401 = vld [vmem:[%s392 + $0x40] sm:$0xff]
      %v402 = vld [vmem:[%s392 + $0x48] sm:$0xff]
      %v403 = vld [vmem:[%s392 + $0x50] sm:$0xff]
      %v404 = vld [vmem:[%s392 + $0x58] sm:$0xff]
      %v405 = vld [vmem:[%s392 + $0x60] sm:$0xff]
      %v406 = vld [vmem:[%s392 + $0x68] sm:$0xff]
      %v407 = vld [vmem:[%s392 + $0x70] sm:$0xff]
      %v408 = vld [vmem:[%s392 + $0x78] sm:$0xff]
      %409 = vmatprep.subr.mxu0 0.0
      %410 = vmatpush1.msra.mxu0 %v393
      %411 = vmatprep.subr.mxu0 0.0
      %412 = vmatpush1.msra.mxu0 %v394
      %413 = vmatprep.subr.mxu0 0.0
      %414 = vmatpush1.msra.mxu0 %v395
      %415 = vmatprep.subr.mxu0 0.0
      %416 = vmatpush1.msra.mxu0 %v396
      %417 = vmatprep.subr.mxu0 0.0
      %418 = vmatpush1.msra.mxu0 %v397
      %419 = vmatprep.subr.mxu0 0.0
      %420 = vmatpush1.msra.mxu0 %v398
      %421 = vmatprep.subr.mxu0 0.0
      %422 = vmatpush1.msra.mxu0 %v399
      %423 = vmatprep.subr.mxu0 0.0
      %424 = vmatpush1.msra.mxu0 %v400
      %425 = vmatprep.subr.mxu0 0.0
      %426 = vmatpush1.msra.mxu0 %v401
      %427 = vmatprep.subr.mxu0 0.0
      %428 = vmatpush1.msra.mxu0 %v402
      %429 = vmatprep.subr.mxu0 0.0
      %430 = vmatpush1.msra.mxu0 %v403
      %431 = vmatprep.subr.mxu0 0.0
      %432 = vmatpush1.msra.mxu0 %v404
      %433 = vmatprep.subr.mxu0 0.0
      %434 = vmatpush1.msra.mxu0 %v405
      %435 = vmatprep.subr.mxu0 0.0
      %436 = vmatpush1.msra.mxu0 %v406
      %437 = vmatprep.subr.mxu0 0.0
      %438 = vmatpush1.msra.mxu0 %v407
      %439 = vmatprep.subr.mxu0 0.0
      %440 = vmatpush1.msra.mxu0 %v408
      %441 = vmatprep.subr.mxu0 0.0
      %442 = vmatpush1.msra.mxu0 0.0
      %443 = vmatprep.subr.mxu0 0.0
      %444 = vmatpush1.msra.mxu0 0.0
      %445 = vmatprep.subr.mxu0 0.0
      %446 = vmatpush1.msra.mxu0 0.0
      %447 = vmatprep.subr.mxu0 0.0
      %448 = vmatpush1.msra.mxu0 0.0
      %449 = vmatprep.subr.mxu0 0.0
      %450 = vmatpush1.msra.mxu0 0.0
      %451 = vmatprep.subr.mxu0 0.0
      %452 = vmatpush1.msra.mxu0 0.0
      %453 = vmatprep.subr.mxu0 0.0
      %454 = vmatpush1.msra.mxu0 0.0
      %455 = vmatprep.subr.mxu0 0.0
      %456 = vmatpush1.msra.mxu0 0.0
      %457 = vmatprep.subr.mxu0 0.0
      %458 = vmatpush1.msra.mxu0 0.0
      %459 = vmatprep.subr.mxu0 0.0
      %460 = vmatpush1.msra.mxu0 0.0
      %461 = vmatprep.subr.mxu0 0.0
      %462 = vmatpush1.msra.mxu0 0.0
      %463 = vmatprep.subr.mxu0 0.0
      %464 = vmatpush1.msra.mxu0 0.0
      %465 = vmatprep.subr.mxu0 0.0
      %466 = vmatpush1.msra.mxu0 0.0
      %467 = vmatprep.subr.mxu0 0.0
      %468 = vmatpush1.msra.mxu0 0.0
      %469 = vmatprep.subr.mxu0 0.0
      %470 = vmatpush1.msra.mxu0 0.0
      %471 = vmatprep.subr.mxu0 0.0
      %472 = vmatpush1.msra.mxu0 0.0
      %473 = vmatprep.mubr.f32.mxu0 0.0
      %474 = vmatmul.mubr.f32.gmra.mrb[0].mxu0 %v391
      %v475 = vpop.f32.mrb[0].mxu0
      %v476 = vadd.f32 %v384, %v475
      %v477 = vpop.f32.mrb[0].mxu0
      %478 = vdwg.mxu0
      %v479 = vmax.f32 %v476, 0.0
      %v480 = vmin.f32 %v479, 1.0
      %vm481 = vcmask 520192
      %482 = vst.msk [vmem:[%s203] sm:$0x1f] %vm481, %v480
      %p483 = scmp.lt.s32.totalorder %s16, 1
      %s484 = scalar_select %p483, %s16, 1
      %s485 = smul.addr %s484, 8
      %s486 = scalar_lea.vmem %s3, %s485
      %p487 = scmp.lt.s32.totalorder %s16, 1
      %s488 = scalar_select %p487, %s16, 1
      %s489 = smul.addr %s488, 8
      %s490 = scalar_lea.vmem %s4, %s489
      // Predicated region
      $region33: #{emg_model2_forward.18} parent=31 // pred_check
        %p491 = pneg %p102
      $region34: #{emg_model2_forward.18} parent=31 // pred_check_branch
        %493 = sbr.rel (%p491) target = $region36
      $region35: #{emg_model2_forward.18} parent=31 // pred_region
        _
      $region36: #{emg_model2_forward.18} parent=31 // pred_fallthru
        _
      // Predicated region
      $region37: #{emg_model2_forward.18} parent=31 // pred_check
        %p494 = pneg %p128
      $region38: #{emg_model2_forward.18} parent=31 // pred_check_branch
        %496 = sbr.rel (%p494) target = $region40
      $region39: #{emg_model2_forward.18} parent=31 // pred_region
        _
      $region40: #{emg_model2_forward.18} parent=31 // pred_fallthru
        _
    $region32: #{emg_model2_forward.18} parent=5 // pred_fallthru
      _
    %p497 = scmp.le.s32.totalorder 2, %s11
    // Predicated region
    $region41: #{emg_model2_forward.18} parent=5 // pred_check
      %p498 = pneg %p497
    $region42: #{emg_model2_forward.18} parent=5 // pred_check_branch
      %500 = sbr.rel (%p498) target = $region44
    $region43: #{emg_model2_forward.18} parent=5 // pred_region
      %s501 = ssub.s32 %s11, 2
      // Predicated region
      $region45: #{emg_model2_forward.18} parent=43 // pred_check
        %p502 = pneg %p108
      $region46: #{emg_model2_forward.18} parent=43 // pred_check_branch
        %504 = sbr.rel (%p502) target = $region48
      $region47: #{emg_model2_forward.18} parent=43 // pred_region
        %p505 = scmp.lt.s32.totalorder %s17, 1
        %s506 = scalar_select %p505, %s17, 1
        %s507 = smul.addr %s506, 8
        %s508 = scalar_lea.vmem %s3, %s507
      $region48: #{emg_model2_forward.18} parent=43 // pred_fallthru
        _
      // Predicated region
      $region49: #{emg_model2_forward.18} parent=43 // pred_check
        %p509 = pneg %p134
      $region50: #{emg_model2_forward.18} parent=43 // pred_check_branch
        %511 = sbr.rel (%p509) target = $region52
      $region51: #{emg_model2_forward.18} parent=43 // pred_region
        %p512 = scmp.lt.s32.totalorder %s17, 1
        %s513 = scalar_select %p512, %s17, 1
        %s514 = smul.addr %s513, 8
        %s515 = scalar_lea.vmem %s4, %s514
      $region52: #{emg_model2_forward.18} parent=43 // pred_fallthru
        _
    $region44: #{emg_model2_forward.18} parent=5 // pred_fallthru
      _
  $region6: #{emg_model2_forward.18} parent=0 // loop_footer
    %s15 = sadd.s32 1, %s11
  $region7: #{emg_model2_forward.18} parent=0 // loop_footer_branch
    %10 = sbr.rel target = $region3
  $region8: #{emg_model2_forward.18} parent=0 // loop_exit
    _

// kernel: emg_model2_forward.19
$region0: #{emg_model2_forward.19}
  #allocation0 [shape = 'u32[]', space=smem, size = 0x4, offset = 0x4, fixed_abs, tag = 'smem constant byte address 0x4 - core index']
  #allocation1 [shape = 'u32[144,128]{1,0:T(1,128)}', space=vmem, size = 0x12000, scoped, tag = 'internal scratch']
  %s0 = inlined_call_operand.vmem [shape: f32[2,13,64], index: 0, kind: input, shape index: {}]
  %s1 = inlined_call_operand.vmem [shape: f32[3,64,32], index: 1, kind: input, shape index: {}]
  %s2 = inlined_call_operand.vmem [shape: f32[1,32], index: 2, kind: input, shape index: {}]
  %s3 = inlined_call_operand.vmem [shape: f32[2,12,32], index: 3, kind: output, shape index: {0}]
  %s4 = inlined_call_operand.vmem [shape: f32[2,12,32], index: 4, kind: output, shape index: {1}]
  %5 = xla_tuple %s3, %s4
  %s6 = sld [smem:[#allocation0]]
  $region53: #{emg_model2_forward.19} parent=0
    _
  %s8 = ssub.s32 1, %s6
  %s9 = scalar_select 0, %s8, %s6
  loop: start=0, step=1, limit=4
  $region2: #{emg_model2_forward.19} parent=0 // loop_pre_header
    _
  $region3: #{emg_model2_forward.19} parent=0 // loop_header
    %s11 = sphi 0, %s15
    %p12 = scmp.ge.s32.totalorder %s11, 4
    %s21 = sphi 0, %s23
    %s24 = sphi 0, %s21
    %s25 = sphi 0, %s24
    %s41 = sphi 0, %s25
    %s45 = sphi 0, %s45
    %s47 = sphi 0, %s45
    %s48 = sphi 0, %s47
    %s62 = sphi 0, %s48
    %s66 = sphi 0, %s66
    %s68 = sphi 0, %s66
    %s69 = sphi 0, %s68
    %s83 = sphi 0, %s69
    %s89 = sphi 0, %s91
    %s92 = sphi 0, %s89
    %s93 = sphi 0, %s92
    %s109 = sphi 0, %s93
    %s115 = sphi 0, %s117
    %s118 = sphi 0, %s115
    %s119 = sphi 0, %s118
    %s135 = sphi 0, %s119
  $region4: #{emg_model2_forward.19} parent=0 // loop_header_branch
    %14 = sbr.rel (%p12) target = $region8
  $region5: #{emg_model2_forward.19} parent=0 // loop_body
    %s16 = ssub.s32 %s11, 1
    %s17 = ssub.s32 %s11, 2
    %s18 = sadd.s32 %s11, 1
    %s19 = ssub.s32 %s11, %s18
    %p20 = scmp.eq.s32.totalorder %s19, 0
    %s22 = sadd.s32 %s21, 1
    %s23 = scalar_select %p20, %s21, %s22
    %p26 = pneg %p20
    %p27 = scmp.eq.s32.totalorder %s11, 1
    %p28 = por %p26, %p27
    %p29 = scmp.ne.s32.totalorder %s21, %s24
    %p30 = scmp.eq.s32.totalorder %s11, 0
    %p31 = por %p29, %p30
    %p32 = scmp.ne.s32.totalorder %s21, %s24
    %p33 = scmp.eq.s32.totalorder %s16, 1
    %p34 = por %p32, %p33
    %p35 = scmp.ne.s32.totalorder %s24, %s25
    %p36 = scmp.eq.s32.totalorder %s16, 0
    %p37 = por %p35, %p36
    %p38 = scmp.ne.s32.totalorder %s24, %s25
    %p39 = scmp.eq.s32.totalorder %s17, 1
    %p40 = por %p38, %p39
    %p42 = scmp.ne.s32.totalorder %s25, %s41
    %p43 = scmp.eq.s32.totalorder %s17, 0
    %p44 = por %p42, %p43
    %s46 = sadd.s32 %s45, 1
    %p49 = scmp.eq.s32.totalorder %s11, 1
    %p50 = scmp.ne.s32.totalorder %s45, %s47
    %p51 = scmp.eq.s32.totalorder %s11, 0
    %p52 = por %p50, %p51
    %p53 = scmp.ne.s32.totalorder %s45, %s47
    %p54 = scmp.eq.s32.totalorder %s16, 1
    %p55 = por %p53, %p54
    %p56 = scmp.ne.s32.totalorder %s47, %s48
    %p57 = scmp.eq.s32.totalorder %s16, 0
    %p58 = por %p56, %p57
    %p59 = scmp.ne.s32.totalorder %s47, %s48
    %p60 = scmp.eq.s32.totalorder %s17, 1
    %p61 = por %p59, %p60
    %p63 = scmp.ne.s32.totalorder %s48, %s62
    %p64 = scmp.eq.s32.totalorder %s17, 0
    %p65 = por %p63, %p64
    %s67 = sadd.s32 %s66, 1
    %p70 = scmp.eq.s32.totalorder %s11, 1
    %p71 = scmp.ne.s32.totalorder %s66, %s68
    %p72 = scmp.eq.s32.totalorder %s11, 0
    %p73 = por %p71, %p72
    %p74 = scmp.ne.s32.totalorder %s66, %s68
    %p75 = scmp.eq.s32.totalorder %s16, 1
    %p76 = por %p74, %p75
    %p77 = scmp.ne.s32.totalorder %s68, %s69
    %p78 = scmp.eq.s32.totalorder %s16, 0
    %p79 = por %p77, %p78
    %p80 = scmp.ne.s32.totalorder %s68, %s69
    %p81 = scmp.eq.s32.totalorder %s17, 1
    %p82 = por %p80, %p81
    %p84 = scmp.ne.s32.totalorder %s69, %s83
    %p85 = scmp.eq.s32.totalorder %s17, 0
    %p86 = por %p84, %p85
    %s87 = ssub.s32 %s11, %s18
    %p88 = scmp.eq.s32.totalorder %s87, 0
    %s90 = sadd.s32 %s89, 1
    %s91 = scalar_select %p88, %s89, %s90
    %p94 = pneg %p88
    %p95 = scmp.eq.s32.totalorder %s11, 1
    %p96 = por %p94, %p95
    %p97 = scmp.ne.s32.totalorder %s89, %s92
    %p98 = scmp.eq.s32.totalorder %s11, 0
    %p99 = por %p97, %p98
    %p100 = scmp.ne.s32.totalorder %s89, %s92
    %p101 = scmp.eq.s32.totalorder %s16, 1
    %p102 = por %p100, %p101
    %p103 = scmp.ne.s32.totalorder %s92, %s93
    %p104 = scmp.eq.s32.totalorder %s16, 0
    %p105 = por %p103, %p104
    %p106 = scmp.ne.s32.totalorder %s92, %s93
    %p107 = scmp.eq.s32.totalorder %s17, 1
    %p108 = por %p106, %p107
    %p110 = scmp.ne.s32.totalorder %s93, %s109
    %p111 = scmp.eq.s32.totalorder %s17, 0
    %p112 = por %p110, %p111
    %s113 = ssub.s32 %s11, %s18
    %p114 = scmp.eq.s32.totalorder %s113, 0
    %s116 = sadd.s32 %s115, 1
    %s117 = scalar_select %p114, %s115, %s116
    %p120 = pneg %p114
    %p121 = scmp.eq.s32.totalorder %s11, 1
    %p122 = por %p120, %p121
    %p123 = scmp.ne.s32.totalorder %s115, %s118
    %p124 = scmp.eq.s32.totalorder %s11, 0
    %p125 = por %p123, %p124
    %p126 = scmp.ne.s32.totalorder %s115, %s118
    %p127 = scmp.eq.s32.totalorder %s16, 1
    %p128 = por %p126, %p127
    %p129 = scmp.ne.s32.totalorder %s118, %s119
    %p130 = scmp.eq.s32.totalorder %s16, 0
    %p131 = por %p129, %p130
    %p132 = scmp.ne.s32.totalorder %s118, %s119
    %p133 = scmp.eq.s32.totalorder %s17, 1
    %p134 = por %p132, %p133
    %p136 = scmp.ne.s32.totalorder %s119, %s135
    %p137 = scmp.eq.s32.totalorder %s17, 0
    %p138 = por %p136, %p137
    %p139 = scmp.le.s32.totalorder 1, %s11
    %p140 = scmp.lt.s32.totalorder %s11, 3
    %p141 = pnand %p139, %p140
    %p142 = pneg %p141
    // Predicated region
    $region9: #{emg_model2_forward.19} parent=5 // pred_check
      _
    $region10: #{emg_model2_forward.19} parent=5 // pred_check_branch
      %144 = sbr.rel (%p141) target = $region12
    $region11: #{emg_model2_forward.19} parent=5 // pred_region
      %s145 = ssub.s32 %s11, 1
      // Predicated region
      $region13: #{emg_model2_forward.19} parent=11 // pred_check
        %p146 = pneg %p58
      $region14: #{emg_model2_forward.19} parent=11 // pred_check_branch
        %148 = sbr.rel (%p146) target = $region16
      $region15: #{emg_model2_forward.19} parent=11 // pred_region
        _
      $region16: #{emg_model2_forward.19} parent=11 // pred_fallthru
        _
      // Predicated region
      $region17: #{emg_model2_forward.19} parent=11 // pred_check
        %p149 = pneg %p79
      $region18: #{emg_model2_forward.19} parent=11 // pred_check_branch
        %151 = sbr.rel (%p149) target = $region20
      $region19: #{emg_model2_forward.19} parent=11 // pred_region
        _
      $region20: #{emg_model2_forward.19} parent=11 // pred_fallthru
        _
    $region12: #{emg_model2_forward.19} parent=5 // pred_fallthru
      _
    %p152 = scmp.lt.s32.totalorder %s11, 2
    // Predicated region
    $region21: #{emg_model2_forward.19} parent=5 // pred_check
      %p153 = pneg %p152
    $region22: #{emg_model2_forward.19} parent=5 // pred_check_branch
      %155 = sbr.rel (%p153) target = $region24
    $region23: #{emg_model2_forward.19} parent=5 // pred_region
      // Predicated region
      $region25: #{emg_model2_forward.19} parent=23 // pred_check
        %p156 = pneg %p31
      $region26: #{emg_model2_forward.19} parent=23 // pred_check_branch
        %158 = sbr.rel (%p156) target = $region28
      $region27: #{emg_model2_forward.19} parent=23 // pred_region
        %p159 = scmp.lt.s32.totalorder %s11, 1
        %s160 = scalar_select %p159, %s11, 1
        %s161 = smul.addr %s160, 2
        %s162 = smul.addr %s161, 8
        %s163 = scalar_lea.vmem %s0, %s162
      $region28: #{emg_model2_forward.19} parent=23 // pred_fallthru
        _
    $region24: #{emg_model2_forward.19} parent=5 // pred_fallthru
      _
    %p164 = scmp.le.s32.totalorder 1, %s11
    %p165 = scmp.lt.s32.totalorder %s11, 3
    %p166 = pnand %p164, %p165
    %p167 = pneg %p166
    // Predicated region
    $region29: #{emg_model2_forward.19} parent=5 // pred_check
      _
    $region30: #{emg_model2_forward.19} parent=5 // pred_check_branch
      %169 = sbr.rel (%p166) target = $region32
    $region31: #{emg_model2_forward.19} parent=5 // pred_region
      %s170 = ssub.s32 %s11, 1
      %p171 = scmp.lt.s32.totalorder %s16, 1
      %s172 = scalar_select %p171, %s16, 1
      %s173 = smul.addr %s172, 2
      %s174 = smul.addr %s173, 8
      %s175 = scalar_lea.vmem %s0, %s174
      %p176 = pneg %p37
      %p177 = pneg %p34
      %p178 = pneg %p58
      %p179 = pneg %p55
      %p180 = pneg %p79
      %p181 = pneg %p76
      %p182 = pneg %p105
      %p183 = pneg %p102
      %p184 = scmp.lt.s32.totalorder %s16, 1
      %s185 = scalar_select %p184, %s16, 1
      %s186 = smul.addr %s185, 2
      %s187 = smul.addr %s186, 8
      %s188 = scalar_lea.vmem %s3, %s187
      %p189 = pneg %p131
      %p190 = pneg %p128
      %p191 = scmp.lt.s32.totalorder %s16, 1
      %s192 = scalar_select %p191, %s16, 1
      %s193 = smul.addr %s192, 2
      %s194 = smul.addr %s193, 8
      %s195 = scalar_lea.vmem %s4, %s194
      %p196 = scmp.lt.s32.totalorder %s16, 1
      %s197 = scalar_select %p196, %s16, 1
      %s198 = smul.addr %s197, 2
      %s199 = smul.addr %s198, 8
      %s200 = scalar_lea.vmem %s0, %s199
      %p201 = scmp.lt.s32.totalorder %s16, 1
      %s202 = scalar_select %p201, %s16, 1
      %s203 = smul.addr %s202, 2
      %s204 = smul.addr %s203, 8
      %s205 = scalar_lea.vmem %s3, %s204
      %p206 = scmp.lt.s32.totalorder %s16, 1
      %s207 = scalar_select %p206, %s16, 1
      %s208 = smul.addr %s207, 2
      %s209 = smul.addr %s208, 8
      %s210 = scalar_lea.vmem %s4, %s209
      %v211 = vld [vmem:[%s2] sm:$0x1]
      %v212 = vld [vmem:[%s200 + $0x1] sm:$0xff]
      %v213 = vld [vmem:[%s200 + $0x9] sm:$0xf]
      %v214 = vld [vmem:[%s1] sm:$0xff]
      %v215 = vld [vmem:[%s1 + $0x8] sm:$0xff]
      %v216 = vld [vmem:[%s1 + $0x10] sm:$0xff]
      %v217 = vld [vmem:[%s1 + $0x18] sm:$0xff]
      %v218 = vld [vmem:[%s1 + $0x20] sm:$0xff]
      %v219 = vld [vmem:[%s1 + $0x28] sm:$0xff]
      %v220 = vld [vmem:[%s1 + $0x30] sm:$0xff]
      %v221 = vld [vmem:[%s1 + $0x38] sm:$0xff]
      %v222 = vld [vmem:[%s200] sm:$0xff]
      %v223 = vld [vmem:[%s200 + $0x8] sm:$0xf]
      %s224 = scalar_lea.vmem %s1, 128
      %v225 = vld [vmem:[%s224] sm:$0xff]
      %v226 = vld [vmem:[%s224 + $0x8] sm:$0xff]
      %v227 = vld [vmem:[%s224 + $0x10] sm:$0xff]
      %v228 = vld [vmem:[%s224 + $0x18] sm:$0xff]
      %v229 = vld [vmem:[%s224 + $0x20] sm:$0xff]
      %v230 = vld [vmem:[%s224 + $0x28] sm:$0xff]
      %v231 = vld [vmem:[%s224 + $0x30] sm:$0xff]
      %v232 = vld [vmem:[%s224 + $0x38] sm:$0xff]
      %vm233 = vcmask 523264
      %v235 = vsel %vm233, %v222, 0
      %v238 = vsel %vm233, %v223, 0
      %240 = vmatprep.subr.mxu0 0.0
      %241 = vmatpush1.msra.mxu0 %v225
      %242 = vmatprep.subr.mxu0 0.0
      %243 = vmatpush1.msra.mxu0 %v226
      %244 = vmatprep.subr.mxu0 0.0
      %245 = vmatpush1.msra.mxu0 %v227
      %246 = vmatprep.subr.mxu0 0.0
      %247 = vmatpush1.msra.mxu0 %v228
      %248 = vmatprep.subr.mxu0 0.0
      %249 = vmatpush1.msra.mxu0 %v229
      %250 = vmatprep.subr.mxu0 0.0
      %251 = vmatpush1.msra.mxu0 %v230
      %252 = vmatprep.subr.mxu0 0.0
      %253 = vmatpush1.msra.mxu0 %v231
      %254 = vmatprep.subr.mxu0 0.0
      %255 = vmatpush1.msra.mxu0 %v232
      %256 = vmatprep.subr.mxu0 0.0
      %257 = vmatpush1.msra.mxu0 0.0
      %258 = vmatprep.subr.mxu0 0.0
      %259 = vmatpush1.msra.mxu0 0.0
      %260 = vmatprep.subr.mxu0 0.0
      %261 = vmatpush1.msra.mxu0 0.0
      %262 = vmatprep.subr.mxu0 0.0
      %263 = vmatpush1.msra.mxu0 0.0
      %264 = vmatprep.subr.mxu0 0.0
      %265 = vmatpush1.msra.mxu0 0.0
      %266 = vmatprep.subr.mxu0 0.0
      %267 = vmatpush1.msra.mxu0 0.0
      %268 = vmatprep.subr.mxu0 0.0
      %269 = vmatpush1.msra.mxu0 0.0
      %270 = vmatprep.subr.mxu0 0.0
      %271 = vmatpush1.msra.mxu0 0.0
      %272 = vmatprep.subr.mxu0 0.0
      %273 = vmatpush1.msra.mxu0 0.0
      %274 = vmatprep.subr.mxu0 0.0
      %275 = vmatpush1.msra.mxu0 0.0
      %276 = vmatprep.subr.mxu0 0.0
      %277 = vmatpush1.msra.mxu0 0.0
      %278 = vmatprep.subr.mxu0 0.0
      %279 = vmatpush1.msra.mxu0 0.0
      %280 = vmatprep.subr.mxu0 0.0
      %281 = vmatpush1.msra.mxu0 0.0
      %282 = vmatprep.subr.mxu0 0.0
      %283 = vmatpush1.msra.mxu0 0.0
      %284 = vmatprep.subr.mxu0 0.0
      %285 = vmatpush1.msra.mxu0 0.0
      %286 = vmatprep.subr.mxu0 0.0
      %287 = vmatpush1.msra.mxu0 0.0
      %288 = vmatprep.subr.mxu0 0.0
      %289 = vmatpush1.msra.mxu0 0.0
      %290 = vmatprep.subr.mxu0 0.0
      %291 = vmatpush1.msra.mxu0 0.0
      %292 = vmatprep.subr.mxu0 0.0
      %293 = vmatpush1.msra.mxu0 0.0
      %294 = vmatprep.subr.mxu0 0.0
      %295 = vmatpush1.msra.mxu0 0.0
      %296 = vmatprep.subr.mxu0 0.0
      %297 = vmatpush1.msra.mxu0 0.0
      %298 = vmatprep.subr.mxu0 0.0
      %299 = vmatpush1.msra.mxu0 0.0
      %300 = vmatprep.subr.mxu0 0.0
      %301 = vmatpush1.msra.mxu0 0.0
      %302 = vmatprep.subr.mxu0 0.0
      %303 = vmatpush1.msra.mxu0 0.0
      %304 = vmatprep.mubr.f32.mxu0 0.0
      %305 = vmatmul.mubr.f32.gmra.mrb[0].mxu0 %v235
      %v306 = vpop.f32.mrb[0].mxu0
      %v307 = vadd.f32 0.0, %v306
      %v308 = vpop.f32.mrb[0].mxu0
      %309 = vmatprep.mubr.f32.mxu0 0.0
      %310 = vmatmul.mubr.f32.gmra.mrb[0].mxu0 %v238
      %v311 = vpop.f32.mrb[0].mxu0
      %v312 = vadd.f32 0.0, %v311
      %v313 = vpop.f32.mrb[0].mxu0
      %314 = vdwg.mxu0
      %v316 = vsel %vm233, %v212, 0
      %v319 = vsel %vm233, %v213, 0
      %321 = vmatprep.subr.mxu0 0.0
      %322 = vmatpush1.msra.mxu0 %v214
      %323 = vmatprep.subr.mxu0 0.0
      %324 = vmatpush1.msra.mxu0 %v215
      %325 = vmatprep.subr.mxu0 0.0
      %326 = vmatpush1.msra.mxu0 %v216
      %327 = vmatprep.subr.mxu0 0.0
      %328 = vmatpush1.msra.mxu0 %v217
      %329 = vmatprep.subr.mxu0 0.0
      %330 = vmatpush1.msra.mxu0 %v218
      %331 = vmatprep.subr.mxu0 0.0
      %332 = vmatpush1.msra.mxu0 %v219
      %333 = vmatprep.subr.mxu0 0.0
      %334 = vmatpush1.msra.mxu0 %v220
      %335 = vmatprep.subr.mxu0 0.0
      %336 = vmatpush1.msra.mxu0 %v221
      %337 = vmatprep.subr.mxu0 0.0
      %338 = vmatpush1.msra.mxu0 0.0
      %339 = vmatprep.subr.mxu0 0.0
      %340 = vmatpush1.msra.mxu0 0.0
      %341 = vmatprep.subr.mxu0 0.0
      %342 = vmatpush1.msra.mxu0 0.0
      %343 = vmatprep.subr.mxu0 0.0
      %344 = vmatpush1.msra.mxu0 0.0
      %345 = vmatprep.subr.mxu0 0.0
      %346 = vmatpush1.msra.mxu0 0.0
      %347 = vmatprep.subr.mxu0 0.0
      %348 = vmatpush1.msra.mxu0 0.0
      %349 = vmatprep.subr.mxu0 0.0
      %350 = vmatpush1.msra.mxu0 0.0
      %351 = vmatprep.subr.mxu0 0.0
      %352 = vmatpush1.msra.mxu0 0.0
      %353 = vmatprep.subr.mxu0 0.0
      %354 = vmatpush1.msra.mxu0 0.0
      %355 = vmatprep.subr.mxu0 0.0
      %356 = vmatpush1.msra.mxu0 0.0
      %357 = vmatprep.subr.mxu0 0.0
      %358 = vmatpush1.msra.mxu0 0.0
      %359 = vmatprep.subr.mxu0 0.0
      %360 = vmatpush1.msra.mxu0 0.0
      %361 = vmatprep.subr.mxu0 0.0
      %362 = vmatpush1.msra.mxu0 0.0
      %363 = vmatprep.subr.mxu0 0.0
      %364 = vmatpush1.msra.mxu0 0.0
      %365 = vmatprep.subr.mxu0 0.0
      %366 = vmatpush1.msra.mxu0 0.0
      %367 = vmatprep.subr.mxu0 0.0
      %368 = vmatpush1.msra.mxu0 0.0
      %369 = vmatprep.subr.mxu0 0.0
      %370 = vmatpush1.msra.mxu0 0.0
      %371 = vmatprep.subr.mxu0 0.0
      %372 = vmatpush1.msra.mxu0 0.0
      %373 = vmatprep.subr.mxu0 0.0
      %374 = vmatpush1.msra.mxu0 0.0
      %375 = vmatprep.subr.mxu0 0.0
      %376 = vmatpush1.msra.mxu0 0.0
      %377 = vmatprep.subr.mxu0 0.0
      %378 = vmatpush1.msra.mxu0 0.0
      %379 = vmatprep.subr.mxu0 0.0
      %380 = vmatpush1.msra.mxu0 0.0
      %381 = vmatprep.subr.mxu0 0.0
      %382 = vmatpush1.msra.mxu0 0.0
      %383 = vmatprep.subr.mxu0 0.0
      %384 = vmatpush1.msra.mxu0 0.0
      %385 = vmatprep.mubr.f32.mxu0 0.0
      %386 = vmatmul.mubr.f32.gmra.mrb[0].mxu0 %v316
      %v387 = vpop.f32.mrb[0].mxu0
      %v388 = vadd.f32 %v307, %v387
      %v389 = vpop.f32.mrb[0].mxu0
      %390 = vmatprep.mubr.f32.mxu0 0.0
      %391 = vmatmul.mubr.f32.gmra.mrb[0].mxu0 %v319
      %v392 = vpop.f32.mrb[0].mxu0
      %v393 = vadd.f32 %v312, %v392
      %v394 = vpop.f32.mrb[0].mxu0
      %395 = vdwg.mxu0
      %v397 = vlaneseq
      %v398 = vshrl.u32 %v397, 7
      %v399 = vsub.s32 0, %v398
      %v400 = vrot.slane %v211, %v399
      %v402 = vadd.f32 %v388, %v400
      %v403 = vadd.f32 %v393, %v400
      %v404 = vmax.f32 %v402, 0.0
      %v405 = vmax.f32 %v403, 0.0
      %v406 = vmin.f32 %v404, 1.0
      %v407 = vmin.f32 %v405, 1.0
      %vm408 = vcmask 261120
      %409 = vst.msk [vmem:[%s205] sm:$0xff] %vm408, %v406
      %vm410 = vcmask 257024
      %411 = vst.msk [vmem:[%s205 + $0x8] sm:$0xf] %vm410, %v407
      %v412 = vld [vmem:[%s200 + $0x1] sm:$0xff]
      %v413 = vld [vmem:[%s200 + $0x9] sm:$0xf]
      %s414 = scalar_lea.vmem %s1, 64
      %v415 = vld [vmem:[%s414] sm:$0xff]
      %v416 = vld [vmem:[%s414 + $0x8] sm:$0xff]
      %v417 = vld [vmem:[%s414 + $0x10] sm:$0xff]
      %v418 = vld [vmem:[%s414 + $0x18] sm:$0xff]
      %v419 = vld [vmem:[%s414 + $0x20] sm:$0xff]
      %v420 = vld [vmem:[%s414 + $0x28] sm:$0xff]
      %v421 = vld [vmem:[%s414 + $0x30] sm:$0xff]
      %v422 = vld [vmem:[%s414 + $0x38] sm:$0xff]
      %v424 = vsel %vm233, %v412, 0
      %v427 = vsel %vm233, %v413, 0
      %429 = vmatprep.subr.mxu0 0.0
      %430 = vmatpush1.msra.mxu0 %v415
      %431 = vmatprep.subr.mxu0 0.0
      %432 = vmatpush1.msra.mxu0 %v416
      %433 = vmatprep.subr.mxu0 0.0
      %434 = vmatpush1.msra.mxu0 %v417
      %435 = vmatprep.subr.mxu0 0.0
      %436 = vmatpush1.msra.mxu0 %v418
      %437 = vmatprep.subr.mxu0 0.0
      %438 = vmatpush1.msra.mxu0 %v419
      %439 = vmatprep.subr.mxu0 0.0
      %440 = vmatpush1.msra.mxu0 %v420
      %441 = vmatprep.subr.mxu0 0.0
      %442 = vmatpush1.msra.mxu0 %v421
      %443 = vmatprep.subr.mxu0 0.0
      %444 = vmatpush1.msra.mxu0 %v422
      %445 = vmatprep.subr.mxu0 0.0
      %446 = vmatpush1.msra.mxu0 0.0
      %447 = vmatprep.subr.mxu0 0.0
      %448 = vmatpush1.msra.mxu0 0.0
      %449 = vmatprep.subr.mxu0 0.0
      %450 = vmatpush1.msra.mxu0 0.0
      %451 = vmatprep.subr.mxu0 0.0
      %452 = vmatpush1.msra.mxu0 0.0
      %453 = vmatprep.subr.mxu0 0.0
      %454 = vmatpush1.msra.mxu0 0.0
      %455 = vmatprep.subr.mxu0 0.0
      %456 = vmatpush1.msra.mxu0 0.0
      %457 = vmatprep.subr.mxu0 0.0
      %458 = vmatpush1.msra.mxu0 0.0
      %459 = vmatprep.subr.mxu0 0.0
      %460 = vmatpush1.msra.mxu0 0.0
      %461 = vmatprep.subr.mxu0 0.0
      %462 = vmatpush1.msra.mxu0 0.0
      %463 = vmatprep.subr.mxu0 0.0
      %464 = vmatpush1.msra.mxu0 0.0
      %465 = vmatprep.subr.mxu0 0.0
      %466 = vmatpush1.msra.mxu0 0.0
      %467 = vmatprep.subr.mxu0 0.0
      %468 = vmatpush1.msra.mxu0 0.0
      %469 = vmatprep.subr.mxu0 0.0
      %470 = vmatpush1.msra.mxu0 0.0
      %471 = vmatprep.subr.mxu0 0.0
      %472 = vmatpush1.msra.mxu0 0.0
      %473 = vmatprep.subr.mxu0 0.0
      %474 = vmatpush1.msra.mxu0 0.0
      %475 = vmatprep.subr.mxu0 0.0
      %476 = vmatpush1.msra.mxu0 0.0
      %477 = vmatprep.subr.mxu0 0.0
      %478 = vmatpush1.msra.mxu0 0.0
      %479 = vmatprep.subr.mxu0 0.0
      %480 = vmatpush1.msra.mxu0 0.0
      %481 = vmatprep.subr.mxu0 0.0
      %482 = vmatpush1.msra.mxu0 0.0
      %483 = vmatprep.subr.mxu0 0.0
      %484 = vmatpush1.msra.mxu0 0.0
      %485 = vmatprep.subr.mxu0 0.0
      %486 = vmatpush1.msra.mxu0 0.0
      %487 = vmatprep.subr.mxu0 0.0
      %488 = vmatpush1.msra.mxu0 0.0
      %489 = vmatprep.subr.mxu0 0.0
      %490 = vmatpush1.msra.mxu0 0.0
      %491 = vmatprep.subr.mxu0 0.0
      %492 = vmatpush1.msra.mxu0 0.0
      %493 = vmatprep.mubr.f32.mxu0 0.0
      %494 = vmatmul.mubr.f32.gmra.mrb[0].mxu0 %v424
      %v495 = vpop.f32.mrb[0].mxu0
      %v496 = vadd.f32 %v400, %v495
      %v497 = vpop.f32.mrb[0].mxu0
      %498 = vmatprep.mubr.f32.mxu0 0.0
      %499 = vmatmul.mubr.f32.gmra.mrb[0].mxu0 %v427
      %v500 = vpop.f32.mrb[0].mxu0
      %v501 = vadd.f32 %v400, %v500
      %v502 = vpop.f32.mrb[0].mxu0
      %503 = vdwg.mxu0
      %v504 = vmax.f32 %v496, 0.0
      %v505 = vmax.f32 %v501, 0.0
      %v506 = vmin.f32 %v504, 1.0
      %v507 = vmin.f32 %v505, 1.0
      %508 = vst.msk [vmem:[%s210] sm:$0xff] %vm408, %v506
      %509 = vst.msk [vmem:[%s210 + $0x8] sm:$0xf] %vm410, %v507
      %p510 = scmp.lt.s32.totalorder %s16, 1
      %s511 = scalar_select %p510, %s16, 1
      %s512 = smul.addr %s511, 2
      %s513 = smul.addr %s512, 8
      %s514 = scalar_lea.vmem %s3, %s513
      %p515 = scmp.lt.s32.totalorder %s16, 1
      %s516 = scalar_select %p515, %s16, 1
      %s517 = smul.addr %s516, 2
      %s518 = smul.addr %s517, 8
      %s519 = scalar_lea.vmem %s4, %s518
      // Predicated region
      $region33: #{emg_model2_forward.19} parent=31 // pred_check
        %p520 = pneg %p102
      $region34: #{emg_model2_forward.19} parent=31 // pred_check_branch
        %522 = sbr.rel (%p520) target = $region36
      $region35: #{emg_model2_forward.19} parent=31 // pred_region
        _
      $region36: #{emg_model2_forward.19} parent=31 // pred_fallthru
        _
      // Predicated region
      $region37: #{emg_model2_forward.19} parent=31 // pred_check
        %p523 = pneg %p128
      $region38: #{emg_model2_forward.19} parent=31 // pred_check_branch
        %525 = sbr.rel (%p523) target = $region40
      $region39: #{emg_model2_forward.19} parent=31 // pred_region
        _
      $region40: #{emg_model2_forward.19} parent=31 // pred_fallthru
        _
    $region32: #{emg_model2_forward.19} parent=5 // pred_fallthru
      _
    %p526 = scmp.le.s32.totalorder 2, %s11
    // Predicated region
    $region41: #{emg_model2_forward.19} parent=5 // pred_check
      %p527 = pneg %p526
    $region42: #{emg_model2_forward.19} parent=5 // pred_check_branch
      %529 = sbr.rel (%p527) target = $region44
    $region43: #{emg_model2_forward.19} parent=5 // pred_region
      %s530 = ssub.s32 %s11, 2
      // Predicated region
      $region45: #{emg_model2_forward.19} parent=43 // pred_check
        %p531 = pneg %p108
      $region46: #{emg_model2_forward.19} parent=43 // pred_check_branch
        %533 = sbr.rel (%p531) target = $region48
      $region47: #{emg_model2_forward.19} parent=43 // pred_region
        %p534 = scmp.lt.s32.totalorder %s17, 1
        %s535 = scalar_select %p534, %s17, 1
        %s536 = smul.addr %s535, 2
        %s537 = smul.addr %s536, 8
        %s538 = scalar_lea.vmem %s3, %s537
      $region48: #{emg_model2_forward.19} parent=43 // pred_fallthru
        _
      // Predicated region
      $region49: #{emg_model2_forward.19} parent=43 // pred_check
        %p539 = pneg %p134
      $region50: #{emg_model2_forward.19} parent=43 // pred_check_branch
        %541 = sbr.rel (%p539) target = $region52
      $region51: #{emg_model2_forward.19} parent=43 // pred_region
        %p542 = scmp.lt.s32.totalorder %s17, 1
        %s543 = scalar_select %p542, %s17, 1
        %s544 = smul.addr %s543, 2
        %s545 = smul.addr %s544, 8
        %s546 = scalar_lea.vmem %s4, %s545
      $region52: #{emg_model2_forward.19} parent=43 // pred_fallthru
        _
    $region44: #{emg_model2_forward.19} parent=5 // pred_fallthru
      _
  $region6: #{emg_model2_forward.19} parent=0 // loop_footer
    %s15 = sadd.s32 1, %s11
  $region7: #{emg_model2_forward.19} parent=0 // loop_footer_branch
    %10 = sbr.rel target = $region3
  $region8: #{emg_model2_forward.19} parent=0 // loop_exit
    _

// kernel: emg_model2_forward.20
$region0: #{emg_model2_forward.20}
  #allocation0 [shape = 'u32[]', space=smem, size = 0x4, offset = 0x4, fixed_abs, tag = 'smem constant byte address 0x4 - core index']
  #allocation1 [shape = 'u32[144,128]{1,0:T(1,128)}', space=vmem, size = 0x12000, scoped, tag = 'internal scratch']
  %s0 = inlined_call_operand.vmem [shape: f32[2,26,32], index: 0, kind: input, shape index: {}]
  %s1 = inlined_call_operand.vmem [shape: f32[3,32,32], index: 1, kind: input, shape index: {}]
  %s2 = inlined_call_operand.vmem [shape: f32[1,32], index: 2, kind: input, shape index: {}]
  %s3 = inlined_call_operand.vmem [shape: f32[2,25,32], index: 3, kind: output, shape index: {0}]
  %s4 = inlined_call_operand.vmem [shape: f32[2,25,32], index: 4, kind: output, shape index: {1}]
  %5 = xla_tuple %s3, %s4
  %s6 = sld [smem:[#allocation0]]
  $region53: #{emg_model2_forward.20} parent=0
    _
  %s8 = ssub.s32 1, %s6
  %s9 = scalar_select 0, %s8, %s6
  loop: start=0, step=1, limit=4
  $region2: #{emg_model2_forward.20} parent=0 // loop_pre_header
    _
  $region3: #{emg_model2_forward.20} parent=0 // loop_header
    %s11 = sphi 0, %s15
    %p12 = scmp.ge.s32.totalorder %s11, 4
    %s21 = sphi 0, %s23
    %s24 = sphi 0, %s21
    %s25 = sphi 0, %s24
    %s41 = sphi 0, %s25
    %s45 = sphi 0, %s45
    %s47 = sphi 0, %s45
    %s48 = sphi 0, %s47
    %s62 = sphi 0, %s48
    %s66 = sphi 0, %s66
    %s68 = sphi 0, %s66
    %s69 = sphi 0, %s68
    %s83 = sphi 0, %s69
    %s89 = sphi 0, %s91
    %s92 = sphi 0, %s89
    %s93 = sphi 0, %s92
    %s109 = sphi 0, %s93
    %s115 = sphi 0, %s117
    %s118 = sphi 0, %s115
    %s119 = sphi 0, %s118
    %s135 = sphi 0, %s119
  $region4: #{emg_model2_forward.20} parent=0 // loop_header_branch
    %14 = sbr.rel (%p12) target = $region8
  $region5: #{emg_model2_forward.20} parent=0 // loop_body
    %s16 = ssub.s32 %s11, 1
    %s17 = ssub.s32 %s11, 2
    %s18 = sadd.s32 %s11, 1
    %s19 = ssub.s32 %s11, %s18
    %p20 = scmp.eq.s32.totalorder %s19, 0
    %s22 = sadd.s32 %s21, 1
    %s23 = scalar_select %p20, %s21, %s22
    %p26 = pneg %p20
    %p27 = scmp.eq.s32.totalorder %s11, 1
    %p28 = por %p26, %p27
    %p29 = scmp.ne.s32.totalorder %s21, %s24
    %p30 = scmp.eq.s32.totalorder %s11, 0
    %p31 = por %p29, %p30
    %p32 = scmp.ne.s32.totalorder %s21, %s24
    %p33 = scmp.eq.s32.totalorder %s16, 1
    %p34 = por %p32, %p33
    %p35 = scmp.ne.s32.totalorder %s24, %s25
    %p36 = scmp.eq.s32.totalorder %s16, 0
    %p37 = por %p35, %p36
    %p38 = scmp.ne.s32.totalorder %s24, %s25
    %p39 = scmp.eq.s32.totalorder %s17, 1
    %p40 = por %p38, %p39
    %p42 = scmp.ne.s32.totalorder %s25, %s41
    %p43 = scmp.eq.s32.totalorder %s17, 0
    %p44 = por %p42, %p43
    %s46 = sadd.s32 %s45, 1
    %p49 = scmp.eq.s32.totalorder %s11, 1
    %p50 = scmp.ne.s32.totalorder %s45, %s47
    %p51 = scmp.eq.s32.totalorder %s11, 0
    %p52 = por %p50, %p51
    %p53 = scmp.ne.s32.totalorder %s45, %s47
    %p54 = scmp.eq.s32.totalorder %s16, 1
    %p55 = por %p53, %p54
    %p56 = scmp.ne.s32.totalorder %s47, %s48
    %p57 = scmp.eq.s32.totalorder %s16, 0
    %p58 = por %p56, %p57
    %p59 = scmp.ne.s32.totalorder %s47, %s48
    %p60 = scmp.eq.s32.totalorder %s17, 1
    %p61 = por %p59, %p60
    %p63 = scmp.ne.s32.totalorder %s48, %s62
    %p64 = scmp.eq.s32.totalorder %s17, 0
    %p65 = por %p63, %p64
    %s67 = sadd.s32 %s66, 1
    %p70 = scmp.eq.s32.totalorder %s11, 1
    %p71 = scmp.ne.s32.totalorder %s66, %s68
    %p72 = scmp.eq.s32.totalorder %s11, 0
    %p73 = por %p71, %p72
    %p74 = scmp.ne.s32.totalorder %s66, %s68
    %p75 = scmp.eq.s32.totalorder %s16, 1
    %p76 = por %p74, %p75
    %p77 = scmp.ne.s32.totalorder %s68, %s69
    %p78 = scmp.eq.s32.totalorder %s16, 0
    %p79 = por %p77, %p78
    %p80 = scmp.ne.s32.totalorder %s68, %s69
    %p81 = scmp.eq.s32.totalorder %s17, 1
    %p82 = por %p80, %p81
    %p84 = scmp.ne.s32.totalorder %s69, %s83
    %p85 = scmp.eq.s32.totalorder %s17, 0
    %p86 = por %p84, %p85
    %s87 = ssub.s32 %s11, %s18
    %p88 = scmp.eq.s32.totalorder %s87, 0
    %s90 = sadd.s32 %s89, 1
    %s91 = scalar_select %p88, %s89, %s90
    %p94 = pneg %p88
    %p95 = scmp.eq.s32.totalorder %s11, 1
    %p96 = por %p94, %p95
    %p97 = scmp.ne.s32.totalorder %s89, %s92
    %p98 = scmp.eq.s32.totalorder %s11, 0
    %p99 = por %p97, %p98
    %p100 = scmp.ne.s32.totalorder %s89, %s92
    %p101 = scmp.eq.s32.totalorder %s16, 1
    %p102 = por %p100, %p101
    %p103 = scmp.ne.s32.totalorder %s92, %s93
    %p104 = scmp.eq.s32.totalorder %s16, 0
    %p105 = por %p103, %p104
    %p106 = scmp.ne.s32.totalorder %s92, %s93
    %p107 = scmp.eq.s32.totalorder %s17, 1
    %p108 = por %p106, %p107
    %p110 = scmp.ne.s32.totalorder %s93, %s109
    %p111 = scmp.eq.s32.totalorder %s17, 0
    %p112 = por %p110, %p111
    %s113 = ssub.s32 %s11, %s18
    %p114 = scmp.eq.s32.totalorder %s113, 0
    %s116 = sadd.s32 %s115, 1
    %s117 = scalar_select %p114, %s115, %s116
    %p120 = pneg %p114
    %p121 = scmp.eq.s32.totalorder %s11, 1
    %p122 = por %p120, %p121
    %p123 = scmp.ne.s32.totalorder %s115, %s118
    %p124 = scmp.eq.s32.totalorder %s11, 0
    %p125 = por %p123, %p124
    %p126 = scmp.ne.s32.totalorder %s115, %s118
    %p127 = scmp.eq.s32.totalorder %s16, 1
    %p128 = por %p126, %p127
    %p129 = scmp.ne.s32.totalorder %s118, %s119
    %p130 = scmp.eq.s32.totalorder %s16, 0
    %p131 = por %p129, %p130
    %p132 = scmp.ne.s32.totalorder %s118, %s119
    %p133 = scmp.eq.s32.totalorder %s17, 1
    %p134 = por %p132, %p133
    %p136 = scmp.ne.s32.totalorder %s119, %s135
    %p137 = scmp.eq.s32.totalorder %s17, 0
    %p138 = por %p136, %p137
    %p139 = scmp.le.s32.totalorder 1, %s11
    %p140 = scmp.lt.s32.totalorder %s11, 3
    %p141 = pnand %p139, %p140
    %p142 = pneg %p141
    // Predicated region
    $region9: #{emg_model2_forward.20} parent=5 // pred_check
      _
    $region10: #{emg_model2_forward.20} parent=5 // pred_check_branch
      %144 = sbr.rel (%p141) target = $region12
    $region11: #{emg_model2_forward.20} parent=5 // pred_region
      %s145 = ssub.s32 %s11, 1
      // Predicated region
      $region13: #{emg_model2_forward.20} parent=11 // pred_check
        %p146 = pneg %p58
      $region14: #{emg_model2_forward.20} parent=11 // pred_check_branch
        %148 = sbr.rel (%p146) target = $region16
      $region15: #{emg_model2_forward.20} parent=11 // pred_region
        _
      $region16: #{emg_model2_forward.20} parent=11 // pred_fallthru
        _
      // Predicated region
      $region17: #{emg_model2_forward.20} parent=11 // pred_check
        %p149 = pneg %p79
      $region18: #{emg_model2_forward.20} parent=11 // pred_check_branch
        %151 = sbr.rel (%p149) target = $region20
      $region19: #{emg_model2_forward.20} parent=11 // pred_region
        _
      $region20: #{emg_model2_forward.20} parent=11 // pred_fallthru
        _
    $region12: #{emg_model2_forward.20} parent=5 // pred_fallthru
      _
    %p152 = scmp.lt.s32.totalorder %s11, 2
    // Predicated region
    $region21: #{emg_model2_forward.20} parent=5 // pred_check
      %p153 = pneg %p152
    $region22: #{emg_model2_forward.20} parent=5 // pred_check_branch
      %155 = sbr.rel (%p153) target = $region24
    $region23: #{emg_model2_forward.20} parent=5 // pred_region
      // Predicated region
      $region25: #{emg_model2_forward.20} parent=23 // pred_check
        %p156 = pneg %p31
      $region26: #{emg_model2_forward.20} parent=23 // pred_check_branch
        %158 = sbr.rel (%p156) target = $region28
      $region27: #{emg_model2_forward.20} parent=23 // pred_region
        %p159 = scmp.lt.s32.totalorder %s11, 1
        %s160 = scalar_select %p159, %s11, 1
        %s161 = smul.addr %s160, 4
        %s162 = smul.addr %s161, 8
        %s163 = scalar_lea.vmem %s0, %s162
      $region28: #{emg_model2_forward.20} parent=23 // pred_fallthru
        _
    $region24: #{emg_model2_forward.20} parent=5 // pred_fallthru
      _
    %p164 = scmp.le.s32.totalorder 1, %s11
    %p165 = scmp.lt.s32.totalorder %s11, 3
    %p166 = pnand %p164, %p165
    %p167 = pneg %p166
    // Predicated region
    $region29: #{emg_model2_forward.20} parent=5 // pred_check
      _
    $region30: #{emg_model2_forward.20} parent=5 // pred_check_branch
      %169 = sbr.rel (%p166) target = $region32
    $region31: #{emg_model2_forward.20} parent=5 // pred_region
      %s170 = ssub.s32 %s11, 1
      %p171 = scmp.lt.s32.totalorder %s16, 1
      %s172 = scalar_select %p171, %s16, 1
      %s173 = smul.addr %s172, 4
      %s174 = smul.addr %s173, 8
      %s175 = scalar_lea.vmem %s0, %s174
      %p176 = pneg %p37
      %p177 = pneg %p34
      %p178 = pneg %p58
      %p179 = pneg %p55
      %p180 = pneg %p79
      %p181 = pneg %p76
      %p182 = pneg %p105
      %p183 = pneg %p102
      %p184 = scmp.lt.s32.totalorder %s16, 1
      %s185 = scalar_select %p184, %s16, 1
      %s186 = smul.addr %s185, 4
      %s187 = smul.addr %s186, 8
      %s188 = scalar_lea.vmem %s3, %s187
      %p189 = pneg %p131
      %p190 = pneg %p128
      %p191 = scmp.lt.s32.totalorder %s16, 1
      %s192 = scalar_select %p191, %s16, 1
      %s193 = smul.addr %s192, 4
      %s194 = smul.addr %s193, 8
      %s195 = scalar_lea.vmem %s4, %s194
      %p196 = scmp.lt.s32.totalorder %s16, 1
      %s197 = scalar_select %p196, %s16, 1
      %s198 = smul.addr %s197, 4
      %s199 = smul.addr %s198, 8
      %s200 = scalar_lea.vmem %s0, %s199
      %p201 = scmp.lt.s32.totalorder %s16, 1
      %s202 = scalar_select %p201, %s16, 1
      %s203 = smul.addr %s202, 4
      %s204 = smul.addr %s203, 8
      %s205 = scalar_lea.vmem %s3, %s204
      %p206 = scmp.lt.s32.totalorder %s16, 1
      %s207 = scalar_select %p206, %s16, 1
      %s208 = smul.addr %s207, 4
      %s209 = smul.addr %s208, 8
      %s210 = scalar_lea.vmem %s4, %s209
      %v211 = vld [vmem:[%s2] sm:$0x1]
      %v212 = vld [vmem:[%s200 + $0x1] sm:$0xff]
      %v213 = vld [vmem:[%s200 + $0x9] sm:$0xff]
      %v214 = vld [vmem:[%s200 + $0x11] sm:$0xff]
      %v215 = vld [vmem:[%s200 + $0x19] sm:$0x1]
      %v216 = vld [vmem:[%s1] sm:$0xff]
      %v217 = vld [vmem:[%s1 + $0x8] sm:$0xff]
      %v218 = vld [vmem:[%s1 + $0x10] sm:$0xff]
      %v219 = vld [vmem:[%s1 + $0x18] sm:$0xff]
      %v220 = vld [vmem:[%s200] sm:$0xff]
      %v221 = vld [vmem:[%s200 + $0x8] sm:$0xff]
      %v222 = vld [vmem:[%s200 + $0x10] sm:$0xff]
      %v223 = vld [vmem:[%s200 + $0x18] sm:$0x1]
      %s224 = scalar_lea.vmem %s1, 64
      %v225 = vld [vmem:[%s224] sm:$0xff]
      %v226 = vld [vmem:[%s224 + $0x8] sm:$0xff]
      %v227 = vld [vmem:[%s224 + $0x10] sm:$0xff]
      %v228 = vld [vmem:[%s224 + $0x18] sm:$0xff]
      %vm229 = vcmask 261120
      %v231 = vsel %vm229, %v220, 0
      %v234 = vsel %vm229, %v221, 0
      %v237 = vsel %vm229, %v222, 0
      %v240 = vsel %vm229, %v223, 0
      %242 = vmatprep.subr.mxu0 0.0
      %243 = vmatpush1.msra.mxu0 %v225
      %244 = vmatprep.subr.mxu0 0.0
      %245 = vmatpush1.msra.mxu0 %v226
      %246 = vmatprep.subr.mxu0 0.0
      %247 = vmatpush1.msra.mxu0 %v227
      %248 = vmatprep.subr.mxu0 0.0
      %249 = vmatpush1.msra.mxu0 %v228
      %250 = vmatprep.subr.mxu0 0.0
      %251 = vmatpush1.msra.mxu0 0.0
      %252 = vmatprep.subr.mxu0 0.0
      %253 = vmatpush1.msra.mxu0 0.0
      %254 = vmatprep.subr.mxu0 0.0
      %255 = vmatpush1.msra.mxu0 0.0
      %256 = vmatprep.subr.mxu0 0.0
      %257 = vmatpush1.msra.mxu0 0.0
      %258 = vmatprep.subr.mxu0 0.0
      %259 = vmatpush1.msra.mxu0 0.0
      %260 = vmatprep.subr.mxu0 0.0
      %261 = vmatpush1.msra.mxu0 0.0
      %262 = vmatprep.subr.mxu0 0.0
      %263 = vmatpush1.msra.mxu0 0.0
      %264 = vmatprep.subr.mxu0 0.0
      %265 = vmatpush1.msra.mxu0 0.0
      %266 = vmatprep.subr.mxu0 0.0
      %267 = vmatpush1.msra.mxu0 0.0
      %268 = vmatprep.subr.mxu0 0.0
      %269 = vmatpush1.msra.mxu0 0.0
      %270 = vmatprep.subr.mxu0 0.0
      %271 = vmatpush1.msra.mxu0 0.0
      %272 = vmatprep.subr.mxu0 0.0
      %273 = vmatpush1.msra.mxu0 0.0
      %274 = vmatprep.subr.mxu0 0.0
      %275 = vmatpush1.msra.mxu0 0.0
      %276 = vmatprep.subr.mxu0 0.0
      %277 = vmatpush1.msra.mxu0 0.0
      %278 = vmatprep.subr.mxu0 0.0
      %279 = vmatpush1.msra.mxu0 0.0
      %280 = vmatprep.subr.mxu0 0.0
      %281 = vmatpush1.msra.mxu0 0.0
      %282 = vmatprep.subr.mxu0 0.0
      %283 = vmatpush1.msra.mxu0 0.0
      %284 = vmatprep.subr.mxu0 0.0
      %285 = vmatpush1.msra.mxu0 0.0
      %286 = vmatprep.subr.mxu0 0.0
      %287 = vmatpush1.msra.mxu0 0.0
      %288 = vmatprep.subr.mxu0 0.0
      %289 = vmatpush1.msra.mxu0 0.0
      %290 = vmatprep.subr.mxu0 0.0
      %291 = vmatpush1.msra.mxu0 0.0
      %292 = vmatprep.subr.mxu0 0.0
      %293 = vmatpush1.msra.mxu0 0.0
      %294 = vmatprep.subr.mxu0 0.0
      %295 = vmatpush1.msra.mxu0 0.0
      %296 = vmatprep.subr.mxu0 0.0
      %297 = vmatpush1.msra.mxu0 0.0
      %298 = vmatprep.subr.mxu0 0.0
      %299 = vmatpush1.msra.mxu0 0.0
      %300 = vmatprep.subr.mxu0 0.0
      %301 = vmatpush1.msra.mxu0 0.0
      %302 = vmatprep.subr.mxu0 0.0
      %303 = vmatpush1.msra.mxu0 0.0
      %304 = vmatprep.subr.mxu0 0.0
      %305 = vmatpush1.msra.mxu0 0.0
      %306 = vmatprep.mubr.f32.mxu0 0.0
      %307 = vmatmul.mubr.f32.gmra.mrb[0].mxu0 %v231
      %v308 = vpop.f32.mrb[0].mxu0
      %v309 = vadd.f32 0.0, %v308
      %v310 = vpop.f32.mrb[0].mxu0
      %311 = vmatprep.mubr.f32.mxu0 0.0
      %312 = vmatmul.mubr.f32.gmra.mrb[0].mxu0 %v234
      %v313 = vpop.f32.mrb[0].mxu0
      %v314 = vadd.f32 0.0, %v313
      %v315 = vpop.f32.mrb[0].mxu0
      %316 = vmatprep.mubr.f32.mxu0 0.0
      %317 = vmatmul.mubr.f32.gmra.mrb[0].mxu0 %v237
      %v318 = vpop.f32.mrb[0].mxu0
      %v319 = vadd.f32 0.0, %v318
      %v320 = vpop.f32.mrb[0].mxu0
      %321 = vmatprep.mubr.f32.mxu0 0.0
      %322 = vmatmul.mubr.f32.gmra.mrb[0].mxu0 %v240
      %v323 = vpop.f32.mrb[0].mxu0
      %v324 = vadd.f32 0.0, %v323
      %v325 = vpop.f32.mrb[0].mxu0
      %326 = vdwg.mxu0
      %v328 = vsel %vm229, %v212, 0
      %v331 = vsel %vm229, %v213, 0
      %v334 = vsel %vm229, %v214, 0
      %v337 = vsel %vm229, %v215, 0
      %339 = vmatprep.subr.mxu0 0.0
      %340 = vmatpush1.msra.mxu0 %v216
      %341 = vmatprep.subr.mxu0 0.0
      %342 = vmatpush1.msra.mxu0 %v217
      %343 = vmatprep.subr.mxu0 0.0
      %344 = vmatpush1.msra.mxu0 %v218
      %345 = vmatprep.subr.mxu0 0.0
      %346 = vmatpush1.msra.mxu0 %v219
      %347 = vmatprep.subr.mxu0 0.0
      %348 = vmatpush1.msra.mxu0 0.0
      %349 = vmatprep.subr.mxu0 0.0
      %350 = vmatpush1.msra.mxu0 0.0
      %351 = vmatprep.subr.mxu0 0.0
      %352 = vmatpush1.msra.mxu0 0.0
      %353 = vmatprep.subr.mxu0 0.0
      %354 = vmatpush1.msra.mxu0 0.0
      %355 = vmatprep.subr.mxu0 0.0
      %356 = vmatpush1.msra.mxu0 0.0
      %357 = vmatprep.subr.mxu0 0.0
      %358 = vmatpush1.msra.mxu0 0.0
      %359 = vmatprep.subr.mxu0 0.0
      %360 = vmatpush1.msra.mxu0 0.0
      %361 = vmatprep.subr.mxu0 0.0
      %362 = vmatpush1.msra.mxu0 0.0
      %363 = vmatprep.subr.mxu0 0.0
      %364 = vmatpush1.msra.mxu0 0.0
      %365 = vmatprep.subr.mxu0 0.0
      %366 = vmatpush1.msra.mxu0 0.0
      %367 = vmatprep.subr.mxu0 0.0
      %368 = vmatpush1.msra.mxu0 0.0
      %369 = vmatprep.subr.mxu0 0.0
      %370 = vmatpush1.msra.mxu0 0.0
      %371 = vmatprep.subr.mxu0 0.0
      %372 = vmatpush1.msra.mxu0 0.0
      %373 = vmatprep.subr.mxu0 0.0
      %374 = vmatpush1.msra.mxu0 0.0
      %375 = vmatprep.subr.mxu0 0.0
      %376 = vmatpush1.msra.mxu0 0.0
      %377 = vmatprep.subr.mxu0 0.0
      %378 = vmatpush1.msra.mxu0 0.0
      %379 = vmatprep.subr.mxu0 0.0
      %380 = vmatpush1.msra.mxu0 0.0
      %381 = vmatprep.subr.mxu0 0.0
      %382 = vmatpush1.msra.mxu0 0.0
      %383 = vmatprep.subr.mxu0 0.0
      %384 = vmatpush1.msra.mxu0 0.0
      %385 = vmatprep.subr.mxu0 0.0
      %386 = vmatpush1.msra.mxu0 0.0
      %387 = vmatprep.subr.mxu0 0.0
      %388 = vmatpush1.msra.mxu0 0.0
      %389 = vmatprep.subr.mxu0 0.0
      %390 = vmatpush1.msra.mxu0 0.0
      %391 = vmatprep.subr.mxu0 0.0
      %392 = vmatpush1.msra.mxu0 0.0
      %393 = vmatprep.subr.mxu0 0.0
      %394 = vmatpush1.msra.mxu0 0.0
      %395 = vmatprep.subr.mxu0 0.0
      %396 = vmatpush1.msra.mxu0 0.0
      %397 = vmatprep.subr.mxu0 0.0
      %398 = vmatpush1.msra.mxu0 0.0
      %399 = vmatprep.subr.mxu0 0.0
      %400 = vmatpush1.msra.mxu0 0.0
      %401 = vmatprep.subr.mxu0 0.0
      %402 = vmatpush1.msra.mxu0 0.0
      %403 = vmatprep.mubr.f32.mxu0 0.0
      %404 = vmatmul.mubr.f32.gmra.mrb[0].mxu0 %v328
      %v405 = vpop.f32.mrb[0].mxu0
      %v406 = vadd.f32 %v309, %v405
      %v407 = vpop.f32.mrb[0].mxu0
      %408 = vmatprep.mubr.f32.mxu0 0.0
      %409 = vmatmul.mubr.f32.gmra.mrb[0].mxu0 %v331
      %v410 = vpop.f32.mrb[0].mxu0
      %v411 = vadd.f32 %v314, %v410
      %v412 = vpop.f32.mrb[0].mxu0
      %413 = vmatprep.mubr.f32.mxu0 0.0
      %414 = vmatmul.mubr.f32.gmra.mrb[0].mxu0 %v334
      %v415 = vpop.f32.mrb[0].mxu0
      %v416 = vadd.f32 %v319, %v415
      %v417 = vpop.f32.mrb[0].mxu0
      %418 = vmatprep.mubr.f32.mxu0 0.0
      %419 = vmatmul.mubr.f32.gmra.mrb[0].mxu0 %v337
      %v420 = vpop.f32.mrb[0].mxu0
      %v421 = vadd.f32 %v324, %v420
      %v422 = vpop.f32.mrb[0].mxu0
      %423 = vdwg.mxu0
      %v425 = vlaneseq
      %v426 = vshrl.u32 %v425, 7
      %v427 = vsub.s32 0, %v426
      %v428 = vrot.slane %v211, %v427
      %v430 = vadd.f32 %v406, %v428
      %v431 = vadd.f32 %v411, %v428
      %v432 = vadd.f32 %v416, %v428
      %v433 = vadd.f32 %v421, %v428
      %v434 = vmax.f32 %v430, 0.0
      %v435 = vmax.f32 %v431, 0.0
      %v436 = vmax.f32 %v432, 0.0
      %v437 = vmax.f32 %v433, 0.0
      %v438 = vmin.f32 %v434, 1.0
      %v439 = vmin.f32 %v435, 1.0
      %v440 = vmin.f32 %v436, 1.0
      %v441 = vmin.f32 %v437, 1.0
      %442 = vst.msk [vmem:[%s205] sm:$0xff] %vm229, %v438
      %443 = vst.msk [vmem:[%s205 + $0x8] sm:$0xff] %vm229, %v439
      %444 = vst.msk [vmem:[%s205 + $0x10] sm:$0xff] %vm229, %v440
      %vm445 = vcmask 253952
      %446 = vst.msk [vmem:[%s205 + $0x18] sm:$0x1] %vm445, %v441
      %v447 = vld [vmem:[%s200 + $0x1] sm:$0xff]
      %v448 = vld [vmem:[%s200 + $0x9] sm:$0xff]
      %v449 = vld [vmem:[%s200 + $0x11] sm:$0xff]
      %v450 = vld [vmem:[%s200 + $0x19] sm:$0x1]
      %s451 = scalar_lea.vmem %s1, 32
      %v452 = vld [vmem:[%s451] sm:$0xff]
      %v453 = vld [vmem:[%s451 + $0x8] sm:$0xff]
      %v454 = vld [vmem:[%s451 + $0x10] sm:$0xff]
      %v455 = vld [vmem:[%s451 + $0x18] sm:$0xff]
      %v457 = vsel %vm229, %v447, 0
      %v460 = vsel %vm229, %v448, 0
      %v463 = vsel %vm229, %v449, 0
      %v466 = vsel %vm229, %v450, 0
      %468 = vmatprep.subr.mxu0 0.0
      %469 = vmatpush1.msra.mxu0 %v452
      %470 = vmatprep.subr.mxu0 0.0
      %471 = vmatpush1.msra.mxu0 %v453
      %472 = vmatprep.subr.mxu0 0.0
      %473 = vmatpush1.msra.mxu0 %v454
      %474 = vmatprep.subr.mxu0 0.0
      %475 = vmatpush1.msra.mxu0 %v455
      %476 = vmatprep.subr.mxu0 0.0
      %477 = vmatpush1.msra.mxu0 0.0
      %478 = vmatprep.subr.mxu0 0.0
      %479 = vmatpush1.msra.mxu0 0.0
      %480 = vmatprep.subr.mxu0 0.0
      %481 = vmatpush1.msra.mxu0 0.0
      %482 = vmatprep.subr.mxu0 0.0
      %483 = vmatpush1.msra.mxu0 0.0
      %484 = vmatprep.subr.mxu0 0.0
      %485 = vmatpush1.msra.mxu0 0.0
      %486 = vmatprep.subr.mxu0 0.0
      %487 = vmatpush1.msra.mxu0 0.0
      %488 = vmatprep.subr.mxu0 0.0
      %489 = vmatpush1.msra.mxu0 0.0
      %490 = vmatprep.subr.mxu0 0.0
      %491 = vmatpush1.msra.mxu0 0.0
      %492 = vmatprep.subr.mxu0 0.0
      %493 = vmatpush1.msra.mxu0 0.0
      %494 = vmatprep.subr.mxu0 0.0
      %495 = vmatpush1.msra.mxu0 0.0
      %496 = vmatprep.subr.mxu0 0.0
      %497 = vmatpush1.msra.mxu0 0.0
      %498 = vmatprep.subr.mxu0 0.0
      %499 = vmatpush1.msra.mxu0 0.0
      %500 = vmatprep.subr.mxu0 0.0
      %501 = vmatpush1.msra.mxu0 0.0
      %502 = vmatprep.subr.mxu0 0.0
      %503 = vmatpush1.msra.mxu0 0.0
      %504 = vmatprep.subr.mxu0 0.0
      %505 = vmatpush1.msra.mxu0 0.0
      %506 = vmatprep.subr.mxu0 0.0
      %507 = vmatpush1.msra.mxu0 0.0
      %508 = vmatprep.subr.mxu0 0.0
      %509 = vmatpush1.msra.mxu0 0.0
      %510 = vmatprep.subr.mxu0 0.0
      %511 = vmatpush1.msra.mxu0 0.0
      %512 = vmatprep.subr.mxu0 0.0
      %513 = vmatpush1.msra.mxu0 0.0
      %514 = vmatprep.subr.mxu0 0.0
      %515 = vmatpush1.msra.mxu0 0.0
      %516 = vmatprep.subr.mxu0 0.0
      %517 = vmatpush1.msra.mxu0 0.0
      %518 = vmatprep.subr.mxu0 0.0
      %519 = vmatpush1.msra.mxu0 0.0
      %520 = vmatprep.subr.mxu0 0.0
      %521 = vmatpush1.msra.mxu0 0.0
      %522 = vmatprep.subr.mxu0 0.0
      %523 = vmatpush1.msra.mxu0 0.0
      %524 = vmatprep.subr.mxu0 0.0
      %525 = vmatpush1.msra.mxu0 0.0
      %526 = vmatprep.subr.mxu0 0.0
      %527 = vmatpush1.msra.mxu0 0.0
      %528 = vmatprep.subr.mxu0 0.0
      %529 = vmatpush1.msra.mxu0 0.0
      %530 = vmatprep.subr.mxu0 0.0
      %531 = vmatpush1.msra.mxu0 0.0
      %532 = vmatprep.mubr.f32.mxu0 0.0
      %533 = vmatmul.mubr.f32.gmra.mrb[0].mxu0 %v457
      %v534 = vpop.f32.mrb[0].mxu0
      %v535 = vadd.f32 %v428, %v534
      %v536 = vpop.f32.mrb[0].mxu0
      %537 = vmatprep.mubr.f32.mxu0 0.0
      %538 = vmatmul.mubr.f32.gmra.mrb[0].mxu0 %v460
      %v539 = vpop.f32.mrb[0].mxu0
      %v540 = vadd.f32 %v428, %v539
      %v541 = vpop.f32.mrb[0].mxu0
      %542 = vmatprep.mubr.f32.mxu0 0.0
      %543 = vmatmul.mubr.f32.gmra.mrb[0].mxu0 %v463
      %v544 = vpop.f32.mrb[0].mxu0
      %v545 = vadd.f32 %v428, %v544
      %v546 = vpop.f32.mrb[0].mxu0
      %547 = vmatprep.mubr.f32.mxu0 0.0
      %548 = vmatmul.mubr.f32.gmra.mrb[0].mxu0 %v466
      %v549 = vpop.f32.mrb[0].mxu0
      %v550 = vadd.f32 %v428, %v549
      %v551 = vpop.f32.mrb[0].mxu0
      %552 = vdwg.mxu0
      %v553 = vmax.f32 %v535, 0.0
      %v554 = vmax.f32 %v540, 0.0
      %v555 = vmax.f32 %v545, 0.0
      %v556 = vmax.f32 %v550, 0.0
      %v557 = vmin.f32 %v553, 1.0
      %v558 = vmin.f32 %v554, 1.0
      %v559 = vmin.f32 %v555, 1.0
      %v560 = vmin.f32 %v556, 1.0
      %561 = vst.msk [vmem:[%s210] sm:$0xff] %vm229, %v557
      %562 = vst.msk [vmem:[%s210 + $0x8] sm:$0xff] %vm229, %v558
      %563 = vst.msk [vmem:[%s210 + $0x10] sm:$0xff] %vm229, %v559
      %564 = vst.msk [vmem:[%s210 + $0x18] sm:$0x1] %vm445, %v560
      %p565 = scmp.lt.s32.totalorder %s16, 1
      %s566 = scalar_select %p565, %s16, 1
      %s567 = smul.addr %s566, 4
      %s568 = smul.addr %s567, 8
      %s569 = scalar_lea.vmem %s3, %s568
      %p570 = scmp.lt.s32.totalorder %s16, 1
      %s571 = scalar_select %p570, %s16, 1
      %s572 = smul.addr %s571, 4
      %s573 = smul.addr %s572, 8
      %s574 = scalar_lea.vmem %s4, %s573
      // Predicated region
      $region33: #{emg_model2_forward.20} parent=31 // pred_check
        %p575 = pneg %p102
      $region34: #{emg_model2_forward.20} parent=31 // pred_check_branch
        %577 = sbr.rel (%p575) target = $region36
      $region35: #{emg_model2_forward.20} parent=31 // pred_region
        _
      $region36: #{emg_model2_forward.20} parent=31 // pred_fallthru
        _
      // Predicated region
      $region37: #{emg_model2_forward.20} parent=31 // pred_check
        %p578 = pneg %p128
      $region38: #{emg_model2_forward.20} parent=31 // pred_check_branch
        %580 = sbr.rel (%p578) target = $region40
      $region39: #{emg_model2_forward.20} parent=31 // pred_region
        _
      $region40: #{emg_model2_forward.20} parent=31 // pred_fallthru
        _
    $region32: #{emg_model2_forward.20} parent=5 // pred_fallthru
      _
    %p581 = scmp.le.s32.totalorder 2, %s11
    // Predicated region
    $region41: #{emg_model2_forward.20} parent=5 // pred_check
      %p582 = pneg %p581
    $region42: #{emg_model2_forward.20} parent=5 // pred_check_branch
      %584 = sbr.rel (%p582) target = $region44
    $region43: #{emg_model2_forward.20} parent=5 // pred_region
      %s585 = ssub.s32 %s11, 2
      // Predicated region
      $region45: #{emg_model2_forward.20} parent=43 // pred_check
        %p586 = pneg %p108
      $region46: #{emg_model2_forward.20} parent=43 // pred_check_branch
        %588 = sbr.rel (%p586) target = $region48
      $region47: #{emg_model2_forward.20} parent=43 // pred_region
        %p589 = scmp.lt.s32.totalorder %s17, 1
        %s590 = scalar_select %p589, %s17, 1
        %s591 = smul.addr %s590, 4
        %s592 = smul.addr %s591, 8
        %s593 = scalar_lea.vmem %s3, %s592
      $region48: #{emg_model2_forward.20} parent=43 // pred_fallthru
        _
      // Predicated region
      $region49: #{emg_model2_forward.20} parent=43 // pred_check
        %p594 = pneg %p134
      $region50: #{emg_model2_forward.20} parent=43 // pred_check_branch
        %596 = sbr.rel (%p594) target = $region52
      $region51: #{emg_model2_forward.20} parent=43 // pred_region
        %p597 = scmp.lt.s32.totalorder %s17, 1
        %s598 = scalar_select %p597, %s17, 1
        %s599 = smul.addr %s598, 4
        %s600 = smul.addr %s599, 8
        %s601 = scalar_lea.vmem %s4, %s600
      $region52: #{emg_model2_forward.20} parent=43 // pred_fallthru
        _
    $region44: #{emg_model2_forward.20} parent=5 // pred_fallthru
      _
  $region6: #{emg_model2_forward.20} parent=0 // loop_footer
    %s15 = sadd.s32 1, %s11
  $region7: #{emg_model2_forward.20} parent=0 // loop_footer_branch
    %10 = sbr.rel target = $region3
  $region8: #{emg_model2_forward.20} parent=0 // loop_exit
    _

// kernel: emg_model2_forward.21
$region0: #{emg_model2_forward.21}
  #allocation0 [shape = 'u32[]', space=smem, size = 0x4, offset = 0x4, fixed_abs, tag = 'smem constant byte address 0x4 - core index']
  #allocation1 [shape = 'u32[144,128]{1,0:T(1,128)}', space=vmem, size = 0x12000, scoped, tag = 'internal scratch']
  %s0 = inlined_call_operand.vmem [shape: f32[2,54,32], index: 0, kind: input, shape index: {}]
  %s1 = inlined_call_operand.vmem [shape: f32[5,32,10], index: 1, kind: input, shape index: {}]
  %s2 = inlined_call_operand.vmem [shape: f32[1,10], index: 2, kind: input, shape index: {}]
  %s3 = inlined_call_operand.vmem [shape: f32[2,52,10], index: 3, kind: output, shape index: {0}]
  %s4 = inlined_call_operand.vmem [shape: f32[2,52,10], index: 4, kind: output, shape index: {1}]
  %5 = xla_tuple %s3, %s4
  %s6 = sld [smem:[#allocation0]]
  $region53: #{emg_model2_forward.21} parent=0
    _
  %s8 = ssub.s32 1, %s6
  %s9 = scalar_select 0, %s8, %s6
  loop: start=0, step=1, limit=4
  $region2: #{emg_model2_forward.21} parent=0 // loop_pre_header
    _
  $region3: #{emg_model2_forward.21} parent=0 // loop_header
    %s11 = sphi 0, %s15
    %p12 = scmp.ge.s32.totalorder %s11, 4
    %s21 = sphi 0, %s23
    %s24 = sphi 0, %s21
    %s25 = sphi 0, %s24
    %s41 = sphi 0, %s25
    %s45 = sphi 0, %s45
    %s47 = sphi 0, %s45
    %s48 = sphi 0, %s47
    %s62 = sphi 0, %s48
    %s66 = sphi 0, %s66
    %s68 = sphi 0, %s66
    %s69 = sphi 0, %s68
    %s83 = sphi 0, %s69
    %s89 = sphi 0, %s91
    %s92 = sphi 0, %s89
    %s93 = sphi 0, %s92
    %s109 = sphi 0, %s93
    %s115 = sphi 0, %s117
    %s118 = sphi 0, %s115
    %s119 = sphi 0, %s118
    %s135 = sphi 0, %s119
  $region4: #{emg_model2_forward.21} parent=0 // loop_header_branch
    %14 = sbr.rel (%p12) target = $region8
  $region5: #{emg_model2_forward.21} parent=0 // loop_body
    %s16 = ssub.s32 %s11, 1
    %s17 = ssub.s32 %s11, 2
    %s18 = sadd.s32 %s11, 1
    %s19 = ssub.s32 %s11, %s18
    %p20 = scmp.eq.s32.totalorder %s19, 0
    %s22 = sadd.s32 %s21, 1
    %s23 = scalar_select %p20, %s21, %s22
    %p26 = pneg %p20
    %p27 = scmp.eq.s32.totalorder %s11, 1
    %p28 = por %p26, %p27
    %p29 = scmp.ne.s32.totalorder %s21, %s24
    %p30 = scmp.eq.s32.totalorder %s11, 0
    %p31 = por %p29, %p30
    %p32 = scmp.ne.s32.totalorder %s21, %s24
    %p33 = scmp.eq.s32.totalorder %s16, 1
    %p34 = por %p32, %p33
    %p35 = scmp.ne.s32.totalorder %s24, %s25
    %p36 = scmp.eq.s32.totalorder %s16, 0
    %p37 = por %p35, %p36
    %p38 = scmp.ne.s32.totalorder %s24, %s25
    %p39 = scmp.eq.s32.totalorder %s17, 1
    %p40 = por %p38, %p39
    %p42 = scmp.ne.s32.totalorder %s25, %s41
    %p43 = scmp.eq.s32.totalorder %s17, 0
    %p44 = por %p42, %p43
    %s46 = sadd.s32 %s45, 1
    %p49 = scmp.eq.s32.totalorder %s11, 1
    %p50 = scmp.ne.s32.totalorder %s45, %s47
    %p51 = scmp.eq.s32.totalorder %s11, 0
    %p52 = por %p50, %p51
    %p53 = scmp.ne.s32.totalorder %s45, %s47
    %p54 = scmp.eq.s32.totalorder %s16, 1
    %p55 = por %p53, %p54
    %p56 = scmp.ne.s32.totalorder %s47, %s48
    %p57 = scmp.eq.s32.totalorder %s16, 0
    %p58 = por %p56, %p57
    %p59 = scmp.ne.s32.totalorder %s47, %s48
    %p60 = scmp.eq.s32.totalorder %s17, 1
    %p61 = por %p59, %p60
    %p63 = scmp.ne.s32.totalorder %s48, %s62
    %p64 = scmp.eq.s32.totalorder %s17, 0
    %p65 = por %p63, %p64
    %s67 = sadd.s32 %s66, 1
    %p70 = scmp.eq.s32.totalorder %s11, 1
    %p71 = scmp.ne.s32.totalorder %s66, %s68
    %p72 = scmp.eq.s32.totalorder %s11, 0
    %p73 = por %p71, %p72
    %p74 = scmp.ne.s32.totalorder %s66, %s68
    %p75 = scmp.eq.s32.totalorder %s16, 1
    %p76 = por %p74, %p75
    %p77 = scmp.ne.s32.totalorder %s68, %s69
    %p78 = scmp.eq.s32.totalorder %s16, 0
    %p79 = por %p77, %p78
    %p80 = scmp.ne.s32.totalorder %s68, %s69
    %p81 = scmp.eq.s32.totalorder %s17, 1
    %p82 = por %p80, %p81
    %p84 = scmp.ne.s32.totalorder %s69, %s83
    %p85 = scmp.eq.s32.totalorder %s17, 0
    %p86 = por %p84, %p85
    %s87 = ssub.s32 %s11, %s18
    %p88 = scmp.eq.s32.totalorder %s87, 0
    %s90 = sadd.s32 %s89, 1
    %s91 = scalar_select %p88, %s89, %s90
    %p94 = pneg %p88
    %p95 = scmp.eq.s32.totalorder %s11, 1
    %p96 = por %p94, %p95
    %p97 = scmp.ne.s32.totalorder %s89, %s92
    %p98 = scmp.eq.s32.totalorder %s11, 0
    %p99 = por %p97, %p98
    %p100 = scmp.ne.s32.totalorder %s89, %s92
    %p101 = scmp.eq.s32.totalorder %s16, 1
    %p102 = por %p100, %p101
    %p103 = scmp.ne.s32.totalorder %s92, %s93
    %p104 = scmp.eq.s32.totalorder %s16, 0
    %p105 = por %p103, %p104
    %p106 = scmp.ne.s32.totalorder %s92, %s93
    %p107 = scmp.eq.s32.totalorder %s17, 1
    %p108 = por %p106, %p107
    %p110 = scmp.ne.s32.totalorder %s93, %s109
    %p111 = scmp.eq.s32.totalorder %s17, 0
    %p112 = por %p110, %p111
    %s113 = ssub.s32 %s11, %s18
    %p114 = scmp.eq.s32.totalorder %s113, 0
    %s116 = sadd.s32 %s115, 1
    %s117 = scalar_select %p114, %s115, %s116
    %p120 = pneg %p114
    %p121 = scmp.eq.s32.totalorder %s11, 1
    %p122 = por %p120, %p121
    %p123 = scmp.ne.s32.totalorder %s115, %s118
    %p124 = scmp.eq.s32.totalorder %s11, 0
    %p125 = por %p123, %p124
    %p126 = scmp.ne.s32.totalorder %s115, %s118
    %p127 = scmp.eq.s32.totalorder %s16, 1
    %p128 = por %p126, %p127
    %p129 = scmp.ne.s32.totalorder %s118, %s119
    %p130 = scmp.eq.s32.totalorder %s16, 0
    %p131 = por %p129, %p130
    %p132 = scmp.ne.s32.totalorder %s118, %s119
    %p133 = scmp.eq.s32.totalorder %s17, 1
    %p134 = por %p132, %p133
    %p136 = scmp.ne.s32.totalorder %s119, %s135
    %p137 = scmp.eq.s32.totalorder %s17, 0
    %p138 = por %p136, %p137
    %p139 = scmp.le.s32.totalorder 1, %s11
    %p140 = scmp.lt.s32.totalorder %s11, 3
    %p141 = pnand %p139, %p140
    %p142 = pneg %p141
    // Predicated region
    $region9: #{emg_model2_forward.21} parent=5 // pred_check
      _
    $region10: #{emg_model2_forward.21} parent=5 // pred_check_branch
      %144 = sbr.rel (%p141) target = $region12
    $region11: #{emg_model2_forward.21} parent=5 // pred_region
      %s145 = ssub.s32 %s11, 1
      // Predicated region
      $region13: #{emg_model2_forward.21} parent=11 // pred_check
        %p146 = pneg %p58
      $region14: #{emg_model2_forward.21} parent=11 // pred_check_branch
        %148 = sbr.rel (%p146) target = $region16
      $region15: #{emg_model2_forward.21} parent=11 // pred_region
        _
      $region16: #{emg_model2_forward.21} parent=11 // pred_fallthru
        _
      // Predicated region
      $region17: #{emg_model2_forward.21} parent=11 // pred_check
        %p149 = pneg %p79
      $region18: #{emg_model2_forward.21} parent=11 // pred_check_branch
        %151 = sbr.rel (%p149) target = $region20
      $region19: #{emg_model2_forward.21} parent=11 // pred_region
        _
      $region20: #{emg_model2_forward.21} parent=11 // pred_fallthru
        _
    $region12: #{emg_model2_forward.21} parent=5 // pred_fallthru
      _
    %p152 = scmp.lt.s32.totalorder %s11, 2
    // Predicated region
    $region21: #{emg_model2_forward.21} parent=5 // pred_check
      %p153 = pneg %p152
    $region22: #{emg_model2_forward.21} parent=5 // pred_check_branch
      %155 = sbr.rel (%p153) target = $region24
    $region23: #{emg_model2_forward.21} parent=5 // pred_region
      // Predicated region
      $region25: #{emg_model2_forward.21} parent=23 // pred_check
        %p156 = pneg %p31
      $region26: #{emg_model2_forward.21} parent=23 // pred_check_branch
        %158 = sbr.rel (%p156) target = $region28
      $region27: #{emg_model2_forward.21} parent=23 // pred_region
        %p159 = scmp.lt.s32.totalorder %s11, 1
        %s160 = scalar_select %p159, %s11, 1
        %s161 = smul.addr %s160, 7
        %s162 = smul.addr %s161, 8
        %s163 = scalar_lea.vmem %s0, %s162
      $region28: #{emg_model2_forward.21} parent=23 // pred_fallthru
        _
    $region24: #{emg_model2_forward.21} parent=5 // pred_fallthru
      _
    %p164 = scmp.le.s32.totalorder 1, %s11
    %p165 = scmp.lt.s32.totalorder %s11, 3
    %p166 = pnand %p164, %p165
    %p167 = pneg %p166
    // Predicated region
    $region29: #{emg_model2_forward.21} parent=5 // pred_check
      _
    $region30: #{emg_model2_forward.21} parent=5 // pred_check_branch
      %169 = sbr.rel (%p166) target = $region32
    $region31: #{emg_model2_forward.21} parent=5 // pred_region
      %s170 = ssub.s32 %s11, 1
      %p171 = scmp.lt.s32.totalorder %s16, 1
      %s172 = scalar_select %p171, %s16, 1
      %s173 = smul.addr %s172, 7
      %s174 = smul.addr %s173, 8
      %s175 = scalar_lea.vmem %s0, %s174
      %p176 = pneg %p37
      %p177 = pneg %p34
      %p178 = pneg %p58
      %p179 = pneg %p55
      %p180 = pneg %p79
      %p181 = pneg %p76
      %p182 = pneg %p105
      %p183 = pneg %p102
      %p184 = scmp.lt.s32.totalorder %s16, 1
      %s185 = scalar_select %p184, %s16, 1
      %s186 = smul.addr %s185, 7
      %s187 = smul.addr %s186, 8
      %s188 = scalar_lea.vmem %s3, %s187
      %p189 = pneg %p131
      %p190 = pneg %p128
      %p191 = scmp.lt.s32.totalorder %s16, 1
      %s192 = scalar_select %p191, %s16, 1
      %s193 = smul.addr %s192, 7
      %s194 = smul.addr %s193, 8
      %s195 = scalar_lea.vmem %s4, %s194
      %p196 = scmp.lt.s32.totalorder %s16, 1
      %s197 = scalar_select %p196, %s16, 1
      %s198 = smul.addr %s197, 7
      %s199 = smul.addr %s198, 8
      %s200 = scalar_lea.vmem %s0, %s199
      %p201 = scmp.lt.s32.totalorder %s16, 1
      %s202 = scalar_select %p201, %s16, 1
      %s203 = smul.addr %s202, 7
      %s204 = smul.addr %s203, 8
      %s205 = scalar_lea.vmem %s3, %s204
      %p206 = scmp.lt.s32.totalorder %s16, 1
      %s207 = scalar_select %p206, %s16, 1
      %s208 = smul.addr %s207, 7
      %s209 = smul.addr %s208, 8
      %s210 = scalar_lea.vmem %s4, %s209
      %v211 = vld [vmem:[%s2] sm:$0x1]
      %v212 = vld [vmem:[%s200 + $0x2] sm:$0xff]
      %v213 = vld [vmem:[%s200 + $0xa] sm:$0xff]
      %v214 = vld [vmem:[%s200 + $0x12] sm:$0xff]
      %v215 = vld [vmem:[%s200 + $0x1a] sm:$0xff]
      %v216 = vld [vmem:[%s200 + $0x22] sm:$0xff]
      %v217 = vld [vmem:[%s200 + $0x2a] sm:$0xff]
      %v218 = vld [vmem:[%s200 + $0x32] sm:$0xf]
      %v219 = vld [vmem:[%s1] sm:$0xff]
      %v220 = vld [vmem:[%s1 + $0x8] sm:$0xff]
      %v221 = vld [vmem:[%s1 + $0x10] sm:$0xff]
      %v222 = vld [vmem:[%s1 + $0x18] sm:$0xff]
      %v223 = vld [vmem:[%s200 + $0x1] sm:$0xff]
      %v224 = vld [vmem:[%s200 + $0x9] sm:$0xff]
      %v225 = vld [vmem:[%s200 + $0x11] sm:$0xff]
      %v226 = vld [vmem:[%s200 + $0x19] sm:$0xff]
      %v227 = vld [vmem:[%s200 + $0x21] sm:$0xff]
      %v228 = vld [vmem:[%s200 + $0x29] sm:$0xff]
      %v229 = vld [vmem:[%s200 + $0x31] sm:$0xf]
      %s230 = scalar_lea.vmem %s1, 64
      %v231 = vld [vmem:[%s230] sm:$0xff]
      %v232 = vld [vmem:[%s230 + $0x8] sm:$0xff]
      %v233 = vld [vmem:[%s230 + $0x10] sm:$0xff]
      %v234 = vld [vmem:[%s230 + $0x18] sm:$0xff]
      %vm235 = vcmask 261120
      %v237 = vsel %vm235, %v223, 0
      %v240 = vsel %vm235, %v224, 0
      %v243 = vsel %vm235, %v225, 0
      %v246 = vsel %vm235, %v226, 0
      %v249 = vsel %vm235, %v227, 0
      %v252 = vsel %vm235, %v228, 0
      %v255 = vsel %vm235, %v229, 0
      %257 = vmatprep.subr.mxu0 0.0
      %258 = vmatpush1.msra.mxu0 %v231
      %259 = vmatprep.subr.mxu0 0.0
      %260 = vmatpush1.msra.mxu0 %v232
      %261 = vmatprep.subr.mxu0 0.0
      %262 = vmatpush1.msra.mxu0 %v233
      %263 = vmatprep.subr.mxu0 0.0
      %264 = vmatpush1.msra.mxu0 %v234
      %265 = vmatprep.subr.mxu0 0.0
      %266 = vmatpush1.msra.mxu0 0.0
      %267 = vmatprep.subr.mxu0 0.0
      %268 = vmatpush1.msra.mxu0 0.0
      %269 = vmatprep.subr.mxu0 0.0
      %270 = vmatpush1.msra.mxu0 0.0
      %271 = vmatprep.subr.mxu0 0.0
      %272 = vmatpush1.msra.mxu0 0.0
      %273 = vmatprep.subr.mxu0 0.0
      %274 = vmatpush1.msra.mxu0 0.0
      %275 = vmatprep.subr.mxu0 0.0
      %276 = vmatpush1.msra.mxu0 0.0
      %277 = vmatprep.subr.mxu0 0.0
      %278 = vmatpush1.msra.mxu0 0.0
      %279 = vmatprep.subr.mxu0 0.0
      %280 = vmatpush1.msra.mxu0 0.0
      %281 = vmatprep.subr.mxu0 0.0
      %282 = vmatpush1.msra.mxu0 0.0
      %283 = vmatprep.subr.mxu0 0.0
      %284 = vmatpush1.msra.mxu0 0.0
      %285 = vmatprep.subr.mxu0 0.0
      %286 = vmatpush1.msra.mxu0 0.0
      %287 = vmatprep.subr.mxu0 0.0
      %288 = vmatpush1.msra.mxu0 0.0
      %289 = vmatprep.subr.mxu0 0.0
      %290 = vmatpush1.msra.mxu0 0.0
      %291 = vmatprep.subr.mxu0 0.0
      %292 = vmatpush1.msra.mxu0 0.0
      %293 = vmatprep.subr.mxu0 0.0
      %294 = vmatpush1.msra.mxu0 0.0
      %295 = vmatprep.subr.mxu0 0.0
      %296 = vmatpush1.msra.mxu0 0.0
      %297 = vmatprep.subr.mxu0 0.0
      %298 = vmatpush1.msra.mxu0 0.0
      %299 = vmatprep.subr.mxu0 0.0
      %300 = vmatpush1.msra.mxu0 0.0
      %301 = vmatprep.subr.mxu0 0.0
      %302 = vmatpush1.msra.mxu0 0.0
      %303 = vmatprep.subr.mxu0 0.0
      %304 = vmatpush1.msra.mxu0 0.0
      %305 = vmatprep.subr.mxu0 0.0
      %306 = vmatpush1.msra.mxu0 0.0
      %307 = vmatprep.subr.mxu0 0.0
      %308 = vmatpush1.msra.mxu0 0.0
      %309 = vmatprep.subr.mxu0 0.0
      %310 = vmatpush1.msra.mxu0 0.0
      %311 = vmatprep.subr.mxu0 0.0
      %312 = vmatpush1.msra.mxu0 0.0
      %313 = vmatprep.subr.mxu0 0.0
      %314 = vmatpush1.msra.mxu0 0.0
      %315 = vmatprep.subr.mxu0 0.0
      %316 = vmatpush1.msra.mxu0 0.0
      %317 = vmatprep.subr.mxu0 0.0
      %318 = vmatpush1.msra.mxu0 0.0
      %319 = vmatprep.subr.mxu0 0.0
      %320 = vmatpush1.msra.mxu0 0.0
      %321 = vmatprep.mubr.f32.mxu0 0.0
      %322 = vmatmul.mubr.f32.gmra.mrb[0].mxu0 %v237
      %v323 = vpop.f32.mrb[0].mxu0
      %v324 = vadd.f32 0.0, %v323
      %v325 = vpop.f32.mrb[0].mxu0
      %326 = vmatprep.mubr.f32.mxu0 0.0
      %327 = vmatmul.mubr.f32.gmra.mrb[0].mxu0 %v240
      %v328 = vpop.f32.mrb[0].mxu0
      %v329 = vadd.f32 0.0, %v328
      %v330 = vpop.f32.mrb[0].mxu0
      %331 = vmatprep.mubr.f32.mxu0 0.0
      %332 = vmatmul.mubr.f32.gmra.mrb[0].mxu0 %v243
      %v333 = vpop.f32.mrb[0].mxu0
      %v334 = vadd.f32 0.0, %v333
      %v335 = vpop.f32.mrb[0].mxu0
      %336 = vmatprep.mubr.f32.mxu0 0.0
      %337 = vmatmul.mubr.f32.gmra.mrb[0].mxu0 %v246
      %v338 = vpop.f32.mrb[0].mxu0
      %v339 = vadd.f32 0.0, %v338
      %v340 = vpop.f32.mrb[0].mxu0
      %341 = vmatprep.mubr.f32.mxu0 0.0
      %342 = vmatmul.mubr.f32.gmra.mrb[0].mxu0 %v249
      %v343 = vpop.f32.mrb[0].mxu0
      %v344 = vadd.f32 0.0, %v343
      %v345 = vpop.f32.mrb[0].mxu0
      %346 = vmatprep.mubr.f32.mxu0 0.0
      %347 = vmatmul.mubr.f32.gmra.mrb[0].mxu0 %v252
      %v348 = vpop.f32.mrb[0].mxu0
      %v349 = vadd.f32 0.0, %v348
      %v350 = vpop.f32.mrb[0].mxu0
      %351 = vmatprep.mubr.f32.mxu0 0.0
      %352 = vmatmul.mubr.f32.gmra.mrb[0].mxu0 %v255
      %v353 = vpop.f32.mrb[0].mxu0
      %v354 = vadd.f32 0.0, %v353
      %v355 = vpop.f32.mrb[0].mxu0
      %356 = vdwg.mxu0
      %v358 = vsel %vm235, %v212, 0
      %v361 = vsel %vm235, %v213, 0
      %v364 = vsel %vm235, %v214, 0
      %v367 = vsel %vm235, %v215, 0
      %v370 = vsel %vm235, %v216, 0
      %v373 = vsel %vm235, %v217, 0
      %v376 = vsel %vm235, %v218, 0
      %378 = vmatprep.subr.mxu0 0.0
      %379 = vmatpush1.msra.mxu0 %v219
      %380 = vmatprep.subr.mxu0 0.0
      %381 = vmatpush1.msra.mxu0 %v220
      %382 = vmatprep.subr.mxu0 0.0
      %383 = vmatpush1.msra.mxu0 %v221
      %384 = vmatprep.subr.mxu0 0.0
      %385 = vmatpush1.msra.mxu0 %v222
      %386 = vmatprep.subr.mxu0 0.0
      %387 = vmatpush1.msra.mxu0 0.0
      %388 = vmatprep.subr.mxu0 0.0
      %389 = vmatpush1.msra.mxu0 0.0
      %390 = vmatprep.subr.mxu0 0.0
      %391 = vmatpush1.msra.mxu0 0.0
      %392 = vmatprep.subr.mxu0 0.0
      %393 = vmatpush1.msra.mxu0 0.0
      %394 = vmatprep.subr.mxu0 0.0
      %395 = vmatpush1.msra.mxu0 0.0
      %396 = vmatprep.subr.mxu0 0.0
      %397 = vmatpush1.msra.mxu0 0.0
      %398 = vmatprep.subr.mxu0 0.0
      %399 = vmatpush1.msra.mxu0 0.0
      %400 = vmatprep.subr.mxu0 0.0
      %401 = vmatpush1.msra.mxu0 0.0
      %402 = vmatprep.subr.mxu0 0.0
      %403 = vmatpush1.msra.mxu0 0.0
      %404 = vmatprep.subr.mxu0 0.0
      %405 = vmatpush1.msra.mxu0 0.0
      %406 = vmatprep.subr.mxu0 0.0
      %407 = vmatpush1.msra.mxu0 0.0
      %408 = vmatprep.subr.mxu0 0.0
      %409 = vmatpush1.msra.mxu0 0.0
      %410 = vmatprep.subr.mxu0 0.0
      %411 = vmatpush1.msra.mxu0 0.0
      %412 = vmatprep.subr.mxu0 0.0
      %413 = vmatpush1.msra.mxu0 0.0
      %414 = vmatprep.subr.mxu0 0.0
      %415 = vmatpush1.msra.mxu0 0.0
      %416 = vmatprep.subr.mxu0 0.0
      %417 = vmatpush1.msra.mxu0 0.0
      %418 = vmatprep.subr.mxu0 0.0
      %419 = vmatpush1.msra.mxu0 0.0
      %420 = vmatprep.subr.mxu0 0.0
      %421 = vmatpush1.msra.mxu0 0.0
      %422 = vmatprep.subr.mxu0 0.0
      %423 = vmatpush1.msra.mxu0 0.0
      %424 = vmatprep.subr.mxu0 0.0
      %425 = vmatpush1.msra.mxu0 0.0
      %426 = vmatprep.subr.mxu0 0.0
      %427 = vmatpush1.msra.mxu0 0.0
      %428 = vmatprep.subr.mxu0 0.0
      %429 = vmatpush1.msra.mxu0 0.0
      %430 = vmatprep.subr.mxu0 0.0
      %431 = vmatpush1.msra.mxu0 0.0
      %432 = vmatprep.subr.mxu0 0.0
      %433 = vmatpush1.msra.mxu0 0.0
      %434 = vmatprep.subr.mxu0 0.0
      %435 = vmatpush1.msra.mxu0 0.0
      %436 = vmatprep.subr.mxu0 0.0
      %437 = vmatpush1.msra.mxu0 0.0
      %438 = vmatprep.subr.mxu0 0.0
      %439 = vmatpush1.msra.mxu0 0.0
      %440 = vmatprep.subr.mxu0 0.0
      %441 = vmatpush1.msra.mxu0 0.0
      %442 = vmatprep.mubr.f32.mxu0 0.0
      %443 = vmatmul.mubr.f32.gmra.mrb[0].mxu0 %v358
      %v444 = vpop.f32.mrb[0].mxu0
      %v445 = vadd.f32 %v324, %v444
      %v446 = vpop.f32.mrb[0].mxu0
      %447 = vmatprep.mubr.f32.mxu0 0.0
      %448 = vmatmul.mubr.f32.gmra.mrb[0].mxu0 %v361
      %v449 = vpop.f32.mrb[0].mxu0
      %v450 = vadd.f32 %v329, %v449
      %v451 = vpop.f32.mrb[0].mxu0
      %452 = vmatprep.mubr.f32.mxu0 0.0
      %453 = vmatmul.mubr.f32.gmra.mrb[0].mxu0 %v364
      %v454 = vpop.f32.mrb[0].mxu0
      %v455 = vadd.f32 %v334, %v454
      %v456 = vpop.f32.mrb[0].mxu0
      %457 = vmatprep.mubr.f32.mxu0 0.0
      %458 = vmatmul.mubr.f32.gmra.mrb[0].mxu0 %v367
      %v459 = vpop.f32.mrb[0].mxu0
      %v460 = vadd.f32 %v339, %v459
      %v461 = vpop.f32.mrb[0].mxu0
      %462 = vmatprep.mubr.f32.mxu0 0.0
      %463 = vmatmul.mubr.f32.gmra.mrb[0].mxu0 %v370
      %v464 = vpop.f32.mrb[0].mxu0
      %v465 = vadd.f32 %v344, %v464
      %v466 = vpop.f32.mrb[0].mxu0
      %467 = vmatprep.mubr.f32.mxu0 0.0
      %468 = vmatmul.mubr.f32.gmra.mrb[0].mxu0 %v373
      %v469 = vpop.f32.mrb[0].mxu0
      %v470 = vadd.f32 %v349, %v469
      %v471 = vpop.f32.mrb[0].mxu0
      %472 = vmatprep.mubr.f32.mxu0 0.0
      %473 = vmatmul.mubr.f32.gmra.mrb[0].mxu0 %v376
      %v474 = vpop.f32.mrb[0].mxu0
      %v475 = vadd.f32 %v354, %v474
      %v476 = vpop.f32.mrb[0].mxu0
      %477 = vdwg.mxu0
      %v478 = vld [vmem:[%s200] sm:$0xff]
      %v479 = vld [vmem:[%s200 + $0x8] sm:$0xff]
      %v480 = vld [vmem:[%s200 + $0x10] sm:$0xff]
      %v481 = vld [vmem:[%s200 + $0x18] sm:$0xff]
      %v482 = vld [vmem:[%s200 + $0x20] sm:$0xff]
      %v483 = vld [vmem:[%s200 + $0x28] sm:$0xff]
      %v484 = vld [vmem:[%s200 + $0x30] sm:$0xf]
      %s485 = scalar_lea.vmem %s1, 128
      %v486 = vld [vmem:[%s485] sm:$0xff]
      %v487 = vld [vmem:[%s485 + $0x8] sm:$0xff]
      %v488 = vld [vmem:[%s485 + $0x10] sm:$0xff]
      %v489 = vld [vmem:[%s485 + $0x18] sm:$0xff]
      %v491 = vsel %vm235, %v478, 0
      %v494 = vsel %vm235, %v479, 0
      %v497 = vsel %vm235, %v480, 0
      %v500 = vsel %vm235, %v481, 0
      %v503 = vsel %vm235, %v482, 0
      %v506 = vsel %vm235, %v483, 0
      %v509 = vsel %vm235, %v484, 0
      %511 = vmatprep.subr.mxu0 0.0
      %512 = vmatpush1.msra.mxu0 %v486
      %513 = vmatprep.subr.mxu0 0.0
      %514 = vmatpush1.msra.mxu0 %v487
      %515 = vmatprep.subr.mxu0 0.0
      %516 = vmatpush1.msra.mxu0 %v488
      %517 = vmatprep.subr.mxu0 0.0
      %518 = vmatpush1.msra.mxu0 %v489
      %519 = vmatprep.subr.mxu0 0.0
      %520 = vmatpush1.msra.mxu0 0.0
      %521 = vmatprep.subr.mxu0 0.0
      %522 = vmatpush1.msra.mxu0 0.0
      %523 = vmatprep.subr.mxu0 0.0
      %524 = vmatpush1.msra.mxu0 0.0
      %525 = vmatprep.subr.mxu0 0.0
      %526 = vmatpush1.msra.mxu0 0.0
      %527 = vmatprep.subr.mxu0 0.0
      %528 = vmatpush1.msra.mxu0 0.0
      %529 = vmatprep.subr.mxu0 0.0
      %530 = vmatpush1.msra.mxu0 0.0
      %531 = vmatprep.subr.mxu0 0.0
      %532 = vmatpush1.msra.mxu0 0.0
      %533 = vmatprep.subr.mxu0 0.0
      %534 = vmatpush1.msra.mxu0 0.0
      %535 = vmatprep.subr.mxu0 0.0
      %536 = vmatpush1.msra.mxu0 0.0
      %537 = vmatprep.subr.mxu0 0.0
      %538 = vmatpush1.msra.mxu0 0.0
      %539 = vmatprep.subr.mxu0 0.0
      %540 = vmatpush1.msra.mxu0 0.0
      %541 = vmatprep.subr.mxu0 0.0
      %542 = vmatpush1.msra.mxu0 0.0
      %543 = vmatprep.subr.mxu0 0.0
      %544 = vmatpush1.msra.mxu0 0.0
      %545 = vmatprep.subr.mxu0 0.0
      %546 = vmatpush1.msra.mxu0 0.0
      %547 = vmatprep.subr.mxu0 0.0
      %548 = vmatpush1.msra.mxu0 0.0
      %549 = vmatprep.subr.mxu0 0.0
      %550 = vmatpush1.msra.mxu0 0.0
      %551 = vmatprep.subr.mxu0 0.0
      %552 = vmatpush1.msra.mxu0 0.0
      %553 = vmatprep.subr.mxu0 0.0
      %554 = vmatpush1.msra.mxu0 0.0
      %555 = vmatprep.subr.mxu0 0.0
      %556 = vmatpush1.msra.mxu0 0.0
      %557 = vmatprep.subr.mxu0 0.0
      %558 = vmatpush1.msra.mxu0 0.0
      %559 = vmatprep.subr.mxu0 0.0
      %560 = vmatpush1.msra.mxu0 0.0
      %561 = vmatprep.subr.mxu0 0.0
      %562 = vmatpush1.msra.mxu0 0.0
      %563 = vmatprep.subr.mxu0 0.0
      %564 = vmatpush1.msra.mxu0 0.0
      %565 = vmatprep.subr.mxu0 0.0
      %566 = vmatpush1.msra.mxu0 0.0
      %567 = vmatprep.subr.mxu0 0.0
      %568 = vmatpush1.msra.mxu0 0.0
      %569 = vmatprep.subr.mxu0 0.0
      %570 = vmatpush1.msra.mxu0 0.0
      %571 = vmatprep.subr.mxu0 0.0
      %572 = vmatpush1.msra.mxu0 0.0
      %573 = vmatprep.subr.mxu0 0.0
      %574 = vmatpush1.msra.mxu0 0.0
      %575 = vmatprep.mubr.f32.mxu0 0.0
      %576 = vmatmul.mubr.f32.gmra.mrb[0].mxu0 %v491
      %v577 = vpop.f32.mrb[0].mxu0
      %v578 = vadd.f32 0.0, %v577
      %v579 = vpop.f32.mrb[0].mxu0
      %580 = vmatprep.mubr.f32.mxu0 0.0
      %581 = vmatmul.mubr.f32.gmra.mrb[0].mxu0 %v494
      %v582 = vpop.f32.mrb[0].mxu0
      %v583 = vadd.f32 0.0, %v582
      %v584 = vpop.f32.mrb[0].mxu0
      %585 = vmatprep.mubr.f32.mxu0 0.0
      %586 = vmatmul.mubr.f32.gmra.mrb[0].mxu0 %v497
      %v587 = vpop.f32.mrb[0].mxu0
      %v588 = vadd.f32 0.0, %v587
      %v589 = vpop.f32.mrb[0].mxu0
      %590 = vmatprep.mubr.f32.mxu0 0.0
      %591 = vmatmul.mubr.f32.gmra.mrb[0].mxu0 %v500
      %v592 = vpop.f32.mrb[0].mxu0
      %v593 = vadd.f32 0.0, %v592
      %v594 = vpop.f32.mrb[0].mxu0
      %595 = vmatprep.mubr.f32.mxu0 0.0
      %596 = vmatmul.mubr.f32.gmra.mrb[0].mxu0 %v503
      %v597 = vpop.f32.mrb[0].mxu0
      %v598 = vadd.f32 0.0, %v597
      %v599 = vpop.f32.mrb[0].mxu0
      %600 = vmatprep.mubr.f32.mxu0 0.0
      %601 = vmatmul.mubr.f32.gmra.mrb[0].mxu0 %v506
      %v602 = vpop.f32.mrb[0].mxu0
      %v603 = vadd.f32 0.0, %v602
      %v604 = vpop.f32.mrb[0].mxu0
      %605 = vmatprep.mubr.f32.mxu0 0.0
      %606 = vmatmul.mubr.f32.gmra.mrb[0].mxu0 %v509
      %v607 = vpop.f32.mrb[0].mxu0
      %v608 = vadd.f32 0.0, %v607
      %v609 = vpop.f32.mrb[0].mxu0
      %610 = vdwg.mxu0
      %v611 = vadd.f32 %v445, %v578
      %v612 = vadd.f32 %v450, %v583
      %v613 = vadd.f32 %v455, %v588
      %v614 = vadd.f32 %v460, %v593
      %v615 = vadd.f32 %v465, %v598
      %v616 = vadd.f32 %v470, %v603
      %v617 = vadd.f32 %v475, %v608
      %v619 = vlaneseq
      %v620 = vshrl.u32 %v619, 7
      %v621 = vsub.s32 0, %v620
      %v622 = vrot.slane %v211, %v621
      %v624 = vadd.f32 %v611, %v622
      %v625 = vadd.f32 %v612, %v622
      %v626 = vadd.f32 %v613, %v622
      %v627 = vadd.f32 %v614, %v622
      %v628 = vadd.f32 %v615, %v622
      %v629 = vadd.f32 %v616, %v622
      %v630 = vadd.f32 %v617, %v622
      %v631 = vmax.f32 %v624, 0.0
      %v632 = vmax.f32 %v625, 0.0
      %v633 = vmax.f32 %v626, 0.0
      %v634 = vmax.f32 %v627, 0.0
      %v635 = vmax.f32 %v628, 0.0
      %v636 = vmax.f32 %v629, 0.0
      %v637 = vmax.f32 %v630, 0.0
      %vm638 = vcmask 80896
      %639 = vst.msk [vmem:[%s205] sm:$0xff] %vm638, %v631
      %640 = vst.msk [vmem:[%s205 + $0x8] sm:$0xff] %vm638, %v632
      %641 = vst.msk [vmem:[%s205 + $0x10] sm:$0xff] %vm638, %v633
      %642 = vst.msk [vmem:[%s205 + $0x18] sm:$0xff] %vm638, %v634
      %643 = vst.msk [vmem:[%s205 + $0x20] sm:$0xff] %vm638, %v635
      %644 = vst.msk [vmem:[%s205 + $0x28] sm:$0xff] %vm638, %v636
      %vm645 = vcmask 76800
      %646 = vst.msk [vmem:[%s205 + $0x30] sm:$0xf] %vm645, %v637
      %v647 = vld [vmem:[%s200 + $0x2] sm:$0xff]
      %v648 = vld [vmem:[%s200 + $0xa] sm:$0xff]
      %v649 = vld [vmem:[%s200 + $0x12] sm:$0xff]
      %v650 = vld [vmem:[%s200 + $0x1a] sm:$0xff]
      %v651 = vld [vmem:[%s200 + $0x22] sm:$0xff]
      %v652 = vld [vmem:[%s200 + $0x2a] sm:$0xff]
      %v653 = vld [vmem:[%s200 + $0x32] sm:$0xf]
      %s654 = scalar_lea.vmem %s1, 32
      %v655 = vld [vmem:[%s654] sm:$0xff]
      %v656 = vld [vmem:[%s654 + $0x8] sm:$0xff]
      %v657 = vld [vmem:[%s654 + $0x10] sm:$0xff]
      %v658 = vld [vmem:[%s654 + $0x18] sm:$0xff]
      %v659 = vld [vmem:[%s200 + $0x1] sm:$0xff]
      %v660 = vld [vmem:[%s200 + $0x9] sm:$0xff]
      %v661 = vld [vmem:[%s200 + $0x11] sm:$0xff]
      %v662 = vld [vmem:[%s200 + $0x19] sm:$0xff]
      %v663 = vld [vmem:[%s200 + $0x21] sm:$0xff]
      %v664 = vld [vmem:[%s200 + $0x29] sm:$0xff]
      %v665 = vld [vmem:[%s200 + $0x31] sm:$0xf]
      %s666 = scalar_lea.vmem %s1, 96
      %v667 = vld [vmem:[%s666] sm:$0xff]
      %v668 = vld [vmem:[%s666 + $0x8] sm:$0xff]
      %v669 = vld [vmem:[%s666 + $0x10] sm:$0xff]
      %v670 = vld [vmem:[%s666 + $0x18] sm:$0xff]
      %v672 = vsel %vm235, %v659, 0
      %v675 = vsel %vm235, %v660, 0
      %v678 = vsel %vm235, %v661, 0
      %v681 = vsel %vm235, %v662, 0
      %v684 = vsel %vm235, %v663, 0
      %v687 = vsel %vm235, %v664, 0
      %v690 = vsel %vm235, %v665, 0
      %692 = vmatprep.subr.mxu0 0.0
      %693 = vmatpush1.msra.mxu0 %v667
      %694 = vmatprep.subr.mxu0 0.0
      %695 = vmatpush1.msra.mxu0 %v668
      %696 = vmatprep.subr.mxu0 0.0
      %697 = vmatpush1.msra.mxu0 %v669
      %698 = vmatprep.subr.mxu0 0.0
      %699 = vmatpush1.msra.mxu0 %v670
      %700 = vmatprep.subr.mxu0 0.0
      %701 = vmatpush1.msra.mxu0 0.0
      %702 = vmatprep.subr.mxu0 0.0
      %703 = vmatpush1.msra.mxu0 0.0
      %704 = vmatprep.subr.mxu0 0.0
      %705 = vmatpush1.msra.mxu0 0.0
      %706 = vmatprep.subr.mxu0 0.0
      %707 = vmatpush1.msra.mxu0 0.0
      %708 = vmatprep.subr.mxu0 0.0
      %709 = vmatpush1.msra.mxu0 0.0
      %710 = vmatprep.subr.mxu0 0.0
      %711 = vmatpush1.msra.mxu0 0.0
      %712 = vmatprep.subr.mxu0 0.0
      %713 = vmatpush1.msra.mxu0 0.0
      %714 = vmatprep.subr.mxu0 0.0
      %715 = vmatpush1.msra.mxu0 0.0
      %716 = vmatprep.subr.mxu0 0.0
      %717 = vmatpush1.msra.mxu0 0.0
      %718 = vmatprep.subr.mxu0 0.0
      %719 = vmatpush1.msra.mxu0 0.0
      %720 = vmatprep.subr.mxu0 0.0
      %721 = vmatpush1.msra.mxu0 0.0
      %722 = vmatprep.subr.mxu0 0.0
      %723 = vmatpush1.msra.mxu0 0.0
      %724 = vmatprep.subr.mxu0 0.0
      %725 = vmatpush1.msra.mxu0 0.0
      %726 = vmatprep.subr.mxu0 0.0
      %727 = vmatpush1.msra.mxu0 0.0
      %728 = vmatprep.subr.mxu0 0.0
      %729 = vmatpush1.msra.mxu0 0.0
      %730 = vmatprep.subr.mxu0 0.0
      %731 = vmatpush1.msra.mxu0 0.0
      %732 = vmatprep.subr.mxu0 0.0
      %733 = vmatpush1.msra.mxu0 0.0
      %734 = vmatprep.subr.mxu0 0.0
      %735 = vmatpush1.msra.mxu0 0.0
      %736 = vmatprep.subr.mxu0 0.0
      %737 = vmatpush1.msra.mxu0 0.0
      %738 = vmatprep.subr.mxu0 0.0
      %739 = vmatpush1.msra.mxu0 0.0
      %740 = vmatprep.subr.mxu0 0.0
      %741 = vmatpush1.msra.mxu0 0.0
      %742 = vmatprep.subr.mxu0 0.0
      %743 = vmatpush1.msra.mxu0 0.0
      %744 = vmatprep.subr.mxu0 0.0
      %745 = vmatpush1.msra.mxu0 0.0
      %746 = vmatprep.subr.mxu0 0.0
      %747 = vmatpush1.msra.mxu0 0.0
      %748 = vmatprep.subr.mxu0 0.0
      %749 = vmatpush1.msra.mxu0 0.0
      %750 = vmatprep.subr.mxu0 0.0
      %751 = vmatpush1.msra.mxu0 0.0
      %752 = vmatprep.subr.mxu0 0.0
      %753 = vmatpush1.msra.mxu0 0.0
      %754 = vmatprep.subr.mxu0 0.0
      %755 = vmatpush1.msra.mxu0 0.0
      %756 = vmatprep.mubr.f32.mxu0 0.0
      %757 = vmatmul.mubr.f32.gmra.mrb[0].mxu0 %v672
      %v758 = vpop.f32.mrb[0].mxu0
      %v759 = vadd.f32 0.0, %v758
      %v760 = vpop.f32.mrb[0].mxu0
      %761 = vmatprep.mubr.f32.mxu0 0.0
      %762 = vmatmul.mubr.f32.gmra.mrb[0].mxu0 %v675
      %v763 = vpop.f32.mrb[0].mxu0
      %v764 = vadd.f32 0.0, %v763
      %v765 = vpop.f32.mrb[0].mxu0
      %766 = vmatprep.mubr.f32.mxu0 0.0
      %767 = vmatmul.mubr.f32.gmra.mrb[0].mxu0 %v678
      %v768 = vpop.f32.mrb[0].mxu0
      %v769 = vadd.f32 0.0, %v768
      %v770 = vpop.f32.mrb[0].mxu0
      %771 = vmatprep.mubr.f32.mxu0 0.0
      %772 = vmatmul.mubr.f32.gmra.mrb[0].mxu0 %v681
      %v773 = vpop.f32.mrb[0].mxu0
      %v774 = vadd.f32 0.0, %v773
      %v775 = vpop.f32.mrb[0].mxu0
      %776 = vmatprep.mubr.f32.mxu0 0.0
      %777 = vmatmul.mubr.f32.gmra.mrb[0].mxu0 %v684
      %v778 = vpop.f32.mrb[0].mxu0
      %v779 = vadd.f32 0.0, %v778
      %v780 = vpop.f32.mrb[0].mxu0
      %781 = vmatprep.mubr.f32.mxu0 0.0
      %782 = vmatmul.mubr.f32.gmra.mrb[0].mxu0 %v687
      %v783 = vpop.f32.mrb[0].mxu0
      %v784 = vadd.f32 0.0, %v783
      %v785 = vpop.f32.mrb[0].mxu0
      %786 = vmatprep.mubr.f32.mxu0 0.0
      %787 = vmatmul.mubr.f32.gmra.mrb[0].mxu0 %v690
      %v788 = vpop.f32.mrb[0].mxu0
      %v789 = vadd.f32 0.0, %v788
      %v790 = vpop.f32.mrb[0].mxu0
      %791 = vdwg.mxu0
      %v793 = vsel %vm235, %v647, 0
      %v796 = vsel %vm235, %v648, 0
      %v799 = vsel %vm235, %v649, 0
      %v802 = vsel %vm235, %v650, 0
      %v805 = vsel %vm235, %v651, 0
      %v808 = vsel %vm235, %v652, 0
      %v811 = vsel %vm235, %v653, 0
      %813 = vmatprep.subr.mxu0 0.0
      %814 = vmatpush1.msra.mxu0 %v655
      %815 = vmatprep.subr.mxu0 0.0
      %816 = vmatpush1.msra.mxu0 %v656
      %817 = vmatprep.subr.mxu0 0.0
      %818 = vmatpush1.msra.mxu0 %v657
      %819 = vmatprep.subr.mxu0 0.0
      %820 = vmatpush1.msra.mxu0 %v658
      %821 = vmatprep.subr.mxu0 0.0
      %822 = vmatpush1.msra.mxu0 0.0
      %823 = vmatprep.subr.mxu0 0.0
      %824 = vmatpush1.msra.mxu0 0.0
      %825 = vmatprep.subr.mxu0 0.0
      %826 = vmatpush1.msra.mxu0 0.0
      %827 = vmatprep.subr.mxu0 0.0
      %828 = vmatpush1.msra.mxu0 0.0
      %829 = vmatprep.subr.mxu0 0.0
      %830 = vmatpush1.msra.mxu0 0.0
      %831 = vmatprep.subr.mxu0 0.0
      %832 = vmatpush1.msra.mxu0 0.0
      %833 = vmatprep.subr.mxu0 0.0
      %834 = vmatpush1.msra.mxu0 0.0
      %835 = vmatprep.subr.mxu0 0.0
      %836 = vmatpush1.msra.mxu0 0.0
      %837 = vmatprep.subr.mxu0 0.0
      %838 = vmatpush1.msra.mxu0 0.0
      %839 = vmatprep.subr.mxu0 0.0
      %840 = vmatpush1.msra.mxu0 0.0
      %841 = vmatprep.subr.mxu0 0.0
      %842 = vmatpush1.msra.mxu0 0.0
      %843 = vmatprep.subr.mxu0 0.0
      %844 = vmatpush1.msra.mxu0 0.0
      %845 = vmatprep.subr.mxu0 0.0
      %846 = vmatpush1.msra.mxu0 0.0
      %847 = vmatprep.subr.mxu0 0.0
      %848 = vmatpush1.msra.mxu0 0.0
      %849 = vmatprep.subr.mxu0 0.0
      %850 = vmatpush1.msra.mxu0 0.0
      %851 = vmatprep.subr.mxu0 0.0
      %852 = vmatpush1.msra.mxu0 0.0
      %853 = vmatprep.subr.mxu0 0.0
      %854 = vmatpush1.msra.mxu0 0.0
      %855 = vmatprep.subr.mxu0 0.0
      %856 = vmatpush1.msra.mxu0 0.0
      %857 = vmatprep.subr.mxu0 0.0
      %858 = vmatpush1.msra.mxu0 0.0
      %859 = vmatprep.subr.mxu0 0.0
      %860 = vmatpush1.msra.mxu0 0.0
      %861 = vmatprep.subr.mxu0 0.0
      %862 = vmatpush1.msra.mxu0 0.0
      %863 = vmatprep.subr.mxu0 0.0
      %864 = vmatpush1.msra.mxu0 0.0
      %865 = vmatprep.subr.mxu0 0.0
      %866 = vmatpush1.msra.mxu0 0.0
      %867 = vmatprep.subr.mxu0 0.0
      %868 = vmatpush1.msra.mxu0 0.0
      %869 = vmatprep.subr.mxu0 0.0
      %870 = vmatpush1.msra.mxu0 0.0
      %871 = vmatprep.subr.mxu0 0.0
      %872 = vmatpush1.msra.mxu0 0.0
      %873 = vmatprep.subr.mxu0 0.0
      %874 = vmatpush1.msra.mxu0 0.0
      %875 = vmatprep.subr.mxu0 0.0
      %876 = vmatpush1.msra.mxu0 0.0
      %877 = vmatprep.mubr.f32.mxu0 0.0
      %878 = vmatmul.mubr.f32.gmra.mrb[0].mxu0 %v793
      %v879 = vpop.f32.mrb[0].mxu0
      %v880 = vadd.f32 %v759, %v879
      %v881 = vpop.f32.mrb[0].mxu0
      %882 = vmatprep.mubr.f32.mxu0 0.0
      %883 = vmatmul.mubr.f32.gmra.mrb[0].mxu0 %v796
      %v884 = vpop.f32.mrb[0].mxu0
      %v885 = vadd.f32 %v764, %v884
      %v886 = vpop.f32.mrb[0].mxu0
      %887 = vmatprep.mubr.f32.mxu0 0.0
      %888 = vmatmul.mubr.f32.gmra.mrb[0].mxu0 %v799
      %v889 = vpop.f32.mrb[0].mxu0
      %v890 = vadd.f32 %v769, %v889
      %v891 = vpop.f32.mrb[0].mxu0
      %892 = vmatprep.mubr.f32.mxu0 0.0
      %893 = vmatmul.mubr.f32.gmra.mrb[0].mxu0 %v802
      %v894 = vpop.f32.mrb[0].mxu0
      %v895 = vadd.f32 %v774, %v894
      %v896 = vpop.f32.mrb[0].mxu0
      %897 = vmatprep.mubr.f32.mxu0 0.0
      %898 = vmatmul.mubr.f32.gmra.mrb[0].mxu0 %v805
      %v899 = vpop.f32.mrb[0].mxu0
      %v900 = vadd.f32 %v779, %v899
      %v901 = vpop.f32.mrb[0].mxu0
      %902 = vmatprep.mubr.f32.mxu0 0.0
      %903 = vmatmul.mubr.f32.gmra.mrb[0].mxu0 %v808
      %v904 = vpop.f32.mrb[0].mxu0
      %v905 = vadd.f32 %v784, %v904
      %v906 = vpop.f32.mrb[0].mxu0
      %907 = vmatprep.mubr.f32.mxu0 0.0
      %908 = vmatmul.mubr.f32.gmra.mrb[0].mxu0 %v811
      %v909 = vpop.f32.mrb[0].mxu0
      %v910 = vadd.f32 %v789, %v909
      %v911 = vpop.f32.mrb[0].mxu0
      %912 = vdwg.mxu0
      %v913 = vadd.f32 %v880, %v622
      %v914 = vadd.f32 %v885, %v622
      %v915 = vadd.f32 %v890, %v622
      %v916 = vadd.f32 %v895, %v622
      %v917 = vadd.f32 %v900, %v622
      %v918 = vadd.f32 %v905, %v622
      %v919 = vadd.f32 %v910, %v622
      %v920 = vmax.f32 %v913, 0.0
      %v921 = vmax.f32 %v914, 0.0
      %v922 = vmax.f32 %v915, 0.0
      %v923 = vmax.f32 %v916, 0.0
      %v924 = vmax.f32 %v917, 0.0
      %v925 = vmax.f32 %v918, 0.0
      %v926 = vmax.f32 %v919, 0.0
      %927 = vst.msk [vmem:[%s210] sm:$0xff] %vm638, %v920
      %928 = vst.msk [vmem:[%s210 + $0x8] sm:$0xff] %vm638, %v921
      %929 = vst.msk [vmem:[%s210 + $0x10] sm:$0xff] %vm638, %v922
      %930 = vst.msk [vmem:[%s210 + $0x18] sm:$0xff] %vm638, %v923
      %931 = vst.msk [vmem:[%s210 + $0x20] sm:$0xff] %vm638, %v924
      %932 = vst.msk [vmem:[%s210 + $0x28] sm:$0xff] %vm638, %v925
      %933 = vst.msk [vmem:[%s210 + $0x30] sm:$0xf] %vm645, %v926
      %p934 = scmp.lt.s32.totalorder %s16, 1
      %s935 = scalar_select %p934, %s16, 1
      %s936 = smul.addr %s935, 7
      %s937 = smul.addr %s936, 8
      %s938 = scalar_lea.vmem %s3, %s937
      %p939 = scmp.lt.s32.totalorder %s16, 1
      %s940 = scalar_select %p939, %s16, 1
      %s941 = smul.addr %s940, 7
      %s942 = smul.addr %s941, 8
      %s943 = scalar_lea.vmem %s4, %s942
      // Predicated region
      $region33: #{emg_model2_forward.21} parent=31 // pred_check
        %p944 = pneg %p102
      $region34: #{emg_model2_forward.21} parent=31 // pred_check_branch
        %946 = sbr.rel (%p944) target = $region36
      $region35: #{emg_model2_forward.21} parent=31 // pred_region
        _
      $region36: #{emg_model2_forward.21} parent=31 // pred_fallthru
        _
      // Predicated region
      $region37: #{emg_model2_forward.21} parent=31 // pred_check
        %p947 = pneg %p128
      $region38: #{emg_model2_forward.21} parent=31 // pred_check_branch
        %949 = sbr.rel (%p947) target = $region40
      $region39: #{emg_model2_forward.21} parent=31 // pred_region
        _
      $region40: #{emg_model2_forward.21} parent=31 // pred_fallthru
        _
    $region32: #{emg_model2_forward.21} parent=5 // pred_fallthru
      _
    %p950 = scmp.le.s32.totalorder 2, %s11
    // Predicated region
    $region41: #{emg_model2_forward.21} parent=5 // pred_check
      %p951 = pneg %p950
    $region42: #{emg_model2_forward.21} parent=5 // pred_check_branch
      %953 = sbr.rel (%p951) target = $region44
    $region43: #{emg_model2_forward.21} parent=5 // pred_region
      %s954 = ssub.s32 %s11, 2
      // Predicated region
      $region45: #{emg_model2_forward.21} parent=43 // pred_check
        %p955 = pneg %p108
      $region46: #{emg_model2_forward.21} parent=43 // pred_check_branch
        %957 = sbr.rel (%p955) target = $region48
      $region47: #{emg_model2_forward.21} parent=43 // pred_region
        %p958 = scmp.lt.s32.totalorder %s17, 1
        %s959 = scalar_select %p958, %s17, 1
        %s960 = smul.addr %s959, 7
        %s961 = smul.addr %s960, 8
        %s962 = scalar_lea.vmem %s3, %s961
      $region48: #{emg_model2_forward.21} parent=43 // pred_fallthru
        _
      // Predicated region
      $region49: #{emg_model2_forward.21} parent=43 // pred_check
        %p963 = pneg %p134
      $region50: #{emg_model2_forward.21} parent=43 // pred_check_branch
        %965 = sbr.rel (%p963) target = $region52
      $region51: #{emg_model2_forward.21} parent=43 // pred_region
        %p966 = scmp.lt.s32.totalorder %s17, 1
        %s967 = scalar_select %p966, %s17, 1
        %s968 = smul.addr %s967, 7
        %s969 = smul.addr %s968, 8
        %s970 = scalar_lea.vmem %s4, %s969
      $region52: #{emg_model2_forward.21} parent=43 // pred_fallthru
        _
    $region44: #{emg_model2_forward.21} parent=5 // pred_fallthru
      _
  $region6: #{emg_model2_forward.21} parent=0 // loop_footer
    %s15 = sadd.s32 1, %s11
  $region7: #{emg_model2_forward.21} parent=0 // loop_footer_branch
    %10 = sbr.rel target = $region3
  $region8: #{emg_model2_forward.21} parent=0 // loop_exit
    _

</llo_original>
